<compile_context>
chip_gen: v5e
topology: v5e:2x2
jax: 0.10.0
libtpu: 0.0.40
codegen_flags: <defaults>
</compile_context>

<pallas_src>
import jax
import jax.numpy as jnp
from jax import lax
from jax.experimental import pallas as pl
from jax.experimental.pallas import tpu as pltpu

# Shapes are hard-coded by the torch module's reshapes.
B = 128                      # batch
GROUPS = 2                   # channel groups
C_IN = 12                    # per-group input channels
C_OUT = 48                   # per-group output channels
H1 = 56                      # roll axis
H2 = 56                      # conv (unfold) axis
HW = H1 * H2                 # 3136 (flattened spatial, p = h1*56 + h2)
K = 7                        # conv taps (unfold kernel (7, 1))
PAD = 3                      # unfold zero padding along h2

C_ALL_IN = GROUPS * C_IN     # 24  (both groups stacked)
C_ALL_OUT = GROUPS * C_OUT   # 96
C_PAD = 32                   # per-tap row block in the im2col scratch (24 used + 8 pad)
KC_PAD = K * C_PAD           # 224 padded contraction dim

BB = 8                       # batch elements per grid step -> grid of 16 steps

# TODO(synk): torch picks shift_direction = +/-1 with random.random() at module
# init; fixed to +1 here for determinism.
SHIFT_DIRECTION = 1


def _conv_roll_kernel(x_ref, w_ref, mask_ref, o_ref, cols_ref):
    """One grid step: BB batch elements, both channel groups, all 7 taps fused.

    x_ref:    (BB, 24, HW)   f32   row c = g*12 + j, flattened p = h1*56 + h2
    w_ref:    (96, 224)      bf16  combined weight, block-diagonal over groups;
                                   row = g*48 + i, col = k*32 + g*12 + j
    mask_ref: (K, HW)        f32   per-tap h2 validity mask (conv zero padding)
    o_ref:    (BB, 96, HW)   f32   row = g*48 + i
    cols_ref: (224, HW)      bf16  im2col scratch; rows [k*32+24, k*32+32) are
                                   padding (their weight columns are zero)
    """
    # Zero the padding rows once per grid step so the (zero) weight columns never
    # multiply uninitialized VMEM (0 * NaN/Inf would poison the accumulator).
    zpad = jnp.zeros((C_PAD - C_ALL_IN, HW), dtype=jnp.bfloat16)
    for k in range(K):
        cols_ref[k * C_PAD + C_ALL_IN:(k + 1) * C_PAD, :] = zpad

    wmat = w_ref[...]        # (96, 224) bf16, loop-invariant
    masks = mask_ref[...]    # (K, HW)   f32,  loop-invariant

    def body(b, carry):
        # im2col for batch element b: 7 statically lane-rolled (+ masked) copies of
        # the (24, HW) slab, written straight into the bf16 scratch at 32-row
        # aligned offsets.
        # TODO(synk): if the static jnp.roll lowers to VALU/vst shift networks
        # instead of XLU vrot, pad the lane axis to 3200 and use pltpu.roll.
        for k in range(K):                                 # static, unrolled
            s = k - PAD
            # Final torch.roll(+1, h1) == +H2 on the flattened axis, folded into
            # the tap shift: output position p reads source p - (H2 - s).
            amt = (SHIFT_DIRECTION * H2 - s) % HW          # 53..59, static
            xs = jnp.roll(x_ref[b], amt, axis=1)           # (24, HW) f32
            if s != 0:                                     # center tap: all-ones mask
                xs = xs * masks[k:k + 1, :]                # kill values crossing an h1 row
            cols_ref[k * C_PAD:k * C_PAD + C_ALL_IN, :] = xs.astype(jnp.bfloat16)
        # Single fused bf16 MXU matmul per batch element, f32 accumulation.
        o_ref[b] = jnp.dot(wmat, cols_ref[...], preferred_element_type=jnp.float32)
        return carry

    lax.fori_loop(0, BB, body, 0)


def _combined_weight(w1, w2):
    """(96, 224) bf16 weight: W[g*48+i, k*32+g*12+j] = sum_c w1[i,c]*w2[j,k,c].

    Columns k*32+24 .. k*32+31 (scratch padding rows) and the off-group block are 0.
    """
    w = jnp.einsum('ic,jkc->ijk', w1, w2,
                   precision=lax.Precision.HIGHEST)        # (48, 12, 7)
    w_ikj = jnp.transpose(w, (0, 2, 1))                    # (48, 7, 12)
    wbig = jnp.zeros((GROUPS, C_OUT, K, C_PAD), dtype=jnp.float32)
    for g in range(GROUPS):                                # block-diagonal over groups
        wbig = wbig.at[g, :, :, g * C_IN:(g + 1) * C_IN].set(w_ikj)
    return wbig.reshape(C_ALL_OUT, KC_PAD).astype(jnp.bfloat16)


def _tap_masks():
    """(K, HW) masks: 1.0 where source h2 = h2(p) + (k - PAD) stays inside [0, 56)."""
    h2 = jnp.arange(HW, dtype=jnp.int32) % H2
    rows = []
    for k in range(K):
        s = k - PAD
        lo = max(0, -s)
        hi = H2 - max(0, s)
        rows.append(((h2 >= lo) & (h2 < hi)).astype(jnp.float32))
    return jnp.stack(rows, axis=0)


def kernel_generated_1_forward(x, w1, w2):
    """JAX/Pallas equivalent of the torch forward.  x: (128, 24, 56, 56) f32."""
    x3 = x.reshape(B, C_ALL_IN, HW).astype(jnp.float32)    # free reshape, row = g*12+j
    wbig = _combined_weight(w1.astype(jnp.float32), w2.astype(jnp.float32))
    mask = _tap_masks()

    out = pl.pallas_call(
        _conv_roll_kernel,
        out_shape=jax.ShapeDtypeStruct((B, C_ALL_OUT, HW), jnp.float32),
        grid=(B // BB,),
        in_specs=[
            pl.BlockSpec((BB, C_ALL_IN, HW), lambda i: (i, 0, 0)),
            pl.BlockSpec((C_ALL_OUT, KC_PAD), lambda i: (0, 0)),
            pl.BlockSpec((K, HW), lambda i: (0, 0)),
        ],
        out_specs=pl.BlockSpec((BB, C_ALL_OUT, HW), lambda i: (i, 0, 0)),
        scratch_shapes=[pltpu.VMEM((KC_PAD, HW), jnp.bfloat16)],
        compiler_params=pltpu.CompilerParams(
            dimension_semantics=("parallel",),            # 16 even steps -> megacore
            vmem_limit_bytes=48 * 1024 * 1024,            # ~25 MiB live; < v7x 64 MiB physical
        ),
    )(x3, wbig, mask)

    return out.reshape(B, C_ALL_OUT, H1, H2)


def _reference(x, w1, w2, nb):
    """Literal jnp translation of the torch forward, on the first nb batch elements."""
    x5 = x[:nb].reshape(nb, GROUPS, C_IN, H1, H2)
    xpad = jnp.pad(x5, ((0, 0), (0, 0), (0, 0), (0, 0), (PAD, PAD)))
    # unfold((7,1), padding=(3,0)) + reshape -> t3[l,o,j,n,k,m] = x5[l,o,j,n,m+k-3] (padded)
    t3 = jnp.stack([xpad[..., k:k + H2] for k in range(K)], axis=4)
    t4 = jnp.einsum('lojnkm,jki->lonmi', t3, w2, precision=lax.Precision.HIGHEST)
    t5 = jnp.einsum('knmlj,ij->kniml', t4, w1, precision=lax.Precision.HIGHEST)
    t6 = t5.reshape(nb, GROUPS * C_OUT, H1, H2)
    return jnp.roll(t6, SHIFT_DIRECTION, axis=2)


if __name__ == "__main__":
    key = jax.random.PRNGKey(0)
    kx, kw1, kw2 = jax.random.split(key, 3)
    # The module's reshapes hard-code the shapes: input must be (128, 24, 56, 56).
    x = jax.random.normal(kx, (B, GROUPS * C_IN, H1, H2), dtype=jnp.float32)
    w1 = jax.random.normal(kw1, (48, 9), dtype=jnp.float32)     # self.weights[0]
    w2 = jax.random.normal(kw2, (12, 7, 9), dtype=jnp.float32)  # self.weights[1]

    out = jax.jit(kernel_generated_1_forward)(x, w1, w2)
    out = jax.block_until_ready(out)
    assert out.shape == (B, GROUPS * C_OUT, H1, H2), out.shape

    # Cross-check a couple of batch elements against the literal torch-op translation.
    # Tolerance is 1e-2 (not 2e-3) because the 168-term contraction runs with bf16
    # MXU operands (expected worst-case max-rel error ~3e-3 for N(0,1) inputs).
    nb = 2
    ref = _reference(x, w1, w2, nb)
    rel_err = float(jnp.max(jnp.abs(out[:nb] - ref)) / (jnp.max(jnp.abs(ref)) + 1e-6))
    assert rel_err < 1e-2, f"kernel/reference mismatch, rel_err={rel_err}"

    print("KERNEL_OK")
</pallas_src>

<mosaic_0001>
module attributes {stable_mosaic.version = 11 : i64} {
  func.func @_conv_roll_kernel(%arg0: i32, %arg1: memref<8x24x3136xf32, #tpu.memory_space<vmem>>, %arg2: memref<96x224xbf16, #tpu.memory_space<vmem>>, %arg3: memref<7x3136xf32, #tpu.memory_space<vmem>>, %arg4: memref<8x96x3136xf32, #tpu.memory_space<vmem>>, %arg5: memref<224x3136xbf16, #tpu.memory_space<vmem>>) attributes {dimension_semantics = [#tpu.dimension_semantics<parallel>], iteration_bounds = array<i64: 16>, scalar_prefetch = 0 : i64, scratch_operands = 1 : i64, tpu.core_type = #tpu.core_type<tc>, window_params = [{transform_indices = @transform_0, window_bounds = array<i64: 8, 24, 3136>}, {pipeline_mode = #tpu.pipeline_mode<synchronous>, transform_indices = @transform_1, window_bounds = array<i64: 96, 224>}, {pipeline_mode = #tpu.pipeline_mode<synchronous>, transform_indices = @transform_2, window_bounds = array<i64: 7, 3136>}, {transform_indices = @transform_3, window_bounds = array<i64: 8, 96, 3136>}]} {
    %cst = arith.constant 0.000000e+00 : bf16
    %0 = vector.broadcast %cst : bf16 to vector<8x3136xbf16>
    %c24 = arith.constant 24 : index
    %c0 = arith.constant 0 : index
    %1 = vector.load %arg5[%c24, %c0] : memref<224x3136xbf16, #tpu.memory_space<vmem>>, vector<8x3136xbf16>
    tpu.vector_store %arg5[%c24, %c0], %0 {strides = array<i32>} : memref<224x3136xbf16, #tpu.memory_space<vmem>>, vector<8x3136xbf16>,
    %c56 = arith.constant 56 : index
    %c0_0 = arith.constant 0 : index
    %2 = vector.load %arg5[%c56, %c0_0] : memref<224x3136xbf16, #tpu.memory_space<vmem>>, vector<8x3136xbf16>
    tpu.vector_store %arg5[%c56, %c0_0], %0 {strides = array<i32>} : memref<224x3136xbf16, #tpu.memory_space<vmem>>, vector<8x3136xbf16>,
    %c88 = arith.constant 88 : index
    %c0_1 = arith.constant 0 : index
    %3 = vector.load %arg5[%c88, %c0_1] : memref<224x3136xbf16, #tpu.memory_space<vmem>>, vector<8x3136xbf16>
    tpu.vector_store %arg5[%c88, %c0_1], %0 {strides = array<i32>} : memref<224x3136xbf16, #tpu.memory_space<vmem>>, vector<8x3136xbf16>,
    %c120 = arith.constant 120 : index
    %c0_2 = arith.constant 0 : index
    %4 = vector.load %arg5[%c120, %c0_2] : memref<224x3136xbf16, #tpu.memory_space<vmem>>, vector<8x3136xbf16>
    tpu.vector_store %arg5[%c120, %c0_2], %0 {strides = array<i32>} : memref<224x3136xbf16, #tpu.memory_space<vmem>>, vector<8x3136xbf16>,
    %c152 = arith.constant 152 : index
    %c0_3 = arith.constant 0 : index
    %5 = vector.load %arg5[%c152, %c0_3] : memref<224x3136xbf16, #tpu.memory_space<vmem>>, vector<8x3136xbf16>
    tpu.vector_store %arg5[%c152, %c0_3], %0 {strides = array<i32>} : memref<224x3136xbf16, #tpu.memory_space<vmem>>, vector<8x3136xbf16>,
    %c184 = arith.constant 184 : index
    %c0_4 = arith.constant 0 : index
    %6 = vector.load %arg5[%c184, %c0_4] : memref<224x3136xbf16, #tpu.memory_space<vmem>>, vector<8x3136xbf16>
    tpu.vector_store %arg5[%c184, %c0_4], %0 {strides = array<i32>} : memref<224x3136xbf16, #tpu.memory_space<vmem>>, vector<8x3136xbf16>,
    %c216 = arith.constant 216 : index
    %c0_5 = arith.constant 0 : index
    %7 = vector.load %arg5[%c216, %c0_5] : memref<224x3136xbf16, #tpu.memory_space<vmem>>, vector<8x3136xbf16>
    tpu.vector_store %arg5[%c216, %c0_5], %0 {strides = array<i32>} : memref<224x3136xbf16, #tpu.memory_space<vmem>>, vector<8x3136xbf16>,
    %c0_6 = arith.constant 0 : index
    %c0_7 = arith.constant 0 : index
    %8 = vector.load %arg2[%c0_6, %c0_7] : memref<96x224xbf16, #tpu.memory_space<vmem>>, vector<96x224xbf16>
    %c0_8 = arith.constant 0 : index
    %c0_9 = arith.constant 0 : index
    %9 = vector.load %arg3[%c0_8, %c0_9] : memref<7x3136xf32, #tpu.memory_space<vmem>>, vector<7x3136xf32>
    %c0_i32 = arith.constant 0 : i32
    %c8_i32 = arith.constant 8 : i32
    %10 = arith.addi %c0_i32, %c8_i32 : i32
    %c1_i32 = arith.constant 1 : i32
    scf.for %arg6 = %c0_i32 to %10 step %c1_i32  : i32 {
      %11 = arith.index_cast %arg6 : i32 to index
      %c0_11 = arith.constant 0 : index
      %c0_12 = arith.constant 0 : index
      %12 = vector.load %arg1[%11, %c0_11, %c0_12] : memref<8x24x3136xf32, #tpu.memory_space<vmem>>, vector<1x24x3136xf32>
      %13 = vector.shape_cast %12 : vector<1x24x3136xf32> to vector<24x3136xf32>
      %14 = vector.extract_strided_slice %13 {offsets = [0, 3077], sizes = [24, 59], strides = [1, 1]} : vector<24x3136xf32> to vector<24x59xf32>
      %15 = vector.extract_strided_slice %13 {offsets = [0, 0], sizes = [24, 3077], strides = [1, 1]} : vector<24x3136xf32> to vector<24x3077xf32>
      %16 = tpu.concatenate %14, %15 in 1 : vector<24x59xf32>, vector<24x3077xf32> -> vector<24x3136xf32>
      %17 = vector.extract_strided_slice %9 {offsets = [0, 0], sizes = [1, 3136], strides = [1, 1]} : vector<7x3136xf32> to vector<1x3136xf32>
      %18 = vector.broadcast %17 : vector<1x3136xf32> to vector<24x3136xf32>
      %19 = arith.mulf %16, %18 : vector<24x3136xf32>
      %20 = arith.truncf %19 : vector<24x3136xf32> to vector<24x3136xbf16>
      %c0_13 = arith.constant 0 : index
      %c0_14 = arith.constant 0 : index
      %21 = vector.load %arg5[%c0_13, %c0_14] : memref<224x3136xbf16, #tpu.memory_space<vmem>>, vector<24x3136xbf16>
      tpu.vector_store %arg5[%c0_13, %c0_14], %20 {strides = array<i32>} : memref<224x3136xbf16, #tpu.memory_space<vmem>>, vector<24x3136xbf16>,
      %22 = arith.index_cast %arg6 : i32 to index
      %c0_15 = arith.constant 0 : index
      %c0_16 = arith.constant 0 : index
      %23 = vector.load %arg1[%22, %c0_15, %c0_16] : memref<8x24x3136xf32, #tpu.memory_space<vmem>>, vector<1x24x3136xf32>
      %24 = vector.shape_cast %23 : vector<1x24x3136xf32> to vector<24x3136xf32>
      %25 = vector.extract_strided_slice %24 {offsets = [0, 3078], sizes = [24, 58], strides = [1, 1]} : vector<24x3136xf32> to vector<24x58xf32>
      %26 = vector.extract_strided_slice %24 {offsets = [0, 0], sizes = [24, 3078], strides = [1, 1]} : vector<24x3136xf32> to vector<24x3078xf32>
      %27 = tpu.concatenate %25, %26 in 1 : vector<24x58xf32>, vector<24x3078xf32> -> vector<24x3136xf32>
      %28 = vector.extract_strided_slice %9 {offsets = [1, 0], sizes = [1, 3136], strides = [1, 1]} : vector<7x3136xf32> to vector<1x3136xf32>
      %29 = vector.broadcast %28 : vector<1x3136xf32> to vector<24x3136xf32>
      %30 = arith.mulf %27, %29 : vector<24x3136xf32>
      %31 = arith.truncf %30 : vector<24x3136xf32> to vector<24x3136xbf16>
      %c32 = arith.constant 32 : index
      %c0_17 = arith.constant 0 : index
      %32 = vector.load %arg5[%c32, %c0_17] : memref<224x3136xbf16, #tpu.memory_space<vmem>>, vector<24x3136xbf16>
      tpu.vector_store %arg5[%c32, %c0_17], %31 {strides = array<i32>} : memref<224x3136xbf16, #tpu.memory_space<vmem>>, vector<24x3136xbf16>,
      %33 = arith.index_cast %arg6 : i32 to index
      %c0_18 = arith.constant 0 : index
      %c0_19 = arith.constant 0 : index
      %34 = vector.load %arg1[%33, %c0_18, %c0_19] : memref<8x24x3136xf32, #tpu.memory_space<vmem>>, vector<1x24x3136xf32>
      %35 = vector.shape_cast %34 : vector<1x24x3136xf32> to vector<24x3136xf32>
      %36 = vector.extract_strided_slice %35 {offsets = [0, 3079], sizes = [24, 57], strides = [1, 1]} : vector<24x3136xf32> to vector<24x57xf32>
      %37 = vector.extract_strided_slice %35 {offsets = [0, 0], sizes = [24, 3079], strides = [1, 1]} : vector<24x3136xf32> to vector<24x3079xf32>
      %38 = tpu.concatenate %36, %37 in 1 : vector<24x57xf32>, vector<24x3079xf32> -> vector<24x3136xf32>
      %39 = vector.extract_strided_slice %9 {offsets = [2, 0], sizes = [1, 3136], strides = [1, 1]} : vector<7x3136xf32> to vector<1x3136xf32>
      %40 = vector.broadcast %39 : vector<1x3136xf32> to vector<24x3136xf32>
      %41 = arith.mulf %38, %40 : vector<24x3136xf32>
      %42 = arith.truncf %41 : vector<24x3136xf32> to vector<24x3136xbf16>
      %c64 = arith.constant 64 : index
      %c0_20 = arith.constant 0 : index
      %43 = vector.load %arg5[%c64, %c0_20] : memref<224x3136xbf16, #tpu.memory_space<vmem>>, vector<24x3136xbf16>
      tpu.vector_store %arg5[%c64, %c0_20], %42 {strides = array<i32>} : memref<224x3136xbf16, #tpu.memory_space<vmem>>, vector<24x3136xbf16>,
      %44 = arith.index_cast %arg6 : i32 to index
      %c0_21 = arith.constant 0 : index
      %c0_22 = arith.constant 0 : index
      %45 = vector.load %arg1[%44, %c0_21, %c0_22] : memref<8x24x3136xf32, #tpu.memory_space<vmem>>, vector<1x24x3136xf32>
      %46 = vector.shape_cast %45 : vector<1x24x3136xf32> to vector<24x3136xf32>
      %47 = vector.extract_strided_slice %46 {offsets = [0, 3080], sizes = [24, 56], strides = [1, 1]} : vector<24x3136xf32> to vector<24x56xf32>
      %48 = vector.extract_strided_slice %46 {offsets = [0, 0], sizes = [24, 3080], strides = [1, 1]} : vector<24x3136xf32> to vector<24x3080xf32>
      %49 = tpu.concatenate %47, %48 in 1 : vector<24x56xf32>, vector<24x3080xf32> -> vector<24x3136xf32>
      %50 = arith.truncf %49 : vector<24x3136xf32> to vector<24x3136xbf16>
      %c96 = arith.constant 96 : index
      %c0_23 = arith.constant 0 : index
      %51 = vector.load %arg5[%c96, %c0_23] : memref<224x3136xbf16, #tpu.memory_space<vmem>>, vector<24x3136xbf16>
      tpu.vector_store %arg5[%c96, %c0_23], %50 {strides = array<i32>} : memref<224x3136xbf16, #tpu.memory_space<vmem>>, vector<24x3136xbf16>,
      %52 = arith.index_cast %arg6 : i32 to index
      %c0_24 = arith.constant 0 : index
      %c0_25 = arith.constant 0 : index
      %53 = vector.load %arg1[%52, %c0_24, %c0_25] : memref<8x24x3136xf32, #tpu.memory_space<vmem>>, vector<1x24x3136xf32>
      %54 = vector.shape_cast %53 : vector<1x24x3136xf32> to vector<24x3136xf32>
      %55 = vector.extract_strided_slice %54 {offsets = [0, 3081], sizes = [24, 55], strides = [1, 1]} : vector<24x3136xf32> to vector<24x55xf32>
      %56 = vector.extract_strided_slice %54 {offsets = [0, 0], sizes = [24, 3081], strides = [1, 1]} : vector<24x3136xf32> to vector<24x3081xf32>
      %57 = tpu.concatenate %55, %56 in 1 : vector<24x55xf32>, vector<24x3081xf32> -> vector<24x3136xf32>
      %58 = vector.extract_strided_slice %9 {offsets = [4, 0], sizes = [1, 3136], strides = [1, 1]} : vector<7x3136xf32> to vector<1x3136xf32>
      %59 = vector.broadcast %58 : vector<1x3136xf32> to vector<24x3136xf32>
      %60 = arith.mulf %57, %59 : vector<24x3136xf32>
      %61 = arith.truncf %60 : vector<24x3136xf32> to vector<24x3136xbf16>
      %c128 = arith.constant 128 : index
      %c0_26 = arith.constant 0 : index
      %62 = vector.load %arg5[%c128, %c0_26] : memref<224x3136xbf16, #tpu.memory_space<vmem>>, vector<24x3136xbf16>
      tpu.vector_store %arg5[%c128, %c0_26], %61 {strides = array<i32>} : memref<224x3136xbf16, #tpu.memory_space<vmem>>, vector<24x3136xbf16>,
      %63 = arith.index_cast %arg6 : i32 to index
      %c0_27 = arith.constant 0 : index
      %c0_28 = arith.constant 0 : index
      %64 = vector.load %arg1[%63, %c0_27, %c0_28] : memref<8x24x3136xf32, #tpu.memory_space<vmem>>, vector<1x24x3136xf32>
      %65 = vector.shape_cast %64 : vector<1x24x3136xf32> to vector<24x3136xf32>
      %66 = vector.extract_strided_slice %65 {offsets = [0, 3082], sizes = [24, 54], strides = [1, 1]} : vector<24x3136xf32> to vector<24x54xf32>
      %67 = vector.extract_strided_slice %65 {offsets = [0, 0], sizes = [24, 3082], strides = [1, 1]} : vector<24x3136xf32> to vector<24x3082xf32>
      %68 = tpu.concatenate %66, %67 in 1 : vector<24x54xf32>, vector<24x3082xf32> -> vector<24x3136xf32>
      %69 = vector.extract_strided_slice %9 {offsets = [5, 0], sizes = [1, 3136], strides = [1, 1]} : vector<7x3136xf32> to vector<1x3136xf32>
      %70 = vector.broadcast %69 : vector<1x3136xf32> to vector<24x3136xf32>
      %71 = arith.mulf %68, %70 : vector<24x3136xf32>
      %72 = arith.truncf %71 : vector<24x3136xf32> to vector<24x3136xbf16>
      %c160 = arith.constant 160 : index
      %c0_29 = arith.constant 0 : index
      %73 = vector.load %arg5[%c160, %c0_29] : memref<224x3136xbf16, #tpu.memory_space<vmem>>, vector<24x3136xbf16>
      tpu.vector_store %arg5[%c160, %c0_29], %72 {strides = array<i32>} : memref<224x3136xbf16, #tpu.memory_space<vmem>>, vector<24x3136xbf16>,
      %74 = arith.index_cast %arg6 : i32 to index
      %c0_30 = arith.constant 0 : index
      %c0_31 = arith.constant 0 : index
      %75 = vector.load %arg1[%74, %c0_30, %c0_31] : memref<8x24x3136xf32, #tpu.memory_space<vmem>>, vector<1x24x3136xf32>
      %76 = vector.shape_cast %75 : vector<1x24x3136xf32> to vector<24x3136xf32>
      %77 = vector.extract_strided_slice %76 {offsets = [0, 3083], sizes = [24, 53], strides = [1, 1]} : vector<24x3136xf32> to vector<24x53xf32>
      %78 = vector.extract_strided_slice %76 {offsets = [0, 0], sizes = [24, 3083], strides = [1, 1]} : vector<24x3136xf32> to vector<24x3083xf32>
      %79 = tpu.concatenate %77, %78 in 1 : vector<24x53xf32>, vector<24x3083xf32> -> vector<24x3136xf32>
      %80 = vector.extract_strided_slice %9 {offsets = [6, 0], sizes = [1, 3136], strides = [1, 1]} : vector<7x3136xf32> to vector<1x3136xf32>
      %81 = vector.broadcast %80 : vector<1x3136xf32> to vector<24x3136xf32>
      %82 = arith.mulf %79, %81 : vector<24x3136xf32>
      %83 = arith.truncf %82 : vector<24x3136xf32> to vector<24x3136xbf16>
      %c192 = arith.constant 192 : index
      %c0_32 = arith.constant 0 : index
      %84 = vector.load %arg5[%c192, %c0_32] : memref<224x3136xbf16, #tpu.memory_space<vmem>>, vector<24x3136xbf16>
      tpu.vector_store %arg5[%c192, %c0_32], %83 {strides = array<i32>} : memref<224x3136xbf16, #tpu.memory_space<vmem>>, vector<24x3136xbf16>,
      %c0_33 = arith.constant 0 : index
      %c0_34 = arith.constant 0 : index
      %85 = vector.load %arg5[%c0_33, %c0_34] : memref<224x3136xbf16, #tpu.memory_space<vmem>>, vector<224x3136xbf16>
      %cst_35 = arith.constant dense<0.000000e+00> : vector<96x3136xf32>
      %86 = tpu.matmul %8, %85, %cst_35 {dimension_numbers = #tpu.dot_dimension_numbers<[1], [0], [0], [1], [0, 0, 1, 1], [], []>} : vector<96x224xbf16>, vector<224x3136xbf16>, vector<96x3136xf32> -> vector<96x3136xf32>
      %87 = arith.index_cast %arg6 : i32 to index
      %c0_36 = arith.constant 0 : index
      %c0_37 = arith.constant 0 : index
      %88 = vector.load %arg4[%87, %c0_36, %c0_37] : memref<8x96x3136xf32, #tpu.memory_space<vmem>>, vector<1x96x3136xf32>
      %89 = vector.shape_cast %88 : vector<1x96x3136xf32> to vector<96x3136xf32>
      %90 = vector.shape_cast %86 : vector<96x3136xf32> to vector<1x96x3136xf32>
      tpu.vector_store %arg4[%87, %c0_36, %c0_37], %90 {strides = array<i32>} : memref<8x96x3136xf32, #tpu.memory_space<vmem>>, vector<1x96x3136xf32>,
    }
    %c8_i32_10 = arith.constant 8 : i32
    return
  }
  func.func @transform_0(%arg0: i32) -> (i32, i32, i32) {
    %c0_i32 = arith.constant 0 : i32
    %c0_i32_0 = arith.constant 0 : i32
    %c0_i32_1 = arith.constant 0 : i32
    return %arg0, %c0_i32, %c0_i32_0 : i32, i32, i32
  }
  func.func @transform_1(%arg0: i32) -> (i32, i32) {
    %c0_i32 = arith.constant 0 : i32
    %c0_i32_0 = arith.constant 0 : i32
    %c0_i32_1 = arith.constant 0 : i32
    return %c0_i32, %c0_i32_0 : i32, i32
  }
  func.func @transform_2(%arg0: i32) -> (i32, i32) {
    %c0_i32 = arith.constant 0 : i32
    %c0_i32_0 = arith.constant 0 : i32
    %c0_i32_1 = arith.constant 0 : i32
    return %c0_i32, %c0_i32_0 : i32, i32
  }
  func.func @transform_3(%arg0: i32) -> (i32, i32, i32) {
    %c0_i32 = arith.constant 0 : i32
    %c0_i32_0 = arith.constant 0 : i32
    %c0_i32_1 = arith.constant 0 : i32
    return %arg0, %c0_i32, %c0_i32_0 : i32, i32, i32
  }
}

</mosaic_0001>

<llo_original>
// kernel: kernel_generated_1_forward.1
$region0: #{kernel_generated_1_forward.1}
  #allocation0 [shape = 'u32[]', space=smem, size = 0x4, offset = 0x4, fixed_abs, tag = 'smem constant byte address 0x4 - core index']
  #allocation1 [shape = 'u32[72,128]{1,0:T(1,128)}', space=vmem, size = 0x9000, scoped, tag = 'internal scratch']
  #allocation2 [shape = 'bf16[224,3136]{1,0:T(8,128)(2,1)}', space=vmem, size = 0x15e000, scoped, tag = 'scratch operand']
  %s0 = inlined_call_operand.vmem [shape: f32[128,24,3136], index: 0, kind: input, shape index: {}]
  %s1 = inlined_call_operand.vmem [shape: bf16[96,224], index: 1, kind: input, shape index: {}]
  %s2 = inlined_call_operand.vmem [shape: f32[7,3136], index: 2, kind: input, shape index: {}]
  %s3 = inlined_call_operand.hbm [shape: f32[128,96,3136], index: 3, kind: output, shape index: {}]
  %s4 = sld [smem:[#allocation0]]
  $region52: #{kernel_generated_1_forward.1} parent=0
    _
  %s6 = ssub.s32 1, %s4
  %s7 = scalar_select 0, %s6, %s4
  $region1: #{kernel_generated_1_forward.1} parent=0
    #allocation3 [shape = 'u8[19660800]{0}', space=vmem, size = 0x12c0000, scoped, tag = 'output window, operand 0']
    #allocation4 [shape = 's32[2]{0}', space=sflag, size = 0x8, scoped, tag = 'scoped memory for kernel_generated_1_forward.1']
    %8 = vsyncpa [#allocation4], 0
    %s9 = scalar_lea.sflag [#allocation4], 1
    %10 = vsyncpa %s9, 0
    loop: start=0, step=1, limit=18
    $region2: #{kernel_generated_1_forward.1} parent=1 // loop_pre_header
      _
    $region3: #{kernel_generated_1_forward.1} parent=1 // loop_header
      %s12 = sphi 0, %s16
      %p13 = scmp.ge.s32.totalorder %s12, 18
      %s22 = sphi 0, %s24
      %s25 = sphi 0, %s22
      %s26 = sphi 0, %s25
      %s42 = sphi 0, %s26
      %s46 = sphi 0, %s46
      %s48 = sphi 0, %s46
      %s49 = sphi 0, %s48
      %s63 = sphi 0, %s49
      %s67 = sphi 0, %s67
      %s69 = sphi 0, %s67
      %s70 = sphi 0, %s69
      %s84 = sphi 0, %s70
      %s90 = sphi 0, %s92
      %s93 = sphi 0, %s90
      %s94 = sphi 0, %s93
      %s110 = sphi 0, %s94
    $region4: #{kernel_generated_1_forward.1} parent=1 // loop_header_branch
      %15 = sbr.rel (%p13) target = $region8
    $region5: #{kernel_generated_1_forward.1} parent=1 // loop_body
      %s17 = ssub.s32 %s12, 1
      %s18 = ssub.s32 %s12, 2
      %s19 = sadd.s32 %s12, 1
      %s20 = ssub.s32 %s12, %s19
      %p21 = scmp.eq.s32.totalorder %s20, 0
      %s23 = sadd.s32 %s22, 1
      %s24 = scalar_select %p21, %s22, %s23
      %p27 = pneg %p21
      %p28 = scmp.eq.s32.totalorder %s12, 15
      %p29 = por %p27, %p28
      %p30 = scmp.ne.s32.totalorder %s22, %s25
      %p31 = scmp.eq.s32.totalorder %s12, 0
      %p32 = por %p30, %p31
      %p33 = scmp.ne.s32.totalorder %s22, %s25
      %p34 = scmp.eq.s32.totalorder %s17, 15
      %p35 = por %p33, %p34
      %p36 = scmp.ne.s32.totalorder %s25, %s26
      %p37 = scmp.eq.s32.totalorder %s17, 0
      %p38 = por %p36, %p37
      %p39 = scmp.ne.s32.totalorder %s25, %s26
      %p40 = scmp.eq.s32.totalorder %s18, 15
      %p41 = por %p39, %p40
      %p43 = scmp.ne.s32.totalorder %s26, %s42
      %p44 = scmp.eq.s32.totalorder %s18, 0
      %p45 = por %p43, %p44
      %s47 = sadd.s32 %s46, 1
      %p50 = scmp.eq.s32.totalorder %s12, 15
      %p51 = scmp.ne.s32.totalorder %s46, %s48
      %p52 = scmp.eq.s32.totalorder %s12, 0
      %p53 = por %p51, %p52
      %p54 = scmp.ne.s32.totalorder %s46, %s48
      %p55 = scmp.eq.s32.totalorder %s17, 15
      %p56 = por %p54, %p55
      %p57 = scmp.ne.s32.totalorder %s48, %s49
      %p58 = scmp.eq.s32.totalorder %s17, 0
      %p59 = por %p57, %p58
      %p60 = scmp.ne.s32.totalorder %s48, %s49
      %p61 = scmp.eq.s32.totalorder %s18, 15
      %p62 = por %p60, %p61
      %p64 = scmp.ne.s32.totalorder %s49, %s63
      %p65 = scmp.eq.s32.totalorder %s18, 0
      %p66 = por %p64, %p65
      %s68 = sadd.s32 %s67, 1
      %p71 = scmp.eq.s32.totalorder %s12, 15
      %p72 = scmp.ne.s32.totalorder %s67, %s69
      %p73 = scmp.eq.s32.totalorder %s12, 0
      %p74 = por %p72, %p73
      %p75 = scmp.ne.s32.totalorder %s67, %s69
      %p76 = scmp.eq.s32.totalorder %s17, 15
      %p77 = por %p75, %p76
      %p78 = scmp.ne.s32.totalorder %s69, %s70
      %p79 = scmp.eq.s32.totalorder %s17, 0
      %p80 = por %p78, %p79
      %p81 = scmp.ne.s32.totalorder %s69, %s70
      %p82 = scmp.eq.s32.totalorder %s18, 15
      %p83 = por %p81, %p82
      %p85 = scmp.ne.s32.totalorder %s70, %s84
      %p86 = scmp.eq.s32.totalorder %s18, 0
      %p87 = por %p85, %p86
      %s88 = ssub.s32 %s12, %s19
      %p89 = scmp.eq.s32.totalorder %s88, 0
      %s91 = sadd.s32 %s90, 1
      %s92 = scalar_select %p89, %s90, %s91
      %p95 = pneg %p89
      %p96 = scmp.eq.s32.totalorder %s12, 15
      %p97 = por %p95, %p96
      %p98 = scmp.ne.s32.totalorder %s90, %s93
      %p99 = scmp.eq.s32.totalorder %s12, 0
      %p100 = por %p98, %p99
      %p101 = scmp.ne.s32.totalorder %s90, %s93
      %p102 = scmp.eq.s32.totalorder %s17, 15
      %p103 = por %p101, %p102
      %p104 = scmp.ne.s32.totalorder %s93, %s94
      %p105 = scmp.eq.s32.totalorder %s17, 0
      %p106 = por %p104, %p105
      %p107 = scmp.ne.s32.totalorder %s93, %s94
      %p108 = scmp.eq.s32.totalorder %s18, 15
      %p109 = por %p107, %p108
      %p111 = scmp.ne.s32.totalorder %s94, %s110
      %p112 = scmp.eq.s32.totalorder %s18, 0
      %p113 = por %p111, %p112
      %p114 = scmp.le.s32.totalorder 1, %s12
      %p115 = scmp.lt.s32.totalorder %s12, 17
      %p116 = pnand %p114, %p115
      %p117 = pneg %p116
      // Predicated region
      $region9: #{kernel_generated_1_forward.1} parent=5 // pred_check
        _
      $region10: #{kernel_generated_1_forward.1} parent=5 // pred_check_branch
        %119 = sbr.rel (%p116) target = $region12
      $region11: #{kernel_generated_1_forward.1} parent=5 // pred_region
        %s120 = ssub.s32 %s12, 1
        // Predicated region
        $region13: #{kernel_generated_1_forward.1} parent=11 // pred_check
          %p121 = pneg %p59
        $region14: #{kernel_generated_1_forward.1} parent=11 // pred_check_branch
          %123 = sbr.rel (%p121) target = $region16
        $region15: #{kernel_generated_1_forward.1} parent=11 // pred_region
          _
        $region16: #{kernel_generated_1_forward.1} parent=11 // pred_fallthru
          _
        // Predicated region
        $region17: #{kernel_generated_1_forward.1} parent=11 // pred_check
          %p124 = pneg %p80
        $region18: #{kernel_generated_1_forward.1} parent=11 // pred_check_branch
          %126 = sbr.rel (%p124) target = $region20
        $region19: #{kernel_generated_1_forward.1} parent=11 // pred_region
          _
        $region20: #{kernel_generated_1_forward.1} parent=11 // pred_fallthru
          _
      $region12: #{kernel_generated_1_forward.1} parent=5 // pred_fallthru
        _
      %p127 = scmp.lt.s32.totalorder %s12, 16
      // Predicated region
      $region21: #{kernel_generated_1_forward.1} parent=5 // pred_check
        %p128 = pneg %p127
      $region22: #{kernel_generated_1_forward.1} parent=5 // pred_check_branch
        %130 = sbr.rel (%p128) target = $region24
      $region23: #{kernel_generated_1_forward.1} parent=5 // pred_region
        // Predicated region
        $region25: #{kernel_generated_1_forward.1} parent=23 // pred_check
          %p131 = pneg %p32
        $region26: #{kernel_generated_1_forward.1} parent=23 // pred_check_branch
          %133 = sbr.rel (%p131) target = $region28
        $region27: #{kernel_generated_1_forward.1} parent=23 // pred_region
          %s134 = smul.u32 8, %s12
          %p135 = scmp.lt.s32.totalorder %s134, 127
          %s136 = scalar_select %p135, %s134, 127
          %s137 = smul.addr %s136, 75
          %s138 = smul.addr %s137, 8
          %s139 = scalar_lea.vmem %s0, %s138
          %s140 = smul.u32 8, %s12
        $region28: #{kernel_generated_1_forward.1} parent=23 // pred_fallthru
          _
      $region24: #{kernel_generated_1_forward.1} parent=5 // pred_fallthru
        _
      %p141 = scmp.le.s32.totalorder 1, %s12
      %p142 = scmp.lt.s32.totalorder %s12, 17
      %p143 = pnand %p141, %p142
      %p144 = pneg %p143
      // Predicated region
      $region29: #{kernel_generated_1_forward.1} parent=5 // pred_check
        _
      $region30: #{kernel_generated_1_forward.1} parent=5 // pred_check_branch
        %146 = sbr.rel (%p143) target = $region32
      $region31: #{kernel_generated_1_forward.1} parent=5 // pred_region
        %s147 = ssub.s32 %s12, 1
        %s148 = smul.u32 8, %s17
        %p149 = scmp.lt.s32.totalorder %s148, 127
        %s150 = scalar_select %p149, %s148, 127
        %s151 = smul.addr %s150, 75
        %s152 = smul.addr %s151, 8
        %s153 = scalar_lea.vmem %s0, %s152
        %p154 = pneg %p38
        %p155 = pneg %p35
        %p156 = pneg %p59
        %p157 = pneg %p56
        %p158 = pneg %p80
        %p159 = pneg %p77
        %p160 = pneg %p106
        %p161 = pneg %p103
        %s162 = sand.u32 %s93, 1
        %s163 = scalar_lea.sflag [#allocation4], %s162
        %s164 = sand.u32 %s93, 1
        %s165 = smul.addr %s164, 19200
        %s166 = scalar_lea.vmem [#allocation3], %s165
        %s167 = smul.u32 8, %s17
        %p168 = scmp.lt.s32.totalorder %s167, 127
        %s169 = scalar_select %p168, %s167, 127
        %s170 = smul.addr %s169, 75
        %s171 = smul.addr %s170, 8
        %s172 = scalar_lea.vmem %s0, %s171
        %s173 = smul.u32 8, %s17
        %s174 = smul.u32 8, %s17
        %176 = vst [vmem:[#allocation2 + $0x12c] sm:$0xff] 0
        %177 = vst [vmem:[#allocation2 + $0x134] sm:$0xff] 0
        %178 = vst [vmem:[#allocation2 + $0x13c] sm:$0xff] 0
        %179 = vst [vmem:[#allocation2 + $0x144] sm:$0xff] 0
        %180 = vst [vmem:[#allocation2 + $0x14c] sm:$0xff] 0
        %181 = vst [vmem:[#allocation2 + $0x154] sm:$0xff] 0
        %182 = vst [vmem:[#allocation2 + $0x15c] sm:$0xff] 0
        %183 = vst [vmem:[#allocation2 + $0x164] sm:$0xff] 0
        %184 = vst [vmem:[#allocation2 + $0x16c] sm:$0xff] 0
        %185 = vst [vmem:[#allocation2 + $0x174] sm:$0xff] 0
        %186 = vst [vmem:[#allocation2 + $0x17c] sm:$0xff] 0
        %187 = vst [vmem:[#allocation2 + $0x184] sm:$0xff] 0
        %vm188 = vcmask 519168
        %189 = vst.msk [vmem:[#allocation2 + $0x18c] sm:$0xf] %vm188, 0
        %190 = vst [vmem:[#allocation2 + $0x2bc] sm:$0xff] 0
        %191 = vst [vmem:[#allocation2 + $0x2c4] sm:$0xff] 0
        %192 = vst [vmem:[#allocation2 + $0x2cc] sm:$0xff] 0
        %193 = vst [vmem:[#allocation2 + $0x2d4] sm:$0xff] 0
        %194 = vst [vmem:[#allocation2 + $0x2dc] sm:$0xff] 0
        %195 = vst [vmem:[#allocation2 + $0x2e4] sm:$0xff] 0
        %196 = vst [vmem:[#allocation2 + $0x2ec] sm:$0xff] 0
        %197 = vst [vmem:[#allocation2 + $0x2f4] sm:$0xff] 0
        %198 = vst [vmem:[#allocation2 + $0x2fc] sm:$0xff] 0
        %199 = vst [vmem:[#allocation2 + $0x304] sm:$0xff] 0
        %200 = vst [vmem:[#allocation2 + $0x30c] sm:$0xff] 0
        %201 = vst [vmem:[#allocation2 + $0x314] sm:$0xff] 0
        %202 = vst.msk [vmem:[#allocation2 + $0x31c] sm:$0xf] %vm188, 0
        %203 = vst [vmem:[#allocation2 + $0x44c] sm:$0xff] 0
        %204 = vst [vmem:[#allocation2 + $0x454] sm:$0xff] 0
        %205 = vst [vmem:[#allocation2 + $0x45c] sm:$0xff] 0
        %206 = vst [vmem:[#allocation2 + $0x464] sm:$0xff] 0
        %207 = vst [vmem:[#allocation2 + $0x46c] sm:$0xff] 0
        %208 = vst [vmem:[#allocation2 + $0x474] sm:$0xff] 0
        %209 = vst [vmem:[#allocation2 + $0x47c] sm:$0xff] 0
        %210 = vst [vmem:[#allocation2 + $0x484] sm:$0xff] 0
        %211 = vst [vmem:[#allocation2 + $0x48c] sm:$0xff] 0
        %212 = vst [vmem:[#allocation2 + $0x494] sm:$0xff] 0
        %213 = vst [vmem:[#allocation2 + $0x49c] sm:$0xff] 0
        %214 = vst [vmem:[#allocation2 + $0x4a4] sm:$0xff] 0
        %215 = vst.msk [vmem:[#allocation2 + $0x4ac] sm:$0xf] %vm188, 0
        %216 = vst [vmem:[#allocation2 + $0x5dc] sm:$0xff] 0
        %217 = vst [vmem:[#allocation2 + $0x5e4] sm:$0xff] 0
        %218 = vst [vmem:[#allocation2 + $0x5ec] sm:$0xff] 0
        %219 = vst [vmem:[#allocation2 + $0x5f4] sm:$0xff] 0
        %220 = vst [vmem:[#allocation2 + $0x5fc] sm:$0xff] 0
        %221 = vst [vmem:[#allocation2 + $0x604] sm:$0xff] 0
        %222 = vst [vmem:[#allocation2 + $0x60c] sm:$0xff] 0
        %223 = vst [vmem:[#allocation2 + $0x614] sm:$0xff] 0
        %224 = vst [vmem:[#allocation2 + $0x61c] sm:$0xff] 0
        %225 = vst [vmem:[#allocation2 + $0x624] sm:$0xff] 0
        %226 = vst [vmem:[#allocation2 + $0x62c] sm:$0xff] 0
        %227 = vst [vmem:[#allocation2 + $0x634] sm:$0xff] 0
        %228 = vst.msk [vmem:[#allocation2 + $0x63c] sm:$0xf] %vm188, 0
        %229 = vst [vmem:[#allocation2 + $0x76c] sm:$0xff] 0
        %230 = vst [vmem:[#allocation2 + $0x774] sm:$0xff] 0
        %231 = vst [vmem:[#allocation2 + $0x77c] sm:$0xff] 0
        %232 = vst [vmem:[#allocation2 + $0x784] sm:$0xff] 0
        %233 = vst [vmem:[#allocation2 + $0x78c] sm:$0xff] 0
        %234 = vst [vmem:[#allocation2 + $0x794] sm:$0xff] 0
        %235 = vst [vmem:[#allocation2 + $0x79c] sm:$0xff] 0
        %236 = vst [vmem:[#allocation2 + $0x7a4] sm:$0xff] 0
        %237 = vst [vmem:[#allocation2 + $0x7ac] sm:$0xff] 0
        %238 = vst [vmem:[#allocation2 + $0x7b4] sm:$0xff] 0
        %239 = vst [vmem:[#allocation2 + $0x7bc] sm:$0xff] 0
        %240 = vst [vmem:[#allocation2 + $0x7c4] sm:$0xff] 0
        %241 = vst.msk [vmem:[#allocation2 + $0x7cc] sm:$0xf] %vm188, 0
        %242 = vst [vmem:[#allocation2 + $0x8fc] sm:$0xff] 0
        %243 = vst [vmem:[#allocation2 + $0x904] sm:$0xff] 0
        %244 = vst [vmem:[#allocation2 + $0x90c] sm:$0xff] 0
        %245 = vst [vmem:[#allocation2 + $0x914] sm:$0xff] 0
        %246 = vst [vmem:[#allocation2 + $0x91c] sm:$0xff] 0
        %247 = vst [vmem:[#allocation2 + $0x924] sm:$0xff] 0
        %248 = vst [vmem:[#allocation2 + $0x92c] sm:$0xff] 0
        %249 = vst [vmem:[#allocation2 + $0x934] sm:$0xff] 0
        %250 = vst [vmem:[#allocation2 + $0x93c] sm:$0xff] 0
        %251 = vst [vmem:[#allocation2 + $0x944] sm:$0xff] 0
        %252 = vst [vmem:[#allocation2 + $0x94c] sm:$0xff] 0
        %253 = vst [vmem:[#allocation2 + $0x954] sm:$0xff] 0
        %254 = vst.msk [vmem:[#allocation2 + $0x95c] sm:$0xf] %vm188, 0
        %255 = vst [vmem:[#allocation2 + $0xa8c] sm:$0xff] 0
        %256 = vst [vmem:[#allocation2 + $0xa94] sm:$0xff] 0
        %257 = vst [vmem:[#allocation2 + $0xa9c] sm:$0xff] 0
        %258 = vst [vmem:[#allocation2 + $0xaa4] sm:$0xff] 0
        %259 = vst [vmem:[#allocation2 + $0xaac] sm:$0xff] 0
        %260 = vst [vmem:[#allocation2 + $0xab4] sm:$0xff] 0
        %261 = vst [vmem:[#allocation2 + $0xabc] sm:$0xff] 0
        %262 = vst [vmem:[#allocation2 + $0xac4] sm:$0xff] 0
        %263 = vst [vmem:[#allocation2 + $0xacc] sm:$0xff] 0
        %264 = vst [vmem:[#allocation2 + $0xad4] sm:$0xff] 0
        %265 = vst [vmem:[#allocation2 + $0xadc] sm:$0xff] 0
        %266 = vst [vmem:[#allocation2 + $0xae4] sm:$0xff] 0
        %267 = vst.msk [vmem:[#allocation2 + $0xaec] sm:$0xf] %vm188, 0
        %v268 = vld [vmem:[%s1] sm:$0xff]
        %v269 = vld [vmem:[%s1 + $0x8] sm:$0xff]
        %v270 = vld [vmem:[%s1 + $0x10] sm:$0xff]
        %v271 = vld [vmem:[%s1 + $0x18] sm:$0xff]
        %v272 = vld [vmem:[%s1 + $0x20] sm:$0xff]
        %v273 = vld [vmem:[%s1 + $0x28] sm:$0xff]
        %v274 = vld [vmem:[%s1 + $0x30] sm:$0xff]
        %v275 = vld [vmem:[%s1 + $0x38] sm:$0xff]
        %v276 = vld [vmem:[%s1 + $0x40] sm:$0xff]
        %v277 = vld [vmem:[%s1 + $0x48] sm:$0xff]
        %v278 = vld [vmem:[%s1 + $0x50] sm:$0xff]
        %v279 = vld [vmem:[%s1 + $0x58] sm:$0xff]
        %v280 = vld [vmem:[%s2] sm:$0x7f]
        %v281 = vld [vmem:[%s2 + $0x8] sm:$0x7f]
        %v282 = vld [vmem:[%s2 + $0x10] sm:$0x7f]
        %v283 = vld [vmem:[%s2 + $0x18] sm:$0x7f]
        %v284 = vld [vmem:[%s2 + $0x20] sm:$0x7f]
        %v285 = vld [vmem:[%s2 + $0x28] sm:$0x7f]
        %v286 = vld [vmem:[%s2 + $0x30] sm:$0x7f]
        %v287 = vld [vmem:[%s2 + $0x38] sm:$0x7f]
        %v288 = vld [vmem:[%s2 + $0x40] sm:$0x7f]
        %v289 = vld [vmem:[%s2 + $0x48] sm:$0x7f]
        %v290 = vld [vmem:[%s2 + $0x50] sm:$0x7f]
        %v291 = vld [vmem:[%s2 + $0x58] sm:$0x7f]
        %v292 = vld [vmem:[%s2 + $0x60] sm:$0x7f]
        %v293 = vld [vmem:[%s2 + $0x68] sm:$0x7f]
        %v294 = vld [vmem:[%s2 + $0x70] sm:$0x7f]
        %v295 = vld [vmem:[%s2 + $0x78] sm:$0x7f]
        %v296 = vld [vmem:[%s2 + $0x80] sm:$0x7f]
        %v297 = vld [vmem:[%s2 + $0x88] sm:$0x7f]
        %v298 = vld [vmem:[%s2 + $0x90] sm:$0x7f]
        %v299 = vld [vmem:[%s2 + $0x98] sm:$0x7f]
        %v300 = vld [vmem:[%s2 + $0xa0] sm:$0x7f]
        %v301 = vld [vmem:[%s2 + $0xa8] sm:$0x7f]
        %v302 = vld [vmem:[%s2 + $0xb0] sm:$0x7f]
        %v303 = vld [vmem:[%s2 + $0xb8] sm:$0x7f]
        %v304 = vld [vmem:[%s2 + $0xc0] sm:$0x7f]
        loop: start=0, step=1, limit=8
        $region33: #{kernel_generated_1_forward.1} parent=31 // loop_pre_header
          _
        $region34: #{kernel_generated_1_forward.1} parent=31 // loop_header
          %s306 = sphi 0, %s310
          %p307 = scmp.ge.s32.totalorder %s306, 8
        $region35: #{kernel_generated_1_forward.1} parent=31 // loop_header_branch
          %309 = sbr.rel (%p307) target = $region39
        $region36: #{kernel_generated_1_forward.1} parent=31 // loop_body
          %s311 = smul.u32 %s306, 75
          %s312 = smul.addr %s311, 8
          %s313 = scalar_lea.vmem %s172, %s312
          %v314 = vld [vmem:[%s313] sm:$0xff]
          %v315 = vld [vmem:[%s313 + $0x8] sm:$0xff]
          %v316 = vld [vmem:[%s313 + $0x10] sm:$0xff]
          %v317 = vld [vmem:[%s313 + $0x18] sm:$0xff]
          %v318 = vld [vmem:[%s313 + $0x20] sm:$0xff]
          %v319 = vld [vmem:[%s313 + $0x28] sm:$0xff]
          %v320 = vld [vmem:[%s313 + $0x30] sm:$0xff]
          %v321 = vld [vmem:[%s313 + $0x38] sm:$0xff]
          %v322 = vld [vmem:[%s313 + $0x40] sm:$0xff]
          %v323 = vld [vmem:[%s313 + $0x48] sm:$0xff]
          %v324 = vld [vmem:[%s313 + $0x50] sm:$0xff]
          %v325 = vld [vmem:[%s313 + $0x58] sm:$0xff]
          %v326 = vld [vmem:[%s313 + $0x60] sm:$0xff]
          %v327 = vld [vmem:[%s313 + $0x68] sm:$0xff]
          %v328 = vld [vmem:[%s313 + $0x70] sm:$0xff]
          %v329 = vld [vmem:[%s313 + $0x78] sm:$0xff]
          %v330 = vld [vmem:[%s313 + $0x80] sm:$0xff]
          %v331 = vld [vmem:[%s313 + $0x88] sm:$0xff]
          %v332 = vld [vmem:[%s313 + $0x90] sm:$0xff]
          %v333 = vld [vmem:[%s313 + $0x98] sm:$0xff]
          %v334 = vld [vmem:[%s313 + $0xa0] sm:$0xff]
          %v335 = vld [vmem:[%s313 + $0xa8] sm:$0xff]
          %v336 = vld [vmem:[%s313 + $0xb0] sm:$0xff]
          %v337 = vld [vmem:[%s313 + $0xb8] sm:$0xff]
          %v338 = vld [vmem:[%s313 + $0xc0] sm:$0xff]
          %v339 = vld [vmem:[%s313 + $0xc8] sm:$0xff]
          %v340 = vld [vmem:[%s313 + $0xd0] sm:$0xff]
          %v341 = vld [vmem:[%s313 + $0xd8] sm:$0xff]
          %v342 = vld [vmem:[%s313 + $0xe0] sm:$0xff]
          %v343 = vld [vmem:[%s313 + $0xe8] sm:$0xff]
          %v344 = vld [vmem:[%s313 + $0xf0] sm:$0xff]
          %v345 = vld [vmem:[%s313 + $0xf8] sm:$0xff]
          %v346 = vld [vmem:[%s313 + $0x100] sm:$0xff]
          %v347 = vld [vmem:[%s313 + $0x108] sm:$0xff]
          %v348 = vld [vmem:[%s313 + $0x110] sm:$0xff]
          %v349 = vld [vmem:[%s313 + $0x118] sm:$0xff]
          %v350 = vld [vmem:[%s313 + $0x120] sm:$0xff]
          %v351 = vld [vmem:[%s313 + $0x128] sm:$0xff]
          %v352 = vld [vmem:[%s313 + $0x130] sm:$0xff]
          %v353 = vld [vmem:[%s313 + $0x138] sm:$0xff]
          %v354 = vld [vmem:[%s313 + $0x140] sm:$0xff]
          %v355 = vld [vmem:[%s313 + $0x148] sm:$0xff]
          %v356 = vld [vmem:[%s313 + $0x150] sm:$0xff]
          %v357 = vld [vmem:[%s313 + $0x158] sm:$0xff]
          %v358 = vld [vmem:[%s313 + $0x160] sm:$0xff]
          %v359 = vld [vmem:[%s313 + $0x168] sm:$0xff]
          %v360 = vld [vmem:[%s313 + $0x170] sm:$0xff]
          %v361 = vld [vmem:[%s313 + $0x178] sm:$0xff]
          %v362 = vld [vmem:[%s313 + $0x180] sm:$0xff]
          %v363 = vld [vmem:[%s313 + $0x188] sm:$0xff]
          %v364 = vld [vmem:[%s313 + $0x190] sm:$0xff]
          %v365 = vld [vmem:[%s313 + $0x198] sm:$0xff]
          %v366 = vld [vmem:[%s313 + $0x1a0] sm:$0xff]
          %v367 = vld [vmem:[%s313 + $0x1a8] sm:$0xff]
          %v368 = vld [vmem:[%s313 + $0x1b0] sm:$0xff]
          %v369 = vld [vmem:[%s313 + $0x1b8] sm:$0xff]
          %v370 = vld [vmem:[%s313 + $0x1c0] sm:$0xff]
          %v371 = vld [vmem:[%s313 + $0x1c8] sm:$0xff]
          %v372 = vld [vmem:[%s313 + $0x1d0] sm:$0xff]
          %v373 = vld [vmem:[%s313 + $0x1d8] sm:$0xff]
          %v374 = vld [vmem:[%s313 + $0x1e0] sm:$0xff]
          %v375 = vld [vmem:[%s313 + $0x1e8] sm:$0xff]
          %v376 = vld [vmem:[%s313 + $0x1f0] sm:$0xff]
          %v377 = vld [vmem:[%s313 + $0x1f8] sm:$0xff]
          %v378 = vld [vmem:[%s313 + $0x200] sm:$0xff]
          %v379 = vld [vmem:[%s313 + $0x208] sm:$0xff]
          %v380 = vld [vmem:[%s313 + $0x210] sm:$0xff]
          %v381 = vld [vmem:[%s313 + $0x218] sm:$0xff]
          %v382 = vld [vmem:[%s313 + $0x220] sm:$0xff]
          %v383 = vld [vmem:[%s313 + $0x228] sm:$0xff]
          %v384 = vld [vmem:[%s313 + $0x230] sm:$0xff]
          %v385 = vld [vmem:[%s313 + $0x238] sm:$0xff]
          %v386 = vld [vmem:[%s313 + $0x240] sm:$0xff]
          %v387 = vld [vmem:[%s313 + $0x248] sm:$0xff]
          %v388 = vld [vmem:[%s313 + $0x250] sm:$0xff]
          %392 = vrot.lane.b32.xlu0 %v338, 123
          %v393 = vpop.permute.xlu0 %392
          %394 = vrot.lane.b32.xlu0 %v363, 123
          %v395 = vpop.permute.xlu0 %394
          %396 = vrot.lane.b32.xlu0 %v388, 123
          %v397 = vpop.permute.xlu0 %396
          %473 = vrot.lane.b32.xlu0 %v314, 59
          %v474 = vpop.permute.xlu0 %473
          %475 = vrot.lane.b32.xlu0 %v315, 59
          %v476 = vpop.permute.xlu0 %475
          %477 = vrot.lane.b32.xlu0 %v316, 59
          %v478 = vpop.permute.xlu0 %477
          %479 = vrot.lane.b32.xlu0 %v317, 59
          %v480 = vpop.permute.xlu0 %479
          %481 = vrot.lane.b32.xlu0 %v318, 59
          %v482 = vpop.permute.xlu0 %481
          %483 = vrot.lane.b32.xlu0 %v319, 59
          %v484 = vpop.permute.xlu0 %483
          %485 = vrot.lane.b32.xlu0 %v320, 59
          %v486 = vpop.permute.xlu0 %485
          %487 = vrot.lane.b32.xlu0 %v321, 59
          %v488 = vpop.permute.xlu0 %487
          %489 = vrot.lane.b32.xlu0 %v322, 59
          %v490 = vpop.permute.xlu0 %489
          %491 = vrot.lane.b32.xlu0 %v323, 59
          %v492 = vpop.permute.xlu0 %491
          %493 = vrot.lane.b32.xlu0 %v324, 59
          %v494 = vpop.permute.xlu0 %493
          %495 = vrot.lane.b32.xlu0 %v325, 59
          %v496 = vpop.permute.xlu0 %495
          %497 = vrot.lane.b32.xlu0 %v326, 59
          %v498 = vpop.permute.xlu0 %497
          %499 = vrot.lane.b32.xlu0 %v327, 59
          %v500 = vpop.permute.xlu0 %499
          %501 = vrot.lane.b32.xlu0 %v328, 59
          %v502 = vpop.permute.xlu0 %501
          %503 = vrot.lane.b32.xlu0 %v329, 59
          %v504 = vpop.permute.xlu0 %503
          %505 = vrot.lane.b32.xlu0 %v330, 59
          %v506 = vpop.permute.xlu0 %505
          %507 = vrot.lane.b32.xlu0 %v331, 59
          %v508 = vpop.permute.xlu0 %507
          %509 = vrot.lane.b32.xlu0 %v332, 59
          %v510 = vpop.permute.xlu0 %509
          %511 = vrot.lane.b32.xlu0 %v333, 59
          %v512 = vpop.permute.xlu0 %511
          %513 = vrot.lane.b32.xlu0 %v334, 59
          %v514 = vpop.permute.xlu0 %513
          %515 = vrot.lane.b32.xlu0 %v335, 59
          %v516 = vpop.permute.xlu0 %515
          %517 = vrot.lane.b32.xlu0 %v336, 59
          %v518 = vpop.permute.xlu0 %517
          %519 = vrot.lane.b32.xlu0 %v337, 59
          %v520 = vpop.permute.xlu0 %519
          %521 = vrot.lane.b32.xlu0 %v338, 59
          %v522 = vpop.permute.xlu0 %521
          %523 = vrot.lane.b32.xlu0 %v339, 59
          %v524 = vpop.permute.xlu0 %523
          %525 = vrot.lane.b32.xlu0 %v340, 59
          %v526 = vpop.permute.xlu0 %525
          %527 = vrot.lane.b32.xlu0 %v341, 59
          %v528 = vpop.permute.xlu0 %527
          %529 = vrot.lane.b32.xlu0 %v342, 59
          %v530 = vpop.permute.xlu0 %529
          %531 = vrot.lane.b32.xlu0 %v343, 59
          %v532 = vpop.permute.xlu0 %531
          %533 = vrot.lane.b32.xlu0 %v344, 59
          %v534 = vpop.permute.xlu0 %533
          %535 = vrot.lane.b32.xlu0 %v345, 59
          %v536 = vpop.permute.xlu0 %535
          %537 = vrot.lane.b32.xlu0 %v346, 59
          %v538 = vpop.permute.xlu0 %537
          %539 = vrot.lane.b32.xlu0 %v347, 59
          %v540 = vpop.permute.xlu0 %539
          %541 = vrot.lane.b32.xlu0 %v348, 59
          %v542 = vpop.permute.xlu0 %541
          %543 = vrot.lane.b32.xlu0 %v349, 59
          %v544 = vpop.permute.xlu0 %543
          %545 = vrot.lane.b32.xlu0 %v350, 59
          %v546 = vpop.permute.xlu0 %545
          %547 = vrot.lane.b32.xlu0 %v351, 59
          %v548 = vpop.permute.xlu0 %547
          %549 = vrot.lane.b32.xlu0 %v352, 59
          %v550 = vpop.permute.xlu0 %549
          %551 = vrot.lane.b32.xlu0 %v353, 59
          %v552 = vpop.permute.xlu0 %551
          %553 = vrot.lane.b32.xlu0 %v354, 59
          %v554 = vpop.permute.xlu0 %553
          %555 = vrot.lane.b32.xlu0 %v355, 59
          %v556 = vpop.permute.xlu0 %555
          %557 = vrot.lane.b32.xlu0 %v356, 59
          %v558 = vpop.permute.xlu0 %557
          %559 = vrot.lane.b32.xlu0 %v357, 59
          %v560 = vpop.permute.xlu0 %559
          %561 = vrot.lane.b32.xlu0 %v358, 59
          %v562 = vpop.permute.xlu0 %561
          %563 = vrot.lane.b32.xlu0 %v359, 59
          %v564 = vpop.permute.xlu0 %563
          %565 = vrot.lane.b32.xlu0 %v360, 59
          %v566 = vpop.permute.xlu0 %565
          %567 = vrot.lane.b32.xlu0 %v361, 59
          %v568 = vpop.permute.xlu0 %567
          %569 = vrot.lane.b32.xlu0 %v362, 59
          %v570 = vpop.permute.xlu0 %569
          %571 = vrot.lane.b32.xlu0 %v363, 59
          %v572 = vpop.permute.xlu0 %571
          %573 = vrot.lane.b32.xlu0 %v364, 59
          %v574 = vpop.permute.xlu0 %573
          %575 = vrot.lane.b32.xlu0 %v365, 59
          %v576 = vpop.permute.xlu0 %575
          %577 = vrot.lane.b32.xlu0 %v366, 59
          %v578 = vpop.permute.xlu0 %577
          %579 = vrot.lane.b32.xlu0 %v367, 59
          %v580 = vpop.permute.xlu0 %579
          %581 = vrot.lane.b32.xlu0 %v368, 59
          %v582 = vpop.permute.xlu0 %581
          %583 = vrot.lane.b32.xlu0 %v369, 59
          %v584 = vpop.permute.xlu0 %583
          %585 = vrot.lane.b32.xlu0 %v370, 59
          %v586 = vpop.permute.xlu0 %585
          %587 = vrot.lane.b32.xlu0 %v371, 59
          %v588 = vpop.permute.xlu0 %587
          %589 = vrot.lane.b32.xlu0 %v372, 59
          %v590 = vpop.permute.xlu0 %589
          %591 = vrot.lane.b32.xlu0 %v373, 59
          %v592 = vpop.permute.xlu0 %591
          %593 = vrot.lane.b32.xlu0 %v374, 59
          %v594 = vpop.permute.xlu0 %593
          %595 = vrot.lane.b32.xlu0 %v375, 59
          %v596 = vpop.permute.xlu0 %595
          %597 = vrot.lane.b32.xlu0 %v376, 59
          %v598 = vpop.permute.xlu0 %597
          %599 = vrot.lane.b32.xlu0 %v377, 59
          %v600 = vpop.permute.xlu0 %599
          %601 = vrot.lane.b32.xlu0 %v378, 59
          %v602 = vpop.permute.xlu0 %601
          %603 = vrot.lane.b32.xlu0 %v379, 59
          %v604 = vpop.permute.xlu0 %603
          %605 = vrot.lane.b32.xlu0 %v380, 59
          %v606 = vpop.permute.xlu0 %605
          %607 = vrot.lane.b32.xlu0 %v381, 59
          %v608 = vpop.permute.xlu0 %607
          %609 = vrot.lane.b32.xlu0 %v382, 59
          %v610 = vpop.permute.xlu0 %609
          %611 = vrot.lane.b32.xlu0 %v383, 59
          %v612 = vpop.permute.xlu0 %611
          %613 = vrot.lane.b32.xlu0 %v384, 59
          %v614 = vpop.permute.xlu0 %613
          %615 = vrot.lane.b32.xlu0 %v385, 59
          %v616 = vpop.permute.xlu0 %615
          %617 = vrot.lane.b32.xlu0 %v386, 59
          %v618 = vpop.permute.xlu0 %617
          %619 = vrot.lane.b32.xlu0 %v387, 59
          %v620 = vpop.permute.xlu0 %619
          %621 = vrot.lane.b32.xlu0 %v388, 59
          %v622 = vpop.permute.xlu0 %621
          %vm623 = vcmask 482304
          %v624 = vsel %vm623, %v474, %v476
          %v625 = vsel %vm623, %v476, %v478
          %v626 = vsel %vm623, %v478, %v480
          %v627 = vsel %vm623, %v480, %v482
          %v628 = vsel %vm623, %v482, %v484
          %v629 = vsel %vm623, %v484, %v486
          %v630 = vsel %vm623, %v486, %v488
          %v631 = vsel %vm623, %v488, %v490
          %v632 = vsel %vm623, %v490, %v492
          %v633 = vsel %vm623, %v492, %v494
          %v634 = vsel %vm623, %v494, %v496
          %v635 = vsel %vm623, %v496, %v498
          %v636 = vsel %vm623, %v498, %v500
          %v637 = vsel %vm623, %v500, %v502
          %v638 = vsel %vm623, %v502, %v504
          %v639 = vsel %vm623, %v504, %v506
          %v640 = vsel %vm623, %v506, %v508
          %v641 = vsel %vm623, %v508, %v510
          %v642 = vsel %vm623, %v510, %v512
          %v643 = vsel %vm623, %v512, %v514
          %v644 = vsel %vm623, %v514, %v516
          %v645 = vsel %vm623, %v516, %v518
          %v646 = vsel %vm623, %v518, %v520
          %v647 = vsel %vm623, %v520, %v522
          %v648 = vsel %vm623, %v524, %v526
          %v649 = vsel %vm623, %v526, %v528
          %v650 = vsel %vm623, %v528, %v530
          %v651 = vsel %vm623, %v530, %v532
          %v652 = vsel %vm623, %v532, %v534
          %v653 = vsel %vm623, %v534, %v536
          %v654 = vsel %vm623, %v536, %v538
          %v655 = vsel %vm623, %v538, %v540
          %v656 = vsel %vm623, %v540, %v542
          %v657 = vsel %vm623, %v542, %v544
          %v658 = vsel %vm623, %v544, %v546
          %v659 = vsel %vm623, %v546, %v548
          %v660 = vsel %vm623, %v548, %v550
          %v661 = vsel %vm623, %v550, %v552
          %v662 = vsel %vm623, %v552, %v554
          %v663 = vsel %vm623, %v554, %v556
          %v664 = vsel %vm623, %v556, %v558
          %v665 = vsel %vm623, %v558, %v560
          %v666 = vsel %vm623, %v560, %v562
          %v667 = vsel %vm623, %v562, %v564
          %v668 = vsel %vm623, %v564, %v566
          %v669 = vsel %vm623, %v566, %v568
          %v670 = vsel %vm623, %v568, %v570
          %v671 = vsel %vm623, %v570, %v572
          %v672 = vsel %vm623, %v574, %v576
          %v673 = vsel %vm623, %v576, %v578
          %v674 = vsel %vm623, %v578, %v580
          %v675 = vsel %vm623, %v580, %v582
          %v676 = vsel %vm623, %v582, %v584
          %v677 = vsel %vm623, %v584, %v586
          %v678 = vsel %vm623, %v586, %v588
          %v679 = vsel %vm623, %v588, %v590
          %v680 = vsel %vm623, %v590, %v592
          %v681 = vsel %vm623, %v592, %v594
          %v682 = vsel %vm623, %v594, %v596
          %v683 = vsel %vm623, %v596, %v598
          %v684 = vsel %vm623, %v598, %v600
          %v685 = vsel %vm623, %v600, %v602
          %v686 = vsel %vm623, %v602, %v604
          %v687 = vsel %vm623, %v604, %v606
          %v688 = vsel %vm623, %v606, %v608
          %v689 = vsel %vm623, %v608, %v610
          %v690 = vsel %vm623, %v610, %v612
          %v691 = vsel %vm623, %v612, %v614
          %v692 = vsel %vm623, %v614, %v616
          %v693 = vsel %vm623, %v616, %v618
          %v694 = vsel %vm623, %v618, %v620
          %v695 = vsel %vm623, %v620, %v622
          %v771 = vsel %vm623, %v393, %v474
          %v772 = vsel %vm623, %v395, %v524
          %v773 = vsel %vm623, %v397, %v574
          %v774 = vperm.slane %v280, 0
          %v775 = vperm.slane %v281, 0
          %v776 = vperm.slane %v282, 0
          %v777 = vperm.slane %v283, 0
          %v778 = vperm.slane %v284, 0
          %v779 = vperm.slane %v285, 0
          %v780 = vperm.slane %v286, 0
          %v781 = vperm.slane %v287, 0
          %v782 = vperm.slane %v288, 0
          %v783 = vperm.slane %v289, 0
          %v784 = vperm.slane %v290, 0
          %v785 = vperm.slane %v291, 0
          %v786 = vperm.slane %v292, 0
          %v787 = vperm.slane %v293, 0
          %v788 = vperm.slane %v294, 0
          %v789 = vperm.slane %v295, 0
          %v790 = vperm.slane %v296, 0
          %v791 = vperm.slane %v297, 0
          %v792 = vperm.slane %v298, 0
          %v793 = vperm.slane %v299, 0
          %v794 = vperm.slane %v300, 0
          %v795 = vperm.slane %v301, 0
          %v796 = vperm.slane %v302, 0
          %v797 = vperm.slane %v303, 0
          %v798 = vperm.slane %v304, 0
          %v799 = vmul.f32 %v771, %v774
          %v800 = vmul.f32 %v624, %v775
          %v801 = vmul.f32 %v625, %v776
          %v802 = vmul.f32 %v626, %v777
          %v803 = vmul.f32 %v627, %v778
          %v804 = vmul.f32 %v628, %v779
          %v805 = vmul.f32 %v629, %v780
          %v806 = vmul.f32 %v630, %v781
          %v807 = vmul.f32 %v631, %v782
          %v808 = vmul.f32 %v632, %v783
          %v809 = vmul.f32 %v633, %v784
          %v810 = vmul.f32 %v634, %v785
          %v811 = vmul.f32 %v635, %v786
          %v812 = vmul.f32 %v636, %v787
          %v813 = vmul.f32 %v637, %v788
          %v814 = vmul.f32 %v638, %v789
          %v815 = vmul.f32 %v639, %v790
          %v816 = vmul.f32 %v640, %v791
          %v817 = vmul.f32 %v641, %v792
          %v818 = vmul.f32 %v642, %v793
          %v819 = vmul.f32 %v643, %v794
          %v820 = vmul.f32 %v644, %v795
          %v821 = vmul.f32 %v645, %v796
          %v822 = vmul.f32 %v646, %v797
          %v823 = vmul.f32 %v647, %v798
          %v824 = vmul.f32 %v772, %v774
          %v825 = vmul.f32 %v648, %v775
          %v826 = vmul.f32 %v649, %v776
          %v827 = vmul.f32 %v650, %v777
          %v828 = vmul.f32 %v651, %v778
          %v829 = vmul.f32 %v652, %v779
          %v830 = vmul.f32 %v653, %v780
          %v831 = vmul.f32 %v654, %v781
          %v832 = vmul.f32 %v655, %v782
          %v833 = vmul.f32 %v656, %v783
          %v834 = vmul.f32 %v657, %v784
          %v835 = vmul.f32 %v658, %v785
          %v836 = vmul.f32 %v659, %v786
          %v837 = vmul.f32 %v660, %v787
          %v838 = vmul.f32 %v661, %v788
          %v839 = vmul.f32 %v662, %v789
          %v840 = vmul.f32 %v663, %v790
          %v841 = vmul.f32 %v664, %v791
          %v842 = vmul.f32 %v665, %v792
          %v843 = vmul.f32 %v666, %v793
          %v844 = vmul.f32 %v667, %v794
          %v845 = vmul.f32 %v668, %v795
          %v846 = vmul.f32 %v669, %v796
          %v847 = vmul.f32 %v670, %v797
          %v848 = vmul.f32 %v671, %v798
          %v849 = vmul.f32 %v773, %v774
          %v850 = vmul.f32 %v672, %v775
          %v851 = vmul.f32 %v673, %v776
          %v852 = vmul.f32 %v674, %v777
          %v853 = vmul.f32 %v675, %v778
          %v854 = vmul.f32 %v676, %v779
          %v855 = vmul.f32 %v677, %v780
          %v856 = vmul.f32 %v678, %v781
          %v857 = vmul.f32 %v679, %v782
          %v858 = vmul.f32 %v680, %v783
          %v859 = vmul.f32 %v681, %v784
          %v860 = vmul.f32 %v682, %v785
          %v861 = vmul.f32 %v683, %v786
          %v862 = vmul.f32 %v684, %v787
          %v863 = vmul.f32 %v685, %v788
          %v864 = vmul.f32 %v686, %v789
          %v865 = vmul.f32 %v687, %v790
          %v866 = vmul.f32 %v688, %v791
          %v867 = vmul.f32 %v689, %v792
          %v868 = vmul.f32 %v690, %v793
          %v869 = vmul.f32 %v691, %v794
          %v870 = vmul.f32 %v692, %v795
          %v871 = vmul.f32 %v693, %v796
          %v872 = vmul.f32 %v694, %v797
          %v873 = vmul.f32 %v695, %v798
          %v874 = vpack.c.bf16 %v800, %v799
          %v875 = vpack.c.bf16 %v802, %v801
          %v876 = vpack.c.bf16 %v804, %v803
          %v877 = vpack.c.bf16 %v806, %v805
          %v878 = vpack.c.bf16 %v808, %v807
          %v879 = vpack.c.bf16 %v810, %v809
          %v880 = vpack.c.bf16 %v812, %v811
          %v881 = vpack.c.bf16 %v814, %v813
          %v882 = vpack.c.bf16 %v816, %v815
          %v883 = vpack.c.bf16 %v818, %v817
          %v884 = vpack.c.bf16 %v820, %v819
          %v885 = vpack.c.bf16 %v822, %v821
          %v886 = vpack.c.bf16 %v823, %v823
          %v887 = vpack.c.bf16 %v825, %v824
          %v888 = vpack.c.bf16 %v827, %v826
          %v889 = vpack.c.bf16 %v829, %v828
          %v890 = vpack.c.bf16 %v831, %v830
          %v891 = vpack.c.bf16 %v833, %v832
          %v892 = vpack.c.bf16 %v835, %v834
          %v893 = vpack.c.bf16 %v837, %v836
          %v894 = vpack.c.bf16 %v839, %v838
          %v895 = vpack.c.bf16 %v841, %v840
          %v896 = vpack.c.bf16 %v843, %v842
          %v897 = vpack.c.bf16 %v845, %v844
          %v898 = vpack.c.bf16 %v847, %v846
          %v899 = vpack.c.bf16 %v848, %v848
          %v900 = vpack.c.bf16 %v850, %v849
          %v901 = vpack.c.bf16 %v852, %v851
          %v902 = vpack.c.bf16 %v854, %v853
          %v903 = vpack.c.bf16 %v856, %v855
          %v904 = vpack.c.bf16 %v858, %v857
          %v905 = vpack.c.bf16 %v860, %v859
          %v906 = vpack.c.bf16 %v862, %v861
          %v907 = vpack.c.bf16 %v864, %v863
          %v908 = vpack.c.bf16 %v866, %v865
          %v909 = vpack.c.bf16 %v868, %v867
          %v910 = vpack.c.bf16 %v870, %v869
          %v911 = vpack.c.bf16 %v872, %v871
          %v912 = vpack.c.bf16 %v873, %v873
          %913 = vst [vmem:[#allocation2] sm:$0xff] %v874
          %914 = vst [vmem:[#allocation2 + $0x8] sm:$0xff] %v875
          %915 = vst [vmem:[#allocation2 + $0x10] sm:$0xff] %v876
          %916 = vst [vmem:[#allocation2 + $0x18] sm:$0xff] %v877
          %917 = vst [vmem:[#allocation2 + $0x20] sm:$0xff] %v878
          %918 = vst [vmem:[#allocation2 + $0x28] sm:$0xff] %v879
          %919 = vst [vmem:[#allocation2 + $0x30] sm:$0xff] %v880
          %920 = vst [vmem:[#allocation2 + $0x38] sm:$0xff] %v881
          %921 = vst [vmem:[#allocation2 + $0x40] sm:$0xff] %v882
          %922 = vst [vmem:[#allocation2 + $0x48] sm:$0xff] %v883
          %923 = vst [vmem:[#allocation2 + $0x50] sm:$0xff] %v884
          %924 = vst [vmem:[#allocation2 + $0x58] sm:$0xff] %v885
          %925 = vst.msk [vmem:[#allocation2 + $0x60] sm:$0xf] %vm188, %v886
          %926 = vst [vmem:[#allocation2 + $0x64] sm:$0xff] %v887
          %927 = vst [vmem:[#allocation2 + $0x6c] sm:$0xff] %v888
          %928 = vst [vmem:[#allocation2 + $0x74] sm:$0xff] %v889
          %929 = vst [vmem:[#allocation2 + $0x7c] sm:$0xff] %v890
          %930 = vst [vmem:[#allocation2 + $0x84] sm:$0xff] %v891
          %931 = vst [vmem:[#allocation2 + $0x8c] sm:$0xff] %v892
          %932 = vst [vmem:[#allocation2 + $0x94] sm:$0xff] %v893
          %933 = vst [vmem:[#allocation2 + $0x9c] sm:$0xff] %v894
          %934 = vst [vmem:[#allocation2 + $0xa4] sm:$0xff] %v895
          %935 = vst [vmem:[#allocation2 + $0xac] sm:$0xff] %v896
          %936 = vst [vmem:[#allocation2 + $0xb4] sm:$0xff] %v897
          %937 = vst [vmem:[#allocation2 + $0xbc] sm:$0xff] %v898
          %938 = vst.msk [vmem:[#allocation2 + $0xc4] sm:$0xf] %vm188, %v899
          %939 = vst [vmem:[#allocation2 + $0xc8] sm:$0xff] %v900
          %940 = vst [vmem:[#allocation2 + $0xd0] sm:$0xff] %v901
          %941 = vst [vmem:[#allocation2 + $0xd8] sm:$0xff] %v902
          %942 = vst [vmem:[#allocation2 + $0xe0] sm:$0xff] %v903
          %943 = vst [vmem:[#allocation2 + $0xe8] sm:$0xff] %v904
          %944 = vst [vmem:[#allocation2 + $0xf0] sm:$0xff] %v905
          %945 = vst [vmem:[#allocation2 + $0xf8] sm:$0xff] %v906
          %946 = vst [vmem:[#allocation2 + $0x100] sm:$0xff] %v907
          %947 = vst [vmem:[#allocation2 + $0x108] sm:$0xff] %v908
          %948 = vst [vmem:[#allocation2 + $0x110] sm:$0xff] %v909
          %949 = vst [vmem:[#allocation2 + $0x118] sm:$0xff] %v910
          %950 = vst [vmem:[#allocation2 + $0x120] sm:$0xff] %v911
          %951 = vst.msk [vmem:[#allocation2 + $0x128] sm:$0xf] %vm188, %v912
          %v952 = vld [vmem:[%s313] sm:$0xff]
          %v953 = vld [vmem:[%s313 + $0x8] sm:$0xff]
          %v954 = vld [vmem:[%s313 + $0x10] sm:$0xff]
          %v955 = vld [vmem:[%s313 + $0x18] sm:$0xff]
          %v956 = vld [vmem:[%s313 + $0x20] sm:$0xff]
          %v957 = vld [vmem:[%s313 + $0x28] sm:$0xff]
          %v958 = vld [vmem:[%s313 + $0x30] sm:$0xff]
          %v959 = vld [vmem:[%s313 + $0x38] sm:$0xff]
          %v960 = vld [vmem:[%s313 + $0x40] sm:$0xff]
          %v961 = vld [vmem:[%s313 + $0x48] sm:$0xff]
          %v962 = vld [vmem:[%s313 + $0x50] sm:$0xff]
          %v963 = vld [vmem:[%s313 + $0x58] sm:$0xff]
          %v964 = vld [vmem:[%s313 + $0x60] sm:$0xff]
          %v965 = vld [vmem:[%s313 + $0x68] sm:$0xff]
          %v966 = vld [vmem:[%s313 + $0x70] sm:$0xff]
          %v967 = vld [vmem:[%s313 + $0x78] sm:$0xff]
          %v968 = vld [vmem:[%s313 + $0x80] sm:$0xff]
          %v969 = vld [vmem:[%s313 + $0x88] sm:$0xff]
          %v970 = vld [vmem:[%s313 + $0x90] sm:$0xff]
          %v971 = vld [vmem:[%s313 + $0x98] sm:$0xff]
          %v972 = vld [vmem:[%s313 + $0xa0] sm:$0xff]
          %v973 = vld [vmem:[%s313 + $0xa8] sm:$0xff]
          %v974 = vld [vmem:[%s313 + $0xb0] sm:$0xff]
          %v975 = vld [vmem:[%s313 + $0xb8] sm:$0xff]
          %v976 = vld [vmem:[%s313 + $0xc0] sm:$0xff]
          %v977 = vld [vmem:[%s313 + $0xc8] sm:$0xff]
          %v978 = vld [vmem:[%s313 + $0xd0] sm:$0xff]
          %v979 = vld [vmem:[%s313 + $0xd8] sm:$0xff]
          %v980 = vld [vmem:[%s313 + $0xe0] sm:$0xff]
          %v981 = vld [vmem:[%s313 + $0xe8] sm:$0xff]
          %v982 = vld [vmem:[%s313 + $0xf0] sm:$0xff]
          %v983 = vld [vmem:[%s313 + $0xf8] sm:$0xff]
          %v984 = vld [vmem:[%s313 + $0x100] sm:$0xff]
          %v985 = vld [vmem:[%s313 + $0x108] sm:$0xff]
          %v986 = vld [vmem:[%s313 + $0x110] sm:$0xff]
          %v987 = vld [vmem:[%s313 + $0x118] sm:$0xff]
          %v988 = vld [vmem:[%s313 + $0x120] sm:$0xff]
          %v989 = vld [vmem:[%s313 + $0x128] sm:$0xff]
          %v990 = vld [vmem:[%s313 + $0x130] sm:$0xff]
          %v991 = vld [vmem:[%s313 + $0x138] sm:$0xff]
          %v992 = vld [vmem:[%s313 + $0x140] sm:$0xff]
          %v993 = vld [vmem:[%s313 + $0x148] sm:$0xff]
          %v994 = vld [vmem:[%s313 + $0x150] sm:$0xff]
          %v995 = vld [vmem:[%s313 + $0x158] sm:$0xff]
          %v996 = vld [vmem:[%s313 + $0x160] sm:$0xff]
          %v997 = vld [vmem:[%s313 + $0x168] sm:$0xff]
          %v998 = vld [vmem:[%s313 + $0x170] sm:$0xff]
          %v999 = vld [vmem:[%s313 + $0x178] sm:$0xff]
          %v1000 = vld [vmem:[%s313 + $0x180] sm:$0xff]
          %v1001 = vld [vmem:[%s313 + $0x188] sm:$0xff]
          %v1002 = vld [vmem:[%s313 + $0x190] sm:$0xff]
          %v1003 = vld [vmem:[%s313 + $0x198] sm:$0xff]
          %v1004 = vld [vmem:[%s313 + $0x1a0] sm:$0xff]
          %v1005 = vld [vmem:[%s313 + $0x1a8] sm:$0xff]
          %v1006 = vld [vmem:[%s313 + $0x1b0] sm:$0xff]
          %v1007 = vld [vmem:[%s313 + $0x1b8] sm:$0xff]
          %v1008 = vld [vmem:[%s313 + $0x1c0] sm:$0xff]
          %v1009 = vld [vmem:[%s313 + $0x1c8] sm:$0xff]
          %v1010 = vld [vmem:[%s313 + $0x1d0] sm:$0xff]
          %v1011 = vld [vmem:[%s313 + $0x1d8] sm:$0xff]
          %v1012 = vld [vmem:[%s313 + $0x1e0] sm:$0xff]
          %v1013 = vld [vmem:[%s313 + $0x1e8] sm:$0xff]
          %v1014 = vld [vmem:[%s313 + $0x1f0] sm:$0xff]
          %v1015 = vld [vmem:[%s313 + $0x1f8] sm:$0xff]
          %v1016 = vld [vmem:[%s313 + $0x200] sm:$0xff]
          %v1017 = vld [vmem:[%s313 + $0x208] sm:$0xff]
          %v1018 = vld [vmem:[%s313 + $0x210] sm:$0xff]
          %v1019 = vld [vmem:[%s313 + $0x218] sm:$0xff]
          %v1020 = vld [vmem:[%s313 + $0x220] sm:$0xff]
          %v1021 = vld [vmem:[%s313 + $0x228] sm:$0xff]
          %v1022 = vld [vmem:[%s313 + $0x230] sm:$0xff]
          %v1023 = vld [vmem:[%s313 + $0x238] sm:$0xff]
          %v1024 = vld [vmem:[%s313 + $0x240] sm:$0xff]
          %v1025 = vld [vmem:[%s313 + $0x248] sm:$0xff]
          %v1026 = vld [vmem:[%s313 + $0x250] sm:$0xff]
          %1030 = vrot.lane.b32.xlu0 %v976, 122
          %v1031 = vpop.permute.xlu0 %1030
          %1032 = vrot.lane.b32.xlu0 %v1001, 122
          %v1033 = vpop.permute.xlu0 %1032
          %1034 = vrot.lane.b32.xlu0 %v1026, 122
          %v1035 = vpop.permute.xlu0 %1034
          %1111 = vrot.lane.b32.xlu0 %v952, 58
          %v1112 = vpop.permute.xlu0 %1111
          %1113 = vrot.lane.b32.xlu0 %v953, 58
          %v1114 = vpop.permute.xlu0 %1113
          %1115 = vrot.lane.b32.xlu0 %v954, 58
          %v1116 = vpop.permute.xlu0 %1115
          %1117 = vrot.lane.b32.xlu0 %v955, 58
          %v1118 = vpop.permute.xlu0 %1117
          %1119 = vrot.lane.b32.xlu0 %v956, 58
          %v1120 = vpop.permute.xlu0 %1119
          %1121 = vrot.lane.b32.xlu0 %v957, 58
          %v1122 = vpop.permute.xlu0 %1121
          %1123 = vrot.lane.b32.xlu0 %v958, 58
          %v1124 = vpop.permute.xlu0 %1123
          %1125 = vrot.lane.b32.xlu0 %v959, 58
          %v1126 = vpop.permute.xlu0 %1125
          %1127 = vrot.lane.b32.xlu0 %v960, 58
          %v1128 = vpop.permute.xlu0 %1127
          %1129 = vrot.lane.b32.xlu0 %v961, 58
          %v1130 = vpop.permute.xlu0 %1129
          %1131 = vrot.lane.b32.xlu0 %v962, 58
          %v1132 = vpop.permute.xlu0 %1131
          %1133 = vrot.lane.b32.xlu0 %v963, 58
          %v1134 = vpop.permute.xlu0 %1133
          %1135 = vrot.lane.b32.xlu0 %v964, 58
          %v1136 = vpop.permute.xlu0 %1135
          %1137 = vrot.lane.b32.xlu0 %v965, 58
          %v1138 = vpop.permute.xlu0 %1137
          %1139 = vrot.lane.b32.xlu0 %v966, 58
          %v1140 = vpop.permute.xlu0 %1139
          %1141 = vrot.lane.b32.xlu0 %v967, 58
          %v1142 = vpop.permute.xlu0 %1141
          %1143 = vrot.lane.b32.xlu0 %v968, 58
          %v1144 = vpop.permute.xlu0 %1143
          %1145 = vrot.lane.b32.xlu0 %v969, 58
          %v1146 = vpop.permute.xlu0 %1145
          %1147 = vrot.lane.b32.xlu0 %v970, 58
          %v1148 = vpop.permute.xlu0 %1147
          %1149 = vrot.lane.b32.xlu0 %v971, 58
          %v1150 = vpop.permute.xlu0 %1149
          %1151 = vrot.lane.b32.xlu0 %v972, 58
          %v1152 = vpop.permute.xlu0 %1151
          %1153 = vrot.lane.b32.xlu0 %v973, 58
          %v1154 = vpop.permute.xlu0 %1153
          %1155 = vrot.lane.b32.xlu0 %v974, 58
          %v1156 = vpop.permute.xlu0 %1155
          %1157 = vrot.lane.b32.xlu0 %v975, 58
          %v1158 = vpop.permute.xlu0 %1157
          %1159 = vrot.lane.b32.xlu0 %v976, 58
          %v1160 = vpop.permute.xlu0 %1159
          %1161 = vrot.lane.b32.xlu0 %v977, 58
          %v1162 = vpop.permute.xlu0 %1161
          %1163 = vrot.lane.b32.xlu0 %v978, 58
          %v1164 = vpop.permute.xlu0 %1163
          %1165 = vrot.lane.b32.xlu0 %v979, 58
          %v1166 = vpop.permute.xlu0 %1165
          %1167 = vrot.lane.b32.xlu0 %v980, 58
          %v1168 = vpop.permute.xlu0 %1167
          %1169 = vrot.lane.b32.xlu0 %v981, 58
          %v1170 = vpop.permute.xlu0 %1169
          %1171 = vrot.lane.b32.xlu0 %v982, 58
          %v1172 = vpop.permute.xlu0 %1171
          %1173 = vrot.lane.b32.xlu0 %v983, 58
          %v1174 = vpop.permute.xlu0 %1173
          %1175 = vrot.lane.b32.xlu0 %v984, 58
          %v1176 = vpop.permute.xlu0 %1175
          %1177 = vrot.lane.b32.xlu0 %v985, 58
          %v1178 = vpop.permute.xlu0 %1177
          %1179 = vrot.lane.b32.xlu0 %v986, 58
          %v1180 = vpop.permute.xlu0 %1179
          %1181 = vrot.lane.b32.xlu0 %v987, 58
          %v1182 = vpop.permute.xlu0 %1181
          %1183 = vrot.lane.b32.xlu0 %v988, 58
          %v1184 = vpop.permute.xlu0 %1183
          %1185 = vrot.lane.b32.xlu0 %v989, 58
          %v1186 = vpop.permute.xlu0 %1185
          %1187 = vrot.lane.b32.xlu0 %v990, 58
          %v1188 = vpop.permute.xlu0 %1187
          %1189 = vrot.lane.b32.xlu0 %v991, 58
          %v1190 = vpop.permute.xlu0 %1189
          %1191 = vrot.lane.b32.xlu0 %v992, 58
          %v1192 = vpop.permute.xlu0 %1191
          %1193 = vrot.lane.b32.xlu0 %v993, 58
          %v1194 = vpop.permute.xlu0 %1193
          %1195 = vrot.lane.b32.xlu0 %v994, 58
          %v1196 = vpop.permute.xlu0 %1195
          %1197 = vrot.lane.b32.xlu0 %v995, 58
          %v1198 = vpop.permute.xlu0 %1197
          %1199 = vrot.lane.b32.xlu0 %v996, 58
          %v1200 = vpop.permute.xlu0 %1199
          %1201 = vrot.lane.b32.xlu0 %v997, 58
          %v1202 = vpop.permute.xlu0 %1201
          %1203 = vrot.lane.b32.xlu0 %v998, 58
          %v1204 = vpop.permute.xlu0 %1203
          %1205 = vrot.lane.b32.xlu0 %v999, 58
          %v1206 = vpop.permute.xlu0 %1205
          %1207 = vrot.lane.b32.xlu0 %v1000, 58
          %v1208 = vpop.permute.xlu0 %1207
          %1209 = vrot.lane.b32.xlu0 %v1001, 58
          %v1210 = vpop.permute.xlu0 %1209
          %1211 = vrot.lane.b32.xlu0 %v1002, 58
          %v1212 = vpop.permute.xlu0 %1211
          %1213 = vrot.lane.b32.xlu0 %v1003, 58
          %v1214 = vpop.permute.xlu0 %1213
          %1215 = vrot.lane.b32.xlu0 %v1004, 58
          %v1216 = vpop.permute.xlu0 %1215
          %1217 = vrot.lane.b32.xlu0 %v1005, 58
          %v1218 = vpop.permute.xlu0 %1217
          %1219 = vrot.lane.b32.xlu0 %v1006, 58
          %v1220 = vpop.permute.xlu0 %1219
          %1221 = vrot.lane.b32.xlu0 %v1007, 58
          %v1222 = vpop.permute.xlu0 %1221
          %1223 = vrot.lane.b32.xlu0 %v1008, 58
          %v1224 = vpop.permute.xlu0 %1223
          %1225 = vrot.lane.b32.xlu0 %v1009, 58
          %v1226 = vpop.permute.xlu0 %1225
          %1227 = vrot.lane.b32.xlu0 %v1010, 58
          %v1228 = vpop.permute.xlu0 %1227
          %1229 = vrot.lane.b32.xlu0 %v1011, 58
          %v1230 = vpop.permute.xlu0 %1229
          %1231 = vrot.lane.b32.xlu0 %v1012, 58
          %v1232 = vpop.permute.xlu0 %1231
          %1233 = vrot.lane.b32.xlu0 %v1013, 58
          %v1234 = vpop.permute.xlu0 %1233
          %1235 = vrot.lane.b32.xlu0 %v1014, 58
          %v1236 = vpop.permute.xlu0 %1235
          %1237 = vrot.lane.b32.xlu0 %v1015, 58
          %v1238 = vpop.permute.xlu0 %1237
          %1239 = vrot.lane.b32.xlu0 %v1016, 58
          %v1240 = vpop.permute.xlu0 %1239
          %1241 = vrot.lane.b32.xlu0 %v1017, 58
          %v1242 = vpop.permute.xlu0 %1241
          %1243 = vrot.lane.b32.xlu0 %v1018, 58
          %v1244 = vpop.permute.xlu0 %1243
          %1245 = vrot.lane.b32.xlu0 %v1019, 58
          %v1246 = vpop.permute.xlu0 %1245
          %1247 = vrot.lane.b32.xlu0 %v1020, 58
          %v1248 = vpop.permute.xlu0 %1247
          %1249 = vrot.lane.b32.xlu0 %v1021, 58
          %v1250 = vpop.permute.xlu0 %1249
          %1251 = vrot.lane.b32.xlu0 %v1022, 58
          %v1252 = vpop.permute.xlu0 %1251
          %1253 = vrot.lane.b32.xlu0 %v1023, 58
          %v1254 = vpop.permute.xlu0 %1253
          %1255 = vrot.lane.b32.xlu0 %v1024, 58
          %v1256 = vpop.permute.xlu0 %1255
          %1257 = vrot.lane.b32.xlu0 %v1025, 58
          %v1258 = vpop.permute.xlu0 %1257
          %1259 = vrot.lane.b32.xlu0 %v1026, 58
          %v1260 = vpop.permute.xlu0 %1259
          %vm1261 = vcmask 474112
          %v1262 = vsel %vm1261, %v1112, %v1114
          %v1263 = vsel %vm1261, %v1114, %v1116
          %v1264 = vsel %vm1261, %v1116, %v1118
          %v1265 = vsel %vm1261, %v1118, %v1120
          %v1266 = vsel %vm1261, %v1120, %v1122
          %v1267 = vsel %vm1261, %v1122, %v1124
          %v1268 = vsel %vm1261, %v1124, %v1126
          %v1269 = vsel %vm1261, %v1126, %v1128
          %v1270 = vsel %vm1261, %v1128, %v1130
          %v1271 = vsel %vm1261, %v1130, %v1132
          %v1272 = vsel %vm1261, %v1132, %v1134
          %v1273 = vsel %vm1261, %v1134, %v1136
          %v1274 = vsel %vm1261, %v1136, %v1138
          %v1275 = vsel %vm1261, %v1138, %v1140
          %v1276 = vsel %vm1261, %v1140, %v1142
          %v1277 = vsel %vm1261, %v1142, %v1144
          %v1278 = vsel %vm1261, %v1144, %v1146
          %v1279 = vsel %vm1261, %v1146, %v1148
          %v1280 = vsel %vm1261, %v1148, %v1150
          %v1281 = vsel %vm1261, %v1150, %v1152
          %v1282 = vsel %vm1261, %v1152, %v1154
          %v1283 = vsel %vm1261, %v1154, %v1156
          %v1284 = vsel %vm1261, %v1156, %v1158
          %v1285 = vsel %vm1261, %v1158, %v1160
          %v1286 = vsel %vm1261, %v1162, %v1164
          %v1287 = vsel %vm1261, %v1164, %v1166
          %v1288 = vsel %vm1261, %v1166, %v1168
          %v1289 = vsel %vm1261, %v1168, %v1170
          %v1290 = vsel %vm1261, %v1170, %v1172
          %v1291 = vsel %vm1261, %v1172, %v1174
          %v1292 = vsel %vm1261, %v1174, %v1176
          %v1293 = vsel %vm1261, %v1176, %v1178
          %v1294 = vsel %vm1261, %v1178, %v1180
          %v1295 = vsel %vm1261, %v1180, %v1182
          %v1296 = vsel %vm1261, %v1182, %v1184
          %v1297 = vsel %vm1261, %v1184, %v1186
          %v1298 = vsel %vm1261, %v1186, %v1188
          %v1299 = vsel %vm1261, %v1188, %v1190
          %v1300 = vsel %vm1261, %v1190, %v1192
          %v1301 = vsel %vm1261, %v1192, %v1194
          %v1302 = vsel %vm1261, %v1194, %v1196
          %v1303 = vsel %vm1261, %v1196, %v1198
          %v1304 = vsel %vm1261, %v1198, %v1200
          %v1305 = vsel %vm1261, %v1200, %v1202
          %v1306 = vsel %vm1261, %v1202, %v1204
          %v1307 = vsel %vm1261, %v1204, %v1206
          %v1308 = vsel %vm1261, %v1206, %v1208
          %v1309 = vsel %vm1261, %v1208, %v1210
          %v1310 = vsel %vm1261, %v1212, %v1214
          %v1311 = vsel %vm1261, %v1214, %v1216
          %v1312 = vsel %vm1261, %v1216, %v1218
          %v1313 = vsel %vm1261, %v1218, %v1220
          %v1314 = vsel %vm1261, %v1220, %v1222
          %v1315 = vsel %vm1261, %v1222, %v1224
          %v1316 = vsel %vm1261, %v1224, %v1226
          %v1317 = vsel %vm1261, %v1226, %v1228
          %v1318 = vsel %vm1261, %v1228, %v1230
          %v1319 = vsel %vm1261, %v1230, %v1232
          %v1320 = vsel %vm1261, %v1232, %v1234
          %v1321 = vsel %vm1261, %v1234, %v1236
          %v1322 = vsel %vm1261, %v1236, %v1238
          %v1323 = vsel %vm1261, %v1238, %v1240
          %v1324 = vsel %vm1261, %v1240, %v1242
          %v1325 = vsel %vm1261, %v1242, %v1244
          %v1326 = vsel %vm1261, %v1244, %v1246
          %v1327 = vsel %vm1261, %v1246, %v1248
          %v1328 = vsel %vm1261, %v1248, %v1250
          %v1329 = vsel %vm1261, %v1250, %v1252
          %v1330 = vsel %vm1261, %v1252, %v1254
          %v1331 = vsel %vm1261, %v1254, %v1256
          %v1332 = vsel %vm1261, %v1256, %v1258
          %v1333 = vsel %vm1261, %v1258, %v1260
          %v1409 = vsel %vm1261, %v1031, %v1112
          %v1410 = vsel %vm1261, %v1033, %v1162
          %v1411 = vsel %vm1261, %v1035, %v1212
          %v1412 = vperm.slane %v280, 1
          %v1413 = vperm.slane %v281, 1
          %v1414 = vperm.slane %v282, 1
          %v1415 = vperm.slane %v283, 1
          %v1416 = vperm.slane %v284, 1
          %v1417 = vperm.slane %v285, 1
          %v1418 = vperm.slane %v286, 1
          %v1419 = vperm.slane %v287, 1
          %v1420 = vperm.slane %v288, 1
          %v1421 = vperm.slane %v289, 1
          %v1422 = vperm.slane %v290, 1
          %v1423 = vperm.slane %v291, 1
          %v1424 = vperm.slane %v292, 1
          %v1425 = vperm.slane %v293, 1
          %v1426 = vperm.slane %v294, 1
          %v1427 = vperm.slane %v295, 1
          %v1428 = vperm.slane %v296, 1
          %v1429 = vperm.slane %v297, 1
          %v1430 = vperm.slane %v298, 1
          %v1431 = vperm.slane %v299, 1
          %v1432 = vperm.slane %v300, 1
          %v1433 = vperm.slane %v301, 1
          %v1434 = vperm.slane %v302, 1
          %v1435 = vperm.slane %v303, 1
          %v1436 = vperm.slane %v304, 1
          %v1437 = vmul.f32 %v1409, %v1412
          %v1438 = vmul.f32 %v1262, %v1413
          %v1439 = vmul.f32 %v1263, %v1414
          %v1440 = vmul.f32 %v1264, %v1415
          %v1441 = vmul.f32 %v1265, %v1416
          %v1442 = vmul.f32 %v1266, %v1417
          %v1443 = vmul.f32 %v1267, %v1418
          %v1444 = vmul.f32 %v1268, %v1419
          %v1445 = vmul.f32 %v1269, %v1420
          %v1446 = vmul.f32 %v1270, %v1421
          %v1447 = vmul.f32 %v1271, %v1422
          %v1448 = vmul.f32 %v1272, %v1423
          %v1449 = vmul.f32 %v1273, %v1424
          %v1450 = vmul.f32 %v1274, %v1425
          %v1451 = vmul.f32 %v1275, %v1426
          %v1452 = vmul.f32 %v1276, %v1427
          %v1453 = vmul.f32 %v1277, %v1428
          %v1454 = vmul.f32 %v1278, %v1429
          %v1455 = vmul.f32 %v1279, %v1430
          %v1456 = vmul.f32 %v1280, %v1431
          %v1457 = vmul.f32 %v1281, %v1432
          %v1458 = vmul.f32 %v1282, %v1433
          %v1459 = vmul.f32 %v1283, %v1434
          %v1460 = vmul.f32 %v1284, %v1435
          %v1461 = vmul.f32 %v1285, %v1436
          %v1462 = vmul.f32 %v1410, %v1412
          %v1463 = vmul.f32 %v1286, %v1413
          %v1464 = vmul.f32 %v1287, %v1414
          %v1465 = vmul.f32 %v1288, %v1415
          %v1466 = vmul.f32 %v1289, %v1416
          %v1467 = vmul.f32 %v1290, %v1417
          %v1468 = vmul.f32 %v1291, %v1418
          %v1469 = vmul.f32 %v1292, %v1419
          %v1470 = vmul.f32 %v1293, %v1420
          %v1471 = vmul.f32 %v1294, %v1421
          %v1472 = vmul.f32 %v1295, %v1422
          %v1473 = vmul.f32 %v1296, %v1423
          %v1474 = vmul.f32 %v1297, %v1424
          %v1475 = vmul.f32 %v1298, %v1425
          %v1476 = vmul.f32 %v1299, %v1426
          %v1477 = vmul.f32 %v1300, %v1427
          %v1478 = vmul.f32 %v1301, %v1428
          %v1479 = vmul.f32 %v1302, %v1429
          %v1480 = vmul.f32 %v1303, %v1430
          %v1481 = vmul.f32 %v1304, %v1431
          %v1482 = vmul.f32 %v1305, %v1432
          %v1483 = vmul.f32 %v1306, %v1433
          %v1484 = vmul.f32 %v1307, %v1434
          %v1485 = vmul.f32 %v1308, %v1435
          %v1486 = vmul.f32 %v1309, %v1436
          %v1487 = vmul.f32 %v1411, %v1412
          %v1488 = vmul.f32 %v1310, %v1413
          %v1489 = vmul.f32 %v1311, %v1414
          %v1490 = vmul.f32 %v1312, %v1415
          %v1491 = vmul.f32 %v1313, %v1416
          %v1492 = vmul.f32 %v1314, %v1417
          %v1493 = vmul.f32 %v1315, %v1418
          %v1494 = vmul.f32 %v1316, %v1419
          %v1495 = vmul.f32 %v1317, %v1420
          %v1496 = vmul.f32 %v1318, %v1421
          %v1497 = vmul.f32 %v1319, %v1422
          %v1498 = vmul.f32 %v1320, %v1423
          %v1499 = vmul.f32 %v1321, %v1424
          %v1500 = vmul.f32 %v1322, %v1425
          %v1501 = vmul.f32 %v1323, %v1426
          %v1502 = vmul.f32 %v1324, %v1427
          %v1503 = vmul.f32 %v1325, %v1428
          %v1504 = vmul.f32 %v1326, %v1429
          %v1505 = vmul.f32 %v1327, %v1430
          %v1506 = vmul.f32 %v1328, %v1431
          %v1507 = vmul.f32 %v1329, %v1432
          %v1508 = vmul.f32 %v1330, %v1433
          %v1509 = vmul.f32 %v1331, %v1434
          %v1510 = vmul.f32 %v1332, %v1435
          %v1511 = vmul.f32 %v1333, %v1436
          %v1512 = vpack.c.bf16 %v1438, %v1437
          %v1513 = vpack.c.bf16 %v1440, %v1439
          %v1514 = vpack.c.bf16 %v1442, %v1441
          %v1515 = vpack.c.bf16 %v1444, %v1443
          %v1516 = vpack.c.bf16 %v1446, %v1445
          %v1517 = vpack.c.bf16 %v1448, %v1447
          %v1518 = vpack.c.bf16 %v1450, %v1449
          %v1519 = vpack.c.bf16 %v1452, %v1451
          %v1520 = vpack.c.bf16 %v1454, %v1453
          %v1521 = vpack.c.bf16 %v1456, %v1455
          %v1522 = vpack.c.bf16 %v1458, %v1457
          %v1523 = vpack.c.bf16 %v1460, %v1459
          %v1524 = vpack.c.bf16 %v1461, %v1461
          %v1525 = vpack.c.bf16 %v1463, %v1462
          %v1526 = vpack.c.bf16 %v1465, %v1464
          %v1527 = vpack.c.bf16 %v1467, %v1466
          %v1528 = vpack.c.bf16 %v1469, %v1468
          %v1529 = vpack.c.bf16 %v1471, %v1470
          %v1530 = vpack.c.bf16 %v1473, %v1472
          %v1531 = vpack.c.bf16 %v1475, %v1474
          %v1532 = vpack.c.bf16 %v1477, %v1476
          %v1533 = vpack.c.bf16 %v1479, %v1478
          %v1534 = vpack.c.bf16 %v1481, %v1480
          %v1535 = vpack.c.bf16 %v1483, %v1482
          %v1536 = vpack.c.bf16 %v1485, %v1484
          %v1537 = vpack.c.bf16 %v1486, %v1486
          %v1538 = vpack.c.bf16 %v1488, %v1487
          %v1539 = vpack.c.bf16 %v1490, %v1489
          %v1540 = vpack.c.bf16 %v1492, %v1491
          %v1541 = vpack.c.bf16 %v1494, %v1493
          %v1542 = vpack.c.bf16 %v1496, %v1495
          %v1543 = vpack.c.bf16 %v1498, %v1497
          %v1544 = vpack.c.bf16 %v1500, %v1499
          %v1545 = vpack.c.bf16 %v1502, %v1501
          %v1546 = vpack.c.bf16 %v1504, %v1503
          %v1547 = vpack.c.bf16 %v1506, %v1505
          %v1548 = vpack.c.bf16 %v1508, %v1507
          %v1549 = vpack.c.bf16 %v1510, %v1509
          %v1550 = vpack.c.bf16 %v1511, %v1511
          %1551 = vst [vmem:[#allocation2 + $0x190] sm:$0xff] %v1512
          %1552 = vst [vmem:[#allocation2 + $0x198] sm:$0xff] %v1513
          %1553 = vst [vmem:[#allocation2 + $0x1a0] sm:$0xff] %v1514
          %1554 = vst [vmem:[#allocation2 + $0x1a8] sm:$0xff] %v1515
          %1555 = vst [vmem:[#allocation2 + $0x1b0] sm:$0xff] %v1516
          %1556 = vst [vmem:[#allocation2 + $0x1b8] sm:$0xff] %v1517
          %1557 = vst [vmem:[#allocation2 + $0x1c0] sm:$0xff] %v1518
          %1558 = vst [vmem:[#allocation2 + $0x1c8] sm:$0xff] %v1519
          %1559 = vst [vmem:[#allocation2 + $0x1d0] sm:$0xff] %v1520
          %1560 = vst [vmem:[#allocation2 + $0x1d8] sm:$0xff] %v1521
          %1561 = vst [vmem:[#allocation2 + $0x1e0] sm:$0xff] %v1522
          %1562 = vst [vmem:[#allocation2 + $0x1e8] sm:$0xff] %v1523
          %1563 = vst.msk [vmem:[#allocation2 + $0x1f0] sm:$0xf] %vm188, %v1524
          %1564 = vst [vmem:[#allocation2 + $0x1f4] sm:$0xff] %v1525
          %1565 = vst [vmem:[#allocation2 + $0x1fc] sm:$0xff] %v1526
          %1566 = vst [vmem:[#allocation2 + $0x204] sm:$0xff] %v1527
          %1567 = vst [vmem:[#allocation2 + $0x20c] sm:$0xff] %v1528
          %1568 = vst [vmem:[#allocation2 + $0x214] sm:$0xff] %v1529
          %1569 = vst [vmem:[#allocation2 + $0x21c] sm:$0xff] %v1530
          %1570 = vst [vmem:[#allocation2 + $0x224] sm:$0xff] %v1531
          %1571 = vst [vmem:[#allocation2 + $0x22c] sm:$0xff] %v1532
          %1572 = vst [vmem:[#allocation2 + $0x234] sm:$0xff] %v1533
          %1573 = vst [vmem:[#allocation2 + $0x23c] sm:$0xff] %v1534
          %1574 = vst [vmem:[#allocation2 + $0x244] sm:$0xff] %v1535
          %1575 = vst [vmem:[#allocation2 + $0x24c] sm:$0xff] %v1536
          %1576 = vst.msk [vmem:[#allocation2 + $0x254] sm:$0xf] %vm188, %v1537
          %1577 = vst [vmem:[#allocation2 + $0x258] sm:$0xff] %v1538
          %1578 = vst [vmem:[#allocation2 + $0x260] sm:$0xff] %v1539
          %1579 = vst [vmem:[#allocation2 + $0x268] sm:$0xff] %v1540
          %1580 = vst [vmem:[#allocation2 + $0x270] sm:$0xff] %v1541
          %1581 = vst [vmem:[#allocation2 + $0x278] sm:$0xff] %v1542
          %1582 = vst [vmem:[#allocation2 + $0x280] sm:$0xff] %v1543
          %1583 = vst [vmem:[#allocation2 + $0x288] sm:$0xff] %v1544
          %1584 = vst [vmem:[#allocation2 + $0x290] sm:$0xff] %v1545
          %1585 = vst [vmem:[#allocation2 + $0x298] sm:$0xff] %v1546
          %1586 = vst [vmem:[#allocation2 + $0x2a0] sm:$0xff] %v1547
          %1587 = vst [vmem:[#allocation2 + $0x2a8] sm:$0xff] %v1548
          %1588 = vst [vmem:[#allocation2 + $0x2b0] sm:$0xff] %v1549
          %1589 = vst.msk [vmem:[#allocation2 + $0x2b8] sm:$0xf] %vm188, %v1550
          %v1590 = vld [vmem:[%s313] sm:$0xff]
          %v1591 = vld [vmem:[%s313 + $0x8] sm:$0xff]
          %v1592 = vld [vmem:[%s313 + $0x10] sm:$0xff]
          %v1593 = vld [vmem:[%s313 + $0x18] sm:$0xff]
          %v1594 = vld [vmem:[%s313 + $0x20] sm:$0xff]
          %v1595 = vld [vmem:[%s313 + $0x28] sm:$0xff]
          %v1596 = vld [vmem:[%s313 + $0x30] sm:$0xff]
          %v1597 = vld [vmem:[%s313 + $0x38] sm:$0xff]
          %v1598 = vld [vmem:[%s313 + $0x40] sm:$0xff]
          %v1599 = vld [vmem:[%s313 + $0x48] sm:$0xff]
          %v1600 = vld [vmem:[%s313 + $0x50] sm:$0xff]
          %v1601 = vld [vmem:[%s313 + $0x58] sm:$0xff]
          %v1602 = vld [vmem:[%s313 + $0x60] sm:$0xff]
          %v1603 = vld [vmem:[%s313 + $0x68] sm:$0xff]
          %v1604 = vld [vmem:[%s313 + $0x70] sm:$0xff]
          %v1605 = vld [vmem:[%s313 + $0x78] sm:$0xff]
          %v1606 = vld [vmem:[%s313 + $0x80] sm:$0xff]
          %v1607 = vld [vmem:[%s313 + $0x88] sm:$0xff]
          %v1608 = vld [vmem:[%s313 + $0x90] sm:$0xff]
          %v1609 = vld [vmem:[%s313 + $0x98] sm:$0xff]
          %v1610 = vld [vmem:[%s313 + $0xa0] sm:$0xff]
          %v1611 = vld [vmem:[%s313 + $0xa8] sm:$0xff]
          %v1612 = vld [vmem:[%s313 + $0xb0] sm:$0xff]
          %v1613 = vld [vmem:[%s313 + $0xb8] sm:$0xff]
          %v1614 = vld [vmem:[%s313 + $0xc0] sm:$0xff]
          %v1615 = vld [vmem:[%s313 + $0xc8] sm:$0xff]
          %v1616 = vld [vmem:[%s313 + $0xd0] sm:$0xff]
          %v1617 = vld [vmem:[%s313 + $0xd8] sm:$0xff]
          %v1618 = vld [vmem:[%s313 + $0xe0] sm:$0xff]
          %v1619 = vld [vmem:[%s313 + $0xe8] sm:$0xff]
          %v1620 = vld [vmem:[%s313 + $0xf0] sm:$0xff]
          %v1621 = vld [vmem:[%s313 + $0xf8] sm:$0xff]
          %v1622 = vld [vmem:[%s313 + $0x100] sm:$0xff]
          %v1623 = vld [vmem:[%s313 + $0x108] sm:$0xff]
          %v1624 = vld [vmem:[%s313 + $0x110] sm:$0xff]
          %v1625 = vld [vmem:[%s313 + $0x118] sm:$0xff]
          %v1626 = vld [vmem:[%s313 + $0x120] sm:$0xff]
          %v1627 = vld [vmem:[%s313 + $0x128] sm:$0xff]
          %v1628 = vld [vmem:[%s313 + $0x130] sm:$0xff]
          %v1629 = vld [vmem:[%s313 + $0x138] sm:$0xff]
          %v1630 = vld [vmem:[%s313 + $0x140] sm:$0xff]
          %v1631 = vld [vmem:[%s313 + $0x148] sm:$0xff]
          %v1632 = vld [vmem:[%s313 + $0x150] sm:$0xff]
          %v1633 = vld [vmem:[%s313 + $0x158] sm:$0xff]
          %v1634 = vld [vmem:[%s313 + $0x160] sm:$0xff]
          %v1635 = vld [vmem:[%s313 + $0x168] sm:$0xff]
          %v1636 = vld [vmem:[%s313 + $0x170] sm:$0xff]
          %v1637 = vld [vmem:[%s313 + $0x178] sm:$0xff]
          %v1638 = vld [vmem:[%s313 + $0x180] sm:$0xff]
          %v1639 = vld [vmem:[%s313 + $0x188] sm:$0xff]
          %v1640 = vld [vmem:[%s313 + $0x190] sm:$0xff]
          %v1641 = vld [vmem:[%s313 + $0x198] sm:$0xff]
          %v1642 = vld [vmem:[%s313 + $0x1a0] sm:$0xff]
          %v1643 = vld [vmem:[%s313 + $0x1a8] sm:$0xff]
          %v1644 = vld [vmem:[%s313 + $0x1b0] sm:$0xff]
          %v1645 = vld [vmem:[%s313 + $0x1b8] sm:$0xff]
          %v1646 = vld [vmem:[%s313 + $0x1c0] sm:$0xff]
          %v1647 = vld [vmem:[%s313 + $0x1c8] sm:$0xff]
          %v1648 = vld [vmem:[%s313 + $0x1d0] sm:$0xff]
          %v1649 = vld [vmem:[%s313 + $0x1d8] sm:$0xff]
          %v1650 = vld [vmem:[%s313 + $0x1e0] sm:$0xff]
          %v1651 = vld [vmem:[%s313 + $0x1e8] sm:$0xff]
          %v1652 = vld [vmem:[%s313 + $0x1f0] sm:$0xff]
          %v1653 = vld [vmem:[%s313 + $0x1f8] sm:$0xff]
          %v1654 = vld [vmem:[%s313 + $0x200] sm:$0xff]
          %v1655 = vld [vmem:[%s313 + $0x208] sm:$0xff]
          %v1656 = vld [vmem:[%s313 + $0x210] sm:$0xff]
          %v1657 = vld [vmem:[%s313 + $0x218] sm:$0xff]
          %v1658 = vld [vmem:[%s313 + $0x220] sm:$0xff]
          %v1659 = vld [vmem:[%s313 + $0x228] sm:$0xff]
          %v1660 = vld [vmem:[%s313 + $0x230] sm:$0xff]
          %v1661 = vld [vmem:[%s313 + $0x238] sm:$0xff]
          %v1662 = vld [vmem:[%s313 + $0x240] sm:$0xff]
          %v1663 = vld [vmem:[%s313 + $0x248] sm:$0xff]
          %v1664 = vld [vmem:[%s313 + $0x250] sm:$0xff]
          %1668 = vrot.lane.b32.xlu0 %v1614, 121
          %v1669 = vpop.permute.xlu0 %1668
          %1670 = vrot.lane.b32.xlu0 %v1639, 121
          %v1671 = vpop.permute.xlu0 %1670
          %1672 = vrot.lane.b32.xlu0 %v1664, 121
          %v1673 = vpop.permute.xlu0 %1672
          %1749 = vrot.lane.b32.xlu0 %v1590, 57
          %v1750 = vpop.permute.xlu0 %1749
          %1751 = vrot.lane.b32.xlu0 %v1591, 57
          %v1752 = vpop.permute.xlu0 %1751
          %1753 = vrot.lane.b32.xlu0 %v1592, 57
          %v1754 = vpop.permute.xlu0 %1753
          %1755 = vrot.lane.b32.xlu0 %v1593, 57
          %v1756 = vpop.permute.xlu0 %1755
          %1757 = vrot.lane.b32.xlu0 %v1594, 57
          %v1758 = vpop.permute.xlu0 %1757
          %1759 = vrot.lane.b32.xlu0 %v1595, 57
          %v1760 = vpop.permute.xlu0 %1759
          %1761 = vrot.lane.b32.xlu0 %v1596, 57
          %v1762 = vpop.permute.xlu0 %1761
          %1763 = vrot.lane.b32.xlu0 %v1597, 57
          %v1764 = vpop.permute.xlu0 %1763
          %1765 = vrot.lane.b32.xlu0 %v1598, 57
          %v1766 = vpop.permute.xlu0 %1765
          %1767 = vrot.lane.b32.xlu0 %v1599, 57
          %v1768 = vpop.permute.xlu0 %1767
          %1769 = vrot.lane.b32.xlu0 %v1600, 57
          %v1770 = vpop.permute.xlu0 %1769
          %1771 = vrot.lane.b32.xlu0 %v1601, 57
          %v1772 = vpop.permute.xlu0 %1771
          %1773 = vrot.lane.b32.xlu0 %v1602, 57
          %v1774 = vpop.permute.xlu0 %1773
          %1775 = vrot.lane.b32.xlu0 %v1603, 57
          %v1776 = vpop.permute.xlu0 %1775
          %1777 = vrot.lane.b32.xlu0 %v1604, 57
          %v1778 = vpop.permute.xlu0 %1777
          %1779 = vrot.lane.b32.xlu0 %v1605, 57
          %v1780 = vpop.permute.xlu0 %1779
          %1781 = vrot.lane.b32.xlu0 %v1606, 57
          %v1782 = vpop.permute.xlu0 %1781
          %1783 = vrot.lane.b32.xlu0 %v1607, 57
          %v1784 = vpop.permute.xlu0 %1783
          %1785 = vrot.lane.b32.xlu0 %v1608, 57
          %v1786 = vpop.permute.xlu0 %1785
          %1787 = vrot.lane.b32.xlu0 %v1609, 57
          %v1788 = vpop.permute.xlu0 %1787
          %1789 = vrot.lane.b32.xlu0 %v1610, 57
          %v1790 = vpop.permute.xlu0 %1789
          %1791 = vrot.lane.b32.xlu0 %v1611, 57
          %v1792 = vpop.permute.xlu0 %1791
          %1793 = vrot.lane.b32.xlu0 %v1612, 57
          %v1794 = vpop.permute.xlu0 %1793
          %1795 = vrot.lane.b32.xlu0 %v1613, 57
          %v1796 = vpop.permute.xlu0 %1795
          %1797 = vrot.lane.b32.xlu0 %v1614, 57
          %v1798 = vpop.permute.xlu0 %1797
          %1799 = vrot.lane.b32.xlu0 %v1615, 57
          %v1800 = vpop.permute.xlu0 %1799
          %1801 = vrot.lane.b32.xlu0 %v1616, 57
          %v1802 = vpop.permute.xlu0 %1801
          %1803 = vrot.lane.b32.xlu0 %v1617, 57
          %v1804 = vpop.permute.xlu0 %1803
          %1805 = vrot.lane.b32.xlu0 %v1618, 57
          %v1806 = vpop.permute.xlu0 %1805
          %1807 = vrot.lane.b32.xlu0 %v1619, 57
          %v1808 = vpop.permute.xlu0 %1807
          %1809 = vrot.lane.b32.xlu0 %v1620, 57
          %v1810 = vpop.permute.xlu0 %1809
          %1811 = vrot.lane.b32.xlu0 %v1621, 57
          %v1812 = vpop.permute.xlu0 %1811
          %1813 = vrot.lane.b32.xlu0 %v1622, 57
          %v1814 = vpop.permute.xlu0 %1813
          %1815 = vrot.lane.b32.xlu0 %v1623, 57
          %v1816 = vpop.permute.xlu0 %1815
          %1817 = vrot.lane.b32.xlu0 %v1624, 57
          %v1818 = vpop.permute.xlu0 %1817
          %1819 = vrot.lane.b32.xlu0 %v1625, 57
          %v1820 = vpop.permute.xlu0 %1819
          %1821 = vrot.lane.b32.xlu0 %v1626, 57
          %v1822 = vpop.permute.xlu0 %1821
          %1823 = vrot.lane.b32.xlu0 %v1627, 57
          %v1824 = vpop.permute.xlu0 %1823
          %1825 = vrot.lane.b32.xlu0 %v1628, 57
          %v1826 = vpop.permute.xlu0 %1825
          %1827 = vrot.lane.b32.xlu0 %v1629, 57
          %v1828 = vpop.permute.xlu0 %1827
          %1829 = vrot.lane.b32.xlu0 %v1630, 57
          %v1830 = vpop.permute.xlu0 %1829
          %1831 = vrot.lane.b32.xlu0 %v1631, 57
          %v1832 = vpop.permute.xlu0 %1831
          %1833 = vrot.lane.b32.xlu0 %v1632, 57
          %v1834 = vpop.permute.xlu0 %1833
          %1835 = vrot.lane.b32.xlu0 %v1633, 57
          %v1836 = vpop.permute.xlu0 %1835
          %1837 = vrot.lane.b32.xlu0 %v1634, 57
          %v1838 = vpop.permute.xlu0 %1837
          %1839 = vrot.lane.b32.xlu0 %v1635, 57
          %v1840 = vpop.permute.xlu0 %1839
          %1841 = vrot.lane.b32.xlu0 %v1636, 57
          %v1842 = vpop.permute.xlu0 %1841
          %1843 = vrot.lane.b32.xlu0 %v1637, 57
          %v1844 = vpop.permute.xlu0 %1843
          %1845 = vrot.lane.b32.xlu0 %v1638, 57
          %v1846 = vpop.permute.xlu0 %1845
          %1847 = vrot.lane.b32.xlu0 %v1639, 57
          %v1848 = vpop.permute.xlu0 %1847
          %1849 = vrot.lane.b32.xlu0 %v1640, 57
          %v1850 = vpop.permute.xlu0 %1849
          %1851 = vrot.lane.b32.xlu0 %v1641, 57
          %v1852 = vpop.permute.xlu0 %1851
          %1853 = vrot.lane.b32.xlu0 %v1642, 57
          %v1854 = vpop.permute.xlu0 %1853
          %1855 = vrot.lane.b32.xlu0 %v1643, 57
          %v1856 = vpop.permute.xlu0 %1855
          %1857 = vrot.lane.b32.xlu0 %v1644, 57
          %v1858 = vpop.permute.xlu0 %1857
          %1859 = vrot.lane.b32.xlu0 %v1645, 57
          %v1860 = vpop.permute.xlu0 %1859
          %1861 = vrot.lane.b32.xlu0 %v1646, 57
          %v1862 = vpop.permute.xlu0 %1861
          %1863 = vrot.lane.b32.xlu0 %v1647, 57
          %v1864 = vpop.permute.xlu0 %1863
          %1865 = vrot.lane.b32.xlu0 %v1648, 57
          %v1866 = vpop.permute.xlu0 %1865
          %1867 = vrot.lane.b32.xlu0 %v1649, 57
          %v1868 = vpop.permute.xlu0 %1867
          %1869 = vrot.lane.b32.xlu0 %v1650, 57
          %v1870 = vpop.permute.xlu0 %1869
          %1871 = vrot.lane.b32.xlu0 %v1651, 57
          %v1872 = vpop.permute.xlu0 %1871
          %1873 = vrot.lane.b32.xlu0 %v1652, 57
          %v1874 = vpop.permute.xlu0 %1873
          %1875 = vrot.lane.b32.xlu0 %v1653, 57
          %v1876 = vpop.permute.xlu0 %1875
          %1877 = vrot.lane.b32.xlu0 %v1654, 57
          %v1878 = vpop.permute.xlu0 %1877
          %1879 = vrot.lane.b32.xlu0 %v1655, 57
          %v1880 = vpop.permute.xlu0 %1879
          %1881 = vrot.lane.b32.xlu0 %v1656, 57
          %v1882 = vpop.permute.xlu0 %1881
          %1883 = vrot.lane.b32.xlu0 %v1657, 57
          %v1884 = vpop.permute.xlu0 %1883
          %1885 = vrot.lane.b32.xlu0 %v1658, 57
          %v1886 = vpop.permute.xlu0 %1885
          %1887 = vrot.lane.b32.xlu0 %v1659, 57
          %v1888 = vpop.permute.xlu0 %1887
          %1889 = vrot.lane.b32.xlu0 %v1660, 57
          %v1890 = vpop.permute.xlu0 %1889
          %1891 = vrot.lane.b32.xlu0 %v1661, 57
          %v1892 = vpop.permute.xlu0 %1891
          %1893 = vrot.lane.b32.xlu0 %v1662, 57
          %v1894 = vpop.permute.xlu0 %1893
          %1895 = vrot.lane.b32.xlu0 %v1663, 57
          %v1896 = vpop.permute.xlu0 %1895
          %1897 = vrot.lane.b32.xlu0 %v1664, 57
          %v1898 = vpop.permute.xlu0 %1897
          %vm1899 = vcmask 465920
          %v1900 = vsel %vm1899, %v1750, %v1752
          %v1901 = vsel %vm1899, %v1752, %v1754
          %v1902 = vsel %vm1899, %v1754, %v1756
          %v1903 = vsel %vm1899, %v1756, %v1758
          %v1904 = vsel %vm1899, %v1758, %v1760
          %v1905 = vsel %vm1899, %v1760, %v1762
          %v1906 = vsel %vm1899, %v1762, %v1764
          %v1907 = vsel %vm1899, %v1764, %v1766
          %v1908 = vsel %vm1899, %v1766, %v1768
          %v1909 = vsel %vm1899, %v1768, %v1770
          %v1910 = vsel %vm1899, %v1770, %v1772
          %v1911 = vsel %vm1899, %v1772, %v1774
          %v1912 = vsel %vm1899, %v1774, %v1776
          %v1913 = vsel %vm1899, %v1776, %v1778
          %v1914 = vsel %vm1899, %v1778, %v1780
          %v1915 = vsel %vm1899, %v1780, %v1782
          %v1916 = vsel %vm1899, %v1782, %v1784
          %v1917 = vsel %vm1899, %v1784, %v1786
          %v1918 = vsel %vm1899, %v1786, %v1788
          %v1919 = vsel %vm1899, %v1788, %v1790
          %v1920 = vsel %vm1899, %v1790, %v1792
          %v1921 = vsel %vm1899, %v1792, %v1794
          %v1922 = vsel %vm1899, %v1794, %v1796
          %v1923 = vsel %vm1899, %v1796, %v1798
          %v1924 = vsel %vm1899, %v1800, %v1802
          %v1925 = vsel %vm1899, %v1802, %v1804
          %v1926 = vsel %vm1899, %v1804, %v1806
          %v1927 = vsel %vm1899, %v1806, %v1808
          %v1928 = vsel %vm1899, %v1808, %v1810
          %v1929 = vsel %vm1899, %v1810, %v1812
          %v1930 = vsel %vm1899, %v1812, %v1814
          %v1931 = vsel %vm1899, %v1814, %v1816
          %v1932 = vsel %vm1899, %v1816, %v1818
          %v1933 = vsel %vm1899, %v1818, %v1820
          %v1934 = vsel %vm1899, %v1820, %v1822
          %v1935 = vsel %vm1899, %v1822, %v1824
          %v1936 = vsel %vm1899, %v1824, %v1826
          %v1937 = vsel %vm1899, %v1826, %v1828
          %v1938 = vsel %vm1899, %v1828, %v1830
          %v1939 = vsel %vm1899, %v1830, %v1832
          %v1940 = vsel %vm1899, %v1832, %v1834
          %v1941 = vsel %vm1899, %v1834, %v1836
          %v1942 = vsel %vm1899, %v1836, %v1838
          %v1943 = vsel %vm1899, %v1838, %v1840
          %v1944 = vsel %vm1899, %v1840, %v1842
          %v1945 = vsel %vm1899, %v1842, %v1844
          %v1946 = vsel %vm1899, %v1844, %v1846
          %v1947 = vsel %vm1899, %v1846, %v1848
          %v1948 = vsel %vm1899, %v1850, %v1852
          %v1949 = vsel %vm1899, %v1852, %v1854
          %v1950 = vsel %vm1899, %v1854, %v1856
          %v1951 = vsel %vm1899, %v1856, %v1858
          %v1952 = vsel %vm1899, %v1858, %v1860
          %v1953 = vsel %vm1899, %v1860, %v1862
          %v1954 = vsel %vm1899, %v1862, %v1864
          %v1955 = vsel %vm1899, %v1864, %v1866
          %v1956 = vsel %vm1899, %v1866, %v1868
          %v1957 = vsel %vm1899, %v1868, %v1870
          %v1958 = vsel %vm1899, %v1870, %v1872
          %v1959 = vsel %vm1899, %v1872, %v1874
          %v1960 = vsel %vm1899, %v1874, %v1876
          %v1961 = vsel %vm1899, %v1876, %v1878
          %v1962 = vsel %vm1899, %v1878, %v1880
          %v1963 = vsel %vm1899, %v1880, %v1882
          %v1964 = vsel %vm1899, %v1882, %v1884
          %v1965 = vsel %vm1899, %v1884, %v1886
          %v1966 = vsel %vm1899, %v1886, %v1888
          %v1967 = vsel %vm1899, %v1888, %v1890
          %v1968 = vsel %vm1899, %v1890, %v1892
          %v1969 = vsel %vm1899, %v1892, %v1894
          %v1970 = vsel %vm1899, %v1894, %v1896
          %v1971 = vsel %vm1899, %v1896, %v1898
          %v2047 = vsel %vm1899, %v1669, %v1750
          %v2048 = vsel %vm1899, %v1671, %v1800
          %v2049 = vsel %vm1899, %v1673, %v1850
          %v2050 = vperm.slane %v280, 2
          %v2051 = vperm.slane %v281, 2
          %v2052 = vperm.slane %v282, 2
          %v2053 = vperm.slane %v283, 2
          %v2054 = vperm.slane %v284, 2
          %v2055 = vperm.slane %v285, 2
          %v2056 = vperm.slane %v286, 2
          %v2057 = vperm.slane %v287, 2
          %v2058 = vperm.slane %v288, 2
          %v2059 = vperm.slane %v289, 2
          %v2060 = vperm.slane %v290, 2
          %v2061 = vperm.slane %v291, 2
          %v2062 = vperm.slane %v292, 2
          %v2063 = vperm.slane %v293, 2
          %v2064 = vperm.slane %v294, 2
          %v2065 = vperm.slane %v295, 2
          %v2066 = vperm.slane %v296, 2
          %v2067 = vperm.slane %v297, 2
          %v2068 = vperm.slane %v298, 2
          %v2069 = vperm.slane %v299, 2
          %v2070 = vperm.slane %v300, 2
          %v2071 = vperm.slane %v301, 2
          %v2072 = vperm.slane %v302, 2
          %v2073 = vperm.slane %v303, 2
          %v2074 = vperm.slane %v304, 2
          %v2075 = vmul.f32 %v2047, %v2050
          %v2076 = vmul.f32 %v1900, %v2051
          %v2077 = vmul.f32 %v1901, %v2052
          %v2078 = vmul.f32 %v1902, %v2053
          %v2079 = vmul.f32 %v1903, %v2054
          %v2080 = vmul.f32 %v1904, %v2055
          %v2081 = vmul.f32 %v1905, %v2056
          %v2082 = vmul.f32 %v1906, %v2057
          %v2083 = vmul.f32 %v1907, %v2058
          %v2084 = vmul.f32 %v1908, %v2059
          %v2085 = vmul.f32 %v1909, %v2060
          %v2086 = vmul.f32 %v1910, %v2061
          %v2087 = vmul.f32 %v1911, %v2062
          %v2088 = vmul.f32 %v1912, %v2063
          %v2089 = vmul.f32 %v1913, %v2064
          %v2090 = vmul.f32 %v1914, %v2065
          %v2091 = vmul.f32 %v1915, %v2066
          %v2092 = vmul.f32 %v1916, %v2067
          %v2093 = vmul.f32 %v1917, %v2068
          %v2094 = vmul.f32 %v1918, %v2069
          %v2095 = vmul.f32 %v1919, %v2070
          %v2096 = vmul.f32 %v1920, %v2071
          %v2097 = vmul.f32 %v1921, %v2072
          %v2098 = vmul.f32 %v1922, %v2073
          %v2099 = vmul.f32 %v1923, %v2074
          %v2100 = vmul.f32 %v2048, %v2050
          %v2101 = vmul.f32 %v1924, %v2051
          %v2102 = vmul.f32 %v1925, %v2052
          %v2103 = vmul.f32 %v1926, %v2053
          %v2104 = vmul.f32 %v1927, %v2054
          %v2105 = vmul.f32 %v1928, %v2055
          %v2106 = vmul.f32 %v1929, %v2056
          %v2107 = vmul.f32 %v1930, %v2057
          %v2108 = vmul.f32 %v1931, %v2058
          %v2109 = vmul.f32 %v1932, %v2059
          %v2110 = vmul.f32 %v1933, %v2060
          %v2111 = vmul.f32 %v1934, %v2061
          %v2112 = vmul.f32 %v1935, %v2062
          %v2113 = vmul.f32 %v1936, %v2063
          %v2114 = vmul.f32 %v1937, %v2064
          %v2115 = vmul.f32 %v1938, %v2065
          %v2116 = vmul.f32 %v1939, %v2066
          %v2117 = vmul.f32 %v1940, %v2067
          %v2118 = vmul.f32 %v1941, %v2068
          %v2119 = vmul.f32 %v1942, %v2069
          %v2120 = vmul.f32 %v1943, %v2070
          %v2121 = vmul.f32 %v1944, %v2071
          %v2122 = vmul.f32 %v1945, %v2072
          %v2123 = vmul.f32 %v1946, %v2073
          %v2124 = vmul.f32 %v1947, %v2074
          %v2125 = vmul.f32 %v2049, %v2050
          %v2126 = vmul.f32 %v1948, %v2051
          %v2127 = vmul.f32 %v1949, %v2052
          %v2128 = vmul.f32 %v1950, %v2053
          %v2129 = vmul.f32 %v1951, %v2054
          %v2130 = vmul.f32 %v1952, %v2055
          %v2131 = vmul.f32 %v1953, %v2056
          %v2132 = vmul.f32 %v1954, %v2057
          %v2133 = vmul.f32 %v1955, %v2058
          %v2134 = vmul.f32 %v1956, %v2059
          %v2135 = vmul.f32 %v1957, %v2060
          %v2136 = vmul.f32 %v1958, %v2061
          %v2137 = vmul.f32 %v1959, %v2062
          %v2138 = vmul.f32 %v1960, %v2063
          %v2139 = vmul.f32 %v1961, %v2064
          %v2140 = vmul.f32 %v1962, %v2065
          %v2141 = vmul.f32 %v1963, %v2066
          %v2142 = vmul.f32 %v1964, %v2067
          %v2143 = vmul.f32 %v1965, %v2068
          %v2144 = vmul.f32 %v1966, %v2069
          %v2145 = vmul.f32 %v1967, %v2070
          %v2146 = vmul.f32 %v1968, %v2071
          %v2147 = vmul.f32 %v1969, %v2072
          %v2148 = vmul.f32 %v1970, %v2073
          %v2149 = vmul.f32 %v1971, %v2074
          %v2150 = vpack.c.bf16 %v2076, %v2075
          %v2151 = vpack.c.bf16 %v2078, %v2077
          %v2152 = vpack.c.bf16 %v2080, %v2079
          %v2153 = vpack.c.bf16 %v2082, %v2081
          %v2154 = vpack.c.bf16 %v2084, %v2083
          %v2155 = vpack.c.bf16 %v2086, %v2085
          %v2156 = vpack.c.bf16 %v2088, %v2087
          %v2157 = vpack.c.bf16 %v2090, %v2089
          %v2158 = vpack.c.bf16 %v2092, %v2091
          %v2159 = vpack.c.bf16 %v2094, %v2093
          %v2160 = vpack.c.bf16 %v2096, %v2095
          %v2161 = vpack.c.bf16 %v2098, %v2097
          %v2162 = vpack.c.bf16 %v2099, %v2099
          %v2163 = vpack.c.bf16 %v2101, %v2100
          %v2164 = vpack.c.bf16 %v2103, %v2102
          %v2165 = vpack.c.bf16 %v2105, %v2104
          %v2166 = vpack.c.bf16 %v2107, %v2106
          %v2167 = vpack.c.bf16 %v2109, %v2108
          %v2168 = vpack.c.bf16 %v2111, %v2110
          %v2169 = vpack.c.bf16 %v2113, %v2112
          %v2170 = vpack.c.bf16 %v2115, %v2114
          %v2171 = vpack.c.bf16 %v2117, %v2116
          %v2172 = vpack.c.bf16 %v2119, %v2118
          %v2173 = vpack.c.bf16 %v2121, %v2120
          %v2174 = vpack.c.bf16 %v2123, %v2122
          %v2175 = vpack.c.bf16 %v2124, %v2124
          %v2176 = vpack.c.bf16 %v2126, %v2125
          %v2177 = vpack.c.bf16 %v2128, %v2127
          %v2178 = vpack.c.bf16 %v2130, %v2129
          %v2179 = vpack.c.bf16 %v2132, %v2131
          %v2180 = vpack.c.bf16 %v2134, %v2133
          %v2181 = vpack.c.bf16 %v2136, %v2135
          %v2182 = vpack.c.bf16 %v2138, %v2137
          %v2183 = vpack.c.bf16 %v2140, %v2139
          %v2184 = vpack.c.bf16 %v2142, %v2141
          %v2185 = vpack.c.bf16 %v2144, %v2143
          %v2186 = vpack.c.bf16 %v2146, %v2145
          %v2187 = vpack.c.bf16 %v2148, %v2147
          %v2188 = vpack.c.bf16 %v2149, %v2149
          %2189 = vst [vmem:[#allocation2 + $0x320] sm:$0xff] %v2150
          %2190 = vst [vmem:[#allocation2 + $0x328] sm:$0xff] %v2151
          %2191 = vst [vmem:[#allocation2 + $0x330] sm:$0xff] %v2152
          %2192 = vst [vmem:[#allocation2 + $0x338] sm:$0xff] %v2153
          %2193 = vst [vmem:[#allocation2 + $0x340] sm:$0xff] %v2154
          %2194 = vst [vmem:[#allocation2 + $0x348] sm:$0xff] %v2155
          %2195 = vst [vmem:[#allocation2 + $0x350] sm:$0xff] %v2156
          %2196 = vst [vmem:[#allocation2 + $0x358] sm:$0xff] %v2157
          %2197 = vst [vmem:[#allocation2 + $0x360] sm:$0xff] %v2158
          %2198 = vst [vmem:[#allocation2 + $0x368] sm:$0xff] %v2159
          %2199 = vst [vmem:[#allocation2 + $0x370] sm:$0xff] %v2160
          %2200 = vst [vmem:[#allocation2 + $0x378] sm:$0xff] %v2161
          %2201 = vst.msk [vmem:[#allocation2 + $0x380] sm:$0xf] %vm188, %v2162
          %2202 = vst [vmem:[#allocation2 + $0x384] sm:$0xff] %v2163
          %2203 = vst [vmem:[#allocation2 + $0x38c] sm:$0xff] %v2164
          %2204 = vst [vmem:[#allocation2 + $0x394] sm:$0xff] %v2165
          %2205 = vst [vmem:[#allocation2 + $0x39c] sm:$0xff] %v2166
          %2206 = vst [vmem:[#allocation2 + $0x3a4] sm:$0xff] %v2167
          %2207 = vst [vmem:[#allocation2 + $0x3ac] sm:$0xff] %v2168
          %2208 = vst [vmem:[#allocation2 + $0x3b4] sm:$0xff] %v2169
          %2209 = vst [vmem:[#allocation2 + $0x3bc] sm:$0xff] %v2170
          %2210 = vst [vmem:[#allocation2 + $0x3c4] sm:$0xff] %v2171
          %2211 = vst [vmem:[#allocation2 + $0x3cc] sm:$0xff] %v2172
          %2212 = vst [vmem:[#allocation2 + $0x3d4] sm:$0xff] %v2173
          %2213 = vst [vmem:[#allocation2 + $0x3dc] sm:$0xff] %v2174
          %2214 = vst.msk [vmem:[#allocation2 + $0x3e4] sm:$0xf] %vm188, %v2175
          %2215 = vst [vmem:[#allocation2 + $0x3e8] sm:$0xff] %v2176
          %2216 = vst [vmem:[#allocation2 + $0x3f0] sm:$0xff] %v2177
          %2217 = vst [vmem:[#allocation2 + $0x3f8] sm:$0xff] %v2178
          %2218 = vst [vmem:[#allocation2 + $0x400] sm:$0xff] %v2179
          %2219 = vst [vmem:[#allocation2 + $0x408] sm:$0xff] %v2180
          %2220 = vst [vmem:[#allocation2 + $0x410] sm:$0xff] %v2181
          %2221 = vst [vmem:[#allocation2 + $0x418] sm:$0xff] %v2182
          %2222 = vst [vmem:[#allocation2 + $0x420] sm:$0xff] %v2183
          %2223 = vst [vmem:[#allocation2 + $0x428] sm:$0xff] %v2184
          %2224 = vst [vmem:[#allocation2 + $0x430] sm:$0xff] %v2185
          %2225 = vst [vmem:[#allocation2 + $0x438] sm:$0xff] %v2186
          %2226 = vst [vmem:[#allocation2 + $0x440] sm:$0xff] %v2187
          %2227 = vst.msk [vmem:[#allocation2 + $0x448] sm:$0xf] %vm188, %v2188
          %v2228 = vld [vmem:[%s313] sm:$0xff]
          %v2229 = vld [vmem:[%s313 + $0x8] sm:$0xff]
          %v2230 = vld [vmem:[%s313 + $0x10] sm:$0xff]
          %v2231 = vld [vmem:[%s313 + $0x18] sm:$0xff]
          %v2232 = vld [vmem:[%s313 + $0x20] sm:$0xff]
          %v2233 = vld [vmem:[%s313 + $0x28] sm:$0xff]
          %v2234 = vld [vmem:[%s313 + $0x30] sm:$0xff]
          %v2235 = vld [vmem:[%s313 + $0x38] sm:$0xff]
          %v2236 = vld [vmem:[%s313 + $0x40] sm:$0xff]
          %v2237 = vld [vmem:[%s313 + $0x48] sm:$0xff]
          %v2238 = vld [vmem:[%s313 + $0x50] sm:$0xff]
          %v2239 = vld [vmem:[%s313 + $0x58] sm:$0xff]
          %v2240 = vld [vmem:[%s313 + $0x60] sm:$0xff]
          %v2241 = vld [vmem:[%s313 + $0x68] sm:$0xff]
          %v2242 = vld [vmem:[%s313 + $0x70] sm:$0xff]
          %v2243 = vld [vmem:[%s313 + $0x78] sm:$0xff]
          %v2244 = vld [vmem:[%s313 + $0x80] sm:$0xff]
          %v2245 = vld [vmem:[%s313 + $0x88] sm:$0xff]
          %v2246 = vld [vmem:[%s313 + $0x90] sm:$0xff]
          %v2247 = vld [vmem:[%s313 + $0x98] sm:$0xff]
          %v2248 = vld [vmem:[%s313 + $0xa0] sm:$0xff]
          %v2249 = vld [vmem:[%s313 + $0xa8] sm:$0xff]
          %v2250 = vld [vmem:[%s313 + $0xb0] sm:$0xff]
          %v2251 = vld [vmem:[%s313 + $0xb8] sm:$0xff]
          %v2252 = vld [vmem:[%s313 + $0xc0] sm:$0xff]
          %v2253 = vld [vmem:[%s313 + $0xc8] sm:$0xff]
          %v2254 = vld [vmem:[%s313 + $0xd0] sm:$0xff]
          %v2255 = vld [vmem:[%s313 + $0xd8] sm:$0xff]
          %v2256 = vld [vmem:[%s313 + $0xe0] sm:$0xff]
          %v2257 = vld [vmem:[%s313 + $0xe8] sm:$0xff]
          %v2258 = vld [vmem:[%s313 + $0xf0] sm:$0xff]
          %v2259 = vld [vmem:[%s313 + $0xf8] sm:$0xff]
          %v2260 = vld [vmem:[%s313 + $0x100] sm:$0xff]
          %v2261 = vld [vmem:[%s313 + $0x108] sm:$0xff]
          %v2262 = vld [vmem:[%s313 + $0x110] sm:$0xff]
          %v2263 = vld [vmem:[%s313 + $0x118] sm:$0xff]
          %v2264 = vld [vmem:[%s313 + $0x120] sm:$0xff]
          %v2265 = vld [vmem:[%s313 + $0x128] sm:$0xff]
          %v2266 = vld [vmem:[%s313 + $0x130] sm:$0xff]
          %v2267 = vld [vmem:[%s313 + $0x138] sm:$0xff]
          %v2268 = vld [vmem:[%s313 + $0x140] sm:$0xff]
          %v2269 = vld [vmem:[%s313 + $0x148] sm:$0xff]
          %v2270 = vld [vmem:[%s313 + $0x150] sm:$0xff]
          %v2271 = vld [vmem:[%s313 + $0x158] sm:$0xff]
          %v2272 = vld [vmem:[%s313 + $0x160] sm:$0xff]
          %v2273 = vld [vmem:[%s313 + $0x168] sm:$0xff]
          %v2274 = vld [vmem:[%s313 + $0x170] sm:$0xff]
          %v2275 = vld [vmem:[%s313 + $0x178] sm:$0xff]
          %v2276 = vld [vmem:[%s313 + $0x180] sm:$0xff]
          %v2277 = vld [vmem:[%s313 + $0x188] sm:$0xff]
          %v2278 = vld [vmem:[%s313 + $0x190] sm:$0xff]
          %v2279 = vld [vmem:[%s313 + $0x198] sm:$0xff]
          %v2280 = vld [vmem:[%s313 + $0x1a0] sm:$0xff]
          %v2281 = vld [vmem:[%s313 + $0x1a8] sm:$0xff]
          %v2282 = vld [vmem:[%s313 + $0x1b0] sm:$0xff]
          %v2283 = vld [vmem:[%s313 + $0x1b8] sm:$0xff]
          %v2284 = vld [vmem:[%s313 + $0x1c0] sm:$0xff]
          %v2285 = vld [vmem:[%s313 + $0x1c8] sm:$0xff]
          %v2286 = vld [vmem:[%s313 + $0x1d0] sm:$0xff]
          %v2287 = vld [vmem:[%s313 + $0x1d8] sm:$0xff]
          %v2288 = vld [vmem:[%s313 + $0x1e0] sm:$0xff]
          %v2289 = vld [vmem:[%s313 + $0x1e8] sm:$0xff]
          %v2290 = vld [vmem:[%s313 + $0x1f0] sm:$0xff]
          %v2291 = vld [vmem:[%s313 + $0x1f8] sm:$0xff]
          %v2292 = vld [vmem:[%s313 + $0x200] sm:$0xff]
          %v2293 = vld [vmem:[%s313 + $0x208] sm:$0xff]
          %v2294 = vld [vmem:[%s313 + $0x210] sm:$0xff]
          %v2295 = vld [vmem:[%s313 + $0x218] sm:$0xff]
          %v2296 = vld [vmem:[%s313 + $0x220] sm:$0xff]
          %v2297 = vld [vmem:[%s313 + $0x228] sm:$0xff]
          %v2298 = vld [vmem:[%s313 + $0x230] sm:$0xff]
          %v2299 = vld [vmem:[%s313 + $0x238] sm:$0xff]
          %v2300 = vld [vmem:[%s313 + $0x240] sm:$0xff]
          %v2301 = vld [vmem:[%s313 + $0x248] sm:$0xff]
          %v2302 = vld [vmem:[%s313 + $0x250] sm:$0xff]
          %2306 = vrot.lane.b32.xlu0 %v2252, 120
          %v2307 = vpop.permute.xlu0 %2306
          %2308 = vrot.lane.b32.xlu0 %v2277, 120
          %v2309 = vpop.permute.xlu0 %2308
          %2310 = vrot.lane.b32.xlu0 %v2302, 120
          %v2311 = vpop.permute.xlu0 %2310
          %2387 = vrot.lane.b32.xlu0 %v2228, 56
          %v2388 = vpop.permute.xlu0 %2387
          %2389 = vrot.lane.b32.xlu0 %v2229, 56
          %v2390 = vpop.permute.xlu0 %2389
          %2391 = vrot.lane.b32.xlu0 %v2230, 56
          %v2392 = vpop.permute.xlu0 %2391
          %2393 = vrot.lane.b32.xlu0 %v2231, 56
          %v2394 = vpop.permute.xlu0 %2393
          %2395 = vrot.lane.b32.xlu0 %v2232, 56
          %v2396 = vpop.permute.xlu0 %2395
          %2397 = vrot.lane.b32.xlu0 %v2233, 56
          %v2398 = vpop.permute.xlu0 %2397
          %2399 = vrot.lane.b32.xlu0 %v2234, 56
          %v2400 = vpop.permute.xlu0 %2399
          %2401 = vrot.lane.b32.xlu0 %v2235, 56
          %v2402 = vpop.permute.xlu0 %2401
          %2403 = vrot.lane.b32.xlu0 %v2236, 56
          %v2404 = vpop.permute.xlu0 %2403
          %2405 = vrot.lane.b32.xlu0 %v2237, 56
          %v2406 = vpop.permute.xlu0 %2405
          %2407 = vrot.lane.b32.xlu0 %v2238, 56
          %v2408 = vpop.permute.xlu0 %2407
          %2409 = vrot.lane.b32.xlu0 %v2239, 56
          %v2410 = vpop.permute.xlu0 %2409
          %2411 = vrot.lane.b32.xlu0 %v2240, 56
          %v2412 = vpop.permute.xlu0 %2411
          %2413 = vrot.lane.b32.xlu0 %v2241, 56
          %v2414 = vpop.permute.xlu0 %2413
          %2415 = vrot.lane.b32.xlu0 %v2242, 56
          %v2416 = vpop.permute.xlu0 %2415
          %2417 = vrot.lane.b32.xlu0 %v2243, 56
          %v2418 = vpop.permute.xlu0 %2417
          %2419 = vrot.lane.b32.xlu0 %v2244, 56
          %v2420 = vpop.permute.xlu0 %2419
          %2421 = vrot.lane.b32.xlu0 %v2245, 56
          %v2422 = vpop.permute.xlu0 %2421
          %2423 = vrot.lane.b32.xlu0 %v2246, 56
          %v2424 = vpop.permute.xlu0 %2423
          %2425 = vrot.lane.b32.xlu0 %v2247, 56
          %v2426 = vpop.permute.xlu0 %2425
          %2427 = vrot.lane.b32.xlu0 %v2248, 56
          %v2428 = vpop.permute.xlu0 %2427
          %2429 = vrot.lane.b32.xlu0 %v2249, 56
          %v2430 = vpop.permute.xlu0 %2429
          %2431 = vrot.lane.b32.xlu0 %v2250, 56
          %v2432 = vpop.permute.xlu0 %2431
          %2433 = vrot.lane.b32.xlu0 %v2251, 56
          %v2434 = vpop.permute.xlu0 %2433
          %2435 = vrot.lane.b32.xlu0 %v2252, 56
          %v2436 = vpop.permute.xlu0 %2435
          %2437 = vrot.lane.b32.xlu0 %v2253, 56
          %v2438 = vpop.permute.xlu0 %2437
          %2439 = vrot.lane.b32.xlu0 %v2254, 56
          %v2440 = vpop.permute.xlu0 %2439
          %2441 = vrot.lane.b32.xlu0 %v2255, 56
          %v2442 = vpop.permute.xlu0 %2441
          %2443 = vrot.lane.b32.xlu0 %v2256, 56
          %v2444 = vpop.permute.xlu0 %2443
          %2445 = vrot.lane.b32.xlu0 %v2257, 56
          %v2446 = vpop.permute.xlu0 %2445
          %2447 = vrot.lane.b32.xlu0 %v2258, 56
          %v2448 = vpop.permute.xlu0 %2447
          %2449 = vrot.lane.b32.xlu0 %v2259, 56
          %v2450 = vpop.permute.xlu0 %2449
          %2451 = vrot.lane.b32.xlu0 %v2260, 56
          %v2452 = vpop.permute.xlu0 %2451
          %2453 = vrot.lane.b32.xlu0 %v2261, 56
          %v2454 = vpop.permute.xlu0 %2453
          %2455 = vrot.lane.b32.xlu0 %v2262, 56
          %v2456 = vpop.permute.xlu0 %2455
          %2457 = vrot.lane.b32.xlu0 %v2263, 56
          %v2458 = vpop.permute.xlu0 %2457
          %2459 = vrot.lane.b32.xlu0 %v2264, 56
          %v2460 = vpop.permute.xlu0 %2459
          %2461 = vrot.lane.b32.xlu0 %v2265, 56
          %v2462 = vpop.permute.xlu0 %2461
          %2463 = vrot.lane.b32.xlu0 %v2266, 56
          %v2464 = vpop.permute.xlu0 %2463
          %2465 = vrot.lane.b32.xlu0 %v2267, 56
          %v2466 = vpop.permute.xlu0 %2465
          %2467 = vrot.lane.b32.xlu0 %v2268, 56
          %v2468 = vpop.permute.xlu0 %2467
          %2469 = vrot.lane.b32.xlu0 %v2269, 56
          %v2470 = vpop.permute.xlu0 %2469
          %2471 = vrot.lane.b32.xlu0 %v2270, 56
          %v2472 = vpop.permute.xlu0 %2471
          %2473 = vrot.lane.b32.xlu0 %v2271, 56
          %v2474 = vpop.permute.xlu0 %2473
          %2475 = vrot.lane.b32.xlu0 %v2272, 56
          %v2476 = vpop.permute.xlu0 %2475
          %2477 = vrot.lane.b32.xlu0 %v2273, 56
          %v2478 = vpop.permute.xlu0 %2477
          %2479 = vrot.lane.b32.xlu0 %v2274, 56
          %v2480 = vpop.permute.xlu0 %2479
          %2481 = vrot.lane.b32.xlu0 %v2275, 56
          %v2482 = vpop.permute.xlu0 %2481
          %2483 = vrot.lane.b32.xlu0 %v2276, 56
          %v2484 = vpop.permute.xlu0 %2483
          %2485 = vrot.lane.b32.xlu0 %v2277, 56
          %v2486 = vpop.permute.xlu0 %2485
          %2487 = vrot.lane.b32.xlu0 %v2278, 56
          %v2488 = vpop.permute.xlu0 %2487
          %2489 = vrot.lane.b32.xlu0 %v2279, 56
          %v2490 = vpop.permute.xlu0 %2489
          %2491 = vrot.lane.b32.xlu0 %v2280, 56
          %v2492 = vpop.permute.xlu0 %2491
          %2493 = vrot.lane.b32.xlu0 %v2281, 56
          %v2494 = vpop.permute.xlu0 %2493
          %2495 = vrot.lane.b32.xlu0 %v2282, 56
          %v2496 = vpop.permute.xlu0 %2495
          %2497 = vrot.lane.b32.xlu0 %v2283, 56
          %v2498 = vpop.permute.xlu0 %2497
          %2499 = vrot.lane.b32.xlu0 %v2284, 56
          %v2500 = vpop.permute.xlu0 %2499
          %2501 = vrot.lane.b32.xlu0 %v2285, 56
          %v2502 = vpop.permute.xlu0 %2501
          %2503 = vrot.lane.b32.xlu0 %v2286, 56
          %v2504 = vpop.permute.xlu0 %2503
          %2505 = vrot.lane.b32.xlu0 %v2287, 56
          %v2506 = vpop.permute.xlu0 %2505
          %2507 = vrot.lane.b32.xlu0 %v2288, 56
          %v2508 = vpop.permute.xlu0 %2507
          %2509 = vrot.lane.b32.xlu0 %v2289, 56
          %v2510 = vpop.permute.xlu0 %2509
          %2511 = vrot.lane.b32.xlu0 %v2290, 56
          %v2512 = vpop.permute.xlu0 %2511
          %2513 = vrot.lane.b32.xlu0 %v2291, 56
          %v2514 = vpop.permute.xlu0 %2513
          %2515 = vrot.lane.b32.xlu0 %v2292, 56
          %v2516 = vpop.permute.xlu0 %2515
          %2517 = vrot.lane.b32.xlu0 %v2293, 56
          %v2518 = vpop.permute.xlu0 %2517
          %2519 = vrot.lane.b32.xlu0 %v2294, 56
          %v2520 = vpop.permute.xlu0 %2519
          %2521 = vrot.lane.b32.xlu0 %v2295, 56
          %v2522 = vpop.permute.xlu0 %2521
          %2523 = vrot.lane.b32.xlu0 %v2296, 56
          %v2524 = vpop.permute.xlu0 %2523
          %2525 = vrot.lane.b32.xlu0 %v2297, 56
          %v2526 = vpop.permute.xlu0 %2525
          %2527 = vrot.lane.b32.xlu0 %v2298, 56
          %v2528 = vpop.permute.xlu0 %2527
          %2529 = vrot.lane.b32.xlu0 %v2299, 56
          %v2530 = vpop.permute.xlu0 %2529
          %2531 = vrot.lane.b32.xlu0 %v2300, 56
          %v2532 = vpop.permute.xlu0 %2531
          %2533 = vrot.lane.b32.xlu0 %v2301, 56
          %v2534 = vpop.permute.xlu0 %2533
          %2535 = vrot.lane.b32.xlu0 %v2302, 56
          %v2536 = vpop.permute.xlu0 %2535
          %vm2537 = vcmask 457728
          %v2538 = vsel %vm2537, %v2388, %v2390
          %v2539 = vsel %vm2537, %v2390, %v2392
          %v2540 = vsel %vm2537, %v2392, %v2394
          %v2541 = vsel %vm2537, %v2394, %v2396
          %v2542 = vsel %vm2537, %v2396, %v2398
          %v2543 = vsel %vm2537, %v2398, %v2400
          %v2544 = vsel %vm2537, %v2400, %v2402
          %v2545 = vsel %vm2537, %v2402, %v2404
          %v2546 = vsel %vm2537, %v2404, %v2406
          %v2547 = vsel %vm2537, %v2406, %v2408
          %v2548 = vsel %vm2537, %v2408, %v2410
          %v2549 = vsel %vm2537, %v2410, %v2412
          %v2550 = vsel %vm2537, %v2412, %v2414
          %v2551 = vsel %vm2537, %v2414, %v2416
          %v2552 = vsel %vm2537, %v2416, %v2418
          %v2553 = vsel %vm2537, %v2418, %v2420
          %v2554 = vsel %vm2537, %v2420, %v2422
          %v2555 = vsel %vm2537, %v2422, %v2424
          %v2556 = vsel %vm2537, %v2424, %v2426
          %v2557 = vsel %vm2537, %v2426, %v2428
          %v2558 = vsel %vm2537, %v2428, %v2430
          %v2559 = vsel %vm2537, %v2430, %v2432
          %v2560 = vsel %vm2537, %v2432, %v2434
          %v2561 = vsel %vm2537, %v2434, %v2436
          %v2562 = vsel %vm2537, %v2438, %v2440
          %v2563 = vsel %vm2537, %v2440, %v2442
          %v2564 = vsel %vm2537, %v2442, %v2444
          %v2565 = vsel %vm2537, %v2444, %v2446
          %v2566 = vsel %vm2537, %v2446, %v2448
          %v2567 = vsel %vm2537, %v2448, %v2450
          %v2568 = vsel %vm2537, %v2450, %v2452
          %v2569 = vsel %vm2537, %v2452, %v2454
          %v2570 = vsel %vm2537, %v2454, %v2456
          %v2571 = vsel %vm2537, %v2456, %v2458
          %v2572 = vsel %vm2537, %v2458, %v2460
          %v2573 = vsel %vm2537, %v2460, %v2462
          %v2574 = vsel %vm2537, %v2462, %v2464
          %v2575 = vsel %vm2537, %v2464, %v2466
          %v2576 = vsel %vm2537, %v2466, %v2468
          %v2577 = vsel %vm2537, %v2468, %v2470
          %v2578 = vsel %vm2537, %v2470, %v2472
          %v2579 = vsel %vm2537, %v2472, %v2474
          %v2580 = vsel %vm2537, %v2474, %v2476
          %v2581 = vsel %vm2537, %v2476, %v2478
          %v2582 = vsel %vm2537, %v2478, %v2480
          %v2583 = vsel %vm2537, %v2480, %v2482
          %v2584 = vsel %vm2537, %v2482, %v2484
          %v2585 = vsel %vm2537, %v2484, %v2486
          %v2586 = vsel %vm2537, %v2488, %v2490
          %v2587 = vsel %vm2537, %v2490, %v2492
          %v2588 = vsel %vm2537, %v2492, %v2494
          %v2589 = vsel %vm2537, %v2494, %v2496
          %v2590 = vsel %vm2537, %v2496, %v2498
          %v2591 = vsel %vm2537, %v2498, %v2500
          %v2592 = vsel %vm2537, %v2500, %v2502
          %v2593 = vsel %vm2537, %v2502, %v2504
          %v2594 = vsel %vm2537, %v2504, %v2506
          %v2595 = vsel %vm2537, %v2506, %v2508
          %v2596 = vsel %vm2537, %v2508, %v2510
          %v2597 = vsel %vm2537, %v2510, %v2512
          %v2598 = vsel %vm2537, %v2512, %v2514
          %v2599 = vsel %vm2537, %v2514, %v2516
          %v2600 = vsel %vm2537, %v2516, %v2518
          %v2601 = vsel %vm2537, %v2518, %v2520
          %v2602 = vsel %vm2537, %v2520, %v2522
          %v2603 = vsel %vm2537, %v2522, %v2524
          %v2604 = vsel %vm2537, %v2524, %v2526
          %v2605 = vsel %vm2537, %v2526, %v2528
          %v2606 = vsel %vm2537, %v2528, %v2530
          %v2607 = vsel %vm2537, %v2530, %v2532
          %v2608 = vsel %vm2537, %v2532, %v2534
          %v2609 = vsel %vm2537, %v2534, %v2536
          %v2685 = vsel %vm2537, %v2307, %v2388
          %v2686 = vsel %vm2537, %v2309, %v2438
          %v2687 = vsel %vm2537, %v2311, %v2488
          %v2688 = vpack.c.bf16 %v2538, %v2685
          %v2689 = vpack.c.bf16 %v2540, %v2539
          %v2690 = vpack.c.bf16 %v2542, %v2541
          %v2691 = vpack.c.bf16 %v2544, %v2543
          %v2692 = vpack.c.bf16 %v2546, %v2545
          %v2693 = vpack.c.bf16 %v2548, %v2547
          %v2694 = vpack.c.bf16 %v2550, %v2549
          %v2695 = vpack.c.bf16 %v2552, %v2551
          %v2696 = vpack.c.bf16 %v2554, %v2553
          %v2697 = vpack.c.bf16 %v2556, %v2555
          %v2698 = vpack.c.bf16 %v2558, %v2557
          %v2699 = vpack.c.bf16 %v2560, %v2559
          %v2700 = vpack.c.bf16 %v2561, %v2561
          %v2701 = vpack.c.bf16 %v2562, %v2686
          %v2702 = vpack.c.bf16 %v2564, %v2563
          %v2703 = vpack.c.bf16 %v2566, %v2565
          %v2704 = vpack.c.bf16 %v2568, %v2567
          %v2705 = vpack.c.bf16 %v2570, %v2569
          %v2706 = vpack.c.bf16 %v2572, %v2571
          %v2707 = vpack.c.bf16 %v2574, %v2573
          %v2708 = vpack.c.bf16 %v2576, %v2575
          %v2709 = vpack.c.bf16 %v2578, %v2577
          %v2710 = vpack.c.bf16 %v2580, %v2579
          %v2711 = vpack.c.bf16 %v2582, %v2581
          %v2712 = vpack.c.bf16 %v2584, %v2583
          %v2713 = vpack.c.bf16 %v2585, %v2585
          %v2714 = vpack.c.bf16 %v2586, %v2687
          %v2715 = vpack.c.bf16 %v2588, %v2587
          %v2716 = vpack.c.bf16 %v2590, %v2589
          %v2717 = vpack.c.bf16 %v2592, %v2591
          %v2718 = vpack.c.bf16 %v2594, %v2593
          %v2719 = vpack.c.bf16 %v2596, %v2595
          %v2720 = vpack.c.bf16 %v2598, %v2597
          %v2721 = vpack.c.bf16 %v2600, %v2599
          %v2722 = vpack.c.bf16 %v2602, %v2601
          %v2723 = vpack.c.bf16 %v2604, %v2603
          %v2724 = vpack.c.bf16 %v2606, %v2605
          %v2725 = vpack.c.bf16 %v2608, %v2607
          %v2726 = vpack.c.bf16 %v2609, %v2609
          %2727 = vst [vmem:[#allocation2 + $0x4b0] sm:$0xff] %v2688
          %2728 = vst [vmem:[#allocation2 + $0x4b8] sm:$0xff] %v2689
          %2729 = vst [vmem:[#allocation2 + $0x4c0] sm:$0xff] %v2690
          %2730 = vst [vmem:[#allocation2 + $0x4c8] sm:$0xff] %v2691
          %2731 = vst [vmem:[#allocation2 + $0x4d0] sm:$0xff] %v2692
          %2732 = vst [vmem:[#allocation2 + $0x4d8] sm:$0xff] %v2693
          %2733 = vst [vmem:[#allocation2 + $0x4e0] sm:$0xff] %v2694
          %2734 = vst [vmem:[#allocation2 + $0x4e8] sm:$0xff] %v2695
          %2735 = vst [vmem:[#allocation2 + $0x4f0] sm:$0xff] %v2696
          %2736 = vst [vmem:[#allocation2 + $0x4f8] sm:$0xff] %v2697
          %2737 = vst [vmem:[#allocation2 + $0x500] sm:$0xff] %v2698
          %2738 = vst [vmem:[#allocation2 + $0x508] sm:$0xff] %v2699
          %2739 = vst.msk [vmem:[#allocation2 + $0x510] sm:$0xf] %vm188, %v2700
          %2740 = vst [vmem:[#allocation2 + $0x514] sm:$0xff] %v2701
          %2741 = vst [vmem:[#allocation2 + $0x51c] sm:$0xff] %v2702
          %2742 = vst [vmem:[#allocation2 + $0x524] sm:$0xff] %v2703
          %2743 = vst [vmem:[#allocation2 + $0x52c] sm:$0xff] %v2704
          %2744 = vst [vmem:[#allocation2 + $0x534] sm:$0xff] %v2705
          %2745 = vst [vmem:[#allocation2 + $0x53c] sm:$0xff] %v2706
          %2746 = vst [vmem:[#allocation2 + $0x544] sm:$0xff] %v2707
          %2747 = vst [vmem:[#allocation2 + $0x54c] sm:$0xff] %v2708
          %2748 = vst [vmem:[#allocation2 + $0x554] sm:$0xff] %v2709
          %2749 = vst [vmem:[#allocation2 + $0x55c] sm:$0xff] %v2710
          %2750 = vst [vmem:[#allocation2 + $0x564] sm:$0xff] %v2711
          %2751 = vst [vmem:[#allocation2 + $0x56c] sm:$0xff] %v2712
          %2752 = vst.msk [vmem:[#allocation2 + $0x574] sm:$0xf] %vm188, %v2713
          %2753 = vst [vmem:[#allocation2 + $0x578] sm:$0xff] %v2714
          %2754 = vst [vmem:[#allocation2 + $0x580] sm:$0xff] %v2715
          %2755 = vst [vmem:[#allocation2 + $0x588] sm:$0xff] %v2716
          %2756 = vst [vmem:[#allocation2 + $0x590] sm:$0xff] %v2717
          %2757 = vst [vmem:[#allocation2 + $0x598] sm:$0xff] %v2718
          %2758 = vst [vmem:[#allocation2 + $0x5a0] sm:$0xff] %v2719
          %2759 = vst [vmem:[#allocation2 + $0x5a8] sm:$0xff] %v2720
          %2760 = vst [vmem:[#allocation2 + $0x5b0] sm:$0xff] %v2721
          %2761 = vst [vmem:[#allocation2 + $0x5b8] sm:$0xff] %v2722
          %2762 = vst [vmem:[#allocation2 + $0x5c0] sm:$0xff] %v2723
          %2763 = vst [vmem:[#allocation2 + $0x5c8] sm:$0xff] %v2724
          %2764 = vst [vmem:[#allocation2 + $0x5d0] sm:$0xff] %v2725
          %2765 = vst.msk [vmem:[#allocation2 + $0x5d8] sm:$0xf] %vm188, %v2726
          %v2766 = vld [vmem:[%s313] sm:$0xff]
          %v2767 = vld [vmem:[%s313 + $0x8] sm:$0xff]
          %v2768 = vld [vmem:[%s313 + $0x10] sm:$0xff]
          %v2769 = vld [vmem:[%s313 + $0x18] sm:$0xff]
          %v2770 = vld [vmem:[%s313 + $0x20] sm:$0xff]
          %v2771 = vld [vmem:[%s313 + $0x28] sm:$0xff]
          %v2772 = vld [vmem:[%s313 + $0x30] sm:$0xff]
          %v2773 = vld [vmem:[%s313 + $0x38] sm:$0xff]
          %v2774 = vld [vmem:[%s313 + $0x40] sm:$0xff]
          %v2775 = vld [vmem:[%s313 + $0x48] sm:$0xff]
          %v2776 = vld [vmem:[%s313 + $0x50] sm:$0xff]
          %v2777 = vld [vmem:[%s313 + $0x58] sm:$0xff]
          %v2778 = vld [vmem:[%s313 + $0x60] sm:$0xff]
          %v2779 = vld [vmem:[%s313 + $0x68] sm:$0xff]
          %v2780 = vld [vmem:[%s313 + $0x70] sm:$0xff]
          %v2781 = vld [vmem:[%s313 + $0x78] sm:$0xff]
          %v2782 = vld [vmem:[%s313 + $0x80] sm:$0xff]
          %v2783 = vld [vmem:[%s313 + $0x88] sm:$0xff]
          %v2784 = vld [vmem:[%s313 + $0x90] sm:$0xff]
          %v2785 = vld [vmem:[%s313 + $0x98] sm:$0xff]
          %v2786 = vld [vmem:[%s313 + $0xa0] sm:$0xff]
          %v2787 = vld [vmem:[%s313 + $0xa8] sm:$0xff]
          %v2788 = vld [vmem:[%s313 + $0xb0] sm:$0xff]
          %v2789 = vld [vmem:[%s313 + $0xb8] sm:$0xff]
          %v2790 = vld [vmem:[%s313 + $0xc0] sm:$0xff]
          %v2791 = vld [vmem:[%s313 + $0xc8] sm:$0xff]
          %v2792 = vld [vmem:[%s313 + $0xd0] sm:$0xff]
          %v2793 = vld [vmem:[%s313 + $0xd8] sm:$0xff]
          %v2794 = vld [vmem:[%s313 + $0xe0] sm:$0xff]
          %v2795 = vld [vmem:[%s313 + $0xe8] sm:$0xff]
          %v2796 = vld [vmem:[%s313 + $0xf0] sm:$0xff]
          %v2797 = vld [vmem:[%s313 + $0xf8] sm:$0xff]
          %v2798 = vld [vmem:[%s313 + $0x100] sm:$0xff]
          %v2799 = vld [vmem:[%s313 + $0x108] sm:$0xff]
          %v2800 = vld [vmem:[%s313 + $0x110] sm:$0xff]
          %v2801 = vld [vmem:[%s313 + $0x118] sm:$0xff]
          %v2802 = vld [vmem:[%s313 + $0x120] sm:$0xff]
          %v2803 = vld [vmem:[%s313 + $0x128] sm:$0xff]
          %v2804 = vld [vmem:[%s313 + $0x130] sm:$0xff]
          %v2805 = vld [vmem:[%s313 + $0x138] sm:$0xff]
          %v2806 = vld [vmem:[%s313 + $0x140] sm:$0xff]
          %v2807 = vld [vmem:[%s313 + $0x148] sm:$0xff]
          %v2808 = vld [vmem:[%s313 + $0x150] sm:$0xff]
          %v2809 = vld [vmem:[%s313 + $0x158] sm:$0xff]
          %v2810 = vld [vmem:[%s313 + $0x160] sm:$0xff]
          %v2811 = vld [vmem:[%s313 + $0x168] sm:$0xff]
          %v2812 = vld [vmem:[%s313 + $0x170] sm:$0xff]
          %v2813 = vld [vmem:[%s313 + $0x178] sm:$0xff]
          %v2814 = vld [vmem:[%s313 + $0x180] sm:$0xff]
          %v2815 = vld [vmem:[%s313 + $0x188] sm:$0xff]
          %v2816 = vld [vmem:[%s313 + $0x190] sm:$0xff]
          %v2817 = vld [vmem:[%s313 + $0x198] sm:$0xff]
          %v2818 = vld [vmem:[%s313 + $0x1a0] sm:$0xff]
          %v2819 = vld [vmem:[%s313 + $0x1a8] sm:$0xff]
          %v2820 = vld [vmem:[%s313 + $0x1b0] sm:$0xff]
          %v2821 = vld [vmem:[%s313 + $0x1b8] sm:$0xff]
          %v2822 = vld [vmem:[%s313 + $0x1c0] sm:$0xff]
          %v2823 = vld [vmem:[%s313 + $0x1c8] sm:$0xff]
          %v2824 = vld [vmem:[%s313 + $0x1d0] sm:$0xff]
          %v2825 = vld [vmem:[%s313 + $0x1d8] sm:$0xff]
          %v2826 = vld [vmem:[%s313 + $0x1e0] sm:$0xff]
          %v2827 = vld [vmem:[%s313 + $0x1e8] sm:$0xff]
          %v2828 = vld [vmem:[%s313 + $0x1f0] sm:$0xff]
          %v2829 = vld [vmem:[%s313 + $0x1f8] sm:$0xff]
          %v2830 = vld [vmem:[%s313 + $0x200] sm:$0xff]
          %v2831 = vld [vmem:[%s313 + $0x208] sm:$0xff]
          %v2832 = vld [vmem:[%s313 + $0x210] sm:$0xff]
          %v2833 = vld [vmem:[%s313 + $0x218] sm:$0xff]
          %v2834 = vld [vmem:[%s313 + $0x220] sm:$0xff]
          %v2835 = vld [vmem:[%s313 + $0x228] sm:$0xff]
          %v2836 = vld [vmem:[%s313 + $0x230] sm:$0xff]
          %v2837 = vld [vmem:[%s313 + $0x238] sm:$0xff]
          %v2838 = vld [vmem:[%s313 + $0x240] sm:$0xff]
          %v2839 = vld [vmem:[%s313 + $0x248] sm:$0xff]
          %v2840 = vld [vmem:[%s313 + $0x250] sm:$0xff]
          %2844 = vrot.lane.b32.xlu0 %v2790, 119
          %v2845 = vpop.permute.xlu0 %2844
          %2846 = vrot.lane.b32.xlu0 %v2815, 119
          %v2847 = vpop.permute.xlu0 %2846
          %2848 = vrot.lane.b32.xlu0 %v2840, 119
          %v2849 = vpop.permute.xlu0 %2848
          %2925 = vrot.lane.b32.xlu0 %v2766, 55
          %v2926 = vpop.permute.xlu0 %2925
          %2927 = vrot.lane.b32.xlu0 %v2767, 55
          %v2928 = vpop.permute.xlu0 %2927
          %2929 = vrot.lane.b32.xlu0 %v2768, 55
          %v2930 = vpop.permute.xlu0 %2929
          %2931 = vrot.lane.b32.xlu0 %v2769, 55
          %v2932 = vpop.permute.xlu0 %2931
          %2933 = vrot.lane.b32.xlu0 %v2770, 55
          %v2934 = vpop.permute.xlu0 %2933
          %2935 = vrot.lane.b32.xlu0 %v2771, 55
          %v2936 = vpop.permute.xlu0 %2935
          %2937 = vrot.lane.b32.xlu0 %v2772, 55
          %v2938 = vpop.permute.xlu0 %2937
          %2939 = vrot.lane.b32.xlu0 %v2773, 55
          %v2940 = vpop.permute.xlu0 %2939
          %2941 = vrot.lane.b32.xlu0 %v2774, 55
          %v2942 = vpop.permute.xlu0 %2941
          %2943 = vrot.lane.b32.xlu0 %v2775, 55
          %v2944 = vpop.permute.xlu0 %2943
          %2945 = vrot.lane.b32.xlu0 %v2776, 55
          %v2946 = vpop.permute.xlu0 %2945
          %2947 = vrot.lane.b32.xlu0 %v2777, 55
          %v2948 = vpop.permute.xlu0 %2947
          %2949 = vrot.lane.b32.xlu0 %v2778, 55
          %v2950 = vpop.permute.xlu0 %2949
          %2951 = vrot.lane.b32.xlu0 %v2779, 55
          %v2952 = vpop.permute.xlu0 %2951
          %2953 = vrot.lane.b32.xlu0 %v2780, 55
          %v2954 = vpop.permute.xlu0 %2953
          %2955 = vrot.lane.b32.xlu0 %v2781, 55
          %v2956 = vpop.permute.xlu0 %2955
          %2957 = vrot.lane.b32.xlu0 %v2782, 55
          %v2958 = vpop.permute.xlu0 %2957
          %2959 = vrot.lane.b32.xlu0 %v2783, 55
          %v2960 = vpop.permute.xlu0 %2959
          %2961 = vrot.lane.b32.xlu0 %v2784, 55
          %v2962 = vpop.permute.xlu0 %2961
          %2963 = vrot.lane.b32.xlu0 %v2785, 55
          %v2964 = vpop.permute.xlu0 %2963
          %2965 = vrot.lane.b32.xlu0 %v2786, 55
          %v2966 = vpop.permute.xlu0 %2965
          %2967 = vrot.lane.b32.xlu0 %v2787, 55
          %v2968 = vpop.permute.xlu0 %2967
          %2969 = vrot.lane.b32.xlu0 %v2788, 55
          %v2970 = vpop.permute.xlu0 %2969
          %2971 = vrot.lane.b32.xlu0 %v2789, 55
          %v2972 = vpop.permute.xlu0 %2971
          %2973 = vrot.lane.b32.xlu0 %v2790, 55
          %v2974 = vpop.permute.xlu0 %2973
          %2975 = vrot.lane.b32.xlu0 %v2791, 55
          %v2976 = vpop.permute.xlu0 %2975
          %2977 = vrot.lane.b32.xlu0 %v2792, 55
          %v2978 = vpop.permute.xlu0 %2977
          %2979 = vrot.lane.b32.xlu0 %v2793, 55
          %v2980 = vpop.permute.xlu0 %2979
          %2981 = vrot.lane.b32.xlu0 %v2794, 55
          %v2982 = vpop.permute.xlu0 %2981
          %2983 = vrot.lane.b32.xlu0 %v2795, 55
          %v2984 = vpop.permute.xlu0 %2983
          %2985 = vrot.lane.b32.xlu0 %v2796, 55
          %v2986 = vpop.permute.xlu0 %2985
          %2987 = vrot.lane.b32.xlu0 %v2797, 55
          %v2988 = vpop.permute.xlu0 %2987
          %2989 = vrot.lane.b32.xlu0 %v2798, 55
          %v2990 = vpop.permute.xlu0 %2989
          %2991 = vrot.lane.b32.xlu0 %v2799, 55
          %v2992 = vpop.permute.xlu0 %2991
          %2993 = vrot.lane.b32.xlu0 %v2800, 55
          %v2994 = vpop.permute.xlu0 %2993
          %2995 = vrot.lane.b32.xlu0 %v2801, 55
          %v2996 = vpop.permute.xlu0 %2995
          %2997 = vrot.lane.b32.xlu0 %v2802, 55
          %v2998 = vpop.permute.xlu0 %2997
          %2999 = vrot.lane.b32.xlu0 %v2803, 55
          %v3000 = vpop.permute.xlu0 %2999
          %3001 = vrot.lane.b32.xlu0 %v2804, 55
          %v3002 = vpop.permute.xlu0 %3001
          %3003 = vrot.lane.b32.xlu0 %v2805, 55
          %v3004 = vpop.permute.xlu0 %3003
          %3005 = vrot.lane.b32.xlu0 %v2806, 55
          %v3006 = vpop.permute.xlu0 %3005
          %3007 = vrot.lane.b32.xlu0 %v2807, 55
          %v3008 = vpop.permute.xlu0 %3007
          %3009 = vrot.lane.b32.xlu0 %v2808, 55
          %v3010 = vpop.permute.xlu0 %3009
          %3011 = vrot.lane.b32.xlu0 %v2809, 55
          %v3012 = vpop.permute.xlu0 %3011
          %3013 = vrot.lane.b32.xlu0 %v2810, 55
          %v3014 = vpop.permute.xlu0 %3013
          %3015 = vrot.lane.b32.xlu0 %v2811, 55
          %v3016 = vpop.permute.xlu0 %3015
          %3017 = vrot.lane.b32.xlu0 %v2812, 55
          %v3018 = vpop.permute.xlu0 %3017
          %3019 = vrot.lane.b32.xlu0 %v2813, 55
          %v3020 = vpop.permute.xlu0 %3019
          %3021 = vrot.lane.b32.xlu0 %v2814, 55
          %v3022 = vpop.permute.xlu0 %3021
          %3023 = vrot.lane.b32.xlu0 %v2815, 55
          %v3024 = vpop.permute.xlu0 %3023
          %3025 = vrot.lane.b32.xlu0 %v2816, 55
          %v3026 = vpop.permute.xlu0 %3025
          %3027 = vrot.lane.b32.xlu0 %v2817, 55
          %v3028 = vpop.permute.xlu0 %3027
          %3029 = vrot.lane.b32.xlu0 %v2818, 55
          %v3030 = vpop.permute.xlu0 %3029
          %3031 = vrot.lane.b32.xlu0 %v2819, 55
          %v3032 = vpop.permute.xlu0 %3031
          %3033 = vrot.lane.b32.xlu0 %v2820, 55
          %v3034 = vpop.permute.xlu0 %3033
          %3035 = vrot.lane.b32.xlu0 %v2821, 55
          %v3036 = vpop.permute.xlu0 %3035
          %3037 = vrot.lane.b32.xlu0 %v2822, 55
          %v3038 = vpop.permute.xlu0 %3037
          %3039 = vrot.lane.b32.xlu0 %v2823, 55
          %v3040 = vpop.permute.xlu0 %3039
          %3041 = vrot.lane.b32.xlu0 %v2824, 55
          %v3042 = vpop.permute.xlu0 %3041
          %3043 = vrot.lane.b32.xlu0 %v2825, 55
          %v3044 = vpop.permute.xlu0 %3043
          %3045 = vrot.lane.b32.xlu0 %v2826, 55
          %v3046 = vpop.permute.xlu0 %3045
          %3047 = vrot.lane.b32.xlu0 %v2827, 55
          %v3048 = vpop.permute.xlu0 %3047
          %3049 = vrot.lane.b32.xlu0 %v2828, 55
          %v3050 = vpop.permute.xlu0 %3049
          %3051 = vrot.lane.b32.xlu0 %v2829, 55
          %v3052 = vpop.permute.xlu0 %3051
          %3053 = vrot.lane.b32.xlu0 %v2830, 55
          %v3054 = vpop.permute.xlu0 %3053
          %3055 = vrot.lane.b32.xlu0 %v2831, 55
          %v3056 = vpop.permute.xlu0 %3055
          %3057 = vrot.lane.b32.xlu0 %v2832, 55
          %v3058 = vpop.permute.xlu0 %3057
          %3059 = vrot.lane.b32.xlu0 %v2833, 55
          %v3060 = vpop.permute.xlu0 %3059
          %3061 = vrot.lane.b32.xlu0 %v2834, 55
          %v3062 = vpop.permute.xlu0 %3061
          %3063 = vrot.lane.b32.xlu0 %v2835, 55
          %v3064 = vpop.permute.xlu0 %3063
          %3065 = vrot.lane.b32.xlu0 %v2836, 55
          %v3066 = vpop.permute.xlu0 %3065
          %3067 = vrot.lane.b32.xlu0 %v2837, 55
          %v3068 = vpop.permute.xlu0 %3067
          %3069 = vrot.lane.b32.xlu0 %v2838, 55
          %v3070 = vpop.permute.xlu0 %3069
          %3071 = vrot.lane.b32.xlu0 %v2839, 55
          %v3072 = vpop.permute.xlu0 %3071
          %3073 = vrot.lane.b32.xlu0 %v2840, 55
          %v3074 = vpop.permute.xlu0 %3073
          %vm3075 = vcmask 449536
          %v3076 = vsel %vm3075, %v2926, %v2928
          %v3077 = vsel %vm3075, %v2928, %v2930
          %v3078 = vsel %vm3075, %v2930, %v2932
          %v3079 = vsel %vm3075, %v2932, %v2934
          %v3080 = vsel %vm3075, %v2934, %v2936
          %v3081 = vsel %vm3075, %v2936, %v2938
          %v3082 = vsel %vm3075, %v2938, %v2940
          %v3083 = vsel %vm3075, %v2940, %v2942
          %v3084 = vsel %vm3075, %v2942, %v2944
          %v3085 = vsel %vm3075, %v2944, %v2946
          %v3086 = vsel %vm3075, %v2946, %v2948
          %v3087 = vsel %vm3075, %v2948, %v2950
          %v3088 = vsel %vm3075, %v2950, %v2952
          %v3089 = vsel %vm3075, %v2952, %v2954
          %v3090 = vsel %vm3075, %v2954, %v2956
          %v3091 = vsel %vm3075, %v2956, %v2958
          %v3092 = vsel %vm3075, %v2958, %v2960
          %v3093 = vsel %vm3075, %v2960, %v2962
          %v3094 = vsel %vm3075, %v2962, %v2964
          %v3095 = vsel %vm3075, %v2964, %v2966
          %v3096 = vsel %vm3075, %v2966, %v2968
          %v3097 = vsel %vm3075, %v2968, %v2970
          %v3098 = vsel %vm3075, %v2970, %v2972
          %v3099 = vsel %vm3075, %v2972, %v2974
          %v3100 = vsel %vm3075, %v2976, %v2978
          %v3101 = vsel %vm3075, %v2978, %v2980
          %v3102 = vsel %vm3075, %v2980, %v2982
          %v3103 = vsel %vm3075, %v2982, %v2984
          %v3104 = vsel %vm3075, %v2984, %v2986
          %v3105 = vsel %vm3075, %v2986, %v2988
          %v3106 = vsel %vm3075, %v2988, %v2990
          %v3107 = vsel %vm3075, %v2990, %v2992
          %v3108 = vsel %vm3075, %v2992, %v2994
          %v3109 = vsel %vm3075, %v2994, %v2996
          %v3110 = vsel %vm3075, %v2996, %v2998
          %v3111 = vsel %vm3075, %v2998, %v3000
          %v3112 = vsel %vm3075, %v3000, %v3002
          %v3113 = vsel %vm3075, %v3002, %v3004
          %v3114 = vsel %vm3075, %v3004, %v3006
          %v3115 = vsel %vm3075, %v3006, %v3008
          %v3116 = vsel %vm3075, %v3008, %v3010
          %v3117 = vsel %vm3075, %v3010, %v3012
          %v3118 = vsel %vm3075, %v3012, %v3014
          %v3119 = vsel %vm3075, %v3014, %v3016
          %v3120 = vsel %vm3075, %v3016, %v3018
          %v3121 = vsel %vm3075, %v3018, %v3020
          %v3122 = vsel %vm3075, %v3020, %v3022
          %v3123 = vsel %vm3075, %v3022, %v3024
          %v3124 = vsel %vm3075, %v3026, %v3028
          %v3125 = vsel %vm3075, %v3028, %v3030
          %v3126 = vsel %vm3075, %v3030, %v3032
          %v3127 = vsel %vm3075, %v3032, %v3034
          %v3128 = vsel %vm3075, %v3034, %v3036
          %v3129 = vsel %vm3075, %v3036, %v3038
          %v3130 = vsel %vm3075, %v3038, %v3040
          %v3131 = vsel %vm3075, %v3040, %v3042
          %v3132 = vsel %vm3075, %v3042, %v3044
          %v3133 = vsel %vm3075, %v3044, %v3046
          %v3134 = vsel %vm3075, %v3046, %v3048
          %v3135 = vsel %vm3075, %v3048, %v3050
          %v3136 = vsel %vm3075, %v3050, %v3052
          %v3137 = vsel %vm3075, %v3052, %v3054
          %v3138 = vsel %vm3075, %v3054, %v3056
          %v3139 = vsel %vm3075, %v3056, %v3058
          %v3140 = vsel %vm3075, %v3058, %v3060
          %v3141 = vsel %vm3075, %v3060, %v3062
          %v3142 = vsel %vm3075, %v3062, %v3064
          %v3143 = vsel %vm3075, %v3064, %v3066
          %v3144 = vsel %vm3075, %v3066, %v3068
          %v3145 = vsel %vm3075, %v3068, %v3070
          %v3146 = vsel %vm3075, %v3070, %v3072
          %v3147 = vsel %vm3075, %v3072, %v3074
          %v3223 = vsel %vm3075, %v2845, %v2926
          %v3224 = vsel %vm3075, %v2847, %v2976
          %v3225 = vsel %vm3075, %v2849, %v3026
          %v3226 = vperm.slane %v280, 4
          %v3227 = vperm.slane %v281, 4
          %v3228 = vperm.slane %v282, 4
          %v3229 = vperm.slane %v283, 4
          %v3230 = vperm.slane %v284, 4
          %v3231 = vperm.slane %v285, 4
          %v3232 = vperm.slane %v286, 4
          %v3233 = vperm.slane %v287, 4
          %v3234 = vperm.slane %v288, 4
          %v3235 = vperm.slane %v289, 4
          %v3236 = vperm.slane %v290, 4
          %v3237 = vperm.slane %v291, 4
          %v3238 = vperm.slane %v292, 4
          %v3239 = vperm.slane %v293, 4
          %v3240 = vperm.slane %v294, 4
          %v3241 = vperm.slane %v295, 4
          %v3242 = vperm.slane %v296, 4
          %v3243 = vperm.slane %v297, 4
          %v3244 = vperm.slane %v298, 4
          %v3245 = vperm.slane %v299, 4
          %v3246 = vperm.slane %v300, 4
          %v3247 = vperm.slane %v301, 4
          %v3248 = vperm.slane %v302, 4
          %v3249 = vperm.slane %v303, 4
          %v3250 = vperm.slane %v304, 4
          %v3251 = vmul.f32 %v3223, %v3226
          %v3252 = vmul.f32 %v3076, %v3227
          %v3253 = vmul.f32 %v3077, %v3228
          %v3254 = vmul.f32 %v3078, %v3229
          %v3255 = vmul.f32 %v3079, %v3230
          %v3256 = vmul.f32 %v3080, %v3231
          %v3257 = vmul.f32 %v3081, %v3232
          %v3258 = vmul.f32 %v3082, %v3233
          %v3259 = vmul.f32 %v3083, %v3234
          %v3260 = vmul.f32 %v3084, %v3235
          %v3261 = vmul.f32 %v3085, %v3236
          %v3262 = vmul.f32 %v3086, %v3237
          %v3263 = vmul.f32 %v3087, %v3238
          %v3264 = vmul.f32 %v3088, %v3239
          %v3265 = vmul.f32 %v3089, %v3240
          %v3266 = vmul.f32 %v3090, %v3241
          %v3267 = vmul.f32 %v3091, %v3242
          %v3268 = vmul.f32 %v3092, %v3243
          %v3269 = vmul.f32 %v3093, %v3244
          %v3270 = vmul.f32 %v3094, %v3245
          %v3271 = vmul.f32 %v3095, %v3246
          %v3272 = vmul.f32 %v3096, %v3247
          %v3273 = vmul.f32 %v3097, %v3248
          %v3274 = vmul.f32 %v3098, %v3249
          %v3275 = vmul.f32 %v3099, %v3250
          %v3276 = vmul.f32 %v3224, %v3226
          %v3277 = vmul.f32 %v3100, %v3227
          %v3278 = vmul.f32 %v3101, %v3228
          %v3279 = vmul.f32 %v3102, %v3229
          %v3280 = vmul.f32 %v3103, %v3230
          %v3281 = vmul.f32 %v3104, %v3231
          %v3282 = vmul.f32 %v3105, %v3232
          %v3283 = vmul.f32 %v3106, %v3233
          %v3284 = vmul.f32 %v3107, %v3234
          %v3285 = vmul.f32 %v3108, %v3235
          %v3286 = vmul.f32 %v3109, %v3236
          %v3287 = vmul.f32 %v3110, %v3237
          %v3288 = vmul.f32 %v3111, %v3238
          %v3289 = vmul.f32 %v3112, %v3239
          %v3290 = vmul.f32 %v3113, %v3240
          %v3291 = vmul.f32 %v3114, %v3241
          %v3292 = vmul.f32 %v3115, %v3242
          %v3293 = vmul.f32 %v3116, %v3243
          %v3294 = vmul.f32 %v3117, %v3244
          %v3295 = vmul.f32 %v3118, %v3245
          %v3296 = vmul.f32 %v3119, %v3246
          %v3297 = vmul.f32 %v3120, %v3247
          %v3298 = vmul.f32 %v3121, %v3248
          %v3299 = vmul.f32 %v3122, %v3249
          %v3300 = vmul.f32 %v3123, %v3250
          %v3301 = vmul.f32 %v3225, %v3226
          %v3302 = vmul.f32 %v3124, %v3227
          %v3303 = vmul.f32 %v3125, %v3228
          %v3304 = vmul.f32 %v3126, %v3229
          %v3305 = vmul.f32 %v3127, %v3230
          %v3306 = vmul.f32 %v3128, %v3231
          %v3307 = vmul.f32 %v3129, %v3232
          %v3308 = vmul.f32 %v3130, %v3233
          %v3309 = vmul.f32 %v3131, %v3234
          %v3310 = vmul.f32 %v3132, %v3235
          %v3311 = vmul.f32 %v3133, %v3236
          %v3312 = vmul.f32 %v3134, %v3237
          %v3313 = vmul.f32 %v3135, %v3238
          %v3314 = vmul.f32 %v3136, %v3239
          %v3315 = vmul.f32 %v3137, %v3240
          %v3316 = vmul.f32 %v3138, %v3241
          %v3317 = vmul.f32 %v3139, %v3242
          %v3318 = vmul.f32 %v3140, %v3243
          %v3319 = vmul.f32 %v3141, %v3244
          %v3320 = vmul.f32 %v3142, %v3245
          %v3321 = vmul.f32 %v3143, %v3246
          %v3322 = vmul.f32 %v3144, %v3247
          %v3323 = vmul.f32 %v3145, %v3248
          %v3324 = vmul.f32 %v3146, %v3249
          %v3325 = vmul.f32 %v3147, %v3250
          %v3326 = vpack.c.bf16 %v3252, %v3251
          %v3327 = vpack.c.bf16 %v3254, %v3253
          %v3328 = vpack.c.bf16 %v3256, %v3255
          %v3329 = vpack.c.bf16 %v3258, %v3257
          %v3330 = vpack.c.bf16 %v3260, %v3259
          %v3331 = vpack.c.bf16 %v3262, %v3261
          %v3332 = vpack.c.bf16 %v3264, %v3263
          %v3333 = vpack.c.bf16 %v3266, %v3265
          %v3334 = vpack.c.bf16 %v3268, %v3267
          %v3335 = vpack.c.bf16 %v3270, %v3269
          %v3336 = vpack.c.bf16 %v3272, %v3271
          %v3337 = vpack.c.bf16 %v3274, %v3273
          %v3338 = vpack.c.bf16 %v3275, %v3275
          %v3339 = vpack.c.bf16 %v3277, %v3276
          %v3340 = vpack.c.bf16 %v3279, %v3278
          %v3341 = vpack.c.bf16 %v3281, %v3280
          %v3342 = vpack.c.bf16 %v3283, %v3282
          %v3343 = vpack.c.bf16 %v3285, %v3284
          %v3344 = vpack.c.bf16 %v3287, %v3286
          %v3345 = vpack.c.bf16 %v3289, %v3288
          %v3346 = vpack.c.bf16 %v3291, %v3290
          %v3347 = vpack.c.bf16 %v3293, %v3292
          %v3348 = vpack.c.bf16 %v3295, %v3294
          %v3349 = vpack.c.bf16 %v3297, %v3296
          %v3350 = vpack.c.bf16 %v3299, %v3298
          %v3351 = vpack.c.bf16 %v3300, %v3300
          %v3352 = vpack.c.bf16 %v3302, %v3301
          %v3353 = vpack.c.bf16 %v3304, %v3303
          %v3354 = vpack.c.bf16 %v3306, %v3305
          %v3355 = vpack.c.bf16 %v3308, %v3307
          %v3356 = vpack.c.bf16 %v3310, %v3309
          %v3357 = vpack.c.bf16 %v3312, %v3311
          %v3358 = vpack.c.bf16 %v3314, %v3313
          %v3359 = vpack.c.bf16 %v3316, %v3315
          %v3360 = vpack.c.bf16 %v3318, %v3317
          %v3361 = vpack.c.bf16 %v3320, %v3319
          %v3362 = vpack.c.bf16 %v3322, %v3321
          %v3363 = vpack.c.bf16 %v3324, %v3323
          %v3364 = vpack.c.bf16 %v3325, %v3325
          %3365 = vst [vmem:[#allocation2 + $0x640] sm:$0xff] %v3326
          %3366 = vst [vmem:[#allocation2 + $0x648] sm:$0xff] %v3327
          %3367 = vst [vmem:[#allocation2 + $0x650] sm:$0xff] %v3328
          %3368 = vst [vmem:[#allocation2 + $0x658] sm:$0xff] %v3329
          %3369 = vst [vmem:[#allocation2 + $0x660] sm:$0xff] %v3330
          %3370 = vst [vmem:[#allocation2 + $0x668] sm:$0xff] %v3331
          %3371 = vst [vmem:[#allocation2 + $0x670] sm:$0xff] %v3332
          %3372 = vst [vmem:[#allocation2 + $0x678] sm:$0xff] %v3333
          %3373 = vst [vmem:[#allocation2 + $0x680] sm:$0xff] %v3334
          %3374 = vst [vmem:[#allocation2 + $0x688] sm:$0xff] %v3335
          %3375 = vst [vmem:[#allocation2 + $0x690] sm:$0xff] %v3336
          %3376 = vst [vmem:[#allocation2 + $0x698] sm:$0xff] %v3337
          %3377 = vst.msk [vmem:[#allocation2 + $0x6a0] sm:$0xf] %vm188, %v3338
          %3378 = vst [vmem:[#allocation2 + $0x6a4] sm:$0xff] %v3339
          %3379 = vst [vmem:[#allocation2 + $0x6ac] sm:$0xff] %v3340
          %3380 = vst [vmem:[#allocation2 + $0x6b4] sm:$0xff] %v3341
          %3381 = vst [vmem:[#allocation2 + $0x6bc] sm:$0xff] %v3342
          %3382 = vst [vmem:[#allocation2 + $0x6c4] sm:$0xff] %v3343
          %3383 = vst [vmem:[#allocation2 + $0x6cc] sm:$0xff] %v3344
          %3384 = vst [vmem:[#allocation2 + $0x6d4] sm:$0xff] %v3345
          %3385 = vst [vmem:[#allocation2 + $0x6dc] sm:$0xff] %v3346
          %3386 = vst [vmem:[#allocation2 + $0x6e4] sm:$0xff] %v3347
          %3387 = vst [vmem:[#allocation2 + $0x6ec] sm:$0xff] %v3348
          %3388 = vst [vmem:[#allocation2 + $0x6f4] sm:$0xff] %v3349
          %3389 = vst [vmem:[#allocation2 + $0x6fc] sm:$0xff] %v3350
          %3390 = vst.msk [vmem:[#allocation2 + $0x704] sm:$0xf] %vm188, %v3351
          %3391 = vst [vmem:[#allocation2 + $0x708] sm:$0xff] %v3352
          %3392 = vst [vmem:[#allocation2 + $0x710] sm:$0xff] %v3353
          %3393 = vst [vmem:[#allocation2 + $0x718] sm:$0xff] %v3354
          %3394 = vst [vmem:[#allocation2 + $0x720] sm:$0xff] %v3355
          %3395 = vst [vmem:[#allocation2 + $0x728] sm:$0xff] %v3356
          %3396 = vst [vmem:[#allocation2 + $0x730] sm:$0xff] %v3357
          %3397 = vst [vmem:[#allocation2 + $0x738] sm:$0xff] %v3358
          %3398 = vst [vmem:[#allocation2 + $0x740] sm:$0xff] %v3359
          %3399 = vst [vmem:[#allocation2 + $0x748] sm:$0xff] %v3360
          %3400 = vst [vmem:[#allocation2 + $0x750] sm:$0xff] %v3361
          %3401 = vst [vmem:[#allocation2 + $0x758] sm:$0xff] %v3362
          %3402 = vst [vmem:[#allocation2 + $0x760] sm:$0xff] %v3363
          %3403 = vst.msk [vmem:[#allocation2 + $0x768] sm:$0xf] %vm188, %v3364
          %v3404 = vld [vmem:[%s313] sm:$0xff]
          %v3405 = vld [vmem:[%s313 + $0x8] sm:$0xff]
          %v3406 = vld [vmem:[%s313 + $0x10] sm:$0xff]
          %v3407 = vld [vmem:[%s313 + $0x18] sm:$0xff]
          %v3408 = vld [vmem:[%s313 + $0x20] sm:$0xff]
          %v3409 = vld [vmem:[%s313 + $0x28] sm:$0xff]
          %v3410 = vld [vmem:[%s313 + $0x30] sm:$0xff]
          %v3411 = vld [vmem:[%s313 + $0x38] sm:$0xff]
          %v3412 = vld [vmem:[%s313 + $0x40] sm:$0xff]
          %v3413 = vld [vmem:[%s313 + $0x48] sm:$0xff]
          %v3414 = vld [vmem:[%s313 + $0x50] sm:$0xff]
          %v3415 = vld [vmem:[%s313 + $0x58] sm:$0xff]
          %v3416 = vld [vmem:[%s313 + $0x60] sm:$0xff]
          %v3417 = vld [vmem:[%s313 + $0x68] sm:$0xff]
          %v3418 = vld [vmem:[%s313 + $0x70] sm:$0xff]
          %v3419 = vld [vmem:[%s313 + $0x78] sm:$0xff]
          %v3420 = vld [vmem:[%s313 + $0x80] sm:$0xff]
          %v3421 = vld [vmem:[%s313 + $0x88] sm:$0xff]
          %v3422 = vld [vmem:[%s313 + $0x90] sm:$0xff]
          %v3423 = vld [vmem:[%s313 + $0x98] sm:$0xff]
          %v3424 = vld [vmem:[%s313 + $0xa0] sm:$0xff]
          %v3425 = vld [vmem:[%s313 + $0xa8] sm:$0xff]
          %v3426 = vld [vmem:[%s313 + $0xb0] sm:$0xff]
          %v3427 = vld [vmem:[%s313 + $0xb8] sm:$0xff]
          %v3428 = vld [vmem:[%s313 + $0xc0] sm:$0xff]
          %v3429 = vld [vmem:[%s313 + $0xc8] sm:$0xff]
          %v3430 = vld [vmem:[%s313 + $0xd0] sm:$0xff]
          %v3431 = vld [vmem:[%s313 + $0xd8] sm:$0xff]
          %v3432 = vld [vmem:[%s313 + $0xe0] sm:$0xff]
          %v3433 = vld [vmem:[%s313 + $0xe8] sm:$0xff]
          %v3434 = vld [vmem:[%s313 + $0xf0] sm:$0xff]
          %v3435 = vld [vmem:[%s313 + $0xf8] sm:$0xff]
          %v3436 = vld [vmem:[%s313 + $0x100] sm:$0xff]
          %v3437 = vld [vmem:[%s313 + $0x108] sm:$0xff]
          %v3438 = vld [vmem:[%s313 + $0x110] sm:$0xff]
          %v3439 = vld [vmem:[%s313 + $0x118] sm:$0xff]
          %v3440 = vld [vmem:[%s313 + $0x120] sm:$0xff]
          %v3441 = vld [vmem:[%s313 + $0x128] sm:$0xff]
          %v3442 = vld [vmem:[%s313 + $0x130] sm:$0xff]
          %v3443 = vld [vmem:[%s313 + $0x138] sm:$0xff]
          %v3444 = vld [vmem:[%s313 + $0x140] sm:$0xff]
          %v3445 = vld [vmem:[%s313 + $0x148] sm:$0xff]
          %v3446 = vld [vmem:[%s313 + $0x150] sm:$0xff]
          %v3447 = vld [vmem:[%s313 + $0x158] sm:$0xff]
          %v3448 = vld [vmem:[%s313 + $0x160] sm:$0xff]
          %v3449 = vld [vmem:[%s313 + $0x168] sm:$0xff]
          %v3450 = vld [vmem:[%s313 + $0x170] sm:$0xff]
          %v3451 = vld [vmem:[%s313 + $0x178] sm:$0xff]
          %v3452 = vld [vmem:[%s313 + $0x180] sm:$0xff]
          %v3453 = vld [vmem:[%s313 + $0x188] sm:$0xff]
          %v3454 = vld [vmem:[%s313 + $0x190] sm:$0xff]
          %v3455 = vld [vmem:[%s313 + $0x198] sm:$0xff]
          %v3456 = vld [vmem:[%s313 + $0x1a0] sm:$0xff]
          %v3457 = vld [vmem:[%s313 + $0x1a8] sm:$0xff]
          %v3458 = vld [vmem:[%s313 + $0x1b0] sm:$0xff]
          %v3459 = vld [vmem:[%s313 + $0x1b8] sm:$0xff]
          %v3460 = vld [vmem:[%s313 + $0x1c0] sm:$0xff]
          %v3461 = vld [vmem:[%s313 + $0x1c8] sm:$0xff]
          %v3462 = vld [vmem:[%s313 + $0x1d0] sm:$0xff]
          %v3463 = vld [vmem:[%s313 + $0x1d8] sm:$0xff]
          %v3464 = vld [vmem:[%s313 + $0x1e0] sm:$0xff]
          %v3465 = vld [vmem:[%s313 + $0x1e8] sm:$0xff]
          %v3466 = vld [vmem:[%s313 + $0x1f0] sm:$0xff]
          %v3467 = vld [vmem:[%s313 + $0x1f8] sm:$0xff]
          %v3468 = vld [vmem:[%s313 + $0x200] sm:$0xff]
          %v3469 = vld [vmem:[%s313 + $0x208] sm:$0xff]
          %v3470 = vld [vmem:[%s313 + $0x210] sm:$0xff]
          %v3471 = vld [vmem:[%s313 + $0x218] sm:$0xff]
          %v3472 = vld [vmem:[%s313 + $0x220] sm:$0xff]
          %v3473 = vld [vmem:[%s313 + $0x228] sm:$0xff]
          %v3474 = vld [vmem:[%s313 + $0x230] sm:$0xff]
          %v3475 = vld [vmem:[%s313 + $0x238] sm:$0xff]
          %v3476 = vld [vmem:[%s313 + $0x240] sm:$0xff]
          %v3477 = vld [vmem:[%s313 + $0x248] sm:$0xff]
          %v3478 = vld [vmem:[%s313 + $0x250] sm:$0xff]
          %3482 = vrot.lane.b32.xlu0 %v3428, 118
          %v3483 = vpop.permute.xlu0 %3482
          %3484 = vrot.lane.b32.xlu0 %v3453, 118
          %v3485 = vpop.permute.xlu0 %3484
          %3486 = vrot.lane.b32.xlu0 %v3478, 118
          %v3487 = vpop.permute.xlu0 %3486
          %3563 = vrot.lane.b32.xlu0 %v3404, 54
          %v3564 = vpop.permute.xlu0 %3563
          %3565 = vrot.lane.b32.xlu0 %v3405, 54
          %v3566 = vpop.permute.xlu0 %3565
          %3567 = vrot.lane.b32.xlu0 %v3406, 54
          %v3568 = vpop.permute.xlu0 %3567
          %3569 = vrot.lane.b32.xlu0 %v3407, 54
          %v3570 = vpop.permute.xlu0 %3569
          %3571 = vrot.lane.b32.xlu0 %v3408, 54
          %v3572 = vpop.permute.xlu0 %3571
          %3573 = vrot.lane.b32.xlu0 %v3409, 54
          %v3574 = vpop.permute.xlu0 %3573
          %3575 = vrot.lane.b32.xlu0 %v3410, 54
          %v3576 = vpop.permute.xlu0 %3575
          %3577 = vrot.lane.b32.xlu0 %v3411, 54
          %v3578 = vpop.permute.xlu0 %3577
          %3579 = vrot.lane.b32.xlu0 %v3412, 54
          %v3580 = vpop.permute.xlu0 %3579
          %3581 = vrot.lane.b32.xlu0 %v3413, 54
          %v3582 = vpop.permute.xlu0 %3581
          %3583 = vrot.lane.b32.xlu0 %v3414, 54
          %v3584 = vpop.permute.xlu0 %3583
          %3585 = vrot.lane.b32.xlu0 %v3415, 54
          %v3586 = vpop.permute.xlu0 %3585
          %3587 = vrot.lane.b32.xlu0 %v3416, 54
          %v3588 = vpop.permute.xlu0 %3587
          %3589 = vrot.lane.b32.xlu0 %v3417, 54
          %v3590 = vpop.permute.xlu0 %3589
          %3591 = vrot.lane.b32.xlu0 %v3418, 54
          %v3592 = vpop.permute.xlu0 %3591
          %3593 = vrot.lane.b32.xlu0 %v3419, 54
          %v3594 = vpop.permute.xlu0 %3593
          %3595 = vrot.lane.b32.xlu0 %v3420, 54
          %v3596 = vpop.permute.xlu0 %3595
          %3597 = vrot.lane.b32.xlu0 %v3421, 54
          %v3598 = vpop.permute.xlu0 %3597
          %3599 = vrot.lane.b32.xlu0 %v3422, 54
          %v3600 = vpop.permute.xlu0 %3599
          %3601 = vrot.lane.b32.xlu0 %v3423, 54
          %v3602 = vpop.permute.xlu0 %3601
          %3603 = vrot.lane.b32.xlu0 %v3424, 54
          %v3604 = vpop.permute.xlu0 %3603
          %3605 = vrot.lane.b32.xlu0 %v3425, 54
          %v3606 = vpop.permute.xlu0 %3605
          %3607 = vrot.lane.b32.xlu0 %v3426, 54
          %v3608 = vpop.permute.xlu0 %3607
          %3609 = vrot.lane.b32.xlu0 %v3427, 54
          %v3610 = vpop.permute.xlu0 %3609
          %3611 = vrot.lane.b32.xlu0 %v3428, 54
          %v3612 = vpop.permute.xlu0 %3611
          %3613 = vrot.lane.b32.xlu0 %v3429, 54
          %v3614 = vpop.permute.xlu0 %3613
          %3615 = vrot.lane.b32.xlu0 %v3430, 54
          %v3616 = vpop.permute.xlu0 %3615
          %3617 = vrot.lane.b32.xlu0 %v3431, 54
          %v3618 = vpop.permute.xlu0 %3617
          %3619 = vrot.lane.b32.xlu0 %v3432, 54
          %v3620 = vpop.permute.xlu0 %3619
          %3621 = vrot.lane.b32.xlu0 %v3433, 54
          %v3622 = vpop.permute.xlu0 %3621
          %3623 = vrot.lane.b32.xlu0 %v3434, 54
          %v3624 = vpop.permute.xlu0 %3623
          %3625 = vrot.lane.b32.xlu0 %v3435, 54
          %v3626 = vpop.permute.xlu0 %3625
          %3627 = vrot.lane.b32.xlu0 %v3436, 54
          %v3628 = vpop.permute.xlu0 %3627
          %3629 = vrot.lane.b32.xlu0 %v3437, 54
          %v3630 = vpop.permute.xlu0 %3629
          %3631 = vrot.lane.b32.xlu0 %v3438, 54
          %v3632 = vpop.permute.xlu0 %3631
          %3633 = vrot.lane.b32.xlu0 %v3439, 54
          %v3634 = vpop.permute.xlu0 %3633
          %3635 = vrot.lane.b32.xlu0 %v3440, 54
          %v3636 = vpop.permute.xlu0 %3635
          %3637 = vrot.lane.b32.xlu0 %v3441, 54
          %v3638 = vpop.permute.xlu0 %3637
          %3639 = vrot.lane.b32.xlu0 %v3442, 54
          %v3640 = vpop.permute.xlu0 %3639
          %3641 = vrot.lane.b32.xlu0 %v3443, 54
          %v3642 = vpop.permute.xlu0 %3641
          %3643 = vrot.lane.b32.xlu0 %v3444, 54
          %v3644 = vpop.permute.xlu0 %3643
          %3645 = vrot.lane.b32.xlu0 %v3445, 54
          %v3646 = vpop.permute.xlu0 %3645
          %3647 = vrot.lane.b32.xlu0 %v3446, 54
          %v3648 = vpop.permute.xlu0 %3647
          %3649 = vrot.lane.b32.xlu0 %v3447, 54
          %v3650 = vpop.permute.xlu0 %3649
          %3651 = vrot.lane.b32.xlu0 %v3448, 54
          %v3652 = vpop.permute.xlu0 %3651
          %3653 = vrot.lane.b32.xlu0 %v3449, 54
          %v3654 = vpop.permute.xlu0 %3653
          %3655 = vrot.lane.b32.xlu0 %v3450, 54
          %v3656 = vpop.permute.xlu0 %3655
          %3657 = vrot.lane.b32.xlu0 %v3451, 54
          %v3658 = vpop.permute.xlu0 %3657
          %3659 = vrot.lane.b32.xlu0 %v3452, 54
          %v3660 = vpop.permute.xlu0 %3659
          %3661 = vrot.lane.b32.xlu0 %v3453, 54
          %v3662 = vpop.permute.xlu0 %3661
          %3663 = vrot.lane.b32.xlu0 %v3454, 54
          %v3664 = vpop.permute.xlu0 %3663
          %3665 = vrot.lane.b32.xlu0 %v3455, 54
          %v3666 = vpop.permute.xlu0 %3665
          %3667 = vrot.lane.b32.xlu0 %v3456, 54
          %v3668 = vpop.permute.xlu0 %3667
          %3669 = vrot.lane.b32.xlu0 %v3457, 54
          %v3670 = vpop.permute.xlu0 %3669
          %3671 = vrot.lane.b32.xlu0 %v3458, 54
          %v3672 = vpop.permute.xlu0 %3671
          %3673 = vrot.lane.b32.xlu0 %v3459, 54
          %v3674 = vpop.permute.xlu0 %3673
          %3675 = vrot.lane.b32.xlu0 %v3460, 54
          %v3676 = vpop.permute.xlu0 %3675
          %3677 = vrot.lane.b32.xlu0 %v3461, 54
          %v3678 = vpop.permute.xlu0 %3677
          %3679 = vrot.lane.b32.xlu0 %v3462, 54
          %v3680 = vpop.permute.xlu0 %3679
          %3681 = vrot.lane.b32.xlu0 %v3463, 54
          %v3682 = vpop.permute.xlu0 %3681
          %3683 = vrot.lane.b32.xlu0 %v3464, 54
          %v3684 = vpop.permute.xlu0 %3683
          %3685 = vrot.lane.b32.xlu0 %v3465, 54
          %v3686 = vpop.permute.xlu0 %3685
          %3687 = vrot.lane.b32.xlu0 %v3466, 54
          %v3688 = vpop.permute.xlu0 %3687
          %3689 = vrot.lane.b32.xlu0 %v3467, 54
          %v3690 = vpop.permute.xlu0 %3689
          %3691 = vrot.lane.b32.xlu0 %v3468, 54
          %v3692 = vpop.permute.xlu0 %3691
          %3693 = vrot.lane.b32.xlu0 %v3469, 54
          %v3694 = vpop.permute.xlu0 %3693
          %3695 = vrot.lane.b32.xlu0 %v3470, 54
          %v3696 = vpop.permute.xlu0 %3695
          %3697 = vrot.lane.b32.xlu0 %v3471, 54
          %v3698 = vpop.permute.xlu0 %3697
          %3699 = vrot.lane.b32.xlu0 %v3472, 54
          %v3700 = vpop.permute.xlu0 %3699
          %3701 = vrot.lane.b32.xlu0 %v3473, 54
          %v3702 = vpop.permute.xlu0 %3701
          %3703 = vrot.lane.b32.xlu0 %v3474, 54
          %v3704 = vpop.permute.xlu0 %3703
          %3705 = vrot.lane.b32.xlu0 %v3475, 54
          %v3706 = vpop.permute.xlu0 %3705
          %3707 = vrot.lane.b32.xlu0 %v3476, 54
          %v3708 = vpop.permute.xlu0 %3707
          %3709 = vrot.lane.b32.xlu0 %v3477, 54
          %v3710 = vpop.permute.xlu0 %3709
          %3711 = vrot.lane.b32.xlu0 %v3478, 54
          %v3712 = vpop.permute.xlu0 %3711
          %vm3713 = vcmask 441344
          %v3714 = vsel %vm3713, %v3564, %v3566
          %v3715 = vsel %vm3713, %v3566, %v3568
          %v3716 = vsel %vm3713, %v3568, %v3570
          %v3717 = vsel %vm3713, %v3570, %v3572
          %v3718 = vsel %vm3713, %v3572, %v3574
          %v3719 = vsel %vm3713, %v3574, %v3576
          %v3720 = vsel %vm3713, %v3576, %v3578
          %v3721 = vsel %vm3713, %v3578, %v3580
          %v3722 = vsel %vm3713, %v3580, %v3582
          %v3723 = vsel %vm3713, %v3582, %v3584
          %v3724 = vsel %vm3713, %v3584, %v3586
          %v3725 = vsel %vm3713, %v3586, %v3588
          %v3726 = vsel %vm3713, %v3588, %v3590
          %v3727 = vsel %vm3713, %v3590, %v3592
          %v3728 = vsel %vm3713, %v3592, %v3594
          %v3729 = vsel %vm3713, %v3594, %v3596
          %v3730 = vsel %vm3713, %v3596, %v3598
          %v3731 = vsel %vm3713, %v3598, %v3600
          %v3732 = vsel %vm3713, %v3600, %v3602
          %v3733 = vsel %vm3713, %v3602, %v3604
          %v3734 = vsel %vm3713, %v3604, %v3606
          %v3735 = vsel %vm3713, %v3606, %v3608
          %v3736 = vsel %vm3713, %v3608, %v3610
          %v3737 = vsel %vm3713, %v3610, %v3612
          %v3738 = vsel %vm3713, %v3614, %v3616
          %v3739 = vsel %vm3713, %v3616, %v3618
          %v3740 = vsel %vm3713, %v3618, %v3620
          %v3741 = vsel %vm3713, %v3620, %v3622
          %v3742 = vsel %vm3713, %v3622, %v3624
          %v3743 = vsel %vm3713, %v3624, %v3626
          %v3744 = vsel %vm3713, %v3626, %v3628
          %v3745 = vsel %vm3713, %v3628, %v3630
          %v3746 = vsel %vm3713, %v3630, %v3632
          %v3747 = vsel %vm3713, %v3632, %v3634
          %v3748 = vsel %vm3713, %v3634, %v3636
          %v3749 = vsel %vm3713, %v3636, %v3638
          %v3750 = vsel %vm3713, %v3638, %v3640
          %v3751 = vsel %vm3713, %v3640, %v3642
          %v3752 = vsel %vm3713, %v3642, %v3644
          %v3753 = vsel %vm3713, %v3644, %v3646
          %v3754 = vsel %vm3713, %v3646, %v3648
          %v3755 = vsel %vm3713, %v3648, %v3650
          %v3756 = vsel %vm3713, %v3650, %v3652
          %v3757 = vsel %vm3713, %v3652, %v3654
          %v3758 = vsel %vm3713, %v3654, %v3656
          %v3759 = vsel %vm3713, %v3656, %v3658
          %v3760 = vsel %vm3713, %v3658, %v3660
          %v3761 = vsel %vm3713, %v3660, %v3662
          %v3762 = vsel %vm3713, %v3664, %v3666
          %v3763 = vsel %vm3713, %v3666, %v3668
          %v3764 = vsel %vm3713, %v3668, %v3670
          %v3765 = vsel %vm3713, %v3670, %v3672
          %v3766 = vsel %vm3713, %v3672, %v3674
          %v3767 = vsel %vm3713, %v3674, %v3676
          %v3768 = vsel %vm3713, %v3676, %v3678
          %v3769 = vsel %vm3713, %v3678, %v3680
          %v3770 = vsel %vm3713, %v3680, %v3682
          %v3771 = vsel %vm3713, %v3682, %v3684
          %v3772 = vsel %vm3713, %v3684, %v3686
          %v3773 = vsel %vm3713, %v3686, %v3688
          %v3774 = vsel %vm3713, %v3688, %v3690
          %v3775 = vsel %vm3713, %v3690, %v3692
          %v3776 = vsel %vm3713, %v3692, %v3694
          %v3777 = vsel %vm3713, %v3694, %v3696
          %v3778 = vsel %vm3713, %v3696, %v3698
          %v3779 = vsel %vm3713, %v3698, %v3700
          %v3780 = vsel %vm3713, %v3700, %v3702
          %v3781 = vsel %vm3713, %v3702, %v3704
          %v3782 = vsel %vm3713, %v3704, %v3706
          %v3783 = vsel %vm3713, %v3706, %v3708
          %v3784 = vsel %vm3713, %v3708, %v3710
          %v3785 = vsel %vm3713, %v3710, %v3712
          %v3861 = vsel %vm3713, %v3483, %v3564
          %v3862 = vsel %vm3713, %v3485, %v3614
          %v3863 = vsel %vm3713, %v3487, %v3664
          %v3864 = vperm.slane %v280, 5
          %v3865 = vperm.slane %v281, 5
          %v3866 = vperm.slane %v282, 5
          %v3867 = vperm.slane %v283, 5
          %v3868 = vperm.slane %v284, 5
          %v3869 = vperm.slane %v285, 5
          %v3870 = vperm.slane %v286, 5
          %v3871 = vperm.slane %v287, 5
          %v3872 = vperm.slane %v288, 5
          %v3873 = vperm.slane %v289, 5
          %v3874 = vperm.slane %v290, 5
          %v3875 = vperm.slane %v291, 5
          %v3876 = vperm.slane %v292, 5
          %v3877 = vperm.slane %v293, 5
          %v3878 = vperm.slane %v294, 5
          %v3879 = vperm.slane %v295, 5
          %v3880 = vperm.slane %v296, 5
          %v3881 = vperm.slane %v297, 5
          %v3882 = vperm.slane %v298, 5
          %v3883 = vperm.slane %v299, 5
          %v3884 = vperm.slane %v300, 5
          %v3885 = vperm.slane %v301, 5
          %v3886 = vperm.slane %v302, 5
          %v3887 = vperm.slane %v303, 5
          %v3888 = vperm.slane %v304, 5
          %v3889 = vmul.f32 %v3861, %v3864
          %v3890 = vmul.f32 %v3714, %v3865
          %v3891 = vmul.f32 %v3715, %v3866
          %v3892 = vmul.f32 %v3716, %v3867
          %v3893 = vmul.f32 %v3717, %v3868
          %v3894 = vmul.f32 %v3718, %v3869
          %v3895 = vmul.f32 %v3719, %v3870
          %v3896 = vmul.f32 %v3720, %v3871
          %v3897 = vmul.f32 %v3721, %v3872
          %v3898 = vmul.f32 %v3722, %v3873
          %v3899 = vmul.f32 %v3723, %v3874
          %v3900 = vmul.f32 %v3724, %v3875
          %v3901 = vmul.f32 %v3725, %v3876
          %v3902 = vmul.f32 %v3726, %v3877
          %v3903 = vmul.f32 %v3727, %v3878
          %v3904 = vmul.f32 %v3728, %v3879
          %v3905 = vmul.f32 %v3729, %v3880
          %v3906 = vmul.f32 %v3730, %v3881
          %v3907 = vmul.f32 %v3731, %v3882
          %v3908 = vmul.f32 %v3732, %v3883
          %v3909 = vmul.f32 %v3733, %v3884
          %v3910 = vmul.f32 %v3734, %v3885
          %v3911 = vmul.f32 %v3735, %v3886
          %v3912 = vmul.f32 %v3736, %v3887
          %v3913 = vmul.f32 %v3737, %v3888
          %v3914 = vmul.f32 %v3862, %v3864
          %v3915 = vmul.f32 %v3738, %v3865
          %v3916 = vmul.f32 %v3739, %v3866
          %v3917 = vmul.f32 %v3740, %v3867
          %v3918 = vmul.f32 %v3741, %v3868
          %v3919 = vmul.f32 %v3742, %v3869
          %v3920 = vmul.f32 %v3743, %v3870
          %v3921 = vmul.f32 %v3744, %v3871
          %v3922 = vmul.f32 %v3745, %v3872
          %v3923 = vmul.f32 %v3746, %v3873
          %v3924 = vmul.f32 %v3747, %v3874
          %v3925 = vmul.f32 %v3748, %v3875
          %v3926 = vmul.f32 %v3749, %v3876
          %v3927 = vmul.f32 %v3750, %v3877
          %v3928 = vmul.f32 %v3751, %v3878
          %v3929 = vmul.f32 %v3752, %v3879
          %v3930 = vmul.f32 %v3753, %v3880
          %v3931 = vmul.f32 %v3754, %v3881
          %v3932 = vmul.f32 %v3755, %v3882
          %v3933 = vmul.f32 %v3756, %v3883
          %v3934 = vmul.f32 %v3757, %v3884
          %v3935 = vmul.f32 %v3758, %v3885
          %v3936 = vmul.f32 %v3759, %v3886
          %v3937 = vmul.f32 %v3760, %v3887
          %v3938 = vmul.f32 %v3761, %v3888
          %v3939 = vmul.f32 %v3863, %v3864
          %v3940 = vmul.f32 %v3762, %v3865
          %v3941 = vmul.f32 %v3763, %v3866
          %v3942 = vmul.f32 %v3764, %v3867
          %v3943 = vmul.f32 %v3765, %v3868
          %v3944 = vmul.f32 %v3766, %v3869
          %v3945 = vmul.f32 %v3767, %v3870
          %v3946 = vmul.f32 %v3768, %v3871
          %v3947 = vmul.f32 %v3769, %v3872
          %v3948 = vmul.f32 %v3770, %v3873
          %v3949 = vmul.f32 %v3771, %v3874
          %v3950 = vmul.f32 %v3772, %v3875
          %v3951 = vmul.f32 %v3773, %v3876
          %v3952 = vmul.f32 %v3774, %v3877
          %v3953 = vmul.f32 %v3775, %v3878
          %v3954 = vmul.f32 %v3776, %v3879
          %v3955 = vmul.f32 %v3777, %v3880
          %v3956 = vmul.f32 %v3778, %v3881
          %v3957 = vmul.f32 %v3779, %v3882
          %v3958 = vmul.f32 %v3780, %v3883
          %v3959 = vmul.f32 %v3781, %v3884
          %v3960 = vmul.f32 %v3782, %v3885
          %v3961 = vmul.f32 %v3783, %v3886
          %v3962 = vmul.f32 %v3784, %v3887
          %v3963 = vmul.f32 %v3785, %v3888
          %v3964 = vpack.c.bf16 %v3890, %v3889
          %v3965 = vpack.c.bf16 %v3892, %v3891
          %v3966 = vpack.c.bf16 %v3894, %v3893
          %v3967 = vpack.c.bf16 %v3896, %v3895
          %v3968 = vpack.c.bf16 %v3898, %v3897
          %v3969 = vpack.c.bf16 %v3900, %v3899
          %v3970 = vpack.c.bf16 %v3902, %v3901
          %v3971 = vpack.c.bf16 %v3904, %v3903
          %v3972 = vpack.c.bf16 %v3906, %v3905
          %v3973 = vpack.c.bf16 %v3908, %v3907
          %v3974 = vpack.c.bf16 %v3910, %v3909
          %v3975 = vpack.c.bf16 %v3912, %v3911
          %v3976 = vpack.c.bf16 %v3913, %v3913
          %v3977 = vpack.c.bf16 %v3915, %v3914
          %v3978 = vpack.c.bf16 %v3917, %v3916
          %v3979 = vpack.c.bf16 %v3919, %v3918
          %v3980 = vpack.c.bf16 %v3921, %v3920
          %v3981 = vpack.c.bf16 %v3923, %v3922
          %v3982 = vpack.c.bf16 %v3925, %v3924
          %v3983 = vpack.c.bf16 %v3927, %v3926
          %v3984 = vpack.c.bf16 %v3929, %v3928
          %v3985 = vpack.c.bf16 %v3931, %v3930
          %v3986 = vpack.c.bf16 %v3933, %v3932
          %v3987 = vpack.c.bf16 %v3935, %v3934
          %v3988 = vpack.c.bf16 %v3937, %v3936
          %v3989 = vpack.c.bf16 %v3938, %v3938
          %v3990 = vpack.c.bf16 %v3940, %v3939
          %v3991 = vpack.c.bf16 %v3942, %v3941
          %v3992 = vpack.c.bf16 %v3944, %v3943
          %v3993 = vpack.c.bf16 %v3946, %v3945
          %v3994 = vpack.c.bf16 %v3948, %v3947
          %v3995 = vpack.c.bf16 %v3950, %v3949
          %v3996 = vpack.c.bf16 %v3952, %v3951
          %v3997 = vpack.c.bf16 %v3954, %v3953
          %v3998 = vpack.c.bf16 %v3956, %v3955
          %v3999 = vpack.c.bf16 %v3958, %v3957
          %v4000 = vpack.c.bf16 %v3960, %v3959
          %v4001 = vpack.c.bf16 %v3962, %v3961
          %v4002 = vpack.c.bf16 %v3963, %v3963
          %4003 = vst [vmem:[#allocation2 + $0x7d0] sm:$0xff] %v3964
          %4004 = vst [vmem:[#allocation2 + $0x7d8] sm:$0xff] %v3965
          %4005 = vst [vmem:[#allocation2 + $0x7e0] sm:$0xff] %v3966
          %4006 = vst [vmem:[#allocation2 + $0x7e8] sm:$0xff] %v3967
          %4007 = vst [vmem:[#allocation2 + $0x7f0] sm:$0xff] %v3968
          %4008 = vst [vmem:[#allocation2 + $0x7f8] sm:$0xff] %v3969
          %4009 = vst [vmem:[#allocation2 + $0x800] sm:$0xff] %v3970
          %4010 = vst [vmem:[#allocation2 + $0x808] sm:$0xff] %v3971
          %4011 = vst [vmem:[#allocation2 + $0x810] sm:$0xff] %v3972
          %4012 = vst [vmem:[#allocation2 + $0x818] sm:$0xff] %v3973
          %4013 = vst [vmem:[#allocation2 + $0x820] sm:$0xff] %v3974
          %4014 = vst [vmem:[#allocation2 + $0x828] sm:$0xff] %v3975
          %4015 = vst.msk [vmem:[#allocation2 + $0x830] sm:$0xf] %vm188, %v3976
          %4016 = vst [vmem:[#allocation2 + $0x834] sm:$0xff] %v3977
          %4017 = vst [vmem:[#allocation2 + $0x83c] sm:$0xff] %v3978
          %4018 = vst [vmem:[#allocation2 + $0x844] sm:$0xff] %v3979
          %4019 = vst [vmem:[#allocation2 + $0x84c] sm:$0xff] %v3980
          %4020 = vst [vmem:[#allocation2 + $0x854] sm:$0xff] %v3981
          %4021 = vst [vmem:[#allocation2 + $0x85c] sm:$0xff] %v3982
          %4022 = vst [vmem:[#allocation2 + $0x864] sm:$0xff] %v3983
          %4023 = vst [vmem:[#allocation2 + $0x86c] sm:$0xff] %v3984
          %4024 = vst [vmem:[#allocation2 + $0x874] sm:$0xff] %v3985
          %4025 = vst [vmem:[#allocation2 + $0x87c] sm:$0xff] %v3986
          %4026 = vst [vmem:[#allocation2 + $0x884] sm:$0xff] %v3987
          %4027 = vst [vmem:[#allocation2 + $0x88c] sm:$0xff] %v3988
          %4028 = vst.msk [vmem:[#allocation2 + $0x894] sm:$0xf] %vm188, %v3989
          %4029 = vst [vmem:[#allocation2 + $0x898] sm:$0xff] %v3990
          %4030 = vst [vmem:[#allocation2 + $0x8a0] sm:$0xff] %v3991
          %4031 = vst [vmem:[#allocation2 + $0x8a8] sm:$0xff] %v3992
          %4032 = vst [vmem:[#allocation2 + $0x8b0] sm:$0xff] %v3993
          %4033 = vst [vmem:[#allocation2 + $0x8b8] sm:$0xff] %v3994
          %4034 = vst [vmem:[#allocation2 + $0x8c0] sm:$0xff] %v3995
          %4035 = vst [vmem:[#allocation2 + $0x8c8] sm:$0xff] %v3996
          %4036 = vst [vmem:[#allocation2 + $0x8d0] sm:$0xff] %v3997
          %4037 = vst [vmem:[#allocation2 + $0x8d8] sm:$0xff] %v3998
          %4038 = vst [vmem:[#allocation2 + $0x8e0] sm:$0xff] %v3999
          %4039 = vst [vmem:[#allocation2 + $0x8e8] sm:$0xff] %v4000
          %4040 = vst [vmem:[#allocation2 + $0x8f0] sm:$0xff] %v4001
          %4041 = vst.msk [vmem:[#allocation2 + $0x8f8] sm:$0xf] %vm188, %v4002
          %v4042 = vld [vmem:[%s313] sm:$0xff]
          %v4043 = vld [vmem:[%s313 + $0x8] sm:$0xff]
          %v4044 = vld [vmem:[%s313 + $0x10] sm:$0xff]
          %v4045 = vld [vmem:[%s313 + $0x18] sm:$0xff]
          %v4046 = vld [vmem:[%s313 + $0x20] sm:$0xff]
          %v4047 = vld [vmem:[%s313 + $0x28] sm:$0xff]
          %v4048 = vld [vmem:[%s313 + $0x30] sm:$0xff]
          %v4049 = vld [vmem:[%s313 + $0x38] sm:$0xff]
          %v4050 = vld [vmem:[%s313 + $0x40] sm:$0xff]
          %v4051 = vld [vmem:[%s313 + $0x48] sm:$0xff]
          %v4052 = vld [vmem:[%s313 + $0x50] sm:$0xff]
          %v4053 = vld [vmem:[%s313 + $0x58] sm:$0xff]
          %v4054 = vld [vmem:[%s313 + $0x60] sm:$0xff]
          %v4055 = vld [vmem:[%s313 + $0x68] sm:$0xff]
          %v4056 = vld [vmem:[%s313 + $0x70] sm:$0xff]
          %v4057 = vld [vmem:[%s313 + $0x78] sm:$0xff]
          %v4058 = vld [vmem:[%s313 + $0x80] sm:$0xff]
          %v4059 = vld [vmem:[%s313 + $0x88] sm:$0xff]
          %v4060 = vld [vmem:[%s313 + $0x90] sm:$0xff]
          %v4061 = vld [vmem:[%s313 + $0x98] sm:$0xff]
          %v4062 = vld [vmem:[%s313 + $0xa0] sm:$0xff]
          %v4063 = vld [vmem:[%s313 + $0xa8] sm:$0xff]
          %v4064 = vld [vmem:[%s313 + $0xb0] sm:$0xff]
          %v4065 = vld [vmem:[%s313 + $0xb8] sm:$0xff]
          %v4066 = vld [vmem:[%s313 + $0xc0] sm:$0xff]
          %v4067 = vld [vmem:[%s313 + $0xc8] sm:$0xff]
          %v4068 = vld [vmem:[%s313 + $0xd0] sm:$0xff]
          %v4069 = vld [vmem:[%s313 + $0xd8] sm:$0xff]
          %v4070 = vld [vmem:[%s313 + $0xe0] sm:$0xff]
          %v4071 = vld [vmem:[%s313 + $0xe8] sm:$0xff]
          %v4072 = vld [vmem:[%s313 + $0xf0] sm:$0xff]
          %v4073 = vld [vmem:[%s313 + $0xf8] sm:$0xff]
          %v4074 = vld [vmem:[%s313 + $0x100] sm:$0xff]
          %v4075 = vld [vmem:[%s313 + $0x108] sm:$0xff]
          %v4076 = vld [vmem:[%s313 + $0x110] sm:$0xff]
          %v4077 = vld [vmem:[%s313 + $0x118] sm:$0xff]
          %v4078 = vld [vmem:[%s313 + $0x120] sm:$0xff]
          %v4079 = vld [vmem:[%s313 + $0x128] sm:$0xff]
          %v4080 = vld [vmem:[%s313 + $0x130] sm:$0xff]
          %v4081 = vld [vmem:[%s313 + $0x138] sm:$0xff]
          %v4082 = vld [vmem:[%s313 + $0x140] sm:$0xff]
          %v4083 = vld [vmem:[%s313 + $0x148] sm:$0xff]
          %v4084 = vld [vmem:[%s313 + $0x150] sm:$0xff]
          %v4085 = vld [vmem:[%s313 + $0x158] sm:$0xff]
          %v4086 = vld [vmem:[%s313 + $0x160] sm:$0xff]
          %v4087 = vld [vmem:[%s313 + $0x168] sm:$0xff]
          %v4088 = vld [vmem:[%s313 + $0x170] sm:$0xff]
          %v4089 = vld [vmem:[%s313 + $0x178] sm:$0xff]
          %v4090 = vld [vmem:[%s313 + $0x180] sm:$0xff]
          %v4091 = vld [vmem:[%s313 + $0x188] sm:$0xff]
          %v4092 = vld [vmem:[%s313 + $0x190] sm:$0xff]
          %v4093 = vld [vmem:[%s313 + $0x198] sm:$0xff]
          %v4094 = vld [vmem:[%s313 + $0x1a0] sm:$0xff]
          %v4095 = vld [vmem:[%s313 + $0x1a8] sm:$0xff]
          %v4096 = vld [vmem:[%s313 + $0x1b0] sm:$0xff]
          %v4097 = vld [vmem:[%s313 + $0x1b8] sm:$0xff]
          %v4098 = vld [vmem:[%s313 + $0x1c0] sm:$0xff]
          %v4099 = vld [vmem:[%s313 + $0x1c8] sm:$0xff]
          %v4100 = vld [vmem:[%s313 + $0x1d0] sm:$0xff]
          %v4101 = vld [vmem:[%s313 + $0x1d8] sm:$0xff]
          %v4102 = vld [vmem:[%s313 + $0x1e0] sm:$0xff]
          %v4103 = vld [vmem:[%s313 + $0x1e8] sm:$0xff]
          %v4104 = vld [vmem:[%s313 + $0x1f0] sm:$0xff]
          %v4105 = vld [vmem:[%s313 + $0x1f8] sm:$0xff]
          %v4106 = vld [vmem:[%s313 + $0x200] sm:$0xff]
          %v4107 = vld [vmem:[%s313 + $0x208] sm:$0xff]
          %v4108 = vld [vmem:[%s313 + $0x210] sm:$0xff]
          %v4109 = vld [vmem:[%s313 + $0x218] sm:$0xff]
          %v4110 = vld [vmem:[%s313 + $0x220] sm:$0xff]
          %v4111 = vld [vmem:[%s313 + $0x228] sm:$0xff]
          %v4112 = vld [vmem:[%s313 + $0x230] sm:$0xff]
          %v4113 = vld [vmem:[%s313 + $0x238] sm:$0xff]
          %v4114 = vld [vmem:[%s313 + $0x240] sm:$0xff]
          %v4115 = vld [vmem:[%s313 + $0x248] sm:$0xff]
          %v4116 = vld [vmem:[%s313 + $0x250] sm:$0xff]
          %4120 = vrot.lane.b32.xlu0 %v4066, 117
          %v4121 = vpop.permute.xlu0 %4120
          %4122 = vrot.lane.b32.xlu0 %v4091, 117
          %v4123 = vpop.permute.xlu0 %4122
          %4124 = vrot.lane.b32.xlu0 %v4116, 117
          %v4125 = vpop.permute.xlu0 %4124
          %4201 = vrot.lane.b32.xlu0 %v4042, 53
          %v4202 = vpop.permute.xlu0 %4201
          %4203 = vrot.lane.b32.xlu0 %v4043, 53
          %v4204 = vpop.permute.xlu0 %4203
          %4205 = vrot.lane.b32.xlu0 %v4044, 53
          %v4206 = vpop.permute.xlu0 %4205
          %4207 = vrot.lane.b32.xlu0 %v4045, 53
          %v4208 = vpop.permute.xlu0 %4207
          %4209 = vrot.lane.b32.xlu0 %v4046, 53
          %v4210 = vpop.permute.xlu0 %4209
          %4211 = vrot.lane.b32.xlu0 %v4047, 53
          %v4212 = vpop.permute.xlu0 %4211
          %4213 = vrot.lane.b32.xlu0 %v4048, 53
          %v4214 = vpop.permute.xlu0 %4213
          %4215 = vrot.lane.b32.xlu0 %v4049, 53
          %v4216 = vpop.permute.xlu0 %4215
          %4217 = vrot.lane.b32.xlu0 %v4050, 53
          %v4218 = vpop.permute.xlu0 %4217
          %4219 = vrot.lane.b32.xlu0 %v4051, 53
          %v4220 = vpop.permute.xlu0 %4219
          %4221 = vrot.lane.b32.xlu0 %v4052, 53
          %v4222 = vpop.permute.xlu0 %4221
          %4223 = vrot.lane.b32.xlu0 %v4053, 53
          %v4224 = vpop.permute.xlu0 %4223
          %4225 = vrot.lane.b32.xlu0 %v4054, 53
          %v4226 = vpop.permute.xlu0 %4225
          %4227 = vrot.lane.b32.xlu0 %v4055, 53
          %v4228 = vpop.permute.xlu0 %4227
          %4229 = vrot.lane.b32.xlu0 %v4056, 53
          %v4230 = vpop.permute.xlu0 %4229
          %4231 = vrot.lane.b32.xlu0 %v4057, 53
          %v4232 = vpop.permute.xlu0 %4231
          %4233 = vrot.lane.b32.xlu0 %v4058, 53
          %v4234 = vpop.permute.xlu0 %4233
          %4235 = vrot.lane.b32.xlu0 %v4059, 53
          %v4236 = vpop.permute.xlu0 %4235
          %4237 = vrot.lane.b32.xlu0 %v4060, 53
          %v4238 = vpop.permute.xlu0 %4237
          %4239 = vrot.lane.b32.xlu0 %v4061, 53
          %v4240 = vpop.permute.xlu0 %4239
          %4241 = vrot.lane.b32.xlu0 %v4062, 53
          %v4242 = vpop.permute.xlu0 %4241
          %4243 = vrot.lane.b32.xlu0 %v4063, 53
          %v4244 = vpop.permute.xlu0 %4243
          %4245 = vrot.lane.b32.xlu0 %v4064, 53
          %v4246 = vpop.permute.xlu0 %4245
          %4247 = vrot.lane.b32.xlu0 %v4065, 53
          %v4248 = vpop.permute.xlu0 %4247
          %4249 = vrot.lane.b32.xlu0 %v4066, 53
          %v4250 = vpop.permute.xlu0 %4249
          %4251 = vrot.lane.b32.xlu0 %v4067, 53
          %v4252 = vpop.permute.xlu0 %4251
          %4253 = vrot.lane.b32.xlu0 %v4068, 53
          %v4254 = vpop.permute.xlu0 %4253
          %4255 = vrot.lane.b32.xlu0 %v4069, 53
          %v4256 = vpop.permute.xlu0 %4255
          %4257 = vrot.lane.b32.xlu0 %v4070, 53
          %v4258 = vpop.permute.xlu0 %4257
          %4259 = vrot.lane.b32.xlu0 %v4071, 53
          %v4260 = vpop.permute.xlu0 %4259
          %4261 = vrot.lane.b32.xlu0 %v4072, 53
          %v4262 = vpop.permute.xlu0 %4261
          %4263 = vrot.lane.b32.xlu0 %v4073, 53
          %v4264 = vpop.permute.xlu0 %4263
          %4265 = vrot.lane.b32.xlu0 %v4074, 53
          %v4266 = vpop.permute.xlu0 %4265
          %4267 = vrot.lane.b32.xlu0 %v4075, 53
          %v4268 = vpop.permute.xlu0 %4267
          %4269 = vrot.lane.b32.xlu0 %v4076, 53
          %v4270 = vpop.permute.xlu0 %4269
          %4271 = vrot.lane.b32.xlu0 %v4077, 53
          %v4272 = vpop.permute.xlu0 %4271
          %4273 = vrot.lane.b32.xlu0 %v4078, 53
          %v4274 = vpop.permute.xlu0 %4273
          %4275 = vrot.lane.b32.xlu0 %v4079, 53
          %v4276 = vpop.permute.xlu0 %4275
          %4277 = vrot.lane.b32.xlu0 %v4080, 53
          %v4278 = vpop.permute.xlu0 %4277
          %4279 = vrot.lane.b32.xlu0 %v4081, 53
          %v4280 = vpop.permute.xlu0 %4279
          %4281 = vrot.lane.b32.xlu0 %v4082, 53
          %v4282 = vpop.permute.xlu0 %4281
          %4283 = vrot.lane.b32.xlu0 %v4083, 53
          %v4284 = vpop.permute.xlu0 %4283
          %4285 = vrot.lane.b32.xlu0 %v4084, 53
          %v4286 = vpop.permute.xlu0 %4285
          %4287 = vrot.lane.b32.xlu0 %v4085, 53
          %v4288 = vpop.permute.xlu0 %4287
          %4289 = vrot.lane.b32.xlu0 %v4086, 53
          %v4290 = vpop.permute.xlu0 %4289
          %4291 = vrot.lane.b32.xlu0 %v4087, 53
          %v4292 = vpop.permute.xlu0 %4291
          %4293 = vrot.lane.b32.xlu0 %v4088, 53
          %v4294 = vpop.permute.xlu0 %4293
          %4295 = vrot.lane.b32.xlu0 %v4089, 53
          %v4296 = vpop.permute.xlu0 %4295
          %4297 = vrot.lane.b32.xlu0 %v4090, 53
          %v4298 = vpop.permute.xlu0 %4297
          %4299 = vrot.lane.b32.xlu0 %v4091, 53
          %v4300 = vpop.permute.xlu0 %4299
          %4301 = vrot.lane.b32.xlu0 %v4092, 53
          %v4302 = vpop.permute.xlu0 %4301
          %4303 = vrot.lane.b32.xlu0 %v4093, 53
          %v4304 = vpop.permute.xlu0 %4303
          %4305 = vrot.lane.b32.xlu0 %v4094, 53
          %v4306 = vpop.permute.xlu0 %4305
          %4307 = vrot.lane.b32.xlu0 %v4095, 53
          %v4308 = vpop.permute.xlu0 %4307
          %4309 = vrot.lane.b32.xlu0 %v4096, 53
          %v4310 = vpop.permute.xlu0 %4309
          %4311 = vrot.lane.b32.xlu0 %v4097, 53
          %v4312 = vpop.permute.xlu0 %4311
          %4313 = vrot.lane.b32.xlu0 %v4098, 53
          %v4314 = vpop.permute.xlu0 %4313
          %4315 = vrot.lane.b32.xlu0 %v4099, 53
          %v4316 = vpop.permute.xlu0 %4315
          %4317 = vrot.lane.b32.xlu0 %v4100, 53
          %v4318 = vpop.permute.xlu0 %4317
          %4319 = vrot.lane.b32.xlu0 %v4101, 53
          %v4320 = vpop.permute.xlu0 %4319
          %4321 = vrot.lane.b32.xlu0 %v4102, 53
          %v4322 = vpop.permute.xlu0 %4321
          %4323 = vrot.lane.b32.xlu0 %v4103, 53
          %v4324 = vpop.permute.xlu0 %4323
          %4325 = vrot.lane.b32.xlu0 %v4104, 53
          %v4326 = vpop.permute.xlu0 %4325
          %4327 = vrot.lane.b32.xlu0 %v4105, 53
          %v4328 = vpop.permute.xlu0 %4327
          %4329 = vrot.lane.b32.xlu0 %v4106, 53
          %v4330 = vpop.permute.xlu0 %4329
          %4331 = vrot.lane.b32.xlu0 %v4107, 53
          %v4332 = vpop.permute.xlu0 %4331
          %4333 = vrot.lane.b32.xlu0 %v4108, 53
          %v4334 = vpop.permute.xlu0 %4333
          %4335 = vrot.lane.b32.xlu0 %v4109, 53
          %v4336 = vpop.permute.xlu0 %4335
          %4337 = vrot.lane.b32.xlu0 %v4110, 53
          %v4338 = vpop.permute.xlu0 %4337
          %4339 = vrot.lane.b32.xlu0 %v4111, 53
          %v4340 = vpop.permute.xlu0 %4339
          %4341 = vrot.lane.b32.xlu0 %v4112, 53
          %v4342 = vpop.permute.xlu0 %4341
          %4343 = vrot.lane.b32.xlu0 %v4113, 53
          %v4344 = vpop.permute.xlu0 %4343
          %4345 = vrot.lane.b32.xlu0 %v4114, 53
          %v4346 = vpop.permute.xlu0 %4345
          %4347 = vrot.lane.b32.xlu0 %v4115, 53
          %v4348 = vpop.permute.xlu0 %4347
          %4349 = vrot.lane.b32.xlu0 %v4116, 53
          %v4350 = vpop.permute.xlu0 %4349
          %vm4351 = vcmask 433152
          %v4352 = vsel %vm4351, %v4202, %v4204
          %v4353 = vsel %vm4351, %v4204, %v4206
          %v4354 = vsel %vm4351, %v4206, %v4208
          %v4355 = vsel %vm4351, %v4208, %v4210
          %v4356 = vsel %vm4351, %v4210, %v4212
          %v4357 = vsel %vm4351, %v4212, %v4214
          %v4358 = vsel %vm4351, %v4214, %v4216
          %v4359 = vsel %vm4351, %v4216, %v4218
          %v4360 = vsel %vm4351, %v4218, %v4220
          %v4361 = vsel %vm4351, %v4220, %v4222
          %v4362 = vsel %vm4351, %v4222, %v4224
          %v4363 = vsel %vm4351, %v4224, %v4226
          %v4364 = vsel %vm4351, %v4226, %v4228
          %v4365 = vsel %vm4351, %v4228, %v4230
          %v4366 = vsel %vm4351, %v4230, %v4232
          %v4367 = vsel %vm4351, %v4232, %v4234
          %v4368 = vsel %vm4351, %v4234, %v4236
          %v4369 = vsel %vm4351, %v4236, %v4238
          %v4370 = vsel %vm4351, %v4238, %v4240
          %v4371 = vsel %vm4351, %v4240, %v4242
          %v4372 = vsel %vm4351, %v4242, %v4244
          %v4373 = vsel %vm4351, %v4244, %v4246
          %v4374 = vsel %vm4351, %v4246, %v4248
          %v4375 = vsel %vm4351, %v4248, %v4250
          %v4376 = vsel %vm4351, %v4252, %v4254
          %v4377 = vsel %vm4351, %v4254, %v4256
          %v4378 = vsel %vm4351, %v4256, %v4258
          %v4379 = vsel %vm4351, %v4258, %v4260
          %v4380 = vsel %vm4351, %v4260, %v4262
          %v4381 = vsel %vm4351, %v4262, %v4264
          %v4382 = vsel %vm4351, %v4264, %v4266
          %v4383 = vsel %vm4351, %v4266, %v4268
          %v4384 = vsel %vm4351, %v4268, %v4270
          %v4385 = vsel %vm4351, %v4270, %v4272
          %v4386 = vsel %vm4351, %v4272, %v4274
          %v4387 = vsel %vm4351, %v4274, %v4276
          %v4388 = vsel %vm4351, %v4276, %v4278
          %v4389 = vsel %vm4351, %v4278, %v4280
          %v4390 = vsel %vm4351, %v4280, %v4282
          %v4391 = vsel %vm4351, %v4282, %v4284
          %v4392 = vsel %vm4351, %v4284, %v4286
          %v4393 = vsel %vm4351, %v4286, %v4288
          %v4394 = vsel %vm4351, %v4288, %v4290
          %v4395 = vsel %vm4351, %v4290, %v4292
          %v4396 = vsel %vm4351, %v4292, %v4294
          %v4397 = vsel %vm4351, %v4294, %v4296
          %v4398 = vsel %vm4351, %v4296, %v4298
          %v4399 = vsel %vm4351, %v4298, %v4300
          %v4400 = vsel %vm4351, %v4302, %v4304
          %v4401 = vsel %vm4351, %v4304, %v4306
          %v4402 = vsel %vm4351, %v4306, %v4308
          %v4403 = vsel %vm4351, %v4308, %v4310
          %v4404 = vsel %vm4351, %v4310, %v4312
          %v4405 = vsel %vm4351, %v4312, %v4314
          %v4406 = vsel %vm4351, %v4314, %v4316
          %v4407 = vsel %vm4351, %v4316, %v4318
          %v4408 = vsel %vm4351, %v4318, %v4320
          %v4409 = vsel %vm4351, %v4320, %v4322
          %v4410 = vsel %vm4351, %v4322, %v4324
          %v4411 = vsel %vm4351, %v4324, %v4326
          %v4412 = vsel %vm4351, %v4326, %v4328
          %v4413 = vsel %vm4351, %v4328, %v4330
          %v4414 = vsel %vm4351, %v4330, %v4332
          %v4415 = vsel %vm4351, %v4332, %v4334
          %v4416 = vsel %vm4351, %v4334, %v4336
          %v4417 = vsel %vm4351, %v4336, %v4338
          %v4418 = vsel %vm4351, %v4338, %v4340
          %v4419 = vsel %vm4351, %v4340, %v4342
          %v4420 = vsel %vm4351, %v4342, %v4344
          %v4421 = vsel %vm4351, %v4344, %v4346
          %v4422 = vsel %vm4351, %v4346, %v4348
          %v4423 = vsel %vm4351, %v4348, %v4350
          %v4499 = vsel %vm4351, %v4121, %v4202
          %v4500 = vsel %vm4351, %v4123, %v4252
          %v4501 = vsel %vm4351, %v4125, %v4302
          %v4502 = vperm.slane %v280, 6
          %v4503 = vperm.slane %v281, 6
          %v4504 = vperm.slane %v282, 6
          %v4505 = vperm.slane %v283, 6
          %v4506 = vperm.slane %v284, 6
          %v4507 = vperm.slane %v285, 6
          %v4508 = vperm.slane %v286, 6
          %v4509 = vperm.slane %v287, 6
          %v4510 = vperm.slane %v288, 6
          %v4511 = vperm.slane %v289, 6
          %v4512 = vperm.slane %v290, 6
          %v4513 = vperm.slane %v291, 6
          %v4514 = vperm.slane %v292, 6
          %v4515 = vperm.slane %v293, 6
          %v4516 = vperm.slane %v294, 6
          %v4517 = vperm.slane %v295, 6
          %v4518 = vperm.slane %v296, 6
          %v4519 = vperm.slane %v297, 6
          %v4520 = vperm.slane %v298, 6
          %v4521 = vperm.slane %v299, 6
          %v4522 = vperm.slane %v300, 6
          %v4523 = vperm.slane %v301, 6
          %v4524 = vperm.slane %v302, 6
          %v4525 = vperm.slane %v303, 6
          %v4526 = vperm.slane %v304, 6
          %v4527 = vmul.f32 %v4499, %v4502
          %v4528 = vmul.f32 %v4352, %v4503
          %v4529 = vmul.f32 %v4353, %v4504
          %v4530 = vmul.f32 %v4354, %v4505
          %v4531 = vmul.f32 %v4355, %v4506
          %v4532 = vmul.f32 %v4356, %v4507
          %v4533 = vmul.f32 %v4357, %v4508
          %v4534 = vmul.f32 %v4358, %v4509
          %v4535 = vmul.f32 %v4359, %v4510
          %v4536 = vmul.f32 %v4360, %v4511
          %v4537 = vmul.f32 %v4361, %v4512
          %v4538 = vmul.f32 %v4362, %v4513
          %v4539 = vmul.f32 %v4363, %v4514
          %v4540 = vmul.f32 %v4364, %v4515
          %v4541 = vmul.f32 %v4365, %v4516
          %v4542 = vmul.f32 %v4366, %v4517
          %v4543 = vmul.f32 %v4367, %v4518
          %v4544 = vmul.f32 %v4368, %v4519
          %v4545 = vmul.f32 %v4369, %v4520
          %v4546 = vmul.f32 %v4370, %v4521
          %v4547 = vmul.f32 %v4371, %v4522
          %v4548 = vmul.f32 %v4372, %v4523
          %v4549 = vmul.f32 %v4373, %v4524
          %v4550 = vmul.f32 %v4374, %v4525
          %v4551 = vmul.f32 %v4375, %v4526
          %v4552 = vmul.f32 %v4500, %v4502
          %v4553 = vmul.f32 %v4376, %v4503
          %v4554 = vmul.f32 %v4377, %v4504
          %v4555 = vmul.f32 %v4378, %v4505
          %v4556 = vmul.f32 %v4379, %v4506
          %v4557 = vmul.f32 %v4380, %v4507
          %v4558 = vmul.f32 %v4381, %v4508
          %v4559 = vmul.f32 %v4382, %v4509
          %v4560 = vmul.f32 %v4383, %v4510
          %v4561 = vmul.f32 %v4384, %v4511
          %v4562 = vmul.f32 %v4385, %v4512
          %v4563 = vmul.f32 %v4386, %v4513
          %v4564 = vmul.f32 %v4387, %v4514
          %v4565 = vmul.f32 %v4388, %v4515
          %v4566 = vmul.f32 %v4389, %v4516
          %v4567 = vmul.f32 %v4390, %v4517
          %v4568 = vmul.f32 %v4391, %v4518
          %v4569 = vmul.f32 %v4392, %v4519
          %v4570 = vmul.f32 %v4393, %v4520
          %v4571 = vmul.f32 %v4394, %v4521
          %v4572 = vmul.f32 %v4395, %v4522
          %v4573 = vmul.f32 %v4396, %v4523
          %v4574 = vmul.f32 %v4397, %v4524
          %v4575 = vmul.f32 %v4398, %v4525
          %v4576 = vmul.f32 %v4399, %v4526
          %v4577 = vmul.f32 %v4501, %v4502
          %v4578 = vmul.f32 %v4400, %v4503
          %v4579 = vmul.f32 %v4401, %v4504
          %v4580 = vmul.f32 %v4402, %v4505
          %v4581 = vmul.f32 %v4403, %v4506
          %v4582 = vmul.f32 %v4404, %v4507
          %v4583 = vmul.f32 %v4405, %v4508
          %v4584 = vmul.f32 %v4406, %v4509
          %v4585 = vmul.f32 %v4407, %v4510
          %v4586 = vmul.f32 %v4408, %v4511
          %v4587 = vmul.f32 %v4409, %v4512
          %v4588 = vmul.f32 %v4410, %v4513
          %v4589 = vmul.f32 %v4411, %v4514
          %v4590 = vmul.f32 %v4412, %v4515
          %v4591 = vmul.f32 %v4413, %v4516
          %v4592 = vmul.f32 %v4414, %v4517
          %v4593 = vmul.f32 %v4415, %v4518
          %v4594 = vmul.f32 %v4416, %v4519
          %v4595 = vmul.f32 %v4417, %v4520
          %v4596 = vmul.f32 %v4418, %v4521
          %v4597 = vmul.f32 %v4419, %v4522
          %v4598 = vmul.f32 %v4420, %v4523
          %v4599 = vmul.f32 %v4421, %v4524
          %v4600 = vmul.f32 %v4422, %v4525
          %v4601 = vmul.f32 %v4423, %v4526
          %v4602 = vpack.c.bf16 %v4528, %v4527
          %v4603 = vpack.c.bf16 %v4530, %v4529
          %v4604 = vpack.c.bf16 %v4532, %v4531
          %v4605 = vpack.c.bf16 %v4534, %v4533
          %v4606 = vpack.c.bf16 %v4536, %v4535
          %v4607 = vpack.c.bf16 %v4538, %v4537
          %v4608 = vpack.c.bf16 %v4540, %v4539
          %v4609 = vpack.c.bf16 %v4542, %v4541
          %v4610 = vpack.c.bf16 %v4544, %v4543
          %v4611 = vpack.c.bf16 %v4546, %v4545
          %v4612 = vpack.c.bf16 %v4548, %v4547
          %v4613 = vpack.c.bf16 %v4550, %v4549
          %v4614 = vpack.c.bf16 %v4551, %v4551
          %v4615 = vpack.c.bf16 %v4553, %v4552
          %v4616 = vpack.c.bf16 %v4555, %v4554
          %v4617 = vpack.c.bf16 %v4557, %v4556
          %v4618 = vpack.c.bf16 %v4559, %v4558
          %v4619 = vpack.c.bf16 %v4561, %v4560
          %v4620 = vpack.c.bf16 %v4563, %v4562
          %v4621 = vpack.c.bf16 %v4565, %v4564
          %v4622 = vpack.c.bf16 %v4567, %v4566
          %v4623 = vpack.c.bf16 %v4569, %v4568
          %v4624 = vpack.c.bf16 %v4571, %v4570
          %v4625 = vpack.c.bf16 %v4573, %v4572
          %v4626 = vpack.c.bf16 %v4575, %v4574
          %v4627 = vpack.c.bf16 %v4576, %v4576
          %v4628 = vpack.c.bf16 %v4578, %v4577
          %v4629 = vpack.c.bf16 %v4580, %v4579
          %v4630 = vpack.c.bf16 %v4582, %v4581
          %v4631 = vpack.c.bf16 %v4584, %v4583
          %v4632 = vpack.c.bf16 %v4586, %v4585
          %v4633 = vpack.c.bf16 %v4588, %v4587
          %v4634 = vpack.c.bf16 %v4590, %v4589
          %v4635 = vpack.c.bf16 %v4592, %v4591
          %v4636 = vpack.c.bf16 %v4594, %v4593
          %v4637 = vpack.c.bf16 %v4596, %v4595
          %v4638 = vpack.c.bf16 %v4598, %v4597
          %v4639 = vpack.c.bf16 %v4600, %v4599
          %v4640 = vpack.c.bf16 %v4601, %v4601
          %4641 = vst [vmem:[#allocation2 + $0x960] sm:$0xff] %v4602
          %4642 = vst [vmem:[#allocation2 + $0x968] sm:$0xff] %v4603
          %4643 = vst [vmem:[#allocation2 + $0x970] sm:$0xff] %v4604
          %4644 = vst [vmem:[#allocation2 + $0x978] sm:$0xff] %v4605
          %4645 = vst [vmem:[#allocation2 + $0x980] sm:$0xff] %v4606
          %4646 = vst [vmem:[#allocation2 + $0x988] sm:$0xff] %v4607
          %4647 = vst [vmem:[#allocation2 + $0x990] sm:$0xff] %v4608
          %4648 = vst [vmem:[#allocation2 + $0x998] sm:$0xff] %v4609
          %4649 = vst [vmem:[#allocation2 + $0x9a0] sm:$0xff] %v4610
          %4650 = vst [vmem:[#allocation2 + $0x9a8] sm:$0xff] %v4611
          %4651 = vst [vmem:[#allocation2 + $0x9b0] sm:$0xff] %v4612
          %4652 = vst [vmem:[#allocation2 + $0x9b8] sm:$0xff] %v4613
          %4653 = vst.msk [vmem:[#allocation2 + $0x9c0] sm:$0xf] %vm188, %v4614
          %4654 = vst [vmem:[#allocation2 + $0x9c4] sm:$0xff] %v4615
          %4655 = vst [vmem:[#allocation2 + $0x9cc] sm:$0xff] %v4616
          %4656 = vst [vmem:[#allocation2 + $0x9d4] sm:$0xff] %v4617
          %4657 = vst [vmem:[#allocation2 + $0x9dc] sm:$0xff] %v4618
          %4658 = vst [vmem:[#allocation2 + $0x9e4] sm:$0xff] %v4619
          %4659 = vst [vmem:[#allocation2 + $0x9ec] sm:$0xff] %v4620
          %4660 = vst [vmem:[#allocation2 + $0x9f4] sm:$0xff] %v4621
          %4661 = vst [vmem:[#allocation2 + $0x9fc] sm:$0xff] %v4622
          %4662 = vst [vmem:[#allocation2 + $0xa04] sm:$0xff] %v4623
          %4663 = vst [vmem:[#allocation2 + $0xa0c] sm:$0xff] %v4624
          %4664 = vst [vmem:[#allocation2 + $0xa14] sm:$0xff] %v4625
          %4665 = vst [vmem:[#allocation2 + $0xa1c] sm:$0xff] %v4626
          %4666 = vst.msk [vmem:[#allocation2 + $0xa24] sm:$0xf] %vm188, %v4627
          %4667 = vst [vmem:[#allocation2 + $0xa28] sm:$0xff] %v4628
          %4668 = vst [vmem:[#allocation2 + $0xa30] sm:$0xff] %v4629
          %4669 = vst [vmem:[#allocation2 + $0xa38] sm:$0xff] %v4630
          %4670 = vst [vmem:[#allocation2 + $0xa40] sm:$0xff] %v4631
          %4671 = vst [vmem:[#allocation2 + $0xa48] sm:$0xff] %v4632
          %4672 = vst [vmem:[#allocation2 + $0xa50] sm:$0xff] %v4633
          %4673 = vst [vmem:[#allocation2 + $0xa58] sm:$0xff] %v4634
          %4674 = vst [vmem:[#allocation2 + $0xa60] sm:$0xff] %v4635
          %4675 = vst [vmem:[#allocation2 + $0xa68] sm:$0xff] %v4636
          %4676 = vst [vmem:[#allocation2 + $0xa70] sm:$0xff] %v4637
          %4677 = vst [vmem:[#allocation2 + $0xa78] sm:$0xff] %v4638
          %4678 = vst [vmem:[#allocation2 + $0xa80] sm:$0xff] %v4639
          %4679 = vst.msk [vmem:[#allocation2 + $0xa88] sm:$0xf] %vm188, %v4640
          %v4680 = vld [vmem:[#allocation2] sm:$0xff]
          %v4681 = vld [vmem:[#allocation2 + $0x8] sm:$0xff]
          %v4682 = vld [vmem:[#allocation2 + $0x10] sm:$0xff]
          %v4683 = vld [vmem:[#allocation2 + $0x18] sm:$0xff]
          %v4684 = vld [vmem:[#allocation2 + $0x20] sm:$0xff]
          %v4685 = vld [vmem:[#allocation2 + $0x28] sm:$0xff]
          %v4686 = vld [vmem:[#allocation2 + $0x30] sm:$0xff]
          %v4687 = vld [vmem:[#allocation2 + $0x38] sm:$0xff]
          %v4688 = vld [vmem:[#allocation2 + $0x40] sm:$0xff]
          %v4689 = vld [vmem:[#allocation2 + $0x48] sm:$0xff]
          %v4690 = vld [vmem:[#allocation2 + $0x50] sm:$0xff]
          %v4691 = vld [vmem:[#allocation2 + $0x58] sm:$0xff]
          %v4692 = vld [vmem:[#allocation2 + $0x60] sm:$0xf]
          %v4693 = vld [vmem:[#allocation2 + $0x64] sm:$0xff]
          %v4694 = vld [vmem:[#allocation2 + $0x6c] sm:$0xff]
          %v4695 = vld [vmem:[#allocation2 + $0x74] sm:$0xff]
          %v4696 = vld [vmem:[#allocation2 + $0x7c] sm:$0xff]
          %v4697 = vld [vmem:[#allocation2 + $0x84] sm:$0xff]
          %v4698 = vld [vmem:[#allocation2 + $0x8c] sm:$0xff]
          %v4699 = vld [vmem:[#allocation2 + $0x94] sm:$0xff]
          %v4700 = vld [vmem:[#allocation2 + $0x9c] sm:$0xff]
          %v4701 = vld [vmem:[#allocation2 + $0xa4] sm:$0xff]
          %v4702 = vld [vmem:[#allocation2 + $0xac] sm:$0xff]
          %v4703 = vld [vmem:[#allocation2 + $0xb4] sm:$0xff]
          %v4704 = vld [vmem:[#allocation2 + $0xbc] sm:$0xff]
          %v4705 = vld [vmem:[#allocation2 + $0xc4] sm:$0xf]
          %v4706 = vld [vmem:[#allocation2 + $0xc8] sm:$0xff]
          %v4707 = vld [vmem:[#allocation2 + $0xd0] sm:$0xff]
          %v4708 = vld [vmem:[#allocation2 + $0xd8] sm:$0xff]
          %v4709 = vld [vmem:[#allocation2 + $0xe0] sm:$0xff]
          %v4710 = vld [vmem:[#allocation2 + $0xe8] sm:$0xff]
          %v4711 = vld [vmem:[#allocation2 + $0xf0] sm:$0xff]
          %v4712 = vld [vmem:[#allocation2 + $0xf8] sm:$0xff]
          %v4713 = vld [vmem:[#allocation2 + $0x100] sm:$0xff]
          %v4714 = vld [vmem:[#allocation2 + $0x108] sm:$0xff]
          %v4715 = vld [vmem:[#allocation2 + $0x110] sm:$0xff]
          %v4716 = vld [vmem:[#allocation2 + $0x118] sm:$0xff]
          %v4717 = vld [vmem:[#allocation2 + $0x120] sm:$0xff]
          %v4718 = vld [vmem:[#allocation2 + $0x128] sm:$0xf]
          %v4719 = vld [vmem:[#allocation2 + $0x12c] sm:$0xff]
          %v4720 = vld [vmem:[#allocation2 + $0x134] sm:$0xff]
          %v4721 = vld [vmem:[#allocation2 + $0x13c] sm:$0xff]
          %v4722 = vld [vmem:[#allocation2 + $0x144] sm:$0xff]
          %v4723 = vld [vmem:[#allocation2 + $0x14c] sm:$0xff]
          %v4724 = vld [vmem:[#allocation2 + $0x154] sm:$0xff]
          %v4725 = vld [vmem:[#allocation2 + $0x15c] sm:$0xff]
          %v4726 = vld [vmem:[#allocation2 + $0x164] sm:$0xff]
          %v4727 = vld [vmem:[#allocation2 + $0x16c] sm:$0xff]
          %v4728 = vld [vmem:[#allocation2 + $0x174] sm:$0xff]
          %v4729 = vld [vmem:[#allocation2 + $0x17c] sm:$0xff]
          %v4730 = vld [vmem:[#allocation2 + $0x184] sm:$0xff]
          %v4731 = vld [vmem:[#allocation2 + $0x18c] sm:$0xf]
          %v4732 = vld [vmem:[#allocation2 + $0x190] sm:$0xff]
          %v4733 = vld [vmem:[#allocation2 + $0x198] sm:$0xff]
          %v4734 = vld [vmem:[#allocation2 + $0x1a0] sm:$0xff]
          %v4735 = vld [vmem:[#allocation2 + $0x1a8] sm:$0xff]
          %v4736 = vld [vmem:[#allocation2 + $0x1b0] sm:$0xff]
          %v4737 = vld [vmem:[#allocation2 + $0x1b8] sm:$0xff]
          %v4738 = vld [vmem:[#allocation2 + $0x1c0] sm:$0xff]
          %v4739 = vld [vmem:[#allocation2 + $0x1c8] sm:$0xff]
          %v4740 = vld [vmem:[#allocation2 + $0x1d0] sm:$0xff]
          %v4741 = vld [vmem:[#allocation2 + $0x1d8] sm:$0xff]
          %v4742 = vld [vmem:[#allocation2 + $0x1e0] sm:$0xff]
          %v4743 = vld [vmem:[#allocation2 + $0x1e8] sm:$0xff]
          %v4744 = vld [vmem:[#allocation2 + $0x1f0] sm:$0xf]
          %v4745 = vld [vmem:[#allocation2 + $0x1f4] sm:$0xff]
          %v4746 = vld [vmem:[#allocation2 + $0x1fc] sm:$0xff]
          %v4747 = vld [vmem:[#allocation2 + $0x204] sm:$0xff]
          %v4748 = vld [vmem:[#allocation2 + $0x20c] sm:$0xff]
          %v4749 = vld [vmem:[#allocation2 + $0x214] sm:$0xff]
          %v4750 = vld [vmem:[#allocation2 + $0x21c] sm:$0xff]
          %v4751 = vld [vmem:[#allocation2 + $0x224] sm:$0xff]
          %v4752 = vld [vmem:[#allocation2 + $0x22c] sm:$0xff]
          %v4753 = vld [vmem:[#allocation2 + $0x234] sm:$0xff]
          %v4754 = vld [vmem:[#allocation2 + $0x23c] sm:$0xff]
          %v4755 = vld [vmem:[#allocation2 + $0x244] sm:$0xff]
          %v4756 = vld [vmem:[#allocation2 + $0x24c] sm:$0xff]
          %v4757 = vld [vmem:[#allocation2 + $0x254] sm:$0xf]
          %v4758 = vld [vmem:[#allocation2 + $0x258] sm:$0xff]
          %v4759 = vld [vmem:[#allocation2 + $0x260] sm:$0xff]
          %v4760 = vld [vmem:[#allocation2 + $0x268] sm:$0xff]
          %v4761 = vld [vmem:[#allocation2 + $0x270] sm:$0xff]
          %v4762 = vld [vmem:[#allocation2 + $0x278] sm:$0xff]
          %v4763 = vld [vmem:[#allocation2 + $0x280] sm:$0xff]
          %v4764 = vld [vmem:[#allocation2 + $0x288] sm:$0xff]
          %v4765 = vld [vmem:[#allocation2 + $0x290] sm:$0xff]
          %v4766 = vld [vmem:[#allocation2 + $0x298] sm:$0xff]
          %v4767 = vld [vmem:[#allocation2 + $0x2a0] sm:$0xff]
          %v4768 = vld [vmem:[#allocation2 + $0x2a8] sm:$0xff]
          %v4769 = vld [vmem:[#allocation2 + $0x2b0] sm:$0xff]
          %v4770 = vld [vmem:[#allocation2 + $0x2b8] sm:$0xf]
          %v4771 = vld [vmem:[#allocation2 + $0x2bc] sm:$0xff]
          %v4772 = vld [vmem:[#allocation2 + $0x2c4] sm:$0xff]
          %v4773 = vld [vmem:[#allocation2 + $0x2cc] sm:$0xff]
          %v4774 = vld [vmem:[#allocation2 + $0x2d4] sm:$0xff]
          %v4775 = vld [vmem:[#allocation2 + $0x2dc] sm:$0xff]
          %v4776 = vld [vmem:[#allocation2 + $0x2e4] sm:$0xff]
          %v4777 = vld [vmem:[#allocation2 + $0x2ec] sm:$0xff]
          %v4778 = vld [vmem:[#allocation2 + $0x2f4] sm:$0xff]
          %v4779 = vld [vmem:[#allocation2 + $0x2fc] sm:$0xff]
          %v4780 = vld [vmem:[#allocation2 + $0x304] sm:$0xff]
          %v4781 = vld [vmem:[#allocation2 + $0x30c] sm:$0xff]
          %v4782 = vld [vmem:[#allocation2 + $0x314] sm:$0xff]
          %v4783 = vld [vmem:[#allocation2 + $0x31c] sm:$0xf]
          %v4784 = vld [vmem:[#allocation2 + $0x320] sm:$0xff]
          %v4785 = vld [vmem:[#allocation2 + $0x328] sm:$0xff]
          %v4786 = vld [vmem:[#allocation2 + $0x330] sm:$0xff]
          %v4787 = vld [vmem:[#allocation2 + $0x338] sm:$0xff]
          %v4788 = vld [vmem:[#allocation2 + $0x340] sm:$0xff]
          %v4789 = vld [vmem:[#allocation2 + $0x348] sm:$0xff]
          %v4790 = vld [vmem:[#allocation2 + $0x350] sm:$0xff]
          %v4791 = vld [vmem:[#allocation2 + $0x358] sm:$0xff]
          %v4792 = vld [vmem:[#allocation2 + $0x360] sm:$0xff]
          %v4793 = vld [vmem:[#allocation2 + $0x368] sm:$0xff]
          %v4794 = vld [vmem:[#allocation2 + $0x370] sm:$0xff]
          %v4795 = vld [vmem:[#allocation2 + $0x378] sm:$0xff]
          %v4796 = vld [vmem:[#allocation2 + $0x380] sm:$0xf]
          %v4797 = vld [vmem:[#allocation2 + $0x384] sm:$0xff]
          %v4798 = vld [vmem:[#allocation2 + $0x38c] sm:$0xff]
          %v4799 = vld [vmem:[#allocation2 + $0x394] sm:$0xff]
          %v4800 = vld [vmem:[#allocation2 + $0x39c] sm:$0xff]
          %v4801 = vld [vmem:[#allocation2 + $0x3a4] sm:$0xff]
          %v4802 = vld [vmem:[#allocation2 + $0x3ac] sm:$0xff]
          %v4803 = vld [vmem:[#allocation2 + $0x3b4] sm:$0xff]
          %v4804 = vld [vmem:[#allocation2 + $0x3bc] sm:$0xff]
          %v4805 = vld [vmem:[#allocation2 + $0x3c4] sm:$0xff]
          %v4806 = vld [vmem:[#allocation2 + $0x3cc] sm:$0xff]
          %v4807 = vld [vmem:[#allocation2 + $0x3d4] sm:$0xff]
          %v4808 = vld [vmem:[#allocation2 + $0x3dc] sm:$0xff]
          %v4809 = vld [vmem:[#allocation2 + $0x3e4] sm:$0xf]
          %v4810 = vld [vmem:[#allocation2 + $0x3e8] sm:$0xff]
          %v4811 = vld [vmem:[#allocation2 + $0x3f0] sm:$0xff]
          %v4812 = vld [vmem:[#allocation2 + $0x3f8] sm:$0xff]
          %v4813 = vld [vmem:[#allocation2 + $0x400] sm:$0xff]
          %v4814 = vld [vmem:[#allocation2 + $0x408] sm:$0xff]
          %v4815 = vld [vmem:[#allocation2 + $0x410] sm:$0xff]
          %v4816 = vld [vmem:[#allocation2 + $0x418] sm:$0xff]
          %v4817 = vld [vmem:[#allocation2 + $0x420] sm:$0xff]
          %v4818 = vld [vmem:[#allocation2 + $0x428] sm:$0xff]
          %v4819 = vld [vmem:[#allocation2 + $0x430] sm:$0xff]
          %v4820 = vld [vmem:[#allocation2 + $0x438] sm:$0xff]
          %v4821 = vld [vmem:[#allocation2 + $0x440] sm:$0xff]
          %v4822 = vld [vmem:[#allocation2 + $0x448] sm:$0xf]
          %v4823 = vld [vmem:[#allocation2 + $0x44c] sm:$0xff]
          %v4824 = vld [vmem:[#allocation2 + $0x454] sm:$0xff]
          %v4825 = vld [vmem:[#allocation2 + $0x45c] sm:$0xff]
          %v4826 = vld [vmem:[#allocation2 + $0x464] sm:$0xff]
          %v4827 = vld [vmem:[#allocation2 + $0x46c] sm:$0xff]
          %v4828 = vld [vmem:[#allocation2 + $0x474] sm:$0xff]
          %v4829 = vld [vmem:[#allocation2 + $0x47c] sm:$0xff]
          %v4830 = vld [vmem:[#allocation2 + $0x484] sm:$0xff]
          %v4831 = vld [vmem:[#allocation2 + $0x48c] sm:$0xff]
          %v4832 = vld [vmem:[#allocation2 + $0x494] sm:$0xff]
          %v4833 = vld [vmem:[#allocation2 + $0x49c] sm:$0xff]
          %v4834 = vld [vmem:[#allocation2 + $0x4a4] sm:$0xff]
          %v4835 = vld [vmem:[#allocation2 + $0x4ac] sm:$0xf]
          %v4836 = vld [vmem:[#allocation2 + $0x4b0] sm:$0xff]
          %v4837 = vld [vmem:[#allocation2 + $0x4b8] sm:$0xff]
          %v4838 = vld [vmem:[#allocation2 + $0x4c0] sm:$0xff]
          %v4839 = vld [vmem:[#allocation2 + $0x4c8] sm:$0xff]
          %v4840 = vld [vmem:[#allocation2 + $0x4d0] sm:$0xff]
          %v4841 = vld [vmem:[#allocation2 + $0x4d8] sm:$0xff]
          %v4842 = vld [vmem:[#allocation2 + $0x4e0] sm:$0xff]
          %v4843 = vld [vmem:[#allocation2 + $0x4e8] sm:$0xff]
          %v4844 = vld [vmem:[#allocation2 + $0x4f0] sm:$0xff]
          %v4845 = vld [vmem:[#allocation2 + $0x4f8] sm:$0xff]
          %v4846 = vld [vmem:[#allocation2 + $0x500] sm:$0xff]
          %v4847 = vld [vmem:[#allocation2 + $0x508] sm:$0xff]
          %v4848 = vld [vmem:[#allocation2 + $0x510] sm:$0xf]
          %v4849 = vld [vmem:[#allocation2 + $0x514] sm:$0xff]
          %v4850 = vld [vmem:[#allocation2 + $0x51c] sm:$0xff]
          %v4851 = vld [vmem:[#allocation2 + $0x524] sm:$0xff]
          %v4852 = vld [vmem:[#allocation2 + $0x52c] sm:$0xff]
          %v4853 = vld [vmem:[#allocation2 + $0x534] sm:$0xff]
          %v4854 = vld [vmem:[#allocation2 + $0x53c] sm:$0xff]
          %v4855 = vld [vmem:[#allocation2 + $0x544] sm:$0xff]
          %v4856 = vld [vmem:[#allocation2 + $0x54c] sm:$0xff]
          %v4857 = vld [vmem:[#allocation2 + $0x554] sm:$0xff]
          %v4858 = vld [vmem:[#allocation2 + $0x55c] sm:$0xff]
          %v4859 = vld [vmem:[#allocation2 + $0x564] sm:$0xff]
          %v4860 = vld [vmem:[#allocation2 + $0x56c] sm:$0xff]
          %v4861 = vld [vmem:[#allocation2 + $0x574] sm:$0xf]
          %v4862 = vld [vmem:[#allocation2 + $0x578] sm:$0xff]
          %v4863 = vld [vmem:[#allocation2 + $0x580] sm:$0xff]
          %v4864 = vld [vmem:[#allocation2 + $0x588] sm:$0xff]
          %v4865 = vld [vmem:[#allocation2 + $0x590] sm:$0xff]
          %v4866 = vld [vmem:[#allocation2 + $0x598] sm:$0xff]
          %v4867 = vld [vmem:[#allocation2 + $0x5a0] sm:$0xff]
          %v4868 = vld [vmem:[#allocation2 + $0x5a8] sm:$0xff]
          %v4869 = vld [vmem:[#allocation2 + $0x5b0] sm:$0xff]
          %v4870 = vld [vmem:[#allocation2 + $0x5b8] sm:$0xff]
          %v4871 = vld [vmem:[#allocation2 + $0x5c0] sm:$0xff]
          %v4872 = vld [vmem:[#allocation2 + $0x5c8] sm:$0xff]
          %v4873 = vld [vmem:[#allocation2 + $0x5d0] sm:$0xff]
          %v4874 = vld [vmem:[#allocation2 + $0x5d8] sm:$0xf]
          %v4875 = vld [vmem:[#allocation2 + $0x5dc] sm:$0xff]
          %v4876 = vld [vmem:[#allocation2 + $0x5e4] sm:$0xff]
          %v4877 = vld [vmem:[#allocation2 + $0x5ec] sm:$0xff]
          %v4878 = vld [vmem:[#allocation2 + $0x5f4] sm:$0xff]
          %v4879 = vld [vmem:[#allocation2 + $0x5fc] sm:$0xff]
          %v4880 = vld [vmem:[#allocation2 + $0x604] sm:$0xff]
          %v4881 = vld [vmem:[#allocation2 + $0x60c] sm:$0xff]
          %v4882 = vld [vmem:[#allocation2 + $0x614] sm:$0xff]
          %v4883 = vld [vmem:[#allocation2 + $0x61c] sm:$0xff]
          %v4884 = vld [vmem:[#allocation2 + $0x624] sm:$0xff]
          %v4885 = vld [vmem:[#allocation2 + $0x62c] sm:$0xff]
          %v4886 = vld [vmem:[#allocation2 + $0x634] sm:$0xff]
          %v4887 = vld [vmem:[#allocation2 + $0x63c] sm:$0xf]
          %v4888 = vld [vmem:[#allocation2 + $0x640] sm:$0xff]
          %v4889 = vld [vmem:[#allocation2 + $0x648] sm:$0xff]
          %v4890 = vld [vmem:[#allocation2 + $0x650] sm:$0xff]
          %v4891 = vld [vmem:[#allocation2 + $0x658] sm:$0xff]
          %v4892 = vld [vmem:[#allocation2 + $0x660] sm:$0xff]
          %v4893 = vld [vmem:[#allocation2 + $0x668] sm:$0xff]
          %v4894 = vld [vmem:[#allocation2 + $0x670] sm:$0xff]
          %v4895 = vld [vmem:[#allocation2 + $0x678] sm:$0xff]
          %v4896 = vld [vmem:[#allocation2 + $0x680] sm:$0xff]
          %v4897 = vld [vmem:[#allocation2 + $0x688] sm:$0xff]
          %v4898 = vld [vmem:[#allocation2 + $0x690] sm:$0xff]
          %v4899 = vld [vmem:[#allocation2 + $0x698] sm:$0xff]
          %v4900 = vld [vmem:[#allocation2 + $0x6a0] sm:$0xf]
          %v4901 = vld [vmem:[#allocation2 + $0x6a4] sm:$0xff]
          %v4902 = vld [vmem:[#allocation2 + $0x6ac] sm:$0xff]
          %v4903 = vld [vmem:[#allocation2 + $0x6b4] sm:$0xff]
          %v4904 = vld [vmem:[#allocation2 + $0x6bc] sm:$0xff]
          %v4905 = vld [vmem:[#allocation2 + $0x6c4] sm:$0xff]
          %v4906 = vld [vmem:[#allocation2 + $0x6cc] sm:$0xff]
          %v4907 = vld [vmem:[#allocation2 + $0x6d4] sm:$0xff]
          %v4908 = vld [vmem:[#allocation2 + $0x6dc] sm:$0xff]
          %v4909 = vld [vmem:[#allocation2 + $0x6e4] sm:$0xff]
          %v4910 = vld [vmem:[#allocation2 + $0x6ec] sm:$0xff]
          %v4911 = vld [vmem:[#allocation2 + $0x6f4] sm:$0xff]
          %v4912 = vld [vmem:[#allocation2 + $0x6fc] sm:$0xff]
          %v4913 = vld [vmem:[#allocation2 + $0x704] sm:$0xf]
          %v4914 = vld [vmem:[#allocation2 + $0x708] sm:$0xff]
          %v4915 = vld [vmem:[#allocation2 + $0x710] sm:$0xff]
          %v4916 = vld [vmem:[#allocation2 + $0x718] sm:$0xff]
          %v4917 = vld [vmem:[#allocation2 + $0x720] sm:$0xff]
          %v4918 = vld [vmem:[#allocation2 + $0x728] sm:$0xff]
          %v4919 = vld [vmem:[#allocation2 + $0x730] sm:$0xff]
          %v4920 = vld [vmem:[#allocation2 + $0x738] sm:$0xff]
          %v4921 = vld [vmem:[#allocation2 + $0x740] sm:$0xff]
          %v4922 = vld [vmem:[#allocation2 + $0x748] sm:$0xff]
          %v4923 = vld [vmem:[#allocation2 + $0x750] sm:$0xff]
          %v4924 = vld [vmem:[#allocation2 + $0x758] sm:$0xff]
          %v4925 = vld [vmem:[#allocation2 + $0x760] sm:$0xff]
          %v4926 = vld [vmem:[#allocation2 + $0x768] sm:$0xf]
          %v4927 = vld [vmem:[#allocation2 + $0x76c] sm:$0xff]
          %v4928 = vld [vmem:[#allocation2 + $0x774] sm:$0xff]
          %v4929 = vld [vmem:[#allocation2 + $0x77c] sm:$0xff]
          %v4930 = vld [vmem:[#allocation2 + $0x784] sm:$0xff]
          %v4931 = vld [vmem:[#allocation2 + $0x78c] sm:$0xff]
          %v4932 = vld [vmem:[#allocation2 + $0x794] sm:$0xff]
          %v4933 = vld [vmem:[#allocation2 + $0x79c] sm:$0xff]
          %v4934 = vld [vmem:[#allocation2 + $0x7a4] sm:$0xff]
          %v4935 = vld [vmem:[#allocation2 + $0x7ac] sm:$0xff]
          %v4936 = vld [vmem:[#allocation2 + $0x7b4] sm:$0xff]
          %v4937 = vld [vmem:[#allocation2 + $0x7bc] sm:$0xff]
          %v4938 = vld [vmem:[#allocation2 + $0x7c4] sm:$0xff]
          %v4939 = vld [vmem:[#allocation2 + $0x7cc] sm:$0xf]
          %v4940 = vld [vmem:[#allocation2 + $0x7d0] sm:$0xff]
          %v4941 = vld [vmem:[#allocation2 + $0x7d8] sm:$0xff]
          %v4942 = vld [vmem:[#allocation2 + $0x7e0] sm:$0xff]
          %v4943 = vld [vmem:[#allocation2 + $0x7e8] sm:$0xff]
          %v4944 = vld [vmem:[#allocation2 + $0x7f0] sm:$0xff]
          %v4945 = vld [vmem:[#allocation2 + $0x7f8] sm:$0xff]
          %v4946 = vld [vmem:[#allocation2 + $0x800] sm:$0xff]
          %v4947 = vld [vmem:[#allocation2 + $0x808] sm:$0xff]
          %v4948 = vld [vmem:[#allocation2 + $0x810] sm:$0xff]
          %v4949 = vld [vmem:[#allocation2 + $0x818] sm:$0xff]
          %v4950 = vld [vmem:[#allocation2 + $0x820] sm:$0xff]
          %v4951 = vld [vmem:[#allocation2 + $0x828] sm:$0xff]
          %v4952 = vld [vmem:[#allocation2 + $0x830] sm:$0xf]
          %v4953 = vld [vmem:[#allocation2 + $0x834] sm:$0xff]
          %v4954 = vld [vmem:[#allocation2 + $0x83c] sm:$0xff]
          %v4955 = vld [vmem:[#allocation2 + $0x844] sm:$0xff]
          %v4956 = vld [vmem:[#allocation2 + $0x84c] sm:$0xff]
          %v4957 = vld [vmem:[#allocation2 + $0x854] sm:$0xff]
          %v4958 = vld [vmem:[#allocation2 + $0x85c] sm:$0xff]
          %v4959 = vld [vmem:[#allocation2 + $0x864] sm:$0xff]
          %v4960 = vld [vmem:[#allocation2 + $0x86c] sm:$0xff]
          %v4961 = vld [vmem:[#allocation2 + $0x874] sm:$0xff]
          %v4962 = vld [vmem:[#allocation2 + $0x87c] sm:$0xff]
          %v4963 = vld [vmem:[#allocation2 + $0x884] sm:$0xff]
          %v4964 = vld [vmem:[#allocation2 + $0x88c] sm:$0xff]
          %v4965 = vld [vmem:[#allocation2 + $0x894] sm:$0xf]
          %v4966 = vld [vmem:[#allocation2 + $0x898] sm:$0xff]
          %v4967 = vld [vmem:[#allocation2 + $0x8a0] sm:$0xff]
          %v4968 = vld [vmem:[#allocation2 + $0x8a8] sm:$0xff]
          %v4969 = vld [vmem:[#allocation2 + $0x8b0] sm:$0xff]
          %v4970 = vld [vmem:[#allocation2 + $0x8b8] sm:$0xff]
          %v4971 = vld [vmem:[#allocation2 + $0x8c0] sm:$0xff]
          %v4972 = vld [vmem:[#allocation2 + $0x8c8] sm:$0xff]
          %v4973 = vld [vmem:[#allocation2 + $0x8d0] sm:$0xff]
          %v4974 = vld [vmem:[#allocation2 + $0x8d8] sm:$0xff]
          %v4975 = vld [vmem:[#allocation2 + $0x8e0] sm:$0xff]
          %v4976 = vld [vmem:[#allocation2 + $0x8e8] sm:$0xff]
          %v4977 = vld [vmem:[#allocation2 + $0x8f0] sm:$0xff]
          %v4978 = vld [vmem:[#allocation2 + $0x8f8] sm:$0xf]
          %v4979 = vld [vmem:[#allocation2 + $0x8fc] sm:$0xff]
          %v4980 = vld [vmem:[#allocation2 + $0x904] sm:$0xff]
          %v4981 = vld [vmem:[#allocation2 + $0x90c] sm:$0xff]
          %v4982 = vld [vmem:[#allocation2 + $0x914] sm:$0xff]
          %v4983 = vld [vmem:[#allocation2 + $0x91c] sm:$0xff]
          %v4984 = vld [vmem:[#allocation2 + $0x924] sm:$0xff]
          %v4985 = vld [vmem:[#allocation2 + $0x92c] sm:$0xff]
          %v4986 = vld [vmem:[#allocation2 + $0x934] sm:$0xff]
          %v4987 = vld [vmem:[#allocation2 + $0x93c] sm:$0xff]
          %v4988 = vld [vmem:[#allocation2 + $0x944] sm:$0xff]
          %v4989 = vld [vmem:[#allocation2 + $0x94c] sm:$0xff]
          %v4990 = vld [vmem:[#allocation2 + $0x954] sm:$0xff]
          %v4991 = vld [vmem:[#allocation2 + $0x95c] sm:$0xf]
          %v4992 = vld [vmem:[#allocation2 + $0x960] sm:$0xff]
          %v4993 = vld [vmem:[#allocation2 + $0x968] sm:$0xff]
          %v4994 = vld [vmem:[#allocation2 + $0x970] sm:$0xff]
          %v4995 = vld [vmem:[#allocation2 + $0x978] sm:$0xff]
          %v4996 = vld [vmem:[#allocation2 + $0x980] sm:$0xff]
          %v4997 = vld [vmem:[#allocation2 + $0x988] sm:$0xff]
          %v4998 = vld [vmem:[#allocation2 + $0x990] sm:$0xff]
          %v4999 = vld [vmem:[#allocation2 + $0x998] sm:$0xff]
          %v5000 = vld [vmem:[#allocation2 + $0x9a0] sm:$0xff]
          %v5001 = vld [vmem:[#allocation2 + $0x9a8] sm:$0xff]
          %v5002 = vld [vmem:[#allocation2 + $0x9b0] sm:$0xff]
          %v5003 = vld [vmem:[#allocation2 + $0x9b8] sm:$0xff]
          %v5004 = vld [vmem:[#allocation2 + $0x9c0] sm:$0xf]
          %v5005 = vld [vmem:[#allocation2 + $0x9c4] sm:$0xff]
          %v5006 = vld [vmem:[#allocation2 + $0x9cc] sm:$0xff]
          %v5007 = vld [vmem:[#allocation2 + $0x9d4] sm:$0xff]
          %v5008 = vld [vmem:[#allocation2 + $0x9dc] sm:$0xff]
          %v5009 = vld [vmem:[#allocation2 + $0x9e4] sm:$0xff]
          %v5010 = vld [vmem:[#allocation2 + $0x9ec] sm:$0xff]
          %v5011 = vld [vmem:[#allocation2 + $0x9f4] sm:$0xff]
          %v5012 = vld [vmem:[#allocation2 + $0x9fc] sm:$0xff]
          %v5013 = vld [vmem:[#allocation2 + $0xa04] sm:$0xff]
          %v5014 = vld [vmem:[#allocation2 + $0xa0c] sm:$0xff]
          %v5015 = vld [vmem:[#allocation2 + $0xa14] sm:$0xff]
          %v5016 = vld [vmem:[#allocation2 + $0xa1c] sm:$0xff]
          %v5017 = vld [vmem:[#allocation2 + $0xa24] sm:$0xf]
          %v5018 = vld [vmem:[#allocation2 + $0xa28] sm:$0xff]
          %v5019 = vld [vmem:[#allocation2 + $0xa30] sm:$0xff]
          %v5020 = vld [vmem:[#allocation2 + $0xa38] sm:$0xff]
          %v5021 = vld [vmem:[#allocation2 + $0xa40] sm:$0xff]
          %v5022 = vld [vmem:[#allocation2 + $0xa48] sm:$0xff]
          %v5023 = vld [vmem:[#allocation2 + $0xa50] sm:$0xff]
          %v5024 = vld [vmem:[#allocation2 + $0xa58] sm:$0xff]
          %v5025 = vld [vmem:[#allocation2 + $0xa60] sm:$0xff]
          %v5026 = vld [vmem:[#allocation2 + $0xa68] sm:$0xff]
          %v5027 = vld [vmem:[#allocation2 + $0xa70] sm:$0xff]
          %v5028 = vld [vmem:[#allocation2 + $0xa78] sm:$0xff]
          %v5029 = vld [vmem:[#allocation2 + $0xa80] sm:$0xff]
          %v5030 = vld [vmem:[#allocation2 + $0xa88] sm:$0xf]
          %v5031 = vld [vmem:[#allocation2 + $0xa8c] sm:$0xff]
          %v5032 = vld [vmem:[#allocation2 + $0xa94] sm:$0xff]
          %v5033 = vld [vmem:[#allocation2 + $0xa9c] sm:$0xff]
          %v5034 = vld [vmem:[#allocation2 + $0xaa4] sm:$0xff]
          %v5035 = vld [vmem:[#allocation2 + $0xaac] sm:$0xff]
          %v5036 = vld [vmem:[#allocation2 + $0xab4] sm:$0xff]
          %v5037 = vld [vmem:[#allocation2 + $0xabc] sm:$0xff]
          %v5038 = vld [vmem:[#allocation2 + $0xac4] sm:$0xff]
          %v5039 = vld [vmem:[#allocation2 + $0xacc] sm:$0xff]
          %v5040 = vld [vmem:[#allocation2 + $0xad4] sm:$0xff]
          %v5041 = vld [vmem:[#allocation2 + $0xadc] sm:$0xff]
          %v5042 = vld [vmem:[#allocation2 + $0xae4] sm:$0xff]
          %v5043 = vld [vmem:[#allocation2 + $0xaec] sm:$0xf]
          %v5056 = vunpack.c.l.b16 %v268
          %v5057 = vunpack.c.h.b16 %v268
          %v5058 = vunpack.c.l.b16 %v269
          %v5059 = vunpack.c.h.b16 %v269
          %v5060 = vunpack.c.l.b16 %v270
          %v5061 = vunpack.c.h.b16 %v270
          %v5062 = vunpack.c.l.b16 %v271
          %v5063 = vunpack.c.h.b16 %v271
          %v5064 = vunpack.c.l.b16 %v272
          %v5065 = vunpack.c.h.b16 %v272
          %v5066 = vunpack.c.l.b16 %v273
          %v5067 = vunpack.c.h.b16 %v273
          %v5068 = vunpack.c.l.b16 %v274
          %v5069 = vunpack.c.h.b16 %v274
          %v5070 = vunpack.c.l.b16 %v275
          %v5071 = vunpack.c.h.b16 %v275
          %v5072 = vunpack.c.l.b16 %v276
          %v5073 = vunpack.c.h.b16 %v276
          %v5074 = vunpack.c.l.b16 %v277
          %v5075 = vunpack.c.h.b16 %v277
          %v5076 = vunpack.c.l.b16 %v278
          %v5077 = vunpack.c.h.b16 %v278
          %v5078 = vunpack.c.l.b16 %v279
          %v5079 = vunpack.c.h.b16 %v279
          %v5080 = vpack.c.b16 %v5058, %v5056
          %v5081 = vpack.c.b16 %v5059, %v5057
          %v5082 = vpack.c.b16 %v5062, %v5060
          %v5083 = vpack.c.b16 %v5063, %v5061
          %v5084 = vpack.c.b16 %v5066, %v5064
          %v5085 = vpack.c.b16 %v5067, %v5065
          %v5086 = vpack.c.b16 %v5070, %v5068
          %v5087 = vpack.c.b16 %v5071, %v5069
          %v5088 = vpack.c.b16 %v5074, %v5072
          %v5089 = vpack.c.b16 %v5075, %v5073
          %v5090 = vpack.c.b16 %v5078, %v5076
          %v5091 = vpack.c.b16 %v5079, %v5077
          %v5462 = vunpack.c.l.b16 %v4680
          %v5463 = vunpack.c.h.b16 %v4680
          %v5464 = vunpack.c.l.b16 %v4681
          %v5465 = vunpack.c.h.b16 %v4681
          %v5466 = vunpack.c.l.b16 %v4682
          %v5467 = vunpack.c.h.b16 %v4682
          %v5468 = vunpack.c.l.b16 %v4683
          %v5469 = vunpack.c.h.b16 %v4683
          %v5470 = vunpack.c.l.b16 %v4684
          %v5471 = vunpack.c.h.b16 %v4684
          %v5472 = vunpack.c.l.b16 %v4685
          %v5473 = vunpack.c.h.b16 %v4685
          %v5474 = vunpack.c.l.b16 %v4686
          %v5475 = vunpack.c.h.b16 %v4686
          %v5476 = vunpack.c.l.b16 %v4687
          %v5477 = vunpack.c.h.b16 %v4687
          %v5478 = vunpack.c.l.b16 %v4688
          %v5479 = vunpack.c.h.b16 %v4688
          %v5480 = vunpack.c.l.b16 %v4689
          %v5481 = vunpack.c.h.b16 %v4689
          %v5482 = vunpack.c.l.b16 %v4690
          %v5483 = vunpack.c.h.b16 %v4690
          %v5484 = vunpack.c.l.b16 %v4691
          %v5485 = vunpack.c.h.b16 %v4691
          %v5486 = vunpack.c.l.b16 %v4692
          %v5487 = vunpack.c.l.b16 %v4693
          %v5488 = vunpack.c.h.b16 %v4693
          %v5489 = vunpack.c.l.b16 %v4694
          %v5490 = vunpack.c.h.b16 %v4694
          %v5491 = vunpack.c.l.b16 %v4695
          %v5492 = vunpack.c.h.b16 %v4695
          %v5493 = vunpack.c.l.b16 %v4696
          %v5494 = vunpack.c.h.b16 %v4696
          %v5495 = vunpack.c.l.b16 %v4697
          %v5496 = vunpack.c.h.b16 %v4697
          %v5497 = vunpack.c.l.b16 %v4698
          %v5498 = vunpack.c.h.b16 %v4698
          %v5499 = vunpack.c.l.b16 %v4699
          %v5500 = vunpack.c.h.b16 %v4699
          %v5501 = vunpack.c.l.b16 %v4700
          %v5502 = vunpack.c.h.b16 %v4700
          %v5503 = vunpack.c.l.b16 %v4701
          %v5504 = vunpack.c.h.b16 %v4701
          %v5505 = vunpack.c.l.b16 %v4702
          %v5506 = vunpack.c.h.b16 %v4702
          %v5507 = vunpack.c.l.b16 %v4703
          %v5508 = vunpack.c.h.b16 %v4703
          %v5509 = vunpack.c.l.b16 %v4704
          %v5510 = vunpack.c.h.b16 %v4704
          %v5511 = vunpack.c.l.b16 %v4705
          %v5512 = vunpack.c.l.b16 %v4706
          %v5513 = vunpack.c.h.b16 %v4706
          %v5514 = vunpack.c.l.b16 %v4707
          %v5515 = vunpack.c.h.b16 %v4707
          %v5516 = vunpack.c.l.b16 %v4708
          %v5517 = vunpack.c.h.b16 %v4708
          %v5518 = vunpack.c.l.b16 %v4709
          %v5519 = vunpack.c.h.b16 %v4709
          %v5520 = vunpack.c.l.b16 %v4710
          %v5521 = vunpack.c.h.b16 %v4710
          %v5522 = vunpack.c.l.b16 %v4711
          %v5523 = vunpack.c.h.b16 %v4711
          %v5524 = vunpack.c.l.b16 %v4712
          %v5525 = vunpack.c.h.b16 %v4712
          %v5526 = vunpack.c.l.b16 %v4713
          %v5527 = vunpack.c.h.b16 %v4713
          %v5528 = vunpack.c.l.b16 %v4714
          %v5529 = vunpack.c.h.b16 %v4714
          %v5530 = vunpack.c.l.b16 %v4715
          %v5531 = vunpack.c.h.b16 %v4715
          %v5532 = vunpack.c.l.b16 %v4716
          %v5533 = vunpack.c.h.b16 %v4716
          %v5534 = vunpack.c.l.b16 %v4717
          %v5535 = vunpack.c.h.b16 %v4717
          %v5536 = vunpack.c.l.b16 %v4718
          %v5537 = vunpack.c.l.b16 %v4719
          %v5538 = vunpack.c.h.b16 %v4719
          %v5539 = vunpack.c.l.b16 %v4720
          %v5540 = vunpack.c.h.b16 %v4720
          %v5541 = vunpack.c.l.b16 %v4721
          %v5542 = vunpack.c.h.b16 %v4721
          %v5543 = vunpack.c.l.b16 %v4722
          %v5544 = vunpack.c.h.b16 %v4722
          %v5545 = vunpack.c.l.b16 %v4723
          %v5546 = vunpack.c.h.b16 %v4723
          %v5547 = vunpack.c.l.b16 %v4724
          %v5548 = vunpack.c.h.b16 %v4724
          %v5549 = vunpack.c.l.b16 %v4725
          %v5550 = vunpack.c.h.b16 %v4725
          %v5551 = vunpack.c.l.b16 %v4726
          %v5552 = vunpack.c.h.b16 %v4726
          %v5553 = vunpack.c.l.b16 %v4727
          %v5554 = vunpack.c.h.b16 %v4727
          %v5555 = vunpack.c.l.b16 %v4728
          %v5556 = vunpack.c.h.b16 %v4728
          %v5557 = vunpack.c.l.b16 %v4729
          %v5558 = vunpack.c.h.b16 %v4729
          %v5559 = vunpack.c.l.b16 %v4730
          %v5560 = vunpack.c.h.b16 %v4730
          %v5561 = vunpack.c.l.b16 %v4731
          %v5562 = vunpack.c.l.b16 %v4732
          %v5563 = vunpack.c.h.b16 %v4732
          %v5564 = vunpack.c.l.b16 %v4733
          %v5565 = vunpack.c.h.b16 %v4733
          %v5566 = vunpack.c.l.b16 %v4734
          %v5567 = vunpack.c.h.b16 %v4734
          %v5568 = vunpack.c.l.b16 %v4735
          %v5569 = vunpack.c.h.b16 %v4735
          %v5570 = vunpack.c.l.b16 %v4736
          %v5571 = vunpack.c.h.b16 %v4736
          %v5572 = vunpack.c.l.b16 %v4737
          %v5573 = vunpack.c.h.b16 %v4737
          %v5574 = vunpack.c.l.b16 %v4738
          %v5575 = vunpack.c.h.b16 %v4738
          %v5576 = vunpack.c.l.b16 %v4739
          %v5577 = vunpack.c.h.b16 %v4739
          %v5578 = vunpack.c.l.b16 %v4740
          %v5579 = vunpack.c.h.b16 %v4740
          %v5580 = vunpack.c.l.b16 %v4741
          %v5581 = vunpack.c.h.b16 %v4741
          %v5582 = vunpack.c.l.b16 %v4742
          %v5583 = vunpack.c.h.b16 %v4742
          %v5584 = vunpack.c.l.b16 %v4743
          %v5585 = vunpack.c.h.b16 %v4743
          %v5586 = vunpack.c.l.b16 %v4744
          %v5587 = vunpack.c.l.b16 %v4745
          %v5588 = vunpack.c.h.b16 %v4745
          %v5589 = vunpack.c.l.b16 %v4746
          %v5590 = vunpack.c.h.b16 %v4746
          %v5591 = vunpack.c.l.b16 %v4747
          %v5592 = vunpack.c.h.b16 %v4747
          %v5593 = vunpack.c.l.b16 %v4748
          %v5594 = vunpack.c.h.b16 %v4748
          %v5595 = vunpack.c.l.b16 %v4749
          %v5596 = vunpack.c.h.b16 %v4749
          %v5597 = vunpack.c.l.b16 %v4750
          %v5598 = vunpack.c.h.b16 %v4750
          %v5599 = vunpack.c.l.b16 %v4751
          %v5600 = vunpack.c.h.b16 %v4751
          %v5601 = vunpack.c.l.b16 %v4752
          %v5602 = vunpack.c.h.b16 %v4752
          %v5603 = vunpack.c.l.b16 %v4753
          %v5604 = vunpack.c.h.b16 %v4753
          %v5605 = vunpack.c.l.b16 %v4754
          %v5606 = vunpack.c.h.b16 %v4754
          %v5607 = vunpack.c.l.b16 %v4755
          %v5608 = vunpack.c.h.b16 %v4755
          %v5609 = vunpack.c.l.b16 %v4756
          %v5610 = vunpack.c.h.b16 %v4756
          %v5611 = vunpack.c.l.b16 %v4757
          %v5612 = vunpack.c.l.b16 %v4758
          %v5613 = vunpack.c.h.b16 %v4758
          %v5614 = vunpack.c.l.b16 %v4759
          %v5615 = vunpack.c.h.b16 %v4759
          %v5616 = vunpack.c.l.b16 %v4760
          %v5617 = vunpack.c.h.b16 %v4760
          %v5618 = vunpack.c.l.b16 %v4761
          %v5619 = vunpack.c.h.b16 %v4761
          %v5620 = vunpack.c.l.b16 %v4762
          %v5621 = vunpack.c.h.b16 %v4762
          %v5622 = vunpack.c.l.b16 %v4763
          %v5623 = vunpack.c.h.b16 %v4763
          %v5624 = vunpack.c.l.b16 %v4764
          %v5625 = vunpack.c.h.b16 %v4764
          %v5626 = vunpack.c.l.b16 %v4765
          %v5627 = vunpack.c.h.b16 %v4765
          %v5628 = vunpack.c.l.b16 %v4766
          %v5629 = vunpack.c.h.b16 %v4766
          %v5630 = vunpack.c.l.b16 %v4767
          %v5631 = vunpack.c.h.b16 %v4767
          %v5632 = vunpack.c.l.b16 %v4768
          %v5633 = vunpack.c.h.b16 %v4768
          %v5634 = vunpack.c.l.b16 %v4769
          %v5635 = vunpack.c.h.b16 %v4769
          %v5636 = vunpack.c.l.b16 %v4770
          %v5637 = vunpack.c.l.b16 %v4771
          %v5638 = vunpack.c.h.b16 %v4771
          %v5639 = vunpack.c.l.b16 %v4772
          %v5640 = vunpack.c.h.b16 %v4772
          %v5641 = vunpack.c.l.b16 %v4773
          %v5642 = vunpack.c.h.b16 %v4773
          %v5643 = vunpack.c.l.b16 %v4774
          %v5644 = vunpack.c.h.b16 %v4774
          %v5645 = vunpack.c.l.b16 %v4775
          %v5646 = vunpack.c.h.b16 %v4775
          %v5647 = vunpack.c.l.b16 %v4776
          %v5648 = vunpack.c.h.b16 %v4776
          %v5649 = vunpack.c.l.b16 %v4777
          %v5650 = vunpack.c.h.b16 %v4777
          %v5651 = vunpack.c.l.b16 %v4778
          %v5652 = vunpack.c.h.b16 %v4778
          %v5653 = vunpack.c.l.b16 %v4779
          %v5654 = vunpack.c.h.b16 %v4779
          %v5655 = vunpack.c.l.b16 %v4780
          %v5656 = vunpack.c.h.b16 %v4780
          %v5657 = vunpack.c.l.b16 %v4781
          %v5658 = vunpack.c.h.b16 %v4781
          %v5659 = vunpack.c.l.b16 %v4782
          %v5660 = vunpack.c.h.b16 %v4782
          %v5661 = vunpack.c.l.b16 %v4783
          %v5662 = vunpack.c.l.b16 %v4784
          %v5663 = vunpack.c.h.b16 %v4784
          %v5664 = vunpack.c.l.b16 %v4785
          %v5665 = vunpack.c.h.b16 %v4785
          %v5666 = vunpack.c.l.b16 %v4786
          %v5667 = vunpack.c.h.b16 %v4786
          %v5668 = vunpack.c.l.b16 %v4787
          %v5669 = vunpack.c.h.b16 %v4787
          %v5670 = vunpack.c.l.b16 %v4788
          %v5671 = vunpack.c.h.b16 %v4788
          %v5672 = vunpack.c.l.b16 %v4789
          %v5673 = vunpack.c.h.b16 %v4789
          %v5674 = vunpack.c.l.b16 %v4790
          %v5675 = vunpack.c.h.b16 %v4790
          %v5676 = vunpack.c.l.b16 %v4791
          %v5677 = vunpack.c.h.b16 %v4791
          %v5678 = vunpack.c.l.b16 %v4792
          %v5679 = vunpack.c.h.b16 %v4792
          %v5680 = vunpack.c.l.b16 %v4793
          %v5681 = vunpack.c.h.b16 %v4793
          %v5682 = vunpack.c.l.b16 %v4794
          %v5683 = vunpack.c.h.b16 %v4794
          %v5684 = vunpack.c.l.b16 %v4795
          %v5685 = vunpack.c.h.b16 %v4795
          %v5686 = vunpack.c.l.b16 %v4796
          %v5687 = vunpack.c.l.b16 %v4797
          %v5688 = vunpack.c.h.b16 %v4797
          %v5689 = vunpack.c.l.b16 %v4798
          %v5690 = vunpack.c.h.b16 %v4798
          %v5691 = vunpack.c.l.b16 %v4799
          %v5692 = vunpack.c.h.b16 %v4799
          %v5693 = vunpack.c.l.b16 %v4800
          %v5694 = vunpack.c.h.b16 %v4800
          %v5695 = vunpack.c.l.b16 %v4801
          %v5696 = vunpack.c.h.b16 %v4801
          %v5697 = vunpack.c.l.b16 %v4802
          %v5698 = vunpack.c.h.b16 %v4802
          %v5699 = vunpack.c.l.b16 %v4803
          %v5700 = vunpack.c.h.b16 %v4803
          %v5701 = vunpack.c.l.b16 %v4804
          %v5702 = vunpack.c.h.b16 %v4804
          %v5703 = vunpack.c.l.b16 %v4805
          %v5704 = vunpack.c.h.b16 %v4805
          %v5705 = vunpack.c.l.b16 %v4806
          %v5706 = vunpack.c.h.b16 %v4806
          %v5707 = vunpack.c.l.b16 %v4807
          %v5708 = vunpack.c.h.b16 %v4807
          %v5709 = vunpack.c.l.b16 %v4808
          %v5710 = vunpack.c.h.b16 %v4808
          %v5711 = vunpack.c.l.b16 %v4809
          %v5712 = vunpack.c.l.b16 %v4810
          %v5713 = vunpack.c.h.b16 %v4810
          %v5714 = vunpack.c.l.b16 %v4811
          %v5715 = vunpack.c.h.b16 %v4811
          %v5716 = vunpack.c.l.b16 %v4812
          %v5717 = vunpack.c.h.b16 %v4812
          %v5718 = vunpack.c.l.b16 %v4813
          %v5719 = vunpack.c.h.b16 %v4813
          %v5720 = vunpack.c.l.b16 %v4814
          %v5721 = vunpack.c.h.b16 %v4814
          %v5722 = vunpack.c.l.b16 %v4815
          %v5723 = vunpack.c.h.b16 %v4815
          %v5724 = vunpack.c.l.b16 %v4816
          %v5725 = vunpack.c.h.b16 %v4816
          %v5726 = vunpack.c.l.b16 %v4817
          %v5727 = vunpack.c.h.b16 %v4817
          %v5728 = vunpack.c.l.b16 %v4818
          %v5729 = vunpack.c.h.b16 %v4818
          %v5730 = vunpack.c.l.b16 %v4819
          %v5731 = vunpack.c.h.b16 %v4819
          %v5732 = vunpack.c.l.b16 %v4820
          %v5733 = vunpack.c.h.b16 %v4820
          %v5734 = vunpack.c.l.b16 %v4821
          %v5735 = vunpack.c.h.b16 %v4821
          %v5736 = vunpack.c.l.b16 %v4822
          %v5737 = vunpack.c.l.b16 %v4823
          %v5738 = vunpack.c.h.b16 %v4823
          %v5739 = vunpack.c.l.b16 %v4824
          %v5740 = vunpack.c.h.b16 %v4824
          %v5741 = vunpack.c.l.b16 %v4825
          %v5742 = vunpack.c.h.b16 %v4825
          %v5743 = vunpack.c.l.b16 %v4826
          %v5744 = vunpack.c.h.b16 %v4826
          %v5745 = vunpack.c.l.b16 %v4827
          %v5746 = vunpack.c.h.b16 %v4827
          %v5747 = vunpack.c.l.b16 %v4828
          %v5748 = vunpack.c.h.b16 %v4828
          %v5749 = vunpack.c.l.b16 %v4829
          %v5750 = vunpack.c.h.b16 %v4829
          %v5751 = vunpack.c.l.b16 %v4830
          %v5752 = vunpack.c.h.b16 %v4830
          %v5753 = vunpack.c.l.b16 %v4831
          %v5754 = vunpack.c.h.b16 %v4831
          %v5755 = vunpack.c.l.b16 %v4832
          %v5756 = vunpack.c.h.b16 %v4832
          %v5757 = vunpack.c.l.b16 %v4833
          %v5758 = vunpack.c.h.b16 %v4833
          %v5759 = vunpack.c.l.b16 %v4834
          %v5760 = vunpack.c.h.b16 %v4834
          %v5761 = vunpack.c.l.b16 %v4835
          %v5762 = vunpack.c.l.b16 %v4836
          %v5763 = vunpack.c.h.b16 %v4836
          %v5764 = vunpack.c.l.b16 %v4837
          %v5765 = vunpack.c.h.b16 %v4837
          %v5766 = vunpack.c.l.b16 %v4838
          %v5767 = vunpack.c.h.b16 %v4838
          %v5768 = vunpack.c.l.b16 %v4839
          %v5769 = vunpack.c.h.b16 %v4839
          %v5770 = vunpack.c.l.b16 %v4840
          %v5771 = vunpack.c.h.b16 %v4840
          %v5772 = vunpack.c.l.b16 %v4841
          %v5773 = vunpack.c.h.b16 %v4841
          %v5774 = vunpack.c.l.b16 %v4842
          %v5775 = vunpack.c.h.b16 %v4842
          %v5776 = vunpack.c.l.b16 %v4843
          %v5777 = vunpack.c.h.b16 %v4843
          %v5778 = vunpack.c.l.b16 %v4844
          %v5779 = vunpack.c.h.b16 %v4844
          %v5780 = vunpack.c.l.b16 %v4845
          %v5781 = vunpack.c.h.b16 %v4845
          %v5782 = vunpack.c.l.b16 %v4846
          %v5783 = vunpack.c.h.b16 %v4846
          %v5784 = vunpack.c.l.b16 %v4847
          %v5785 = vunpack.c.h.b16 %v4847
          %v5786 = vunpack.c.l.b16 %v4848
          %v5787 = vunpack.c.l.b16 %v4849
          %v5788 = vunpack.c.h.b16 %v4849
          %v5789 = vunpack.c.l.b16 %v4850
          %v5790 = vunpack.c.h.b16 %v4850
          %v5791 = vunpack.c.l.b16 %v4851
          %v5792 = vunpack.c.h.b16 %v4851
          %v5793 = vunpack.c.l.b16 %v4852
          %v5794 = vunpack.c.h.b16 %v4852
          %v5795 = vunpack.c.l.b16 %v4853
          %v5796 = vunpack.c.h.b16 %v4853
          %v5797 = vunpack.c.l.b16 %v4854
          %v5798 = vunpack.c.h.b16 %v4854
          %v5799 = vunpack.c.l.b16 %v4855
          %v5800 = vunpack.c.h.b16 %v4855
          %v5801 = vunpack.c.l.b16 %v4856
          %v5802 = vunpack.c.h.b16 %v4856
          %v5803 = vunpack.c.l.b16 %v4857
          %v5804 = vunpack.c.h.b16 %v4857
          %v5805 = vunpack.c.l.b16 %v4858
          %v5806 = vunpack.c.h.b16 %v4858
          %v5807 = vunpack.c.l.b16 %v4859
          %v5808 = vunpack.c.h.b16 %v4859
          %v5809 = vunpack.c.l.b16 %v4860
          %v5810 = vunpack.c.h.b16 %v4860
          %v5811 = vunpack.c.l.b16 %v4861
          %v5812 = vunpack.c.l.b16 %v4862
          %v5813 = vunpack.c.h.b16 %v4862
          %v5814 = vunpack.c.l.b16 %v4863
          %v5815 = vunpack.c.h.b16 %v4863
          %v5816 = vunpack.c.l.b16 %v4864
          %v5817 = vunpack.c.h.b16 %v4864
          %v5818 = vunpack.c.l.b16 %v4865
          %v5819 = vunpack.c.h.b16 %v4865
          %v5820 = vunpack.c.l.b16 %v4866
          %v5821 = vunpack.c.h.b16 %v4866
          %v5822 = vunpack.c.l.b16 %v4867
          %v5823 = vunpack.c.h.b16 %v4867
          %v5824 = vunpack.c.l.b16 %v4868
          %v5825 = vunpack.c.h.b16 %v4868
          %v5826 = vunpack.c.l.b16 %v4869
          %v5827 = vunpack.c.h.b16 %v4869
          %v5828 = vunpack.c.l.b16 %v4870
          %v5829 = vunpack.c.h.b16 %v4870
          %v5830 = vunpack.c.l.b16 %v4871
          %v5831 = vunpack.c.h.b16 %v4871
          %v5832 = vunpack.c.l.b16 %v4872
          %v5833 = vunpack.c.h.b16 %v4872
          %v5834 = vunpack.c.l.b16 %v4873
          %v5835 = vunpack.c.h.b16 %v4873
          %v5836 = vunpack.c.l.b16 %v4874
          %v5837 = vunpack.c.l.b16 %v4875
          %v5838 = vunpack.c.h.b16 %v4875
          %v5839 = vunpack.c.l.b16 %v4876
          %v5840 = vunpack.c.h.b16 %v4876
          %v5841 = vunpack.c.l.b16 %v4877
          %v5842 = vunpack.c.h.b16 %v4877
          %v5843 = vunpack.c.l.b16 %v4878
          %v5844 = vunpack.c.h.b16 %v4878
          %v5845 = vunpack.c.l.b16 %v4879
          %v5846 = vunpack.c.h.b16 %v4879
          %v5847 = vunpack.c.l.b16 %v4880
          %v5848 = vunpack.c.h.b16 %v4880
          %v5849 = vunpack.c.l.b16 %v4881
          %v5850 = vunpack.c.h.b16 %v4881
          %v5851 = vunpack.c.l.b16 %v4882
          %v5852 = vunpack.c.h.b16 %v4882
          %v5853 = vunpack.c.l.b16 %v4883
          %v5854 = vunpack.c.h.b16 %v4883
          %v5855 = vunpack.c.l.b16 %v4884
          %v5856 = vunpack.c.h.b16 %v4884
          %v5857 = vunpack.c.l.b16 %v4885
          %v5858 = vunpack.c.h.b16 %v4885
          %v5859 = vunpack.c.l.b16 %v4886
          %v5860 = vunpack.c.h.b16 %v4886
          %v5861 = vunpack.c.l.b16 %v4887
          %v5862 = vunpack.c.l.b16 %v4888
          %v5863 = vunpack.c.h.b16 %v4888
          %v5864 = vunpack.c.l.b16 %v4889
          %v5865 = vunpack.c.h.b16 %v4889
          %v5866 = vunpack.c.l.b16 %v4890
          %v5867 = vunpack.c.h.b16 %v4890
          %v5868 = vunpack.c.l.b16 %v4891
          %v5869 = vunpack.c.h.b16 %v4891
          %v5870 = vunpack.c.l.b16 %v4892
          %v5871 = vunpack.c.h.b16 %v4892
          %v5872 = vunpack.c.l.b16 %v4893
          %v5873 = vunpack.c.h.b16 %v4893
          %v5874 = vunpack.c.l.b16 %v4894
          %v5875 = vunpack.c.h.b16 %v4894
          %v5876 = vunpack.c.l.b16 %v4895
          %v5877 = vunpack.c.h.b16 %v4895
          %v5878 = vunpack.c.l.b16 %v4896
          %v5879 = vunpack.c.h.b16 %v4896
          %v5880 = vunpack.c.l.b16 %v4897
          %v5881 = vunpack.c.h.b16 %v4897
          %v5882 = vunpack.c.l.b16 %v4898
          %v5883 = vunpack.c.h.b16 %v4898
          %v5884 = vunpack.c.l.b16 %v4899
          %v5885 = vunpack.c.h.b16 %v4899
          %v5886 = vunpack.c.l.b16 %v4900
          %v5887 = vunpack.c.l.b16 %v4901
          %v5888 = vunpack.c.h.b16 %v4901
          %v5889 = vunpack.c.l.b16 %v4902
          %v5890 = vunpack.c.h.b16 %v4902
          %v5891 = vunpack.c.l.b16 %v4903
          %v5892 = vunpack.c.h.b16 %v4903
          %v5893 = vunpack.c.l.b16 %v4904
          %v5894 = vunpack.c.h.b16 %v4904
          %v5895 = vunpack.c.l.b16 %v4905
          %v5896 = vunpack.c.h.b16 %v4905
          %v5897 = vunpack.c.l.b16 %v4906
          %v5898 = vunpack.c.h.b16 %v4906
          %v5899 = vunpack.c.l.b16 %v4907
          %v5900 = vunpack.c.h.b16 %v4907
          %v5901 = vunpack.c.l.b16 %v4908
          %v5902 = vunpack.c.h.b16 %v4908
          %v5903 = vunpack.c.l.b16 %v4909
          %v5904 = vunpack.c.h.b16 %v4909
          %v5905 = vunpack.c.l.b16 %v4910
          %v5906 = vunpack.c.h.b16 %v4910
          %v5907 = vunpack.c.l.b16 %v4911
          %v5908 = vunpack.c.h.b16 %v4911
          %v5909 = vunpack.c.l.b16 %v4912
          %v5910 = vunpack.c.h.b16 %v4912
          %v5911 = vunpack.c.l.b16 %v4913
          %v5912 = vunpack.c.l.b16 %v4914
          %v5913 = vunpack.c.h.b16 %v4914
          %v5914 = vunpack.c.l.b16 %v4915
          %v5915 = vunpack.c.h.b16 %v4915
          %v5916 = vunpack.c.l.b16 %v4916
          %v5917 = vunpack.c.h.b16 %v4916
          %v5918 = vunpack.c.l.b16 %v4917
          %v5919 = vunpack.c.h.b16 %v4917
          %v5920 = vunpack.c.l.b16 %v4918
          %v5921 = vunpack.c.h.b16 %v4918
          %v5922 = vunpack.c.l.b16 %v4919
          %v5923 = vunpack.c.h.b16 %v4919
          %v5924 = vunpack.c.l.b16 %v4920
          %v5925 = vunpack.c.h.b16 %v4920
          %v5926 = vunpack.c.l.b16 %v4921
          %v5927 = vunpack.c.h.b16 %v4921
          %v5928 = vunpack.c.l.b16 %v4922
          %v5929 = vunpack.c.h.b16 %v4922
          %v5930 = vunpack.c.l.b16 %v4923
          %v5931 = vunpack.c.h.b16 %v4923
          %v5932 = vunpack.c.l.b16 %v4924
          %v5933 = vunpack.c.h.b16 %v4924
          %v5934 = vunpack.c.l.b16 %v4925
          %v5935 = vunpack.c.h.b16 %v4925
          %v5936 = vunpack.c.l.b16 %v4926
          %v5937 = vunpack.c.l.b16 %v4927
          %v5938 = vunpack.c.h.b16 %v4927
          %v5939 = vunpack.c.l.b16 %v4928
          %v5940 = vunpack.c.h.b16 %v4928
          %v5941 = vunpack.c.l.b16 %v4929
          %v5942 = vunpack.c.h.b16 %v4929
          %v5943 = vunpack.c.l.b16 %v4930
          %v5944 = vunpack.c.h.b16 %v4930
          %v5945 = vunpack.c.l.b16 %v4931
          %v5946 = vunpack.c.h.b16 %v4931
          %v5947 = vunpack.c.l.b16 %v4932
          %v5948 = vunpack.c.h.b16 %v4932
          %v5949 = vunpack.c.l.b16 %v4933
          %v5950 = vunpack.c.h.b16 %v4933
          %v5951 = vunpack.c.l.b16 %v4934
          %v5952 = vunpack.c.h.b16 %v4934
          %v5953 = vunpack.c.l.b16 %v4935
          %v5954 = vunpack.c.h.b16 %v4935
          %v5955 = vunpack.c.l.b16 %v4936
          %v5956 = vunpack.c.h.b16 %v4936
          %v5957 = vunpack.c.l.b16 %v4937
          %v5958 = vunpack.c.h.b16 %v4937
          %v5959 = vunpack.c.l.b16 %v4938
          %v5960 = vunpack.c.h.b16 %v4938
          %v5961 = vunpack.c.l.b16 %v4939
          %v5962 = vunpack.c.l.b16 %v4940
          %v5963 = vunpack.c.h.b16 %v4940
          %v5964 = vunpack.c.l.b16 %v4941
          %v5965 = vunpack.c.h.b16 %v4941
          %v5966 = vunpack.c.l.b16 %v4942
          %v5967 = vunpack.c.h.b16 %v4942
          %v5968 = vunpack.c.l.b16 %v4943
          %v5969 = vunpack.c.h.b16 %v4943
          %v5970 = vunpack.c.l.b16 %v4944
          %v5971 = vunpack.c.h.b16 %v4944
          %v5972 = vunpack.c.l.b16 %v4945
          %v5973 = vunpack.c.h.b16 %v4945
          %v5974 = vunpack.c.l.b16 %v4946
          %v5975 = vunpack.c.h.b16 %v4946
          %v5976 = vunpack.c.l.b16 %v4947
          %v5977 = vunpack.c.h.b16 %v4947
          %v5978 = vunpack.c.l.b16 %v4948
          %v5979 = vunpack.c.h.b16 %v4948
          %v5980 = vunpack.c.l.b16 %v4949
          %v5981 = vunpack.c.h.b16 %v4949
          %v5982 = vunpack.c.l.b16 %v4950
          %v5983 = vunpack.c.h.b16 %v4950
          %v5984 = vunpack.c.l.b16 %v4951
          %v5985 = vunpack.c.h.b16 %v4951
          %v5986 = vunpack.c.l.b16 %v4952
          %v5987 = vunpack.c.l.b16 %v4953
          %v5988 = vunpack.c.h.b16 %v4953
          %v5989 = vunpack.c.l.b16 %v4954
          %v5990 = vunpack.c.h.b16 %v4954
          %v5991 = vunpack.c.l.b16 %v4955
          %v5992 = vunpack.c.h.b16 %v4955
          %v5993 = vunpack.c.l.b16 %v4956
          %v5994 = vunpack.c.h.b16 %v4956
          %v5995 = vunpack.c.l.b16 %v4957
          %v5996 = vunpack.c.h.b16 %v4957
          %v5997 = vunpack.c.l.b16 %v4958
          %v5998 = vunpack.c.h.b16 %v4958
          %v5999 = vunpack.c.l.b16 %v4959
          %v6000 = vunpack.c.h.b16 %v4959
          %v6001 = vunpack.c.l.b16 %v4960
          %v6002 = vunpack.c.h.b16 %v4960
          %v6003 = vunpack.c.l.b16 %v4961
          %v6004 = vunpack.c.h.b16 %v4961
          %v6005 = vunpack.c.l.b16 %v4962
          %v6006 = vunpack.c.h.b16 %v4962
          %v6007 = vunpack.c.l.b16 %v4963
          %v6008 = vunpack.c.h.b16 %v4963
          %v6009 = vunpack.c.l.b16 %v4964
          %v6010 = vunpack.c.h.b16 %v4964
          %v6011 = vunpack.c.l.b16 %v4965
          %v6012 = vunpack.c.l.b16 %v4966
          %v6013 = vunpack.c.h.b16 %v4966
          %v6014 = vunpack.c.l.b16 %v4967
          %v6015 = vunpack.c.h.b16 %v4967
          %v6016 = vunpack.c.l.b16 %v4968
          %v6017 = vunpack.c.h.b16 %v4968
          %v6018 = vunpack.c.l.b16 %v4969
          %v6019 = vunpack.c.h.b16 %v4969
          %v6020 = vunpack.c.l.b16 %v4970
          %v6021 = vunpack.c.h.b16 %v4970
          %v6022 = vunpack.c.l.b16 %v4971
          %v6023 = vunpack.c.h.b16 %v4971
          %v6024 = vunpack.c.l.b16 %v4972
          %v6025 = vunpack.c.h.b16 %v4972
          %v6026 = vunpack.c.l.b16 %v4973
          %v6027 = vunpack.c.h.b16 %v4973
          %v6028 = vunpack.c.l.b16 %v4974
          %v6029 = vunpack.c.h.b16 %v4974
          %v6030 = vunpack.c.l.b16 %v4975
          %v6031 = vunpack.c.h.b16 %v4975
          %v6032 = vunpack.c.l.b16 %v4976
          %v6033 = vunpack.c.h.b16 %v4976
          %v6034 = vunpack.c.l.b16 %v4977
          %v6035 = vunpack.c.h.b16 %v4977
          %v6036 = vunpack.c.l.b16 %v4978
          %v6037 = vunpack.c.l.b16 %v4979
          %v6038 = vunpack.c.h.b16 %v4979
          %v6039 = vunpack.c.l.b16 %v4980
          %v6040 = vunpack.c.h.b16 %v4980
          %v6041 = vunpack.c.l.b16 %v4981
          %v6042 = vunpack.c.h.b16 %v4981
          %v6043 = vunpack.c.l.b16 %v4982
          %v6044 = vunpack.c.h.b16 %v4982
          %v6045 = vunpack.c.l.b16 %v4983
          %v6046 = vunpack.c.h.b16 %v4983
          %v6047 = vunpack.c.l.b16 %v4984
          %v6048 = vunpack.c.h.b16 %v4984
          %v6049 = vunpack.c.l.b16 %v4985
          %v6050 = vunpack.c.h.b16 %v4985
          %v6051 = vunpack.c.l.b16 %v4986
          %v6052 = vunpack.c.h.b16 %v4986
          %v6053 = vunpack.c.l.b16 %v4987
          %v6054 = vunpack.c.h.b16 %v4987
          %v6055 = vunpack.c.l.b16 %v4988
          %v6056 = vunpack.c.h.b16 %v4988
          %v6057 = vunpack.c.l.b16 %v4989
          %v6058 = vunpack.c.h.b16 %v4989
          %v6059 = vunpack.c.l.b16 %v4990
          %v6060 = vunpack.c.h.b16 %v4990
          %v6061 = vunpack.c.l.b16 %v4991
          %v6062 = vunpack.c.l.b16 %v4992
          %v6063 = vunpack.c.h.b16 %v4992
          %v6064 = vunpack.c.l.b16 %v4993
          %v6065 = vunpack.c.h.b16 %v4993
          %v6066 = vunpack.c.l.b16 %v4994
          %v6067 = vunpack.c.h.b16 %v4994
          %v6068 = vunpack.c.l.b16 %v4995
          %v6069 = vunpack.c.h.b16 %v4995
          %v6070 = vunpack.c.l.b16 %v4996
          %v6071 = vunpack.c.h.b16 %v4996
          %v6072 = vunpack.c.l.b16 %v4997
          %v6073 = vunpack.c.h.b16 %v4997
          %v6074 = vunpack.c.l.b16 %v4998
          %v6075 = vunpack.c.h.b16 %v4998
          %v6076 = vunpack.c.l.b16 %v4999
          %v6077 = vunpack.c.h.b16 %v4999
          %v6078 = vunpack.c.l.b16 %v5000
          %v6079 = vunpack.c.h.b16 %v5000
          %v6080 = vunpack.c.l.b16 %v5001
          %v6081 = vunpack.c.h.b16 %v5001
          %v6082 = vunpack.c.l.b16 %v5002
          %v6083 = vunpack.c.h.b16 %v5002
          %v6084 = vunpack.c.l.b16 %v5003
          %v6085 = vunpack.c.h.b16 %v5003
          %v6086 = vunpack.c.l.b16 %v5004
          %v6087 = vunpack.c.l.b16 %v5005
          %v6088 = vunpack.c.h.b16 %v5005
          %v6089 = vunpack.c.l.b16 %v5006
          %v6090 = vunpack.c.h.b16 %v5006
          %v6091 = vunpack.c.l.b16 %v5007
          %v6092 = vunpack.c.h.b16 %v5007
          %v6093 = vunpack.c.l.b16 %v5008
          %v6094 = vunpack.c.h.b16 %v5008
          %v6095 = vunpack.c.l.b16 %v5009
          %v6096 = vunpack.c.h.b16 %v5009
          %v6097 = vunpack.c.l.b16 %v5010
          %v6098 = vunpack.c.h.b16 %v5010
          %v6099 = vunpack.c.l.b16 %v5011
          %v6100 = vunpack.c.h.b16 %v5011
          %v6101 = vunpack.c.l.b16 %v5012
          %v6102 = vunpack.c.h.b16 %v5012
          %v6103 = vunpack.c.l.b16 %v5013
          %v6104 = vunpack.c.h.b16 %v5013
          %v6105 = vunpack.c.l.b16 %v5014
          %v6106 = vunpack.c.h.b16 %v5014
          %v6107 = vunpack.c.l.b16 %v5015
          %v6108 = vunpack.c.h.b16 %v5015
          %v6109 = vunpack.c.l.b16 %v5016
          %v6110 = vunpack.c.h.b16 %v5016
          %v6111 = vunpack.c.l.b16 %v5017
          %v6112 = vunpack.c.l.b16 %v5018
          %v6113 = vunpack.c.h.b16 %v5018
          %v6114 = vunpack.c.l.b16 %v5019
          %v6115 = vunpack.c.h.b16 %v5019
          %v6116 = vunpack.c.l.b16 %v5020
          %v6117 = vunpack.c.h.b16 %v5020
          %v6118 = vunpack.c.l.b16 %v5021
          %v6119 = vunpack.c.h.b16 %v5021
          %v6120 = vunpack.c.l.b16 %v5022
          %v6121 = vunpack.c.h.b16 %v5022
          %v6122 = vunpack.c.l.b16 %v5023
          %v6123 = vunpack.c.h.b16 %v5023
          %v6124 = vunpack.c.l.b16 %v5024
          %v6125 = vunpack.c.h.b16 %v5024
          %v6126 = vunpack.c.l.b16 %v5025
          %v6127 = vunpack.c.h.b16 %v5025
          %v6128 = vunpack.c.l.b16 %v5026
          %v6129 = vunpack.c.h.b16 %v5026
          %v6130 = vunpack.c.l.b16 %v5027
          %v6131 = vunpack.c.h.b16 %v5027
          %v6132 = vunpack.c.l.b16 %v5028
          %v6133 = vunpack.c.h.b16 %v5028
          %v6134 = vunpack.c.l.b16 %v5029
          %v6135 = vunpack.c.h.b16 %v5029
          %v6136 = vunpack.c.l.b16 %v5030
          %v6137 = vunpack.c.l.b16 %v5031
          %v6138 = vunpack.c.h.b16 %v5031
          %v6139 = vunpack.c.l.b16 %v5032
          %v6140 = vunpack.c.h.b16 %v5032
          %v6141 = vunpack.c.l.b16 %v5033
          %v6142 = vunpack.c.h.b16 %v5033
          %v6143 = vunpack.c.l.b16 %v5034
          %v6144 = vunpack.c.h.b16 %v5034
          %v6145 = vunpack.c.l.b16 %v5035
          %v6146 = vunpack.c.h.b16 %v5035
          %v6147 = vunpack.c.l.b16 %v5036
          %v6148 = vunpack.c.h.b16 %v5036
          %v6149 = vunpack.c.l.b16 %v5037
          %v6150 = vunpack.c.h.b16 %v5037
          %v6151 = vunpack.c.l.b16 %v5038
          %v6152 = vunpack.c.h.b16 %v5038
          %v6153 = vunpack.c.l.b16 %v5039
          %v6154 = vunpack.c.h.b16 %v5039
          %v6155 = vunpack.c.l.b16 %v5040
          %v6156 = vunpack.c.h.b16 %v5040
          %v6157 = vunpack.c.l.b16 %v5041
          %v6158 = vunpack.c.h.b16 %v5041
          %v6159 = vunpack.c.l.b16 %v5042
          %v6160 = vunpack.c.h.b16 %v5042
          %v6161 = vunpack.c.l.b16 %v5043
          %v6162 = vpack.c.b16 %v5487, %v5462
          %v6163 = vpack.c.b16 %v5488, %v5463
          %v6164 = vpack.c.b16 %v5489, %v5464
          %v6165 = vpack.c.b16 %v5490, %v5465
          %v6166 = vpack.c.b16 %v5491, %v5466
          %v6167 = vpack.c.b16 %v5492, %v5467
          %v6168 = vpack.c.b16 %v5493, %v5468
          %v6169 = vpack.c.b16 %v5494, %v5469
          %v6170 = vpack.c.b16 %v5495, %v5470
          %v6171 = vpack.c.b16 %v5496, %v5471
          %v6172 = vpack.c.b16 %v5497, %v5472
          %v6173 = vpack.c.b16 %v5498, %v5473
          %v6174 = vpack.c.b16 %v5499, %v5474
          %v6175 = vpack.c.b16 %v5500, %v5475
          %v6176 = vpack.c.b16 %v5501, %v5476
          %v6177 = vpack.c.b16 %v5502, %v5477
          %v6178 = vpack.c.b16 %v5503, %v5478
          %v6179 = vpack.c.b16 %v5504, %v5479
          %v6180 = vpack.c.b16 %v5505, %v5480
          %v6181 = vpack.c.b16 %v5506, %v5481
          %v6182 = vpack.c.b16 %v5507, %v5482
          %v6183 = vpack.c.b16 %v5508, %v5483
          %v6184 = vpack.c.b16 %v5509, %v5484
          %v6185 = vpack.c.b16 %v5510, %v5485
          %v6186 = vpack.c.b16 %v5511, %v5486
          %v6187 = vpack.c.b16 %v5537, %v5512
          %v6188 = vpack.c.b16 %v5538, %v5513
          %v6189 = vpack.c.b16 %v5539, %v5514
          %v6190 = vpack.c.b16 %v5540, %v5515
          %v6191 = vpack.c.b16 %v5541, %v5516
          %v6192 = vpack.c.b16 %v5542, %v5517
          %v6193 = vpack.c.b16 %v5543, %v5518
          %v6194 = vpack.c.b16 %v5544, %v5519
          %v6195 = vpack.c.b16 %v5545, %v5520
          %v6196 = vpack.c.b16 %v5546, %v5521
          %v6197 = vpack.c.b16 %v5547, %v5522
          %v6198 = vpack.c.b16 %v5548, %v5523
          %v6199 = vpack.c.b16 %v5549, %v5524
          %v6200 = vpack.c.b16 %v5550, %v5525
          %v6201 = vpack.c.b16 %v5551, %v5526
          %v6202 = vpack.c.b16 %v5552, %v5527
          %v6203 = vpack.c.b16 %v5553, %v5528
          %v6204 = vpack.c.b16 %v5554, %v5529
          %v6205 = vpack.c.b16 %v5555, %v5530
          %v6206 = vpack.c.b16 %v5556, %v5531
          %v6207 = vpack.c.b16 %v5557, %v5532
          %v6208 = vpack.c.b16 %v5558, %v5533
          %v6209 = vpack.c.b16 %v5559, %v5534
          %v6210 = vpack.c.b16 %v5560, %v5535
          %v6211 = vpack.c.b16 %v5561, %v5536
          %v6212 = vpack.c.b16 %v5587, %v5562
          %v6213 = vpack.c.b16 %v5588, %v5563
          %v6214 = vpack.c.b16 %v5589, %v5564
          %v6215 = vpack.c.b16 %v5590, %v5565
          %v6216 = vpack.c.b16 %v5591, %v5566
          %v6217 = vpack.c.b16 %v5592, %v5567
          %v6218 = vpack.c.b16 %v5593, %v5568
          %v6219 = vpack.c.b16 %v5594, %v5569
          %v6220 = vpack.c.b16 %v5595, %v5570
          %v6221 = vpack.c.b16 %v5596, %v5571
          %v6222 = vpack.c.b16 %v5597, %v5572
          %v6223 = vpack.c.b16 %v5598, %v5573
          %v6224 = vpack.c.b16 %v5599, %v5574
          %v6225 = vpack.c.b16 %v5600, %v5575
          %v6226 = vpack.c.b16 %v5601, %v5576
          %v6227 = vpack.c.b16 %v5602, %v5577
          %v6228 = vpack.c.b16 %v5603, %v5578
          %v6229 = vpack.c.b16 %v5604, %v5579
          %v6230 = vpack.c.b16 %v5605, %v5580
          %v6231 = vpack.c.b16 %v5606, %v5581
          %v6232 = vpack.c.b16 %v5607, %v5582
          %v6233 = vpack.c.b16 %v5608, %v5583
          %v6234 = vpack.c.b16 %v5609, %v5584
          %v6235 = vpack.c.b16 %v5610, %v5585
          %v6236 = vpack.c.b16 %v5611, %v5586
          %v6237 = vpack.c.b16 %v5637, %v5612
          %v6238 = vpack.c.b16 %v5638, %v5613
          %v6239 = vpack.c.b16 %v5639, %v5614
          %v6240 = vpack.c.b16 %v5640, %v5615
          %v6241 = vpack.c.b16 %v5641, %v5616
          %v6242 = vpack.c.b16 %v5642, %v5617
          %v6243 = vpack.c.b16 %v5643, %v5618
          %v6244 = vpack.c.b16 %v5644, %v5619
          %v6245 = vpack.c.b16 %v5645, %v5620
          %v6246 = vpack.c.b16 %v5646, %v5621
          %v6247 = vpack.c.b16 %v5647, %v5622
          %v6248 = vpack.c.b16 %v5648, %v5623
          %v6249 = vpack.c.b16 %v5649, %v5624
          %v6250 = vpack.c.b16 %v5650, %v5625
          %v6251 = vpack.c.b16 %v5651, %v5626
          %v6252 = vpack.c.b16 %v5652, %v5627
          %v6253 = vpack.c.b16 %v5653, %v5628
          %v6254 = vpack.c.b16 %v5654, %v5629
          %v6255 = vpack.c.b16 %v5655, %v5630
          %v6256 = vpack.c.b16 %v5656, %v5631
          %v6257 = vpack.c.b16 %v5657, %v5632
          %v6258 = vpack.c.b16 %v5658, %v5633
          %v6259 = vpack.c.b16 %v5659, %v5634
          %v6260 = vpack.c.b16 %v5660, %v5635
          %v6261 = vpack.c.b16 %v5661, %v5636
          %v6262 = vpack.c.b16 %v5687, %v5662
          %v6263 = vpack.c.b16 %v5688, %v5663
          %v6264 = vpack.c.b16 %v5689, %v5664
          %v6265 = vpack.c.b16 %v5690, %v5665
          %v6266 = vpack.c.b16 %v5691, %v5666
          %v6267 = vpack.c.b16 %v5692, %v5667
          %v6268 = vpack.c.b16 %v5693, %v5668
          %v6269 = vpack.c.b16 %v5694, %v5669
          %v6270 = vpack.c.b16 %v5695, %v5670
          %v6271 = vpack.c.b16 %v5696, %v5671
          %v6272 = vpack.c.b16 %v5697, %v5672
          %v6273 = vpack.c.b16 %v5698, %v5673
          %v6274 = vpack.c.b16 %v5699, %v5674
          %v6275 = vpack.c.b16 %v5700, %v5675
          %v6276 = vpack.c.b16 %v5701, %v5676
          %v6277 = vpack.c.b16 %v5702, %v5677
          %v6278 = vpack.c.b16 %v5703, %v5678
          %v6279 = vpack.c.b16 %v5704, %v5679
          %v6280 = vpack.c.b16 %v5705, %v5680
          %v6281 = vpack.c.b16 %v5706, %v5681
          %v6282 = vpack.c.b16 %v5707, %v5682
          %v6283 = vpack.c.b16 %v5708, %v5683
          %v6284 = vpack.c.b16 %v5709, %v5684
          %v6285 = vpack.c.b16 %v5710, %v5685
          %v6286 = vpack.c.b16 %v5711, %v5686
          %v6287 = vpack.c.b16 %v5737, %v5712
          %v6288 = vpack.c.b16 %v5738, %v5713
          %v6289 = vpack.c.b16 %v5739, %v5714
          %v6290 = vpack.c.b16 %v5740, %v5715
          %v6291 = vpack.c.b16 %v5741, %v5716
          %v6292 = vpack.c.b16 %v5742, %v5717
          %v6293 = vpack.c.b16 %v5743, %v5718
          %v6294 = vpack.c.b16 %v5744, %v5719
          %v6295 = vpack.c.b16 %v5745, %v5720
          %v6296 = vpack.c.b16 %v5746, %v5721
          %v6297 = vpack.c.b16 %v5747, %v5722
          %v6298 = vpack.c.b16 %v5748, %v5723
          %v6299 = vpack.c.b16 %v5749, %v5724
          %v6300 = vpack.c.b16 %v5750, %v5725
          %v6301 = vpack.c.b16 %v5751, %v5726
          %v6302 = vpack.c.b16 %v5752, %v5727
          %v6303 = vpack.c.b16 %v5753, %v5728
          %v6304 = vpack.c.b16 %v5754, %v5729
          %v6305 = vpack.c.b16 %v5755, %v5730
          %v6306 = vpack.c.b16 %v5756, %v5731
          %v6307 = vpack.c.b16 %v5757, %v5732
          %v6308 = vpack.c.b16 %v5758, %v5733
          %v6309 = vpack.c.b16 %v5759, %v5734
          %v6310 = vpack.c.b16 %v5760, %v5735
          %v6311 = vpack.c.b16 %v5761, %v5736
          %v6312 = vpack.c.b16 %v5787, %v5762
          %v6313 = vpack.c.b16 %v5788, %v5763
          %v6314 = vpack.c.b16 %v5789, %v5764
          %v6315 = vpack.c.b16 %v5790, %v5765
          %v6316 = vpack.c.b16 %v5791, %v5766
          %v6317 = vpack.c.b16 %v5792, %v5767
          %v6318 = vpack.c.b16 %v5793, %v5768
          %v6319 = vpack.c.b16 %v5794, %v5769
          %v6320 = vpack.c.b16 %v5795, %v5770
          %v6321 = vpack.c.b16 %v5796, %v5771
          %v6322 = vpack.c.b16 %v5797, %v5772
          %v6323 = vpack.c.b16 %v5798, %v5773
          %v6324 = vpack.c.b16 %v5799, %v5774
          %v6325 = vpack.c.b16 %v5800, %v5775
          %v6326 = vpack.c.b16 %v5801, %v5776
          %v6327 = vpack.c.b16 %v5802, %v5777
          %v6328 = vpack.c.b16 %v5803, %v5778
          %v6329 = vpack.c.b16 %v5804, %v5779
          %v6330 = vpack.c.b16 %v5805, %v5780
          %v6331 = vpack.c.b16 %v5806, %v5781
          %v6332 = vpack.c.b16 %v5807, %v5782
          %v6333 = vpack.c.b16 %v5808, %v5783
          %v6334 = vpack.c.b16 %v5809, %v5784
          %v6335 = vpack.c.b16 %v5810, %v5785
          %v6336 = vpack.c.b16 %v5811, %v5786
          %v6337 = vpack.c.b16 %v5837, %v5812
          %v6338 = vpack.c.b16 %v5838, %v5813
          %v6339 = vpack.c.b16 %v5839, %v5814
          %v6340 = vpack.c.b16 %v5840, %v5815
          %v6341 = vpack.c.b16 %v5841, %v5816
          %v6342 = vpack.c.b16 %v5842, %v5817
          %v6343 = vpack.c.b16 %v5843, %v5818
          %v6344 = vpack.c.b16 %v5844, %v5819
          %v6345 = vpack.c.b16 %v5845, %v5820
          %v6346 = vpack.c.b16 %v5846, %v5821
          %v6347 = vpack.c.b16 %v5847, %v5822
          %v6348 = vpack.c.b16 %v5848, %v5823
          %v6349 = vpack.c.b16 %v5849, %v5824
          %v6350 = vpack.c.b16 %v5850, %v5825
          %v6351 = vpack.c.b16 %v5851, %v5826
          %v6352 = vpack.c.b16 %v5852, %v5827
          %v6353 = vpack.c.b16 %v5853, %v5828
          %v6354 = vpack.c.b16 %v5854, %v5829
          %v6355 = vpack.c.b16 %v5855, %v5830
          %v6356 = vpack.c.b16 %v5856, %v5831
          %v6357 = vpack.c.b16 %v5857, %v5832
          %v6358 = vpack.c.b16 %v5858, %v5833
          %v6359 = vpack.c.b16 %v5859, %v5834
          %v6360 = vpack.c.b16 %v5860, %v5835
          %v6361 = vpack.c.b16 %v5861, %v5836
          %v6362 = vpack.c.b16 %v5887, %v5862
          %v6363 = vpack.c.b16 %v5888, %v5863
          %v6364 = vpack.c.b16 %v5889, %v5864
          %v6365 = vpack.c.b16 %v5890, %v5865
          %v6366 = vpack.c.b16 %v5891, %v5866
          %v6367 = vpack.c.b16 %v5892, %v5867
          %v6368 = vpack.c.b16 %v5893, %v5868
          %v6369 = vpack.c.b16 %v5894, %v5869
          %v6370 = vpack.c.b16 %v5895, %v5870
          %v6371 = vpack.c.b16 %v5896, %v5871
          %v6372 = vpack.c.b16 %v5897, %v5872
          %v6373 = vpack.c.b16 %v5898, %v5873
          %v6374 = vpack.c.b16 %v5899, %v5874
          %v6375 = vpack.c.b16 %v5900, %v5875
          %v6376 = vpack.c.b16 %v5901, %v5876
          %v6377 = vpack.c.b16 %v5902, %v5877
          %v6378 = vpack.c.b16 %v5903, %v5878
          %v6379 = vpack.c.b16 %v5904, %v5879
          %v6380 = vpack.c.b16 %v5905, %v5880
          %v6381 = vpack.c.b16 %v5906, %v5881
          %v6382 = vpack.c.b16 %v5907, %v5882
          %v6383 = vpack.c.b16 %v5908, %v5883
          %v6384 = vpack.c.b16 %v5909, %v5884
          %v6385 = vpack.c.b16 %v5910, %v5885
          %v6386 = vpack.c.b16 %v5911, %v5886
          %v6387 = vpack.c.b16 %v5937, %v5912
          %v6388 = vpack.c.b16 %v5938, %v5913
          %v6389 = vpack.c.b16 %v5939, %v5914
          %v6390 = vpack.c.b16 %v5940, %v5915
          %v6391 = vpack.c.b16 %v5941, %v5916
          %v6392 = vpack.c.b16 %v5942, %v5917
          %v6393 = vpack.c.b16 %v5943, %v5918
          %v6394 = vpack.c.b16 %v5944, %v5919
          %v6395 = vpack.c.b16 %v5945, %v5920
          %v6396 = vpack.c.b16 %v5946, %v5921
          %v6397 = vpack.c.b16 %v5947, %v5922
          %v6398 = vpack.c.b16 %v5948, %v5923
          %v6399 = vpack.c.b16 %v5949, %v5924
          %v6400 = vpack.c.b16 %v5950, %v5925
          %v6401 = vpack.c.b16 %v5951, %v5926
          %v6402 = vpack.c.b16 %v5952, %v5927
          %v6403 = vpack.c.b16 %v5953, %v5928
          %v6404 = vpack.c.b16 %v5954, %v5929
          %v6405 = vpack.c.b16 %v5955, %v5930
          %v6406 = vpack.c.b16 %v5956, %v5931
          %v6407 = vpack.c.b16 %v5957, %v5932
          %v6408 = vpack.c.b16 %v5958, %v5933
          %v6409 = vpack.c.b16 %v5959, %v5934
          %v6410 = vpack.c.b16 %v5960, %v5935
          %v6411 = vpack.c.b16 %v5961, %v5936
          %v6412 = vpack.c.b16 %v5987, %v5962
          %v6413 = vpack.c.b16 %v5988, %v5963
          %v6414 = vpack.c.b16 %v5989, %v5964
          %v6415 = vpack.c.b16 %v5990, %v5965
          %v6416 = vpack.c.b16 %v5991, %v5966
          %v6417 = vpack.c.b16 %v5992, %v5967
          %v6418 = vpack.c.b16 %v5993, %v5968
          %v6419 = vpack.c.b16 %v5994, %v5969
          %v6420 = vpack.c.b16 %v5995, %v5970
          %v6421 = vpack.c.b16 %v5996, %v5971
          %v6422 = vpack.c.b16 %v5997, %v5972
          %v6423 = vpack.c.b16 %v5998, %v5973
          %v6424 = vpack.c.b16 %v5999, %v5974
          %v6425 = vpack.c.b16 %v6000, %v5975
          %v6426 = vpack.c.b16 %v6001, %v5976
          %v6427 = vpack.c.b16 %v6002, %v5977
          %v6428 = vpack.c.b16 %v6003, %v5978
          %v6429 = vpack.c.b16 %v6004, %v5979
          %v6430 = vpack.c.b16 %v6005, %v5980
          %v6431 = vpack.c.b16 %v6006, %v5981
          %v6432 = vpack.c.b16 %v6007, %v5982
          %v6433 = vpack.c.b16 %v6008, %v5983
          %v6434 = vpack.c.b16 %v6009, %v5984
          %v6435 = vpack.c.b16 %v6010, %v5985
          %v6436 = vpack.c.b16 %v6011, %v5986
          %v6437 = vpack.c.b16 %v6037, %v6012
          %v6438 = vpack.c.b16 %v6038, %v6013
          %v6439 = vpack.c.b16 %v6039, %v6014
          %v6440 = vpack.c.b16 %v6040, %v6015
          %v6441 = vpack.c.b16 %v6041, %v6016
          %v6442 = vpack.c.b16 %v6042, %v6017
          %v6443 = vpack.c.b16 %v6043, %v6018
          %v6444 = vpack.c.b16 %v6044, %v6019
          %v6445 = vpack.c.b16 %v6045, %v6020
          %v6446 = vpack.c.b16 %v6046, %v6021
          %v6447 = vpack.c.b16 %v6047, %v6022
          %v6448 = vpack.c.b16 %v6048, %v6023
          %v6449 = vpack.c.b16 %v6049, %v6024
          %v6450 = vpack.c.b16 %v6050, %v6025
          %v6451 = vpack.c.b16 %v6051, %v6026
          %v6452 = vpack.c.b16 %v6052, %v6027
          %v6453 = vpack.c.b16 %v6053, %v6028
          %v6454 = vpack.c.b16 %v6054, %v6029
          %v6455 = vpack.c.b16 %v6055, %v6030
          %v6456 = vpack.c.b16 %v6056, %v6031
          %v6457 = vpack.c.b16 %v6057, %v6032
          %v6458 = vpack.c.b16 %v6058, %v6033
          %v6459 = vpack.c.b16 %v6059, %v6034
          %v6460 = vpack.c.b16 %v6060, %v6035
          %v6461 = vpack.c.b16 %v6061, %v6036
          %v6462 = vpack.c.b16 %v6087, %v6062
          %v6463 = vpack.c.b16 %v6088, %v6063
          %v6464 = vpack.c.b16 %v6089, %v6064
          %v6465 = vpack.c.b16 %v6090, %v6065
          %v6466 = vpack.c.b16 %v6091, %v6066
          %v6467 = vpack.c.b16 %v6092, %v6067
          %v6468 = vpack.c.b16 %v6093, %v6068
          %v6469 = vpack.c.b16 %v6094, %v6069
          %v6470 = vpack.c.b16 %v6095, %v6070
          %v6471 = vpack.c.b16 %v6096, %v6071
          %v6472 = vpack.c.b16 %v6097, %v6072
          %v6473 = vpack.c.b16 %v6098, %v6073
          %v6474 = vpack.c.b16 %v6099, %v6074
          %v6475 = vpack.c.b16 %v6100, %v6075
          %v6476 = vpack.c.b16 %v6101, %v6076
          %v6477 = vpack.c.b16 %v6102, %v6077
          %v6478 = vpack.c.b16 %v6103, %v6078
          %v6479 = vpack.c.b16 %v6104, %v6079
          %v6480 = vpack.c.b16 %v6105, %v6080
          %v6481 = vpack.c.b16 %v6106, %v6081
          %v6482 = vpack.c.b16 %v6107, %v6082
          %v6483 = vpack.c.b16 %v6108, %v6083
          %v6484 = vpack.c.b16 %v6109, %v6084
          %v6485 = vpack.c.b16 %v6110, %v6085
          %v6486 = vpack.c.b16 %v6111, %v6086
          %v6487 = vpack.c.b16 %v6137, %v6112
          %v6488 = vpack.c.b16 %v6138, %v6113
          %v6489 = vpack.c.b16 %v6139, %v6114
          %v6490 = vpack.c.b16 %v6140, %v6115
          %v6491 = vpack.c.b16 %v6141, %v6116
          %v6492 = vpack.c.b16 %v6142, %v6117
          %v6493 = vpack.c.b16 %v6143, %v6118
          %v6494 = vpack.c.b16 %v6144, %v6119
          %v6495 = vpack.c.b16 %v6145, %v6120
          %v6496 = vpack.c.b16 %v6146, %v6121
          %v6497 = vpack.c.b16 %v6147, %v6122
          %v6498 = vpack.c.b16 %v6148, %v6123
          %v6499 = vpack.c.b16 %v6149, %v6124
          %v6500 = vpack.c.b16 %v6150, %v6125
          %v6501 = vpack.c.b16 %v6151, %v6126
          %v6502 = vpack.c.b16 %v6152, %v6127
          %v6503 = vpack.c.b16 %v6153, %v6128
          %v6504 = vpack.c.b16 %v6154, %v6129
          %v6505 = vpack.c.b16 %v6155, %v6130
          %v6506 = vpack.c.b16 %v6156, %v6131
          %v6507 = vpack.c.b16 %v6157, %v6132
          %v6508 = vpack.c.b16 %v6158, %v6133
          %v6509 = vpack.c.b16 %v6159, %v6134
          %v6510 = vpack.c.b16 %v6160, %v6135
          %v6511 = vpack.c.b16 %v6161, %v6136
          %vm6862 = vcmask 785408
          %v6864 = vsel %vm6862, %v5081, 0
          %v6867 = vsel %vm6862, %v5083, 0
          %v6870 = vsel %vm6862, %v5085, 0
          %v6873 = vsel %vm6862, %v5087, 0
          %v6876 = vsel %vm6862, %v5089, 0
          %v6879 = vsel %vm6862, %v5091, 0
          %6881 = vmatpush.bf16.msra.mxu0 %v6337
          %6882 = vmatpush.bf16.msra.mxu0 %v6312
          %6883 = vmatpush.bf16.msra.mxu0 %v6287
          %6884 = vmatpush.bf16.msra.mxu0 %v6262
          %6885 = vmatpush.bf16.msra.mxu0 %v6237
          %6886 = vmatpush.bf16.msra.mxu0 %v6212
          %6887 = vmatpush.bf16.msra.mxu0 %v6187
          %6888 = vmatpush.bf16.msra.mxu0 %v6162
          %6889 = vmatmul.bf16.gmra.mxu0 %v5080
          %v6890 = vpop.f32.mrf.mxu0
          %v6891 = vadd.f32 0.0, %v6890
          %v6892 = vpop.f32.mrf.mxu0
          %v6893 = vadd.f32 0.0, %v6892
          %6894 = vmatmul.bf16.gmra.mxu0 %v5082
          %v6895 = vpop.f32.mrf.mxu0
          %v6896 = vadd.f32 0.0, %v6895
          %v6897 = vpop.f32.mrf.mxu0
          %v6898 = vadd.f32 0.0, %v6897
          %6899 = vmatmul.bf16.gmra.mxu0 %v5084
          %v6900 = vpop.f32.mrf.mxu0
          %v6901 = vadd.f32 0.0, %v6900
          %v6902 = vpop.f32.mrf.mxu0
          %v6903 = vadd.f32 0.0, %v6902
          %6904 = vmatmul.bf16.gmra.mxu0 %v5086
          %v6905 = vpop.f32.mrf.mxu0
          %v6906 = vadd.f32 0.0, %v6905
          %v6907 = vpop.f32.mrf.mxu0
          %v6908 = vadd.f32 0.0, %v6907
          %6909 = vmatmul.bf16.gmra.mxu0 %v5088
          %v6910 = vpop.f32.mrf.mxu0
          %v6911 = vadd.f32 0.0, %v6910
          %v6912 = vpop.f32.mrf.mxu0
          %v6913 = vadd.f32 0.0, %v6912
          %6914 = vmatmul.bf16.gmra.mxu0 %v5090
          %v6915 = vpop.f32.mrf.mxu0
          %v6916 = vadd.f32 0.0, %v6915
          %v6917 = vpop.f32.mrf.mxu0
          %v6918 = vadd.f32 0.0, %v6917
          %6919 = vdwg.mxu0
          %6920 = vmatpush.bf16.msra.mxu0 0
          %6921 = vmatpush.bf16.msra.mxu0 0
          %6922 = vmatpush.bf16.msra.mxu0 %v6487
          %6923 = vmatpush.bf16.msra.mxu0 %v6462
          %6924 = vmatpush.bf16.msra.mxu0 %v6437
          %6925 = vmatpush.bf16.msra.mxu0 %v6412
          %6926 = vmatpush.bf16.msra.mxu0 %v6387
          %6927 = vmatpush.bf16.msra.mxu0 %v6362
          %6928 = vmatmul.bf16.gmra.mxu0 %v6864
          %v6929 = vpop.f32.mrf.mxu0
          %v6930 = vadd.f32 %v6891, %v6929
          %v6931 = vpop.f32.mrf.mxu0
          %v6932 = vadd.f32 %v6893, %v6931
          %6933 = vmatmul.bf16.gmra.mxu0 %v6867
          %v6934 = vpop.f32.mrf.mxu0
          %v6935 = vadd.f32 %v6896, %v6934
          %v6936 = vpop.f32.mrf.mxu0
          %v6937 = vadd.f32 %v6898, %v6936
          %6938 = vmatmul.bf16.gmra.mxu0 %v6870
          %v6939 = vpop.f32.mrf.mxu0
          %v6940 = vadd.f32 %v6901, %v6939
          %v6941 = vpop.f32.mrf.mxu0
          %v6942 = vadd.f32 %v6903, %v6941
          %6943 = vmatmul.bf16.gmra.mxu0 %v6873
          %v6944 = vpop.f32.mrf.mxu0
          %v6945 = vadd.f32 %v6906, %v6944
          %v6946 = vpop.f32.mrf.mxu0
          %v6947 = vadd.f32 %v6908, %v6946
          %6948 = vmatmul.bf16.gmra.mxu0 %v6876
          %v6949 = vpop.f32.mrf.mxu0
          %v6950 = vadd.f32 %v6911, %v6949
          %v6951 = vpop.f32.mrf.mxu0
          %v6952 = vadd.f32 %v6913, %v6951
          %6953 = vmatmul.bf16.gmra.mxu0 %v6879
          %v6954 = vpop.f32.mrf.mxu0
          %v6955 = vadd.f32 %v6916, %v6954
          %v6956 = vpop.f32.mrf.mxu0
          %v6957 = vadd.f32 %v6918, %v6956
          %6958 = vdwg.mxu0
          %6959 = vmatpush.bf16.msra.mxu0 %v6338
          %6960 = vmatpush.bf16.msra.mxu0 %v6313
          %6961 = vmatpush.bf16.msra.mxu0 %v6288
          %6962 = vmatpush.bf16.msra.mxu0 %v6263
          %6963 = vmatpush.bf16.msra.mxu0 %v6238
          %6964 = vmatpush.bf16.msra.mxu0 %v6213
          %6965 = vmatpush.bf16.msra.mxu0 %v6188
          %6966 = vmatpush.bf16.msra.mxu0 %v6163
          %6967 = vmatmul.bf16.gmra.mxu0 %v5080
          %v6968 = vpop.f32.mrf.mxu0
          %v6969 = vadd.f32 0.0, %v6968
          %v6970 = vpop.f32.mrf.mxu0
          %v6971 = vadd.f32 0.0, %v6970
          %6972 = vmatmul.bf16.gmra.mxu0 %v5082
          %v6973 = vpop.f32.mrf.mxu0
          %v6974 = vadd.f32 0.0, %v6973
          %v6975 = vpop.f32.mrf.mxu0
          %v6976 = vadd.f32 0.0, %v6975
          %6977 = vmatmul.bf16.gmra.mxu0 %v5084
          %v6978 = vpop.f32.mrf.mxu0
          %v6979 = vadd.f32 0.0, %v6978
          %v6980 = vpop.f32.mrf.mxu0
          %v6981 = vadd.f32 0.0, %v6980
          %6982 = vmatmul.bf16.gmra.mxu0 %v5086
          %v6983 = vpop.f32.mrf.mxu0
          %v6984 = vadd.f32 0.0, %v6983
          %v6985 = vpop.f32.mrf.mxu0
          %v6986 = vadd.f32 0.0, %v6985
          %6987 = vmatmul.bf16.gmra.mxu0 %v5088
          %v6988 = vpop.f32.mrf.mxu0
          %v6989 = vadd.f32 0.0, %v6988
          %v6990 = vpop.f32.mrf.mxu0
          %v6991 = vadd.f32 0.0, %v6990
          %6992 = vmatmul.bf16.gmra.mxu0 %v5090
          %v6993 = vpop.f32.mrf.mxu0
          %v6994 = vadd.f32 0.0, %v6993
          %v6995 = vpop.f32.mrf.mxu0
          %v6996 = vadd.f32 0.0, %v6995
          %6997 = vdwg.mxu0
          %6998 = vmatpush.bf16.msra.mxu0 0
          %6999 = vmatpush.bf16.msra.mxu0 0
          %7000 = vmatpush.bf16.msra.mxu0 %v6488
          %7001 = vmatpush.bf16.msra.mxu0 %v6463
          %7002 = vmatpush.bf16.msra.mxu0 %v6438
          %7003 = vmatpush.bf16.msra.mxu0 %v6413
          %7004 = vmatpush.bf16.msra.mxu0 %v6388
          %7005 = vmatpush.bf16.msra.mxu0 %v6363
          %7006 = vmatmul.bf16.gmra.mxu0 %v6864
          %v7007 = vpop.f32.mrf.mxu0
          %v7008 = vadd.f32 %v6969, %v7007
          %v7009 = vpop.f32.mrf.mxu0
          %v7010 = vadd.f32 %v6971, %v7009
          %7011 = vmatmul.bf16.gmra.mxu0 %v6867
          %v7012 = vpop.f32.mrf.mxu0
          %v7013 = vadd.f32 %v6974, %v7012
          %v7014 = vpop.f32.mrf.mxu0
          %v7015 = vadd.f32 %v6976, %v7014
          %7016 = vmatmul.bf16.gmra.mxu0 %v6870
          %v7017 = vpop.f32.mrf.mxu0
          %v7018 = vadd.f32 %v6979, %v7017
          %v7019 = vpop.f32.mrf.mxu0
          %v7020 = vadd.f32 %v6981, %v7019
          %7021 = vmatmul.bf16.gmra.mxu0 %v6873
          %v7022 = vpop.f32.mrf.mxu0
          %v7023 = vadd.f32 %v6984, %v7022
          %v7024 = vpop.f32.mrf.mxu0
          %v7025 = vadd.f32 %v6986, %v7024
          %7026 = vmatmul.bf16.gmra.mxu0 %v6876
          %v7027 = vpop.f32.mrf.mxu0
          %v7028 = vadd.f32 %v6989, %v7027
          %v7029 = vpop.f32.mrf.mxu0
          %v7030 = vadd.f32 %v6991, %v7029
          %7031 = vmatmul.bf16.gmra.mxu0 %v6879
          %v7032 = vpop.f32.mrf.mxu0
          %v7033 = vadd.f32 %v6994, %v7032
          %v7034 = vpop.f32.mrf.mxu0
          %v7035 = vadd.f32 %v6996, %v7034
          %7036 = vdwg.mxu0
          %7037 = vmatpush.bf16.msra.mxu0 %v6339
          %7038 = vmatpush.bf16.msra.mxu0 %v6314
          %7039 = vmatpush.bf16.msra.mxu0 %v6289
          %7040 = vmatpush.bf16.msra.mxu0 %v6264
          %7041 = vmatpush.bf16.msra.mxu0 %v6239
          %7042 = vmatpush.bf16.msra.mxu0 %v6214
          %7043 = vmatpush.bf16.msra.mxu0 %v6189
          %7044 = vmatpush.bf16.msra.mxu0 %v6164
          %7045 = vmatmul.bf16.gmra.mxu0 %v5080
          %v7046 = vpop.f32.mrf.mxu0
          %v7047 = vadd.f32 0.0, %v7046
          %v7048 = vpop.f32.mrf.mxu0
          %v7049 = vadd.f32 0.0, %v7048
          %7050 = vmatmul.bf16.gmra.mxu0 %v5082
          %v7051 = vpop.f32.mrf.mxu0
          %v7052 = vadd.f32 0.0, %v7051
          %v7053 = vpop.f32.mrf.mxu0
          %v7054 = vadd.f32 0.0, %v7053
          %7055 = vmatmul.bf16.gmra.mxu0 %v5084
          %v7056 = vpop.f32.mrf.mxu0
          %v7057 = vadd.f32 0.0, %v7056
          %v7058 = vpop.f32.mrf.mxu0
          %v7059 = vadd.f32 0.0, %v7058
          %7060 = vmatmul.bf16.gmra.mxu0 %v5086
          %v7061 = vpop.f32.mrf.mxu0
          %v7062 = vadd.f32 0.0, %v7061
          %v7063 = vpop.f32.mrf.mxu0
          %v7064 = vadd.f32 0.0, %v7063
          %7065 = vmatmul.bf16.gmra.mxu0 %v5088
          %v7066 = vpop.f32.mrf.mxu0
          %v7067 = vadd.f32 0.0, %v7066
          %v7068 = vpop.f32.mrf.mxu0
          %v7069 = vadd.f32 0.0, %v7068
          %7070 = vmatmul.bf16.gmra.mxu0 %v5090
          %v7071 = vpop.f32.mrf.mxu0
          %v7072 = vadd.f32 0.0, %v7071
          %v7073 = vpop.f32.mrf.mxu0
          %v7074 = vadd.f32 0.0, %v7073
          %7075 = vdwg.mxu0
          %7076 = vmatpush.bf16.msra.mxu0 0
          %7077 = vmatpush.bf16.msra.mxu0 0
          %7078 = vmatpush.bf16.msra.mxu0 %v6489
          %7079 = vmatpush.bf16.msra.mxu0 %v6464
          %7080 = vmatpush.bf16.msra.mxu0 %v6439
          %7081 = vmatpush.bf16.msra.mxu0 %v6414
          %7082 = vmatpush.bf16.msra.mxu0 %v6389
          %7083 = vmatpush.bf16.msra.mxu0 %v6364
          %7084 = vmatmul.bf16.gmra.mxu0 %v6864
          %v7085 = vpop.f32.mrf.mxu0
          %v7086 = vadd.f32 %v7047, %v7085
          %v7087 = vpop.f32.mrf.mxu0
          %v7088 = vadd.f32 %v7049, %v7087
          %7089 = vmatmul.bf16.gmra.mxu0 %v6867
          %v7090 = vpop.f32.mrf.mxu0
          %v7091 = vadd.f32 %v7052, %v7090
          %v7092 = vpop.f32.mrf.mxu0
          %v7093 = vadd.f32 %v7054, %v7092
          %7094 = vmatmul.bf16.gmra.mxu0 %v6870
          %v7095 = vpop.f32.mrf.mxu0
          %v7096 = vadd.f32 %v7057, %v7095
          %v7097 = vpop.f32.mrf.mxu0
          %v7098 = vadd.f32 %v7059, %v7097
          %7099 = vmatmul.bf16.gmra.mxu0 %v6873
          %v7100 = vpop.f32.mrf.mxu0
          %v7101 = vadd.f32 %v7062, %v7100
          %v7102 = vpop.f32.mrf.mxu0
          %v7103 = vadd.f32 %v7064, %v7102
          %7104 = vmatmul.bf16.gmra.mxu0 %v6876
          %v7105 = vpop.f32.mrf.mxu0
          %v7106 = vadd.f32 %v7067, %v7105
          %v7107 = vpop.f32.mrf.mxu0
          %v7108 = vadd.f32 %v7069, %v7107
          %7109 = vmatmul.bf16.gmra.mxu0 %v6879
          %v7110 = vpop.f32.mrf.mxu0
          %v7111 = vadd.f32 %v7072, %v7110
          %v7112 = vpop.f32.mrf.mxu0
          %v7113 = vadd.f32 %v7074, %v7112
          %7114 = vdwg.mxu0
          %7115 = vmatpush.bf16.msra.mxu0 %v6340
          %7116 = vmatpush.bf16.msra.mxu0 %v6315
          %7117 = vmatpush.bf16.msra.mxu0 %v6290
          %7118 = vmatpush.bf16.msra.mxu0 %v6265
          %7119 = vmatpush.bf16.msra.mxu0 %v6240
          %7120 = vmatpush.bf16.msra.mxu0 %v6215
          %7121 = vmatpush.bf16.msra.mxu0 %v6190
          %7122 = vmatpush.bf16.msra.mxu0 %v6165
          %7123 = vmatmul.bf16.gmra.mxu0 %v5080
          %v7124 = vpop.f32.mrf.mxu0
          %v7125 = vadd.f32 0.0, %v7124
          %v7126 = vpop.f32.mrf.mxu0
          %v7127 = vadd.f32 0.0, %v7126
          %7128 = vmatmul.bf16.gmra.mxu0 %v5082
          %v7129 = vpop.f32.mrf.mxu0
          %v7130 = vadd.f32 0.0, %v7129
          %v7131 = vpop.f32.mrf.mxu0
          %v7132 = vadd.f32 0.0, %v7131
          %7133 = vmatmul.bf16.gmra.mxu0 %v5084
          %v7134 = vpop.f32.mrf.mxu0
          %v7135 = vadd.f32 0.0, %v7134
          %v7136 = vpop.f32.mrf.mxu0
          %v7137 = vadd.f32 0.0, %v7136
          %7138 = vmatmul.bf16.gmra.mxu0 %v5086
          %v7139 = vpop.f32.mrf.mxu0
          %v7140 = vadd.f32 0.0, %v7139
          %v7141 = vpop.f32.mrf.mxu0
          %v7142 = vadd.f32 0.0, %v7141
          %7143 = vmatmul.bf16.gmra.mxu0 %v5088
          %v7144 = vpop.f32.mrf.mxu0
          %v7145 = vadd.f32 0.0, %v7144
          %v7146 = vpop.f32.mrf.mxu0
          %v7147 = vadd.f32 0.0, %v7146
          %7148 = vmatmul.bf16.gmra.mxu0 %v5090
          %v7149 = vpop.f32.mrf.mxu0
          %v7150 = vadd.f32 0.0, %v7149
          %v7151 = vpop.f32.mrf.mxu0
          %v7152 = vadd.f32 0.0, %v7151
          %7153 = vdwg.mxu0
          %7154 = vmatpush.bf16.msra.mxu0 0
          %7155 = vmatpush.bf16.msra.mxu0 0
          %7156 = vmatpush.bf16.msra.mxu0 %v6490
          %7157 = vmatpush.bf16.msra.mxu0 %v6465
          %7158 = vmatpush.bf16.msra.mxu0 %v6440
          %7159 = vmatpush.bf16.msra.mxu0 %v6415
          %7160 = vmatpush.bf16.msra.mxu0 %v6390
          %7161 = vmatpush.bf16.msra.mxu0 %v6365
          %7162 = vmatmul.bf16.gmra.mxu0 %v6864
          %v7163 = vpop.f32.mrf.mxu0
          %v7164 = vadd.f32 %v7125, %v7163
          %v7165 = vpop.f32.mrf.mxu0
          %v7166 = vadd.f32 %v7127, %v7165
          %7167 = vmatmul.bf16.gmra.mxu0 %v6867
          %v7168 = vpop.f32.mrf.mxu0
          %v7169 = vadd.f32 %v7130, %v7168
          %v7170 = vpop.f32.mrf.mxu0
          %v7171 = vadd.f32 %v7132, %v7170
          %7172 = vmatmul.bf16.gmra.mxu0 %v6870
          %v7173 = vpop.f32.mrf.mxu0
          %v7174 = vadd.f32 %v7135, %v7173
          %v7175 = vpop.f32.mrf.mxu0
          %v7176 = vadd.f32 %v7137, %v7175
          %7177 = vmatmul.bf16.gmra.mxu0 %v6873
          %v7178 = vpop.f32.mrf.mxu0
          %v7179 = vadd.f32 %v7140, %v7178
          %v7180 = vpop.f32.mrf.mxu0
          %v7181 = vadd.f32 %v7142, %v7180
          %7182 = vmatmul.bf16.gmra.mxu0 %v6876
          %v7183 = vpop.f32.mrf.mxu0
          %v7184 = vadd.f32 %v7145, %v7183
          %v7185 = vpop.f32.mrf.mxu0
          %v7186 = vadd.f32 %v7147, %v7185
          %7187 = vmatmul.bf16.gmra.mxu0 %v6879
          %v7188 = vpop.f32.mrf.mxu0
          %v7189 = vadd.f32 %v7150, %v7188
          %v7190 = vpop.f32.mrf.mxu0
          %v7191 = vadd.f32 %v7152, %v7190
          %7192 = vdwg.mxu0
          %7193 = vmatpush.bf16.msra.mxu0 %v6341
          %7194 = vmatpush.bf16.msra.mxu0 %v6316
          %7195 = vmatpush.bf16.msra.mxu0 %v6291
          %7196 = vmatpush.bf16.msra.mxu0 %v6266
          %7197 = vmatpush.bf16.msra.mxu0 %v6241
          %7198 = vmatpush.bf16.msra.mxu0 %v6216
          %7199 = vmatpush.bf16.msra.mxu0 %v6191
          %7200 = vmatpush.bf16.msra.mxu0 %v6166
          %7201 = vmatmul.bf16.gmra.mxu0 %v5080
          %v7202 = vpop.f32.mrf.mxu0
          %v7203 = vadd.f32 0.0, %v7202
          %v7204 = vpop.f32.mrf.mxu0
          %v7205 = vadd.f32 0.0, %v7204
          %7206 = vmatmul.bf16.gmra.mxu0 %v5082
          %v7207 = vpop.f32.mrf.mxu0
          %v7208 = vadd.f32 0.0, %v7207
          %v7209 = vpop.f32.mrf.mxu0
          %v7210 = vadd.f32 0.0, %v7209
          %7211 = vmatmul.bf16.gmra.mxu0 %v5084
          %v7212 = vpop.f32.mrf.mxu0
          %v7213 = vadd.f32 0.0, %v7212
          %v7214 = vpop.f32.mrf.mxu0
          %v7215 = vadd.f32 0.0, %v7214
          %7216 = vmatmul.bf16.gmra.mxu0 %v5086
          %v7217 = vpop.f32.mrf.mxu0
          %v7218 = vadd.f32 0.0, %v7217
          %v7219 = vpop.f32.mrf.mxu0
          %v7220 = vadd.f32 0.0, %v7219
          %7221 = vmatmul.bf16.gmra.mxu0 %v5088
          %v7222 = vpop.f32.mrf.mxu0
          %v7223 = vadd.f32 0.0, %v7222
          %v7224 = vpop.f32.mrf.mxu0
          %v7225 = vadd.f32 0.0, %v7224
          %7226 = vmatmul.bf16.gmra.mxu0 %v5090
          %v7227 = vpop.f32.mrf.mxu0
          %v7228 = vadd.f32 0.0, %v7227
          %v7229 = vpop.f32.mrf.mxu0
          %v7230 = vadd.f32 0.0, %v7229
          %7231 = vdwg.mxu0
          %7232 = vmatpush.bf16.msra.mxu0 0
          %7233 = vmatpush.bf16.msra.mxu0 0
          %7234 = vmatpush.bf16.msra.mxu0 %v6491
          %7235 = vmatpush.bf16.msra.mxu0 %v6466
          %7236 = vmatpush.bf16.msra.mxu0 %v6441
          %7237 = vmatpush.bf16.msra.mxu0 %v6416
          %7238 = vmatpush.bf16.msra.mxu0 %v6391
          %7239 = vmatpush.bf16.msra.mxu0 %v6366
          %7240 = vmatmul.bf16.gmra.mxu0 %v6864
          %v7241 = vpop.f32.mrf.mxu0
          %v7242 = vadd.f32 %v7203, %v7241
          %v7243 = vpop.f32.mrf.mxu0
          %v7244 = vadd.f32 %v7205, %v7243
          %7245 = vmatmul.bf16.gmra.mxu0 %v6867
          %v7246 = vpop.f32.mrf.mxu0
          %v7247 = vadd.f32 %v7208, %v7246
          %v7248 = vpop.f32.mrf.mxu0
          %v7249 = vadd.f32 %v7210, %v7248
          %7250 = vmatmul.bf16.gmra.mxu0 %v6870
          %v7251 = vpop.f32.mrf.mxu0
          %v7252 = vadd.f32 %v7213, %v7251
          %v7253 = vpop.f32.mrf.mxu0
          %v7254 = vadd.f32 %v7215, %v7253
          %7255 = vmatmul.bf16.gmra.mxu0 %v6873
          %v7256 = vpop.f32.mrf.mxu0
          %v7257 = vadd.f32 %v7218, %v7256
          %v7258 = vpop.f32.mrf.mxu0
          %v7259 = vadd.f32 %v7220, %v7258
          %7260 = vmatmul.bf16.gmra.mxu0 %v6876
          %v7261 = vpop.f32.mrf.mxu0
          %v7262 = vadd.f32 %v7223, %v7261
          %v7263 = vpop.f32.mrf.mxu0
          %v7264 = vadd.f32 %v7225, %v7263
          %7265 = vmatmul.bf16.gmra.mxu0 %v6879
          %v7266 = vpop.f32.mrf.mxu0
          %v7267 = vadd.f32 %v7228, %v7266
          %v7268 = vpop.f32.mrf.mxu0
          %v7269 = vadd.f32 %v7230, %v7268
          %7270 = vdwg.mxu0
          %7271 = vmatpush.bf16.msra.mxu0 %v6342
          %7272 = vmatpush.bf16.msra.mxu0 %v6317
          %7273 = vmatpush.bf16.msra.mxu0 %v6292
          %7274 = vmatpush.bf16.msra.mxu0 %v6267
          %7275 = vmatpush.bf16.msra.mxu0 %v6242
          %7276 = vmatpush.bf16.msra.mxu0 %v6217
          %7277 = vmatpush.bf16.msra.mxu0 %v6192
          %7278 = vmatpush.bf16.msra.mxu0 %v6167
          %7279 = vmatmul.bf16.gmra.mxu0 %v5080
          %v7280 = vpop.f32.mrf.mxu0
          %v7281 = vadd.f32 0.0, %v7280
          %v7282 = vpop.f32.mrf.mxu0
          %v7283 = vadd.f32 0.0, %v7282
          %7284 = vmatmul.bf16.gmra.mxu0 %v5082
          %v7285 = vpop.f32.mrf.mxu0
          %v7286 = vadd.f32 0.0, %v7285
          %v7287 = vpop.f32.mrf.mxu0
          %v7288 = vadd.f32 0.0, %v7287
          %7289 = vmatmul.bf16.gmra.mxu0 %v5084
          %v7290 = vpop.f32.mrf.mxu0
          %v7291 = vadd.f32 0.0, %v7290
          %v7292 = vpop.f32.mrf.mxu0
          %v7293 = vadd.f32 0.0, %v7292
          %7294 = vmatmul.bf16.gmra.mxu0 %v5086
          %v7295 = vpop.f32.mrf.mxu0
          %v7296 = vadd.f32 0.0, %v7295
          %v7297 = vpop.f32.mrf.mxu0
          %v7298 = vadd.f32 0.0, %v7297
          %7299 = vmatmul.bf16.gmra.mxu0 %v5088
          %v7300 = vpop.f32.mrf.mxu0
          %v7301 = vadd.f32 0.0, %v7300
          %v7302 = vpop.f32.mrf.mxu0
          %v7303 = vadd.f32 0.0, %v7302
          %7304 = vmatmul.bf16.gmra.mxu0 %v5090
          %v7305 = vpop.f32.mrf.mxu0
          %v7306 = vadd.f32 0.0, %v7305
          %v7307 = vpop.f32.mrf.mxu0
          %v7308 = vadd.f32 0.0, %v7307
          %7309 = vdwg.mxu0
          %7310 = vmatpush.bf16.msra.mxu0 0
          %7311 = vmatpush.bf16.msra.mxu0 0
          %7312 = vmatpush.bf16.msra.mxu0 %v6492
          %7313 = vmatpush.bf16.msra.mxu0 %v6467
          %7314 = vmatpush.bf16.msra.mxu0 %v6442
          %7315 = vmatpush.bf16.msra.mxu0 %v6417
          %7316 = vmatpush.bf16.msra.mxu0 %v6392
          %7317 = vmatpush.bf16.msra.mxu0 %v6367
          %7318 = vmatmul.bf16.gmra.mxu0 %v6864
          %v7319 = vpop.f32.mrf.mxu0
          %v7320 = vadd.f32 %v7281, %v7319
          %v7321 = vpop.f32.mrf.mxu0
          %v7322 = vadd.f32 %v7283, %v7321
          %7323 = vmatmul.bf16.gmra.mxu0 %v6867
          %v7324 = vpop.f32.mrf.mxu0
          %v7325 = vadd.f32 %v7286, %v7324
          %v7326 = vpop.f32.mrf.mxu0
          %v7327 = vadd.f32 %v7288, %v7326
          %7328 = vmatmul.bf16.gmra.mxu0 %v6870
          %v7329 = vpop.f32.mrf.mxu0
          %v7330 = vadd.f32 %v7291, %v7329
          %v7331 = vpop.f32.mrf.mxu0
          %v7332 = vadd.f32 %v7293, %v7331
          %7333 = vmatmul.bf16.gmra.mxu0 %v6873
          %v7334 = vpop.f32.mrf.mxu0
          %v7335 = vadd.f32 %v7296, %v7334
          %v7336 = vpop.f32.mrf.mxu0
          %v7337 = vadd.f32 %v7298, %v7336
          %7338 = vmatmul.bf16.gmra.mxu0 %v6876
          %v7339 = vpop.f32.mrf.mxu0
          %v7340 = vadd.f32 %v7301, %v7339
          %v7341 = vpop.f32.mrf.mxu0
          %v7342 = vadd.f32 %v7303, %v7341
          %7343 = vmatmul.bf16.gmra.mxu0 %v6879
          %v7344 = vpop.f32.mrf.mxu0
          %v7345 = vadd.f32 %v7306, %v7344
          %v7346 = vpop.f32.mrf.mxu0
          %v7347 = vadd.f32 %v7308, %v7346
          %7348 = vdwg.mxu0
          %7349 = vmatpush.bf16.msra.mxu0 %v6343
          %7350 = vmatpush.bf16.msra.mxu0 %v6318
          %7351 = vmatpush.bf16.msra.mxu0 %v6293
          %7352 = vmatpush.bf16.msra.mxu0 %v6268
          %7353 = vmatpush.bf16.msra.mxu0 %v6243
          %7354 = vmatpush.bf16.msra.mxu0 %v6218
          %7355 = vmatpush.bf16.msra.mxu0 %v6193
          %7356 = vmatpush.bf16.msra.mxu0 %v6168
          %7357 = vmatmul.bf16.gmra.mxu0 %v5080
          %v7358 = vpop.f32.mrf.mxu0
          %v7359 = vadd.f32 0.0, %v7358
          %v7360 = vpop.f32.mrf.mxu0
          %v7361 = vadd.f32 0.0, %v7360
          %7362 = vmatmul.bf16.gmra.mxu0 %v5082
          %v7363 = vpop.f32.mrf.mxu0
          %v7364 = vadd.f32 0.0, %v7363
          %v7365 = vpop.f32.mrf.mxu0
          %v7366 = vadd.f32 0.0, %v7365
          %7367 = vmatmul.bf16.gmra.mxu0 %v5084
          %v7368 = vpop.f32.mrf.mxu0
          %v7369 = vadd.f32 0.0, %v7368
          %v7370 = vpop.f32.mrf.mxu0
          %v7371 = vadd.f32 0.0, %v7370
          %7372 = vmatmul.bf16.gmra.mxu0 %v5086
          %v7373 = vpop.f32.mrf.mxu0
          %v7374 = vadd.f32 0.0, %v7373
          %v7375 = vpop.f32.mrf.mxu0
          %v7376 = vadd.f32 0.0, %v7375
          %7377 = vmatmul.bf16.gmra.mxu0 %v5088
          %v7378 = vpop.f32.mrf.mxu0
          %v7379 = vadd.f32 0.0, %v7378
          %v7380 = vpop.f32.mrf.mxu0
          %v7381 = vadd.f32 0.0, %v7380
          %7382 = vmatmul.bf16.gmra.mxu0 %v5090
          %v7383 = vpop.f32.mrf.mxu0
          %v7384 = vadd.f32 0.0, %v7383
          %v7385 = vpop.f32.mrf.mxu0
          %v7386 = vadd.f32 0.0, %v7385
          %7387 = vdwg.mxu0
          %7388 = vmatpush.bf16.msra.mxu0 0
          %7389 = vmatpush.bf16.msra.mxu0 0
          %7390 = vmatpush.bf16.msra.mxu0 %v6493
          %7391 = vmatpush.bf16.msra.mxu0 %v6468
          %7392 = vmatpush.bf16.msra.mxu0 %v6443
          %7393 = vmatpush.bf16.msra.mxu0 %v6418
          %7394 = vmatpush.bf16.msra.mxu0 %v6393
          %7395 = vmatpush.bf16.msra.mxu0 %v6368
          %7396 = vmatmul.bf16.gmra.mxu0 %v6864
          %v7397 = vpop.f32.mrf.mxu0
          %v7398 = vadd.f32 %v7359, %v7397
          %v7399 = vpop.f32.mrf.mxu0
          %v7400 = vadd.f32 %v7361, %v7399
          %7401 = vmatmul.bf16.gmra.mxu0 %v6867
          %v7402 = vpop.f32.mrf.mxu0
          %v7403 = vadd.f32 %v7364, %v7402
          %v7404 = vpop.f32.mrf.mxu0
          %v7405 = vadd.f32 %v7366, %v7404
          %7406 = vmatmul.bf16.gmra.mxu0 %v6870
          %v7407 = vpop.f32.mrf.mxu0
          %v7408 = vadd.f32 %v7369, %v7407
          %v7409 = vpop.f32.mrf.mxu0
          %v7410 = vadd.f32 %v7371, %v7409
          %7411 = vmatmul.bf16.gmra.mxu0 %v6873
          %v7412 = vpop.f32.mrf.mxu0
          %v7413 = vadd.f32 %v7374, %v7412
          %v7414 = vpop.f32.mrf.mxu0
          %v7415 = vadd.f32 %v7376, %v7414
          %7416 = vmatmul.bf16.gmra.mxu0 %v6876
          %v7417 = vpop.f32.mrf.mxu0
          %v7418 = vadd.f32 %v7379, %v7417
          %v7419 = vpop.f32.mrf.mxu0
          %v7420 = vadd.f32 %v7381, %v7419
          %7421 = vmatmul.bf16.gmra.mxu0 %v6879
          %v7422 = vpop.f32.mrf.mxu0
          %v7423 = vadd.f32 %v7384, %v7422
          %v7424 = vpop.f32.mrf.mxu0
          %v7425 = vadd.f32 %v7386, %v7424
          %7426 = vdwg.mxu0
          %7427 = vmatpush.bf16.msra.mxu0 %v6344
          %7428 = vmatpush.bf16.msra.mxu0 %v6319
          %7429 = vmatpush.bf16.msra.mxu0 %v6294
          %7430 = vmatpush.bf16.msra.mxu0 %v6269
          %7431 = vmatpush.bf16.msra.mxu0 %v6244
          %7432 = vmatpush.bf16.msra.mxu0 %v6219
          %7433 = vmatpush.bf16.msra.mxu0 %v6194
          %7434 = vmatpush.bf16.msra.mxu0 %v6169
          %7435 = vmatmul.bf16.gmra.mxu0 %v5080
          %v7436 = vpop.f32.mrf.mxu0
          %v7437 = vadd.f32 0.0, %v7436
          %v7438 = vpop.f32.mrf.mxu0
          %v7439 = vadd.f32 0.0, %v7438
          %7440 = vmatmul.bf16.gmra.mxu0 %v5082
          %v7441 = vpop.f32.mrf.mxu0
          %v7442 = vadd.f32 0.0, %v7441
          %v7443 = vpop.f32.mrf.mxu0
          %v7444 = vadd.f32 0.0, %v7443
          %7445 = vmatmul.bf16.gmra.mxu0 %v5084
          %v7446 = vpop.f32.mrf.mxu0
          %v7447 = vadd.f32 0.0, %v7446
          %v7448 = vpop.f32.mrf.mxu0
          %v7449 = vadd.f32 0.0, %v7448
          %7450 = vmatmul.bf16.gmra.mxu0 %v5086
          %v7451 = vpop.f32.mrf.mxu0
          %v7452 = vadd.f32 0.0, %v7451
          %v7453 = vpop.f32.mrf.mxu0
          %v7454 = vadd.f32 0.0, %v7453
          %7455 = vmatmul.bf16.gmra.mxu0 %v5088
          %v7456 = vpop.f32.mrf.mxu0
          %v7457 = vadd.f32 0.0, %v7456
          %v7458 = vpop.f32.mrf.mxu0
          %v7459 = vadd.f32 0.0, %v7458
          %7460 = vmatmul.bf16.gmra.mxu0 %v5090
          %v7461 = vpop.f32.mrf.mxu0
          %v7462 = vadd.f32 0.0, %v7461
          %v7463 = vpop.f32.mrf.mxu0
          %v7464 = vadd.f32 0.0, %v7463
          %7465 = vdwg.mxu0
          %7466 = vmatpush.bf16.msra.mxu0 0
          %7467 = vmatpush.bf16.msra.mxu0 0
          %7468 = vmatpush.bf16.msra.mxu0 %v6494
          %7469 = vmatpush.bf16.msra.mxu0 %v6469
          %7470 = vmatpush.bf16.msra.mxu0 %v6444
          %7471 = vmatpush.bf16.msra.mxu0 %v6419
          %7472 = vmatpush.bf16.msra.mxu0 %v6394
          %7473 = vmatpush.bf16.msra.mxu0 %v6369
          %7474 = vmatmul.bf16.gmra.mxu0 %v6864
          %v7475 = vpop.f32.mrf.mxu0
          %v7476 = vadd.f32 %v7437, %v7475
          %v7477 = vpop.f32.mrf.mxu0
          %v7478 = vadd.f32 %v7439, %v7477
          %7479 = vmatmul.bf16.gmra.mxu0 %v6867
          %v7480 = vpop.f32.mrf.mxu0
          %v7481 = vadd.f32 %v7442, %v7480
          %v7482 = vpop.f32.mrf.mxu0
          %v7483 = vadd.f32 %v7444, %v7482
          %7484 = vmatmul.bf16.gmra.mxu0 %v6870
          %v7485 = vpop.f32.mrf.mxu0
          %v7486 = vadd.f32 %v7447, %v7485
          %v7487 = vpop.f32.mrf.mxu0
          %v7488 = vadd.f32 %v7449, %v7487
          %7489 = vmatmul.bf16.gmra.mxu0 %v6873
          %v7490 = vpop.f32.mrf.mxu0
          %v7491 = vadd.f32 %v7452, %v7490
          %v7492 = vpop.f32.mrf.mxu0
          %v7493 = vadd.f32 %v7454, %v7492
          %7494 = vmatmul.bf16.gmra.mxu0 %v6876
          %v7495 = vpop.f32.mrf.mxu0
          %v7496 = vadd.f32 %v7457, %v7495
          %v7497 = vpop.f32.mrf.mxu0
          %v7498 = vadd.f32 %v7459, %v7497
          %7499 = vmatmul.bf16.gmra.mxu0 %v6879
          %v7500 = vpop.f32.mrf.mxu0
          %v7501 = vadd.f32 %v7462, %v7500
          %v7502 = vpop.f32.mrf.mxu0
          %v7503 = vadd.f32 %v7464, %v7502
          %7504 = vdwg.mxu0
          %7505 = vmatpush.bf16.msra.mxu0 %v6345
          %7506 = vmatpush.bf16.msra.mxu0 %v6320
          %7507 = vmatpush.bf16.msra.mxu0 %v6295
          %7508 = vmatpush.bf16.msra.mxu0 %v6270
          %7509 = vmatpush.bf16.msra.mxu0 %v6245
          %7510 = vmatpush.bf16.msra.mxu0 %v6220
          %7511 = vmatpush.bf16.msra.mxu0 %v6195
          %7512 = vmatpush.bf16.msra.mxu0 %v6170
          %7513 = vmatmul.bf16.gmra.mxu0 %v5080
          %v7514 = vpop.f32.mrf.mxu0
          %v7515 = vadd.f32 0.0, %v7514
          %v7516 = vpop.f32.mrf.mxu0
          %v7517 = vadd.f32 0.0, %v7516
          %7518 = vmatmul.bf16.gmra.mxu0 %v5082
          %v7519 = vpop.f32.mrf.mxu0
          %v7520 = vadd.f32 0.0, %v7519
          %v7521 = vpop.f32.mrf.mxu0
          %v7522 = vadd.f32 0.0, %v7521
          %7523 = vmatmul.bf16.gmra.mxu0 %v5084
          %v7524 = vpop.f32.mrf.mxu0
          %v7525 = vadd.f32 0.0, %v7524
          %v7526 = vpop.f32.mrf.mxu0
          %v7527 = vadd.f32 0.0, %v7526
          %7528 = vmatmul.bf16.gmra.mxu0 %v5086
          %v7529 = vpop.f32.mrf.mxu0
          %v7530 = vadd.f32 0.0, %v7529
          %v7531 = vpop.f32.mrf.mxu0
          %v7532 = vadd.f32 0.0, %v7531
          %7533 = vmatmul.bf16.gmra.mxu0 %v5088
          %v7534 = vpop.f32.mrf.mxu0
          %v7535 = vadd.f32 0.0, %v7534
          %v7536 = vpop.f32.mrf.mxu0
          %v7537 = vadd.f32 0.0, %v7536
          %7538 = vmatmul.bf16.gmra.mxu0 %v5090
          %v7539 = vpop.f32.mrf.mxu0
          %v7540 = vadd.f32 0.0, %v7539
          %v7541 = vpop.f32.mrf.mxu0
          %v7542 = vadd.f32 0.0, %v7541
          %7543 = vdwg.mxu0
          %7544 = vmatpush.bf16.msra.mxu0 0
          %7545 = vmatpush.bf16.msra.mxu0 0
          %7546 = vmatpush.bf16.msra.mxu0 %v6495
          %7547 = vmatpush.bf16.msra.mxu0 %v6470
          %7548 = vmatpush.bf16.msra.mxu0 %v6445
          %7549 = vmatpush.bf16.msra.mxu0 %v6420
          %7550 = vmatpush.bf16.msra.mxu0 %v6395
          %7551 = vmatpush.bf16.msra.mxu0 %v6370
          %7552 = vmatmul.bf16.gmra.mxu0 %v6864
          %v7553 = vpop.f32.mrf.mxu0
          %v7554 = vadd.f32 %v7515, %v7553
          %v7555 = vpop.f32.mrf.mxu0
          %v7556 = vadd.f32 %v7517, %v7555
          %7557 = vmatmul.bf16.gmra.mxu0 %v6867
          %v7558 = vpop.f32.mrf.mxu0
          %v7559 = vadd.f32 %v7520, %v7558
          %v7560 = vpop.f32.mrf.mxu0
          %v7561 = vadd.f32 %v7522, %v7560
          %7562 = vmatmul.bf16.gmra.mxu0 %v6870
          %v7563 = vpop.f32.mrf.mxu0
          %v7564 = vadd.f32 %v7525, %v7563
          %v7565 = vpop.f32.mrf.mxu0
          %v7566 = vadd.f32 %v7527, %v7565
          %7567 = vmatmul.bf16.gmra.mxu0 %v6873
          %v7568 = vpop.f32.mrf.mxu0
          %v7569 = vadd.f32 %v7530, %v7568
          %v7570 = vpop.f32.mrf.mxu0
          %v7571 = vadd.f32 %v7532, %v7570
          %7572 = vmatmul.bf16.gmra.mxu0 %v6876
          %v7573 = vpop.f32.mrf.mxu0
          %v7574 = vadd.f32 %v7535, %v7573
          %v7575 = vpop.f32.mrf.mxu0
          %v7576 = vadd.f32 %v7537, %v7575
          %7577 = vmatmul.bf16.gmra.mxu0 %v6879
          %v7578 = vpop.f32.mrf.mxu0
          %v7579 = vadd.f32 %v7540, %v7578
          %v7580 = vpop.f32.mrf.mxu0
          %v7581 = vadd.f32 %v7542, %v7580
          %7582 = vdwg.mxu0
          %7583 = vmatpush.bf16.msra.mxu0 %v6346
          %7584 = vmatpush.bf16.msra.mxu0 %v6321
          %7585 = vmatpush.bf16.msra.mxu0 %v6296
          %7586 = vmatpush.bf16.msra.mxu0 %v6271
          %7587 = vmatpush.bf16.msra.mxu0 %v6246
          %7588 = vmatpush.bf16.msra.mxu0 %v6221
          %7589 = vmatpush.bf16.msra.mxu0 %v6196
          %7590 = vmatpush.bf16.msra.mxu0 %v6171
          %7591 = vmatmul.bf16.gmra.mxu0 %v5080
          %v7592 = vpop.f32.mrf.mxu0
          %v7593 = vadd.f32 0.0, %v7592
          %v7594 = vpop.f32.mrf.mxu0
          %v7595 = vadd.f32 0.0, %v7594
          %7596 = vmatmul.bf16.gmra.mxu0 %v5082
          %v7597 = vpop.f32.mrf.mxu0
          %v7598 = vadd.f32 0.0, %v7597
          %v7599 = vpop.f32.mrf.mxu0
          %v7600 = vadd.f32 0.0, %v7599
          %7601 = vmatmul.bf16.gmra.mxu0 %v5084
          %v7602 = vpop.f32.mrf.mxu0
          %v7603 = vadd.f32 0.0, %v7602
          %v7604 = vpop.f32.mrf.mxu0
          %v7605 = vadd.f32 0.0, %v7604
          %7606 = vmatmul.bf16.gmra.mxu0 %v5086
          %v7607 = vpop.f32.mrf.mxu0
          %v7608 = vadd.f32 0.0, %v7607
          %v7609 = vpop.f32.mrf.mxu0
          %v7610 = vadd.f32 0.0, %v7609
          %7611 = vmatmul.bf16.gmra.mxu0 %v5088
          %v7612 = vpop.f32.mrf.mxu0
          %v7613 = vadd.f32 0.0, %v7612
          %v7614 = vpop.f32.mrf.mxu0
          %v7615 = vadd.f32 0.0, %v7614
          %7616 = vmatmul.bf16.gmra.mxu0 %v5090
          %v7617 = vpop.f32.mrf.mxu0
          %v7618 = vadd.f32 0.0, %v7617
          %v7619 = vpop.f32.mrf.mxu0
          %v7620 = vadd.f32 0.0, %v7619
          %7621 = vdwg.mxu0
          %7622 = vmatpush.bf16.msra.mxu0 0
          %7623 = vmatpush.bf16.msra.mxu0 0
          %7624 = vmatpush.bf16.msra.mxu0 %v6496
          %7625 = vmatpush.bf16.msra.mxu0 %v6471
          %7626 = vmatpush.bf16.msra.mxu0 %v6446
          %7627 = vmatpush.bf16.msra.mxu0 %v6421
          %7628 = vmatpush.bf16.msra.mxu0 %v6396
          %7629 = vmatpush.bf16.msra.mxu0 %v6371
          %7630 = vmatmul.bf16.gmra.mxu0 %v6864
          %v7631 = vpop.f32.mrf.mxu0
          %v7632 = vadd.f32 %v7593, %v7631
          %v7633 = vpop.f32.mrf.mxu0
          %v7634 = vadd.f32 %v7595, %v7633
          %7635 = vmatmul.bf16.gmra.mxu0 %v6867
          %v7636 = vpop.f32.mrf.mxu0
          %v7637 = vadd.f32 %v7598, %v7636
          %v7638 = vpop.f32.mrf.mxu0
          %v7639 = vadd.f32 %v7600, %v7638
          %7640 = vmatmul.bf16.gmra.mxu0 %v6870
          %v7641 = vpop.f32.mrf.mxu0
          %v7642 = vadd.f32 %v7603, %v7641
          %v7643 = vpop.f32.mrf.mxu0
          %v7644 = vadd.f32 %v7605, %v7643
          %7645 = vmatmul.bf16.gmra.mxu0 %v6873
          %v7646 = vpop.f32.mrf.mxu0
          %v7647 = vadd.f32 %v7608, %v7646
          %v7648 = vpop.f32.mrf.mxu0
          %v7649 = vadd.f32 %v7610, %v7648
          %7650 = vmatmul.bf16.gmra.mxu0 %v6876
          %v7651 = vpop.f32.mrf.mxu0
          %v7652 = vadd.f32 %v7613, %v7651
          %v7653 = vpop.f32.mrf.mxu0
          %v7654 = vadd.f32 %v7615, %v7653
          %7655 = vmatmul.bf16.gmra.mxu0 %v6879
          %v7656 = vpop.f32.mrf.mxu0
          %v7657 = vadd.f32 %v7618, %v7656
          %v7658 = vpop.f32.mrf.mxu0
          %v7659 = vadd.f32 %v7620, %v7658
          %7660 = vdwg.mxu0
          %7661 = vmatpush.bf16.msra.mxu0 %v6347
          %7662 = vmatpush.bf16.msra.mxu0 %v6322
          %7663 = vmatpush.bf16.msra.mxu0 %v6297
          %7664 = vmatpush.bf16.msra.mxu0 %v6272
          %7665 = vmatpush.bf16.msra.mxu0 %v6247
          %7666 = vmatpush.bf16.msra.mxu0 %v6222
          %7667 = vmatpush.bf16.msra.mxu0 %v6197
          %7668 = vmatpush.bf16.msra.mxu0 %v6172
          %7669 = vmatmul.bf16.gmra.mxu0 %v5080
          %v7670 = vpop.f32.mrf.mxu0
          %v7671 = vadd.f32 0.0, %v7670
          %v7672 = vpop.f32.mrf.mxu0
          %v7673 = vadd.f32 0.0, %v7672
          %7674 = vmatmul.bf16.gmra.mxu0 %v5082
          %v7675 = vpop.f32.mrf.mxu0
          %v7676 = vadd.f32 0.0, %v7675
          %v7677 = vpop.f32.mrf.mxu0
          %v7678 = vadd.f32 0.0, %v7677
          %7679 = vmatmul.bf16.gmra.mxu0 %v5084
          %v7680 = vpop.f32.mrf.mxu0
          %v7681 = vadd.f32 0.0, %v7680
          %v7682 = vpop.f32.mrf.mxu0
          %v7683 = vadd.f32 0.0, %v7682
          %7684 = vmatmul.bf16.gmra.mxu0 %v5086
          %v7685 = vpop.f32.mrf.mxu0
          %v7686 = vadd.f32 0.0, %v7685
          %v7687 = vpop.f32.mrf.mxu0
          %v7688 = vadd.f32 0.0, %v7687
          %7689 = vmatmul.bf16.gmra.mxu0 %v5088
          %v7690 = vpop.f32.mrf.mxu0
          %v7691 = vadd.f32 0.0, %v7690
          %v7692 = vpop.f32.mrf.mxu0
          %v7693 = vadd.f32 0.0, %v7692
          %7694 = vmatmul.bf16.gmra.mxu0 %v5090
          %v7695 = vpop.f32.mrf.mxu0
          %v7696 = vadd.f32 0.0, %v7695
          %v7697 = vpop.f32.mrf.mxu0
          %v7698 = vadd.f32 0.0, %v7697
          %7699 = vdwg.mxu0
          %7700 = vmatpush.bf16.msra.mxu0 0
          %7701 = vmatpush.bf16.msra.mxu0 0
          %7702 = vmatpush.bf16.msra.mxu0 %v6497
          %7703 = vmatpush.bf16.msra.mxu0 %v6472
          %7704 = vmatpush.bf16.msra.mxu0 %v6447
          %7705 = vmatpush.bf16.msra.mxu0 %v6422
          %7706 = vmatpush.bf16.msra.mxu0 %v6397
          %7707 = vmatpush.bf16.msra.mxu0 %v6372
          %7708 = vmatmul.bf16.gmra.mxu0 %v6864
          %v7709 = vpop.f32.mrf.mxu0
          %v7710 = vadd.f32 %v7671, %v7709
          %v7711 = vpop.f32.mrf.mxu0
          %v7712 = vadd.f32 %v7673, %v7711
          %7713 = vmatmul.bf16.gmra.mxu0 %v6867
          %v7714 = vpop.f32.mrf.mxu0
          %v7715 = vadd.f32 %v7676, %v7714
          %v7716 = vpop.f32.mrf.mxu0
          %v7717 = vadd.f32 %v7678, %v7716
          %7718 = vmatmul.bf16.gmra.mxu0 %v6870
          %v7719 = vpop.f32.mrf.mxu0
          %v7720 = vadd.f32 %v7681, %v7719
          %v7721 = vpop.f32.mrf.mxu0
          %v7722 = vadd.f32 %v7683, %v7721
          %7723 = vmatmul.bf16.gmra.mxu0 %v6873
          %v7724 = vpop.f32.mrf.mxu0
          %v7725 = vadd.f32 %v7686, %v7724
          %v7726 = vpop.f32.mrf.mxu0
          %v7727 = vadd.f32 %v7688, %v7726
          %7728 = vmatmul.bf16.gmra.mxu0 %v6876
          %v7729 = vpop.f32.mrf.mxu0
          %v7730 = vadd.f32 %v7691, %v7729
          %v7731 = vpop.f32.mrf.mxu0
          %v7732 = vadd.f32 %v7693, %v7731
          %7733 = vmatmul.bf16.gmra.mxu0 %v6879
          %v7734 = vpop.f32.mrf.mxu0
          %v7735 = vadd.f32 %v7696, %v7734
          %v7736 = vpop.f32.mrf.mxu0
          %v7737 = vadd.f32 %v7698, %v7736
          %7738 = vdwg.mxu0
          %7739 = vmatpush.bf16.msra.mxu0 %v6348
          %7740 = vmatpush.bf16.msra.mxu0 %v6323
          %7741 = vmatpush.bf16.msra.mxu0 %v6298
          %7742 = vmatpush.bf16.msra.mxu0 %v6273
          %7743 = vmatpush.bf16.msra.mxu0 %v6248
          %7744 = vmatpush.bf16.msra.mxu0 %v6223
          %7745 = vmatpush.bf16.msra.mxu0 %v6198
          %7746 = vmatpush.bf16.msra.mxu0 %v6173
          %7747 = vmatmul.bf16.gmra.mxu0 %v5080
          %v7748 = vpop.f32.mrf.mxu0
          %v7749 = vadd.f32 0.0, %v7748
          %v7750 = vpop.f32.mrf.mxu0
          %v7751 = vadd.f32 0.0, %v7750
          %7752 = vmatmul.bf16.gmra.mxu0 %v5082
          %v7753 = vpop.f32.mrf.mxu0
          %v7754 = vadd.f32 0.0, %v7753
          %v7755 = vpop.f32.mrf.mxu0
          %v7756 = vadd.f32 0.0, %v7755
          %7757 = vmatmul.bf16.gmra.mxu0 %v5084
          %v7758 = vpop.f32.mrf.mxu0
          %v7759 = vadd.f32 0.0, %v7758
          %v7760 = vpop.f32.mrf.mxu0
          %v7761 = vadd.f32 0.0, %v7760
          %7762 = vmatmul.bf16.gmra.mxu0 %v5086
          %v7763 = vpop.f32.mrf.mxu0
          %v7764 = vadd.f32 0.0, %v7763
          %v7765 = vpop.f32.mrf.mxu0
          %v7766 = vadd.f32 0.0, %v7765
          %7767 = vmatmul.bf16.gmra.mxu0 %v5088
          %v7768 = vpop.f32.mrf.mxu0
          %v7769 = vadd.f32 0.0, %v7768
          %v7770 = vpop.f32.mrf.mxu0
          %v7771 = vadd.f32 0.0, %v7770
          %7772 = vmatmul.bf16.gmra.mxu0 %v5090
          %v7773 = vpop.f32.mrf.mxu0
          %v7774 = vadd.f32 0.0, %v7773
          %v7775 = vpop.f32.mrf.mxu0
          %v7776 = vadd.f32 0.0, %v7775
          %7777 = vdwg.mxu0
          %7778 = vmatpush.bf16.msra.mxu0 0
          %7779 = vmatpush.bf16.msra.mxu0 0
          %7780 = vmatpush.bf16.msra.mxu0 %v6498
          %7781 = vmatpush.bf16.msra.mxu0 %v6473
          %7782 = vmatpush.bf16.msra.mxu0 %v6448
          %7783 = vmatpush.bf16.msra.mxu0 %v6423
          %7784 = vmatpush.bf16.msra.mxu0 %v6398
          %7785 = vmatpush.bf16.msra.mxu0 %v6373
          %7786 = vmatmul.bf16.gmra.mxu0 %v6864
          %v7787 = vpop.f32.mrf.mxu0
          %v7788 = vadd.f32 %v7749, %v7787
          %v7789 = vpop.f32.mrf.mxu0
          %v7790 = vadd.f32 %v7751, %v7789
          %7791 = vmatmul.bf16.gmra.mxu0 %v6867
          %v7792 = vpop.f32.mrf.mxu0
          %v7793 = vadd.f32 %v7754, %v7792
          %v7794 = vpop.f32.mrf.mxu0
          %v7795 = vadd.f32 %v7756, %v7794
          %7796 = vmatmul.bf16.gmra.mxu0 %v6870
          %v7797 = vpop.f32.mrf.mxu0
          %v7798 = vadd.f32 %v7759, %v7797
          %v7799 = vpop.f32.mrf.mxu0
          %v7800 = vadd.f32 %v7761, %v7799
          %7801 = vmatmul.bf16.gmra.mxu0 %v6873
          %v7802 = vpop.f32.mrf.mxu0
          %v7803 = vadd.f32 %v7764, %v7802
          %v7804 = vpop.f32.mrf.mxu0
          %v7805 = vadd.f32 %v7766, %v7804
          %7806 = vmatmul.bf16.gmra.mxu0 %v6876
          %v7807 = vpop.f32.mrf.mxu0
          %v7808 = vadd.f32 %v7769, %v7807
          %v7809 = vpop.f32.mrf.mxu0
          %v7810 = vadd.f32 %v7771, %v7809
          %7811 = vmatmul.bf16.gmra.mxu0 %v6879
          %v7812 = vpop.f32.mrf.mxu0
          %v7813 = vadd.f32 %v7774, %v7812
          %v7814 = vpop.f32.mrf.mxu0
          %v7815 = vadd.f32 %v7776, %v7814
          %7816 = vdwg.mxu0
          %7817 = vmatpush.bf16.msra.mxu0 %v6349
          %7818 = vmatpush.bf16.msra.mxu0 %v6324
          %7819 = vmatpush.bf16.msra.mxu0 %v6299
          %7820 = vmatpush.bf16.msra.mxu0 %v6274
          %7821 = vmatpush.bf16.msra.mxu0 %v6249
          %7822 = vmatpush.bf16.msra.mxu0 %v6224
          %7823 = vmatpush.bf16.msra.mxu0 %v6199
          %7824 = vmatpush.bf16.msra.mxu0 %v6174
          %7825 = vmatmul.bf16.gmra.mxu0 %v5080
          %v7826 = vpop.f32.mrf.mxu0
          %v7827 = vadd.f32 0.0, %v7826
          %v7828 = vpop.f32.mrf.mxu0
          %v7829 = vadd.f32 0.0, %v7828
          %7830 = vmatmul.bf16.gmra.mxu0 %v5082
          %v7831 = vpop.f32.mrf.mxu0
          %v7832 = vadd.f32 0.0, %v7831
          %v7833 = vpop.f32.mrf.mxu0
          %v7834 = vadd.f32 0.0, %v7833
          %7835 = vmatmul.bf16.gmra.mxu0 %v5084
          %v7836 = vpop.f32.mrf.mxu0
          %v7837 = vadd.f32 0.0, %v7836
          %v7838 = vpop.f32.mrf.mxu0
          %v7839 = vadd.f32 0.0, %v7838
          %7840 = vmatmul.bf16.gmra.mxu0 %v5086
          %v7841 = vpop.f32.mrf.mxu0
          %v7842 = vadd.f32 0.0, %v7841
          %v7843 = vpop.f32.mrf.mxu0
          %v7844 = vadd.f32 0.0, %v7843
          %7845 = vmatmul.bf16.gmra.mxu0 %v5088
          %v7846 = vpop.f32.mrf.mxu0
          %v7847 = vadd.f32 0.0, %v7846
          %v7848 = vpop.f32.mrf.mxu0
          %v7849 = vadd.f32 0.0, %v7848
          %7850 = vmatmul.bf16.gmra.mxu0 %v5090
          %v7851 = vpop.f32.mrf.mxu0
          %v7852 = vadd.f32 0.0, %v7851
          %v7853 = vpop.f32.mrf.mxu0
          %v7854 = vadd.f32 0.0, %v7853
          %7855 = vdwg.mxu0
          %7856 = vmatpush.bf16.msra.mxu0 0
          %7857 = vmatpush.bf16.msra.mxu0 0
          %7858 = vmatpush.bf16.msra.mxu0 %v6499
          %7859 = vmatpush.bf16.msra.mxu0 %v6474
          %7860 = vmatpush.bf16.msra.mxu0 %v6449
          %7861 = vmatpush.bf16.msra.mxu0 %v6424
          %7862 = vmatpush.bf16.msra.mxu0 %v6399
          %7863 = vmatpush.bf16.msra.mxu0 %v6374
          %7864 = vmatmul.bf16.gmra.mxu0 %v6864
          %v7865 = vpop.f32.mrf.mxu0
          %v7866 = vadd.f32 %v7827, %v7865
          %v7867 = vpop.f32.mrf.mxu0
          %v7868 = vadd.f32 %v7829, %v7867
          %7869 = vmatmul.bf16.gmra.mxu0 %v6867
          %v7870 = vpop.f32.mrf.mxu0
          %v7871 = vadd.f32 %v7832, %v7870
          %v7872 = vpop.f32.mrf.mxu0
          %v7873 = vadd.f32 %v7834, %v7872
          %7874 = vmatmul.bf16.gmra.mxu0 %v6870
          %v7875 = vpop.f32.mrf.mxu0
          %v7876 = vadd.f32 %v7837, %v7875
          %v7877 = vpop.f32.mrf.mxu0
          %v7878 = vadd.f32 %v7839, %v7877
          %7879 = vmatmul.bf16.gmra.mxu0 %v6873
          %v7880 = vpop.f32.mrf.mxu0
          %v7881 = vadd.f32 %v7842, %v7880
          %v7882 = vpop.f32.mrf.mxu0
          %v7883 = vadd.f32 %v7844, %v7882
          %7884 = vmatmul.bf16.gmra.mxu0 %v6876
          %v7885 = vpop.f32.mrf.mxu0
          %v7886 = vadd.f32 %v7847, %v7885
          %v7887 = vpop.f32.mrf.mxu0
          %v7888 = vadd.f32 %v7849, %v7887
          %7889 = vmatmul.bf16.gmra.mxu0 %v6879
          %v7890 = vpop.f32.mrf.mxu0
          %v7891 = vadd.f32 %v7852, %v7890
          %v7892 = vpop.f32.mrf.mxu0
          %v7893 = vadd.f32 %v7854, %v7892
          %7894 = vdwg.mxu0
          %7895 = vmatpush.bf16.msra.mxu0 %v6350
          %7896 = vmatpush.bf16.msra.mxu0 %v6325
          %7897 = vmatpush.bf16.msra.mxu0 %v6300
          %7898 = vmatpush.bf16.msra.mxu0 %v6275
          %7899 = vmatpush.bf16.msra.mxu0 %v6250
          %7900 = vmatpush.bf16.msra.mxu0 %v6225
          %7901 = vmatpush.bf16.msra.mxu0 %v6200
          %7902 = vmatpush.bf16.msra.mxu0 %v6175
          %7903 = vmatmul.bf16.gmra.mxu0 %v5080
          %v7904 = vpop.f32.mrf.mxu0
          %v7905 = vadd.f32 0.0, %v7904
          %v7906 = vpop.f32.mrf.mxu0
          %v7907 = vadd.f32 0.0, %v7906
          %7908 = vmatmul.bf16.gmra.mxu0 %v5082
          %v7909 = vpop.f32.mrf.mxu0
          %v7910 = vadd.f32 0.0, %v7909
          %v7911 = vpop.f32.mrf.mxu0
          %v7912 = vadd.f32 0.0, %v7911
          %7913 = vmatmul.bf16.gmra.mxu0 %v5084
          %v7914 = vpop.f32.mrf.mxu0
          %v7915 = vadd.f32 0.0, %v7914
          %v7916 = vpop.f32.mrf.mxu0
          %v7917 = vadd.f32 0.0, %v7916
          %7918 = vmatmul.bf16.gmra.mxu0 %v5086
          %v7919 = vpop.f32.mrf.mxu0
          %v7920 = vadd.f32 0.0, %v7919
          %v7921 = vpop.f32.mrf.mxu0
          %v7922 = vadd.f32 0.0, %v7921
          %7923 = vmatmul.bf16.gmra.mxu0 %v5088
          %v7924 = vpop.f32.mrf.mxu0
          %v7925 = vadd.f32 0.0, %v7924
          %v7926 = vpop.f32.mrf.mxu0
          %v7927 = vadd.f32 0.0, %v7926
          %7928 = vmatmul.bf16.gmra.mxu0 %v5090
          %v7929 = vpop.f32.mrf.mxu0
          %v7930 = vadd.f32 0.0, %v7929
          %v7931 = vpop.f32.mrf.mxu0
          %v7932 = vadd.f32 0.0, %v7931
          %7933 = vdwg.mxu0
          %7934 = vmatpush.bf16.msra.mxu0 0
          %7935 = vmatpush.bf16.msra.mxu0 0
          %7936 = vmatpush.bf16.msra.mxu0 %v6500
          %7937 = vmatpush.bf16.msra.mxu0 %v6475
          %7938 = vmatpush.bf16.msra.mxu0 %v6450
          %7939 = vmatpush.bf16.msra.mxu0 %v6425
          %7940 = vmatpush.bf16.msra.mxu0 %v6400
          %7941 = vmatpush.bf16.msra.mxu0 %v6375
          %7942 = vmatmul.bf16.gmra.mxu0 %v6864
          %v7943 = vpop.f32.mrf.mxu0
          %v7944 = vadd.f32 %v7905, %v7943
          %v7945 = vpop.f32.mrf.mxu0
          %v7946 = vadd.f32 %v7907, %v7945
          %7947 = vmatmul.bf16.gmra.mxu0 %v6867
          %v7948 = vpop.f32.mrf.mxu0
          %v7949 = vadd.f32 %v7910, %v7948
          %v7950 = vpop.f32.mrf.mxu0
          %v7951 = vadd.f32 %v7912, %v7950
          %7952 = vmatmul.bf16.gmra.mxu0 %v6870
          %v7953 = vpop.f32.mrf.mxu0
          %v7954 = vadd.f32 %v7915, %v7953
          %v7955 = vpop.f32.mrf.mxu0
          %v7956 = vadd.f32 %v7917, %v7955
          %7957 = vmatmul.bf16.gmra.mxu0 %v6873
          %v7958 = vpop.f32.mrf.mxu0
          %v7959 = vadd.f32 %v7920, %v7958
          %v7960 = vpop.f32.mrf.mxu0
          %v7961 = vadd.f32 %v7922, %v7960
          %7962 = vmatmul.bf16.gmra.mxu0 %v6876
          %v7963 = vpop.f32.mrf.mxu0
          %v7964 = vadd.f32 %v7925, %v7963
          %v7965 = vpop.f32.mrf.mxu0
          %v7966 = vadd.f32 %v7927, %v7965
          %7967 = vmatmul.bf16.gmra.mxu0 %v6879
          %v7968 = vpop.f32.mrf.mxu0
          %v7969 = vadd.f32 %v7930, %v7968
          %v7970 = vpop.f32.mrf.mxu0
          %v7971 = vadd.f32 %v7932, %v7970
          %7972 = vdwg.mxu0
          %7973 = vmatpush.bf16.msra.mxu0 %v6351
          %7974 = vmatpush.bf16.msra.mxu0 %v6326
          %7975 = vmatpush.bf16.msra.mxu0 %v6301
          %7976 = vmatpush.bf16.msra.mxu0 %v6276
          %7977 = vmatpush.bf16.msra.mxu0 %v6251
          %7978 = vmatpush.bf16.msra.mxu0 %v6226
          %7979 = vmatpush.bf16.msra.mxu0 %v6201
          %7980 = vmatpush.bf16.msra.mxu0 %v6176
          %7981 = vmatmul.bf16.gmra.mxu0 %v5080
          %v7982 = vpop.f32.mrf.mxu0
          %v7983 = vadd.f32 0.0, %v7982
          %v7984 = vpop.f32.mrf.mxu0
          %v7985 = vadd.f32 0.0, %v7984
          %7986 = vmatmul.bf16.gmra.mxu0 %v5082
          %v7987 = vpop.f32.mrf.mxu0
          %v7988 = vadd.f32 0.0, %v7987
          %v7989 = vpop.f32.mrf.mxu0
          %v7990 = vadd.f32 0.0, %v7989
          %7991 = vmatmul.bf16.gmra.mxu0 %v5084
          %v7992 = vpop.f32.mrf.mxu0
          %v7993 = vadd.f32 0.0, %v7992
          %v7994 = vpop.f32.mrf.mxu0
          %v7995 = vadd.f32 0.0, %v7994
          %7996 = vmatmul.bf16.gmra.mxu0 %v5086
          %v7997 = vpop.f32.mrf.mxu0
          %v7998 = vadd.f32 0.0, %v7997
          %v7999 = vpop.f32.mrf.mxu0
          %v8000 = vadd.f32 0.0, %v7999
          %8001 = vmatmul.bf16.gmra.mxu0 %v5088
          %v8002 = vpop.f32.mrf.mxu0
          %v8003 = vadd.f32 0.0, %v8002
          %v8004 = vpop.f32.mrf.mxu0
          %v8005 = vadd.f32 0.0, %v8004
          %8006 = vmatmul.bf16.gmra.mxu0 %v5090
          %v8007 = vpop.f32.mrf.mxu0
          %v8008 = vadd.f32 0.0, %v8007
          %v8009 = vpop.f32.mrf.mxu0
          %v8010 = vadd.f32 0.0, %v8009
          %8011 = vdwg.mxu0
          %8012 = vmatpush.bf16.msra.mxu0 0
          %8013 = vmatpush.bf16.msra.mxu0 0
          %8014 = vmatpush.bf16.msra.mxu0 %v6501
          %8015 = vmatpush.bf16.msra.mxu0 %v6476
          %8016 = vmatpush.bf16.msra.mxu0 %v6451
          %8017 = vmatpush.bf16.msra.mxu0 %v6426
          %8018 = vmatpush.bf16.msra.mxu0 %v6401
          %8019 = vmatpush.bf16.msra.mxu0 %v6376
          %8020 = vmatmul.bf16.gmra.mxu0 %v6864
          %v8021 = vpop.f32.mrf.mxu0
          %v8022 = vadd.f32 %v7983, %v8021
          %v8023 = vpop.f32.mrf.mxu0
          %v8024 = vadd.f32 %v7985, %v8023
          %8025 = vmatmul.bf16.gmra.mxu0 %v6867
          %v8026 = vpop.f32.mrf.mxu0
          %v8027 = vadd.f32 %v7988, %v8026
          %v8028 = vpop.f32.mrf.mxu0
          %v8029 = vadd.f32 %v7990, %v8028
          %8030 = vmatmul.bf16.gmra.mxu0 %v6870
          %v8031 = vpop.f32.mrf.mxu0
          %v8032 = vadd.f32 %v7993, %v8031
          %v8033 = vpop.f32.mrf.mxu0
          %v8034 = vadd.f32 %v7995, %v8033
          %8035 = vmatmul.bf16.gmra.mxu0 %v6873
          %v8036 = vpop.f32.mrf.mxu0
          %v8037 = vadd.f32 %v7998, %v8036
          %v8038 = vpop.f32.mrf.mxu0
          %v8039 = vadd.f32 %v8000, %v8038
          %8040 = vmatmul.bf16.gmra.mxu0 %v6876
          %v8041 = vpop.f32.mrf.mxu0
          %v8042 = vadd.f32 %v8003, %v8041
          %v8043 = vpop.f32.mrf.mxu0
          %v8044 = vadd.f32 %v8005, %v8043
          %8045 = vmatmul.bf16.gmra.mxu0 %v6879
          %v8046 = vpop.f32.mrf.mxu0
          %v8047 = vadd.f32 %v8008, %v8046
          %v8048 = vpop.f32.mrf.mxu0
          %v8049 = vadd.f32 %v8010, %v8048
          %8050 = vdwg.mxu0
          %8051 = vmatpush.bf16.msra.mxu0 %v6352
          %8052 = vmatpush.bf16.msra.mxu0 %v6327
          %8053 = vmatpush.bf16.msra.mxu0 %v6302
          %8054 = vmatpush.bf16.msra.mxu0 %v6277
          %8055 = vmatpush.bf16.msra.mxu0 %v6252
          %8056 = vmatpush.bf16.msra.mxu0 %v6227
          %8057 = vmatpush.bf16.msra.mxu0 %v6202
          %8058 = vmatpush.bf16.msra.mxu0 %v6177
          %8059 = vmatmul.bf16.gmra.mxu0 %v5080
          %v8060 = vpop.f32.mrf.mxu0
          %v8061 = vadd.f32 0.0, %v8060
          %v8062 = vpop.f32.mrf.mxu0
          %v8063 = vadd.f32 0.0, %v8062
          %8064 = vmatmul.bf16.gmra.mxu0 %v5082
          %v8065 = vpop.f32.mrf.mxu0
          %v8066 = vadd.f32 0.0, %v8065
          %v8067 = vpop.f32.mrf.mxu0
          %v8068 = vadd.f32 0.0, %v8067
          %8069 = vmatmul.bf16.gmra.mxu0 %v5084
          %v8070 = vpop.f32.mrf.mxu0
          %v8071 = vadd.f32 0.0, %v8070
          %v8072 = vpop.f32.mrf.mxu0
          %v8073 = vadd.f32 0.0, %v8072
          %8074 = vmatmul.bf16.gmra.mxu0 %v5086
          %v8075 = vpop.f32.mrf.mxu0
          %v8076 = vadd.f32 0.0, %v8075
          %v8077 = vpop.f32.mrf.mxu0
          %v8078 = vadd.f32 0.0, %v8077
          %8079 = vmatmul.bf16.gmra.mxu0 %v5088
          %v8080 = vpop.f32.mrf.mxu0
          %v8081 = vadd.f32 0.0, %v8080
          %v8082 = vpop.f32.mrf.mxu0
          %v8083 = vadd.f32 0.0, %v8082
          %8084 = vmatmul.bf16.gmra.mxu0 %v5090
          %v8085 = vpop.f32.mrf.mxu0
          %v8086 = vadd.f32 0.0, %v8085
          %v8087 = vpop.f32.mrf.mxu0
          %v8088 = vadd.f32 0.0, %v8087
          %8089 = vdwg.mxu0
          %8090 = vmatpush.bf16.msra.mxu0 0
          %8091 = vmatpush.bf16.msra.mxu0 0
          %8092 = vmatpush.bf16.msra.mxu0 %v6502
          %8093 = vmatpush.bf16.msra.mxu0 %v6477
          %8094 = vmatpush.bf16.msra.mxu0 %v6452
          %8095 = vmatpush.bf16.msra.mxu0 %v6427
          %8096 = vmatpush.bf16.msra.mxu0 %v6402
          %8097 = vmatpush.bf16.msra.mxu0 %v6377
          %8098 = vmatmul.bf16.gmra.mxu0 %v6864
          %v8099 = vpop.f32.mrf.mxu0
          %v8100 = vadd.f32 %v8061, %v8099
          %v8101 = vpop.f32.mrf.mxu0
          %v8102 = vadd.f32 %v8063, %v8101
          %8103 = vmatmul.bf16.gmra.mxu0 %v6867
          %v8104 = vpop.f32.mrf.mxu0
          %v8105 = vadd.f32 %v8066, %v8104
          %v8106 = vpop.f32.mrf.mxu0
          %v8107 = vadd.f32 %v8068, %v8106
          %8108 = vmatmul.bf16.gmra.mxu0 %v6870
          %v8109 = vpop.f32.mrf.mxu0
          %v8110 = vadd.f32 %v8071, %v8109
          %v8111 = vpop.f32.mrf.mxu0
          %v8112 = vadd.f32 %v8073, %v8111
          %8113 = vmatmul.bf16.gmra.mxu0 %v6873
          %v8114 = vpop.f32.mrf.mxu0
          %v8115 = vadd.f32 %v8076, %v8114
          %v8116 = vpop.f32.mrf.mxu0
          %v8117 = vadd.f32 %v8078, %v8116
          %8118 = vmatmul.bf16.gmra.mxu0 %v6876
          %v8119 = vpop.f32.mrf.mxu0
          %v8120 = vadd.f32 %v8081, %v8119
          %v8121 = vpop.f32.mrf.mxu0
          %v8122 = vadd.f32 %v8083, %v8121
          %8123 = vmatmul.bf16.gmra.mxu0 %v6879
          %v8124 = vpop.f32.mrf.mxu0
          %v8125 = vadd.f32 %v8086, %v8124
          %v8126 = vpop.f32.mrf.mxu0
          %v8127 = vadd.f32 %v8088, %v8126
          %8128 = vdwg.mxu0
          %8129 = vmatpush.bf16.msra.mxu0 %v6353
          %8130 = vmatpush.bf16.msra.mxu0 %v6328
          %8131 = vmatpush.bf16.msra.mxu0 %v6303
          %8132 = vmatpush.bf16.msra.mxu0 %v6278
          %8133 = vmatpush.bf16.msra.mxu0 %v6253
          %8134 = vmatpush.bf16.msra.mxu0 %v6228
          %8135 = vmatpush.bf16.msra.mxu0 %v6203
          %8136 = vmatpush.bf16.msra.mxu0 %v6178
          %8137 = vmatmul.bf16.gmra.mxu0 %v5080
          %v8138 = vpop.f32.mrf.mxu0
          %v8139 = vadd.f32 0.0, %v8138
          %v8140 = vpop.f32.mrf.mxu0
          %v8141 = vadd.f32 0.0, %v8140
          %8142 = vmatmul.bf16.gmra.mxu0 %v5082
          %v8143 = vpop.f32.mrf.mxu0
          %v8144 = vadd.f32 0.0, %v8143
          %v8145 = vpop.f32.mrf.mxu0
          %v8146 = vadd.f32 0.0, %v8145
          %8147 = vmatmul.bf16.gmra.mxu0 %v5084
          %v8148 = vpop.f32.mrf.mxu0
          %v8149 = vadd.f32 0.0, %v8148
          %v8150 = vpop.f32.mrf.mxu0
          %v8151 = vadd.f32 0.0, %v8150
          %8152 = vmatmul.bf16.gmra.mxu0 %v5086
          %v8153 = vpop.f32.mrf.mxu0
          %v8154 = vadd.f32 0.0, %v8153
          %v8155 = vpop.f32.mrf.mxu0
          %v8156 = vadd.f32 0.0, %v8155
          %8157 = vmatmul.bf16.gmra.mxu0 %v5088
          %v8158 = vpop.f32.mrf.mxu0
          %v8159 = vadd.f32 0.0, %v8158
          %v8160 = vpop.f32.mrf.mxu0
          %v8161 = vadd.f32 0.0, %v8160
          %8162 = vmatmul.bf16.gmra.mxu0 %v5090
          %v8163 = vpop.f32.mrf.mxu0
          %v8164 = vadd.f32 0.0, %v8163
          %v8165 = vpop.f32.mrf.mxu0
          %v8166 = vadd.f32 0.0, %v8165
          %8167 = vdwg.mxu0
          %8168 = vmatpush.bf16.msra.mxu0 0
          %8169 = vmatpush.bf16.msra.mxu0 0
          %8170 = vmatpush.bf16.msra.mxu0 %v6503
          %8171 = vmatpush.bf16.msra.mxu0 %v6478
          %8172 = vmatpush.bf16.msra.mxu0 %v6453
          %8173 = vmatpush.bf16.msra.mxu0 %v6428
          %8174 = vmatpush.bf16.msra.mxu0 %v6403
          %8175 = vmatpush.bf16.msra.mxu0 %v6378
          %8176 = vmatmul.bf16.gmra.mxu0 %v6864
          %v8177 = vpop.f32.mrf.mxu0
          %v8178 = vadd.f32 %v8139, %v8177
          %v8179 = vpop.f32.mrf.mxu0
          %v8180 = vadd.f32 %v8141, %v8179
          %8181 = vmatmul.bf16.gmra.mxu0 %v6867
          %v8182 = vpop.f32.mrf.mxu0
          %v8183 = vadd.f32 %v8144, %v8182
          %v8184 = vpop.f32.mrf.mxu0
          %v8185 = vadd.f32 %v8146, %v8184
          %8186 = vmatmul.bf16.gmra.mxu0 %v6870
          %v8187 = vpop.f32.mrf.mxu0
          %v8188 = vadd.f32 %v8149, %v8187
          %v8189 = vpop.f32.mrf.mxu0
          %v8190 = vadd.f32 %v8151, %v8189
          %8191 = vmatmul.bf16.gmra.mxu0 %v6873
          %v8192 = vpop.f32.mrf.mxu0
          %v8193 = vadd.f32 %v8154, %v8192
          %v8194 = vpop.f32.mrf.mxu0
          %v8195 = vadd.f32 %v8156, %v8194
          %8196 = vmatmul.bf16.gmra.mxu0 %v6876
          %v8197 = vpop.f32.mrf.mxu0
          %v8198 = vadd.f32 %v8159, %v8197
          %v8199 = vpop.f32.mrf.mxu0
          %v8200 = vadd.f32 %v8161, %v8199
          %8201 = vmatmul.bf16.gmra.mxu0 %v6879
          %v8202 = vpop.f32.mrf.mxu0
          %v8203 = vadd.f32 %v8164, %v8202
          %v8204 = vpop.f32.mrf.mxu0
          %v8205 = vadd.f32 %v8166, %v8204
          %8206 = vdwg.mxu0
          %8207 = vmatpush.bf16.msra.mxu0 %v6354
          %8208 = vmatpush.bf16.msra.mxu0 %v6329
          %8209 = vmatpush.bf16.msra.mxu0 %v6304
          %8210 = vmatpush.bf16.msra.mxu0 %v6279
          %8211 = vmatpush.bf16.msra.mxu0 %v6254
          %8212 = vmatpush.bf16.msra.mxu0 %v6229
          %8213 = vmatpush.bf16.msra.mxu0 %v6204
          %8214 = vmatpush.bf16.msra.mxu0 %v6179
          %8215 = vmatmul.bf16.gmra.mxu0 %v5080
          %v8216 = vpop.f32.mrf.mxu0
          %v8217 = vadd.f32 0.0, %v8216
          %v8218 = vpop.f32.mrf.mxu0
          %v8219 = vadd.f32 0.0, %v8218
          %8220 = vmatmul.bf16.gmra.mxu0 %v5082
          %v8221 = vpop.f32.mrf.mxu0
          %v8222 = vadd.f32 0.0, %v8221
          %v8223 = vpop.f32.mrf.mxu0
          %v8224 = vadd.f32 0.0, %v8223
          %8225 = vmatmul.bf16.gmra.mxu0 %v5084
          %v8226 = vpop.f32.mrf.mxu0
          %v8227 = vadd.f32 0.0, %v8226
          %v8228 = vpop.f32.mrf.mxu0
          %v8229 = vadd.f32 0.0, %v8228
          %8230 = vmatmul.bf16.gmra.mxu0 %v5086
          %v8231 = vpop.f32.mrf.mxu0
          %v8232 = vadd.f32 0.0, %v8231
          %v8233 = vpop.f32.mrf.mxu0
          %v8234 = vadd.f32 0.0, %v8233
          %8235 = vmatmul.bf16.gmra.mxu0 %v5088
          %v8236 = vpop.f32.mrf.mxu0
          %v8237 = vadd.f32 0.0, %v8236
          %v8238 = vpop.f32.mrf.mxu0
          %v8239 = vadd.f32 0.0, %v8238
          %8240 = vmatmul.bf16.gmra.mxu0 %v5090
          %v8241 = vpop.f32.mrf.mxu0
          %v8242 = vadd.f32 0.0, %v8241
          %v8243 = vpop.f32.mrf.mxu0
          %v8244 = vadd.f32 0.0, %v8243
          %8245 = vdwg.mxu0
          %8246 = vmatpush.bf16.msra.mxu0 0
          %8247 = vmatpush.bf16.msra.mxu0 0
          %8248 = vmatpush.bf16.msra.mxu0 %v6504
          %8249 = vmatpush.bf16.msra.mxu0 %v6479
          %8250 = vmatpush.bf16.msra.mxu0 %v6454
          %8251 = vmatpush.bf16.msra.mxu0 %v6429
          %8252 = vmatpush.bf16.msra.mxu0 %v6404
          %8253 = vmatpush.bf16.msra.mxu0 %v6379
          %8254 = vmatmul.bf16.gmra.mxu0 %v6864
          %v8255 = vpop.f32.mrf.mxu0
          %v8256 = vadd.f32 %v8217, %v8255
          %v8257 = vpop.f32.mrf.mxu0
          %v8258 = vadd.f32 %v8219, %v8257
          %8259 = vmatmul.bf16.gmra.mxu0 %v6867
          %v8260 = vpop.f32.mrf.mxu0
          %v8261 = vadd.f32 %v8222, %v8260
          %v8262 = vpop.f32.mrf.mxu0
          %v8263 = vadd.f32 %v8224, %v8262
          %8264 = vmatmul.bf16.gmra.mxu0 %v6870
          %v8265 = vpop.f32.mrf.mxu0
          %v8266 = vadd.f32 %v8227, %v8265
          %v8267 = vpop.f32.mrf.mxu0
          %v8268 = vadd.f32 %v8229, %v8267
          %8269 = vmatmul.bf16.gmra.mxu0 %v6873
          %v8270 = vpop.f32.mrf.mxu0
          %v8271 = vadd.f32 %v8232, %v8270
          %v8272 = vpop.f32.mrf.mxu0
          %v8273 = vadd.f32 %v8234, %v8272
          %8274 = vmatmul.bf16.gmra.mxu0 %v6876
          %v8275 = vpop.f32.mrf.mxu0
          %v8276 = vadd.f32 %v8237, %v8275
          %v8277 = vpop.f32.mrf.mxu0
          %v8278 = vadd.f32 %v8239, %v8277
          %8279 = vmatmul.bf16.gmra.mxu0 %v6879
          %v8280 = vpop.f32.mrf.mxu0
          %v8281 = vadd.f32 %v8242, %v8280
          %v8282 = vpop.f32.mrf.mxu0
          %v8283 = vadd.f32 %v8244, %v8282
          %8284 = vdwg.mxu0
          %8285 = vmatpush.bf16.msra.mxu0 %v6355
          %8286 = vmatpush.bf16.msra.mxu0 %v6330
          %8287 = vmatpush.bf16.msra.mxu0 %v6305
          %8288 = vmatpush.bf16.msra.mxu0 %v6280
          %8289 = vmatpush.bf16.msra.mxu0 %v6255
          %8290 = vmatpush.bf16.msra.mxu0 %v6230
          %8291 = vmatpush.bf16.msra.mxu0 %v6205
          %8292 = vmatpush.bf16.msra.mxu0 %v6180
          %8293 = vmatmul.bf16.gmra.mxu0 %v5080
          %v8294 = vpop.f32.mrf.mxu0
          %v8295 = vadd.f32 0.0, %v8294
          %v8296 = vpop.f32.mrf.mxu0
          %v8297 = vadd.f32 0.0, %v8296
          %8298 = vmatmul.bf16.gmra.mxu0 %v5082
          %v8299 = vpop.f32.mrf.mxu0
          %v8300 = vadd.f32 0.0, %v8299
          %v8301 = vpop.f32.mrf.mxu0
          %v8302 = vadd.f32 0.0, %v8301
          %8303 = vmatmul.bf16.gmra.mxu0 %v5084
          %v8304 = vpop.f32.mrf.mxu0
          %v8305 = vadd.f32 0.0, %v8304
          %v8306 = vpop.f32.mrf.mxu0
          %v8307 = vadd.f32 0.0, %v8306
          %8308 = vmatmul.bf16.gmra.mxu0 %v5086
          %v8309 = vpop.f32.mrf.mxu0
          %v8310 = vadd.f32 0.0, %v8309
          %v8311 = vpop.f32.mrf.mxu0
          %v8312 = vadd.f32 0.0, %v8311
          %8313 = vmatmul.bf16.gmra.mxu0 %v5088
          %v8314 = vpop.f32.mrf.mxu0
          %v8315 = vadd.f32 0.0, %v8314
          %v8316 = vpop.f32.mrf.mxu0
          %v8317 = vadd.f32 0.0, %v8316
          %8318 = vmatmul.bf16.gmra.mxu0 %v5090
          %v8319 = vpop.f32.mrf.mxu0
          %v8320 = vadd.f32 0.0, %v8319
          %v8321 = vpop.f32.mrf.mxu0
          %v8322 = vadd.f32 0.0, %v8321
          %8323 = vdwg.mxu0
          %8324 = vmatpush.bf16.msra.mxu0 0
          %8325 = vmatpush.bf16.msra.mxu0 0
          %8326 = vmatpush.bf16.msra.mxu0 %v6505
          %8327 = vmatpush.bf16.msra.mxu0 %v6480
          %8328 = vmatpush.bf16.msra.mxu0 %v6455
          %8329 = vmatpush.bf16.msra.mxu0 %v6430
          %8330 = vmatpush.bf16.msra.mxu0 %v6405
          %8331 = vmatpush.bf16.msra.mxu0 %v6380
          %8332 = vmatmul.bf16.gmra.mxu0 %v6864
          %v8333 = vpop.f32.mrf.mxu0
          %v8334 = vadd.f32 %v8295, %v8333
          %v8335 = vpop.f32.mrf.mxu0
          %v8336 = vadd.f32 %v8297, %v8335
          %8337 = vmatmul.bf16.gmra.mxu0 %v6867
          %v8338 = vpop.f32.mrf.mxu0
          %v8339 = vadd.f32 %v8300, %v8338
          %v8340 = vpop.f32.mrf.mxu0
          %v8341 = vadd.f32 %v8302, %v8340
          %8342 = vmatmul.bf16.gmra.mxu0 %v6870
          %v8343 = vpop.f32.mrf.mxu0
          %v8344 = vadd.f32 %v8305, %v8343
          %v8345 = vpop.f32.mrf.mxu0
          %v8346 = vadd.f32 %v8307, %v8345
          %8347 = vmatmul.bf16.gmra.mxu0 %v6873
          %v8348 = vpop.f32.mrf.mxu0
          %v8349 = vadd.f32 %v8310, %v8348
          %v8350 = vpop.f32.mrf.mxu0
          %v8351 = vadd.f32 %v8312, %v8350
          %8352 = vmatmul.bf16.gmra.mxu0 %v6876
          %v8353 = vpop.f32.mrf.mxu0
          %v8354 = vadd.f32 %v8315, %v8353
          %v8355 = vpop.f32.mrf.mxu0
          %v8356 = vadd.f32 %v8317, %v8355
          %8357 = vmatmul.bf16.gmra.mxu0 %v6879
          %v8358 = vpop.f32.mrf.mxu0
          %v8359 = vadd.f32 %v8320, %v8358
          %v8360 = vpop.f32.mrf.mxu0
          %v8361 = vadd.f32 %v8322, %v8360
          %8362 = vdwg.mxu0
          %8363 = vmatpush.bf16.msra.mxu0 %v6356
          %8364 = vmatpush.bf16.msra.mxu0 %v6331
          %8365 = vmatpush.bf16.msra.mxu0 %v6306
          %8366 = vmatpush.bf16.msra.mxu0 %v6281
          %8367 = vmatpush.bf16.msra.mxu0 %v6256
          %8368 = vmatpush.bf16.msra.mxu0 %v6231
          %8369 = vmatpush.bf16.msra.mxu0 %v6206
          %8370 = vmatpush.bf16.msra.mxu0 %v6181
          %8371 = vmatmul.bf16.gmra.mxu0 %v5080
          %v8372 = vpop.f32.mrf.mxu0
          %v8373 = vadd.f32 0.0, %v8372
          %v8374 = vpop.f32.mrf.mxu0
          %v8375 = vadd.f32 0.0, %v8374
          %8376 = vmatmul.bf16.gmra.mxu0 %v5082
          %v8377 = vpop.f32.mrf.mxu0
          %v8378 = vadd.f32 0.0, %v8377
          %v8379 = vpop.f32.mrf.mxu0
          %v8380 = vadd.f32 0.0, %v8379
          %8381 = vmatmul.bf16.gmra.mxu0 %v5084
          %v8382 = vpop.f32.mrf.mxu0
          %v8383 = vadd.f32 0.0, %v8382
          %v8384 = vpop.f32.mrf.mxu0
          %v8385 = vadd.f32 0.0, %v8384
          %8386 = vmatmul.bf16.gmra.mxu0 %v5086
          %v8387 = vpop.f32.mrf.mxu0
          %v8388 = vadd.f32 0.0, %v8387
          %v8389 = vpop.f32.mrf.mxu0
          %v8390 = vadd.f32 0.0, %v8389
          %8391 = vmatmul.bf16.gmra.mxu0 %v5088
          %v8392 = vpop.f32.mrf.mxu0
          %v8393 = vadd.f32 0.0, %v8392
          %v8394 = vpop.f32.mrf.mxu0
          %v8395 = vadd.f32 0.0, %v8394
          %8396 = vmatmul.bf16.gmra.mxu0 %v5090
          %v8397 = vpop.f32.mrf.mxu0
          %v8398 = vadd.f32 0.0, %v8397
          %v8399 = vpop.f32.mrf.mxu0
          %v8400 = vadd.f32 0.0, %v8399
          %8401 = vdwg.mxu0
          %8402 = vmatpush.bf16.msra.mxu0 0
          %8403 = vmatpush.bf16.msra.mxu0 0
          %8404 = vmatpush.bf16.msra.mxu0 %v6506
          %8405 = vmatpush.bf16.msra.mxu0 %v6481
          %8406 = vmatpush.bf16.msra.mxu0 %v6456
          %8407 = vmatpush.bf16.msra.mxu0 %v6431
          %8408 = vmatpush.bf16.msra.mxu0 %v6406
          %8409 = vmatpush.bf16.msra.mxu0 %v6381
          %8410 = vmatmul.bf16.gmra.mxu0 %v6864
          %v8411 = vpop.f32.mrf.mxu0
          %v8412 = vadd.f32 %v8373, %v8411
          %v8413 = vpop.f32.mrf.mxu0
          %v8414 = vadd.f32 %v8375, %v8413
          %8415 = vmatmul.bf16.gmra.mxu0 %v6867
          %v8416 = vpop.f32.mrf.mxu0
          %v8417 = vadd.f32 %v8378, %v8416
          %v8418 = vpop.f32.mrf.mxu0
          %v8419 = vadd.f32 %v8380, %v8418
          %8420 = vmatmul.bf16.gmra.mxu0 %v6870
          %v8421 = vpop.f32.mrf.mxu0
          %v8422 = vadd.f32 %v8383, %v8421
          %v8423 = vpop.f32.mrf.mxu0
          %v8424 = vadd.f32 %v8385, %v8423
          %8425 = vmatmul.bf16.gmra.mxu0 %v6873
          %v8426 = vpop.f32.mrf.mxu0
          %v8427 = vadd.f32 %v8388, %v8426
          %v8428 = vpop.f32.mrf.mxu0
          %v8429 = vadd.f32 %v8390, %v8428
          %8430 = vmatmul.bf16.gmra.mxu0 %v6876
          %v8431 = vpop.f32.mrf.mxu0
          %v8432 = vadd.f32 %v8393, %v8431
          %v8433 = vpop.f32.mrf.mxu0
          %v8434 = vadd.f32 %v8395, %v8433
          %8435 = vmatmul.bf16.gmra.mxu0 %v6879
          %v8436 = vpop.f32.mrf.mxu0
          %v8437 = vadd.f32 %v8398, %v8436
          %v8438 = vpop.f32.mrf.mxu0
          %v8439 = vadd.f32 %v8400, %v8438
          %8440 = vdwg.mxu0
          %8441 = vmatpush.bf16.msra.mxu0 %v6357
          %8442 = vmatpush.bf16.msra.mxu0 %v6332
          %8443 = vmatpush.bf16.msra.mxu0 %v6307
          %8444 = vmatpush.bf16.msra.mxu0 %v6282
          %8445 = vmatpush.bf16.msra.mxu0 %v6257
          %8446 = vmatpush.bf16.msra.mxu0 %v6232
          %8447 = vmatpush.bf16.msra.mxu0 %v6207
          %8448 = vmatpush.bf16.msra.mxu0 %v6182
          %8449 = vmatmul.bf16.gmra.mxu0 %v5080
          %v8450 = vpop.f32.mrf.mxu0
          %v8451 = vadd.f32 0.0, %v8450
          %v8452 = vpop.f32.mrf.mxu0
          %v8453 = vadd.f32 0.0, %v8452
          %8454 = vmatmul.bf16.gmra.mxu0 %v5082
          %v8455 = vpop.f32.mrf.mxu0
          %v8456 = vadd.f32 0.0, %v8455
          %v8457 = vpop.f32.mrf.mxu0
          %v8458 = vadd.f32 0.0, %v8457
          %8459 = vmatmul.bf16.gmra.mxu0 %v5084
          %v8460 = vpop.f32.mrf.mxu0
          %v8461 = vadd.f32 0.0, %v8460
          %v8462 = vpop.f32.mrf.mxu0
          %v8463 = vadd.f32 0.0, %v8462
          %8464 = vmatmul.bf16.gmra.mxu0 %v5086
          %v8465 = vpop.f32.mrf.mxu0
          %v8466 = vadd.f32 0.0, %v8465
          %v8467 = vpop.f32.mrf.mxu0
          %v8468 = vadd.f32 0.0, %v8467
          %8469 = vmatmul.bf16.gmra.mxu0 %v5088
          %v8470 = vpop.f32.mrf.mxu0
          %v8471 = vadd.f32 0.0, %v8470
          %v8472 = vpop.f32.mrf.mxu0
          %v8473 = vadd.f32 0.0, %v8472
          %8474 = vmatmul.bf16.gmra.mxu0 %v5090
          %v8475 = vpop.f32.mrf.mxu0
          %v8476 = vadd.f32 0.0, %v8475
          %v8477 = vpop.f32.mrf.mxu0
          %v8478 = vadd.f32 0.0, %v8477
          %8479 = vdwg.mxu0
          %8480 = vmatpush.bf16.msra.mxu0 0
          %8481 = vmatpush.bf16.msra.mxu0 0
          %8482 = vmatpush.bf16.msra.mxu0 %v6507
          %8483 = vmatpush.bf16.msra.mxu0 %v6482
          %8484 = vmatpush.bf16.msra.mxu0 %v6457
          %8485 = vmatpush.bf16.msra.mxu0 %v6432
          %8486 = vmatpush.bf16.msra.mxu0 %v6407
          %8487 = vmatpush.bf16.msra.mxu0 %v6382
          %8488 = vmatmul.bf16.gmra.mxu0 %v6864
          %v8489 = vpop.f32.mrf.mxu0
          %v8490 = vadd.f32 %v8451, %v8489
          %v8491 = vpop.f32.mrf.mxu0
          %v8492 = vadd.f32 %v8453, %v8491
          %8493 = vmatmul.bf16.gmra.mxu0 %v6867
          %v8494 = vpop.f32.mrf.mxu0
          %v8495 = vadd.f32 %v8456, %v8494
          %v8496 = vpop.f32.mrf.mxu0
          %v8497 = vadd.f32 %v8458, %v8496
          %8498 = vmatmul.bf16.gmra.mxu0 %v6870
          %v8499 = vpop.f32.mrf.mxu0
          %v8500 = vadd.f32 %v8461, %v8499
          %v8501 = vpop.f32.mrf.mxu0
          %v8502 = vadd.f32 %v8463, %v8501
          %8503 = vmatmul.bf16.gmra.mxu0 %v6873
          %v8504 = vpop.f32.mrf.mxu0
          %v8505 = vadd.f32 %v8466, %v8504
          %v8506 = vpop.f32.mrf.mxu0
          %v8507 = vadd.f32 %v8468, %v8506
          %8508 = vmatmul.bf16.gmra.mxu0 %v6876
          %v8509 = vpop.f32.mrf.mxu0
          %v8510 = vadd.f32 %v8471, %v8509
          %v8511 = vpop.f32.mrf.mxu0
          %v8512 = vadd.f32 %v8473, %v8511
          %8513 = vmatmul.bf16.gmra.mxu0 %v6879
          %v8514 = vpop.f32.mrf.mxu0
          %v8515 = vadd.f32 %v8476, %v8514
          %v8516 = vpop.f32.mrf.mxu0
          %v8517 = vadd.f32 %v8478, %v8516
          %8518 = vdwg.mxu0
          %8519 = vmatpush.bf16.msra.mxu0 %v6358
          %8520 = vmatpush.bf16.msra.mxu0 %v6333
          %8521 = vmatpush.bf16.msra.mxu0 %v6308
          %8522 = vmatpush.bf16.msra.mxu0 %v6283
          %8523 = vmatpush.bf16.msra.mxu0 %v6258
          %8524 = vmatpush.bf16.msra.mxu0 %v6233
          %8525 = vmatpush.bf16.msra.mxu0 %v6208
          %8526 = vmatpush.bf16.msra.mxu0 %v6183
          %8527 = vmatmul.bf16.gmra.mxu0 %v5080
          %v8528 = vpop.f32.mrf.mxu0
          %v8529 = vadd.f32 0.0, %v8528
          %v8530 = vpop.f32.mrf.mxu0
          %v8531 = vadd.f32 0.0, %v8530
          %8532 = vmatmul.bf16.gmra.mxu0 %v5082
          %v8533 = vpop.f32.mrf.mxu0
          %v8534 = vadd.f32 0.0, %v8533
          %v8535 = vpop.f32.mrf.mxu0
          %v8536 = vadd.f32 0.0, %v8535
          %8537 = vmatmul.bf16.gmra.mxu0 %v5084
          %v8538 = vpop.f32.mrf.mxu0
          %v8539 = vadd.f32 0.0, %v8538
          %v8540 = vpop.f32.mrf.mxu0
          %v8541 = vadd.f32 0.0, %v8540
          %8542 = vmatmul.bf16.gmra.mxu0 %v5086
          %v8543 = vpop.f32.mrf.mxu0
          %v8544 = vadd.f32 0.0, %v8543
          %v8545 = vpop.f32.mrf.mxu0
          %v8546 = vadd.f32 0.0, %v8545
          %8547 = vmatmul.bf16.gmra.mxu0 %v5088
          %v8548 = vpop.f32.mrf.mxu0
          %v8549 = vadd.f32 0.0, %v8548
          %v8550 = vpop.f32.mrf.mxu0
          %v8551 = vadd.f32 0.0, %v8550
          %8552 = vmatmul.bf16.gmra.mxu0 %v5090
          %v8553 = vpop.f32.mrf.mxu0
          %v8554 = vadd.f32 0.0, %v8553
          %v8555 = vpop.f32.mrf.mxu0
          %v8556 = vadd.f32 0.0, %v8555
          %8557 = vdwg.mxu0
          %8558 = vmatpush.bf16.msra.mxu0 0
          %8559 = vmatpush.bf16.msra.mxu0 0
          %8560 = vmatpush.bf16.msra.mxu0 %v6508
          %8561 = vmatpush.bf16.msra.mxu0 %v6483
          %8562 = vmatpush.bf16.msra.mxu0 %v6458
          %8563 = vmatpush.bf16.msra.mxu0 %v6433
          %8564 = vmatpush.bf16.msra.mxu0 %v6408
          %8565 = vmatpush.bf16.msra.mxu0 %v6383
          %8566 = vmatmul.bf16.gmra.mxu0 %v6864
          %v8567 = vpop.f32.mrf.mxu0
          %v8568 = vadd.f32 %v8529, %v8567
          %v8569 = vpop.f32.mrf.mxu0
          %v8570 = vadd.f32 %v8531, %v8569
          %8571 = vmatmul.bf16.gmra.mxu0 %v6867
          %v8572 = vpop.f32.mrf.mxu0
          %v8573 = vadd.f32 %v8534, %v8572
          %v8574 = vpop.f32.mrf.mxu0
          %v8575 = vadd.f32 %v8536, %v8574
          %8576 = vmatmul.bf16.gmra.mxu0 %v6870
          %v8577 = vpop.f32.mrf.mxu0
          %v8578 = vadd.f32 %v8539, %v8577
          %v8579 = vpop.f32.mrf.mxu0
          %v8580 = vadd.f32 %v8541, %v8579
          %8581 = vmatmul.bf16.gmra.mxu0 %v6873
          %v8582 = vpop.f32.mrf.mxu0
          %v8583 = vadd.f32 %v8544, %v8582
          %v8584 = vpop.f32.mrf.mxu0
          %v8585 = vadd.f32 %v8546, %v8584
          %8586 = vmatmul.bf16.gmra.mxu0 %v6876
          %v8587 = vpop.f32.mrf.mxu0
          %v8588 = vadd.f32 %v8549, %v8587
          %v8589 = vpop.f32.mrf.mxu0
          %v8590 = vadd.f32 %v8551, %v8589
          %8591 = vmatmul.bf16.gmra.mxu0 %v6879
          %v8592 = vpop.f32.mrf.mxu0
          %v8593 = vadd.f32 %v8554, %v8592
          %v8594 = vpop.f32.mrf.mxu0
          %v8595 = vadd.f32 %v8556, %v8594
          %8596 = vdwg.mxu0
          %8597 = vmatpush.bf16.msra.mxu0 %v6359
          %8598 = vmatpush.bf16.msra.mxu0 %v6334
          %8599 = vmatpush.bf16.msra.mxu0 %v6309
          %8600 = vmatpush.bf16.msra.mxu0 %v6284
          %8601 = vmatpush.bf16.msra.mxu0 %v6259
          %8602 = vmatpush.bf16.msra.mxu0 %v6234
          %8603 = vmatpush.bf16.msra.mxu0 %v6209
          %8604 = vmatpush.bf16.msra.mxu0 %v6184
          %8605 = vmatmul.bf16.gmra.mxu0 %v5080
          %v8606 = vpop.f32.mrf.mxu0
          %v8607 = vadd.f32 0.0, %v8606
          %v8608 = vpop.f32.mrf.mxu0
          %v8609 = vadd.f32 0.0, %v8608
          %8610 = vmatmul.bf16.gmra.mxu0 %v5082
          %v8611 = vpop.f32.mrf.mxu0
          %v8612 = vadd.f32 0.0, %v8611
          %v8613 = vpop.f32.mrf.mxu0
          %v8614 = vadd.f32 0.0, %v8613
          %8615 = vmatmul.bf16.gmra.mxu0 %v5084
          %v8616 = vpop.f32.mrf.mxu0
          %v8617 = vadd.f32 0.0, %v8616
          %v8618 = vpop.f32.mrf.mxu0
          %v8619 = vadd.f32 0.0, %v8618
          %8620 = vmatmul.bf16.gmra.mxu0 %v5086
          %v8621 = vpop.f32.mrf.mxu0
          %v8622 = vadd.f32 0.0, %v8621
          %v8623 = vpop.f32.mrf.mxu0
          %v8624 = vadd.f32 0.0, %v8623
          %8625 = vmatmul.bf16.gmra.mxu0 %v5088
          %v8626 = vpop.f32.mrf.mxu0
          %v8627 = vadd.f32 0.0, %v8626
          %v8628 = vpop.f32.mrf.mxu0
          %v8629 = vadd.f32 0.0, %v8628
          %8630 = vmatmul.bf16.gmra.mxu0 %v5090
          %v8631 = vpop.f32.mrf.mxu0
          %v8632 = vadd.f32 0.0, %v8631
          %v8633 = vpop.f32.mrf.mxu0
          %v8634 = vadd.f32 0.0, %v8633
          %8635 = vdwg.mxu0
          %8636 = vmatpush.bf16.msra.mxu0 0
          %8637 = vmatpush.bf16.msra.mxu0 0
          %8638 = vmatpush.bf16.msra.mxu0 %v6509
          %8639 = vmatpush.bf16.msra.mxu0 %v6484
          %8640 = vmatpush.bf16.msra.mxu0 %v6459
          %8641 = vmatpush.bf16.msra.mxu0 %v6434
          %8642 = vmatpush.bf16.msra.mxu0 %v6409
          %8643 = vmatpush.bf16.msra.mxu0 %v6384
          %8644 = vmatmul.bf16.gmra.mxu0 %v6864
          %v8645 = vpop.f32.mrf.mxu0
          %v8646 = vadd.f32 %v8607, %v8645
          %v8647 = vpop.f32.mrf.mxu0
          %v8648 = vadd.f32 %v8609, %v8647
          %8649 = vmatmul.bf16.gmra.mxu0 %v6867
          %v8650 = vpop.f32.mrf.mxu0
          %v8651 = vadd.f32 %v8612, %v8650
          %v8652 = vpop.f32.mrf.mxu0
          %v8653 = vadd.f32 %v8614, %v8652
          %8654 = vmatmul.bf16.gmra.mxu0 %v6870
          %v8655 = vpop.f32.mrf.mxu0
          %v8656 = vadd.f32 %v8617, %v8655
          %v8657 = vpop.f32.mrf.mxu0
          %v8658 = vadd.f32 %v8619, %v8657
          %8659 = vmatmul.bf16.gmra.mxu0 %v6873
          %v8660 = vpop.f32.mrf.mxu0
          %v8661 = vadd.f32 %v8622, %v8660
          %v8662 = vpop.f32.mrf.mxu0
          %v8663 = vadd.f32 %v8624, %v8662
          %8664 = vmatmul.bf16.gmra.mxu0 %v6876
          %v8665 = vpop.f32.mrf.mxu0
          %v8666 = vadd.f32 %v8627, %v8665
          %v8667 = vpop.f32.mrf.mxu0
          %v8668 = vadd.f32 %v8629, %v8667
          %8669 = vmatmul.bf16.gmra.mxu0 %v6879
          %v8670 = vpop.f32.mrf.mxu0
          %v8671 = vadd.f32 %v8632, %v8670
          %v8672 = vpop.f32.mrf.mxu0
          %v8673 = vadd.f32 %v8634, %v8672
          %8674 = vdwg.mxu0
          %8675 = vmatpush.bf16.msra.mxu0 %v6360
          %8676 = vmatpush.bf16.msra.mxu0 %v6335
          %8677 = vmatpush.bf16.msra.mxu0 %v6310
          %8678 = vmatpush.bf16.msra.mxu0 %v6285
          %8679 = vmatpush.bf16.msra.mxu0 %v6260
          %8680 = vmatpush.bf16.msra.mxu0 %v6235
          %8681 = vmatpush.bf16.msra.mxu0 %v6210
          %8682 = vmatpush.bf16.msra.mxu0 %v6185
          %8683 = vmatmul.bf16.gmra.mxu0 %v5080
          %v8684 = vpop.f32.mrf.mxu0
          %v8685 = vadd.f32 0.0, %v8684
          %v8686 = vpop.f32.mrf.mxu0
          %v8687 = vadd.f32 0.0, %v8686
          %8688 = vmatmul.bf16.gmra.mxu0 %v5082
          %v8689 = vpop.f32.mrf.mxu0
          %v8690 = vadd.f32 0.0, %v8689
          %v8691 = vpop.f32.mrf.mxu0
          %v8692 = vadd.f32 0.0, %v8691
          %8693 = vmatmul.bf16.gmra.mxu0 %v5084
          %v8694 = vpop.f32.mrf.mxu0
          %v8695 = vadd.f32 0.0, %v8694
          %v8696 = vpop.f32.mrf.mxu0
          %v8697 = vadd.f32 0.0, %v8696
          %8698 = vmatmul.bf16.gmra.mxu0 %v5086
          %v8699 = vpop.f32.mrf.mxu0
          %v8700 = vadd.f32 0.0, %v8699
          %v8701 = vpop.f32.mrf.mxu0
          %v8702 = vadd.f32 0.0, %v8701
          %8703 = vmatmul.bf16.gmra.mxu0 %v5088
          %v8704 = vpop.f32.mrf.mxu0
          %v8705 = vadd.f32 0.0, %v8704
          %v8706 = vpop.f32.mrf.mxu0
          %v8707 = vadd.f32 0.0, %v8706
          %8708 = vmatmul.bf16.gmra.mxu0 %v5090
          %v8709 = vpop.f32.mrf.mxu0
          %v8710 = vadd.f32 0.0, %v8709
          %v8711 = vpop.f32.mrf.mxu0
          %v8712 = vadd.f32 0.0, %v8711
          %8713 = vdwg.mxu0
          %8714 = vmatpush.bf16.msra.mxu0 0
          %8715 = vmatpush.bf16.msra.mxu0 0
          %8716 = vmatpush.bf16.msra.mxu0 %v6510
          %8717 = vmatpush.bf16.msra.mxu0 %v6485
          %8718 = vmatpush.bf16.msra.mxu0 %v6460
          %8719 = vmatpush.bf16.msra.mxu0 %v6435
          %8720 = vmatpush.bf16.msra.mxu0 %v6410
          %8721 = vmatpush.bf16.msra.mxu0 %v6385
          %8722 = vmatmul.bf16.gmra.mxu0 %v6864
          %v8723 = vpop.f32.mrf.mxu0
          %v8724 = vadd.f32 %v8685, %v8723
          %v8725 = vpop.f32.mrf.mxu0
          %v8726 = vadd.f32 %v8687, %v8725
          %8727 = vmatmul.bf16.gmra.mxu0 %v6867
          %v8728 = vpop.f32.mrf.mxu0
          %v8729 = vadd.f32 %v8690, %v8728
          %v8730 = vpop.f32.mrf.mxu0
          %v8731 = vadd.f32 %v8692, %v8730
          %8732 = vmatmul.bf16.gmra.mxu0 %v6870
          %v8733 = vpop.f32.mrf.mxu0
          %v8734 = vadd.f32 %v8695, %v8733
          %v8735 = vpop.f32.mrf.mxu0
          %v8736 = vadd.f32 %v8697, %v8735
          %8737 = vmatmul.bf16.gmra.mxu0 %v6873
          %v8738 = vpop.f32.mrf.mxu0
          %v8739 = vadd.f32 %v8700, %v8738
          %v8740 = vpop.f32.mrf.mxu0
          %v8741 = vadd.f32 %v8702, %v8740
          %8742 = vmatmul.bf16.gmra.mxu0 %v6876
          %v8743 = vpop.f32.mrf.mxu0
          %v8744 = vadd.f32 %v8705, %v8743
          %v8745 = vpop.f32.mrf.mxu0
          %v8746 = vadd.f32 %v8707, %v8745
          %8747 = vmatmul.bf16.gmra.mxu0 %v6879
          %v8748 = vpop.f32.mrf.mxu0
          %v8749 = vadd.f32 %v8710, %v8748
          %v8750 = vpop.f32.mrf.mxu0
          %v8751 = vadd.f32 %v8712, %v8750
          %8752 = vdwg.mxu0
          %8753 = vmatpush.bf16.msra.mxu0 %v6361
          %8754 = vmatpush.bf16.msra.mxu0 %v6336
          %8755 = vmatpush.bf16.msra.mxu0 %v6311
          %8756 = vmatpush.bf16.msra.mxu0 %v6286
          %8757 = vmatpush.bf16.msra.mxu0 %v6261
          %8758 = vmatpush.bf16.msra.mxu0 %v6236
          %8759 = vmatpush.bf16.msra.mxu0 %v6211
          %8760 = vmatpush.bf16.msra.mxu0 %v6186
          %8761 = vmatmul.bf16.gmra.mxu0 %v5080
          %v8762 = vpop.f32.mrf.mxu0
          %v8763 = vadd.f32 0.0, %v8762
          %v8764 = vpop.f32.mrf.mxu0
          %v8765 = vadd.f32 0.0, %v8764
          %8766 = vmatmul.bf16.gmra.mxu0 %v5082
          %v8767 = vpop.f32.mrf.mxu0
          %v8768 = vadd.f32 0.0, %v8767
          %v8769 = vpop.f32.mrf.mxu0
          %v8770 = vadd.f32 0.0, %v8769
          %8771 = vmatmul.bf16.gmra.mxu0 %v5084
          %v8772 = vpop.f32.mrf.mxu0
          %v8773 = vadd.f32 0.0, %v8772
          %v8774 = vpop.f32.mrf.mxu0
          %v8775 = vadd.f32 0.0, %v8774
          %8776 = vmatmul.bf16.gmra.mxu0 %v5086
          %v8777 = vpop.f32.mrf.mxu0
          %v8778 = vadd.f32 0.0, %v8777
          %v8779 = vpop.f32.mrf.mxu0
          %v8780 = vadd.f32 0.0, %v8779
          %8781 = vmatmul.bf16.gmra.mxu0 %v5088
          %v8782 = vpop.f32.mrf.mxu0
          %v8783 = vadd.f32 0.0, %v8782
          %v8784 = vpop.f32.mrf.mxu0
          %v8785 = vadd.f32 0.0, %v8784
          %8786 = vmatmul.bf16.gmra.mxu0 %v5090
          %v8787 = vpop.f32.mrf.mxu0
          %v8788 = vadd.f32 0.0, %v8787
          %v8789 = vpop.f32.mrf.mxu0
          %v8790 = vadd.f32 0.0, %v8789
          %8791 = vdwg.mxu0
          %8792 = vmatpush.bf16.msra.mxu0 0
          %8793 = vmatpush.bf16.msra.mxu0 0
          %8794 = vmatpush.bf16.msra.mxu0 %v6511
          %8795 = vmatpush.bf16.msra.mxu0 %v6486
          %8796 = vmatpush.bf16.msra.mxu0 %v6461
          %8797 = vmatpush.bf16.msra.mxu0 %v6436
          %8798 = vmatpush.bf16.msra.mxu0 %v6411
          %8799 = vmatpush.bf16.msra.mxu0 %v6386
          %8800 = vmatmul.bf16.gmra.mxu0 %v6864
          %v8801 = vpop.f32.mrf.mxu0
          %v8802 = vadd.f32 %v8763, %v8801
          %v8803 = vpop.f32.mrf.mxu0
          %v8804 = vadd.f32 %v8765, %v8803
          %8805 = vmatmul.bf16.gmra.mxu0 %v6867
          %v8806 = vpop.f32.mrf.mxu0
          %v8807 = vadd.f32 %v8768, %v8806
          %v8808 = vpop.f32.mrf.mxu0
          %v8809 = vadd.f32 %v8770, %v8808
          %8810 = vmatmul.bf16.gmra.mxu0 %v6870
          %v8811 = vpop.f32.mrf.mxu0
          %v8812 = vadd.f32 %v8773, %v8811
          %v8813 = vpop.f32.mrf.mxu0
          %v8814 = vadd.f32 %v8775, %v8813
          %8815 = vmatmul.bf16.gmra.mxu0 %v6873
          %v8816 = vpop.f32.mrf.mxu0
          %v8817 = vadd.f32 %v8778, %v8816
          %v8818 = vpop.f32.mrf.mxu0
          %v8819 = vadd.f32 %v8780, %v8818
          %8820 = vmatmul.bf16.gmra.mxu0 %v6876
          %v8821 = vpop.f32.mrf.mxu0
          %v8822 = vadd.f32 %v8783, %v8821
          %v8823 = vpop.f32.mrf.mxu0
          %v8824 = vadd.f32 %v8785, %v8823
          %8825 = vmatmul.bf16.gmra.mxu0 %v6879
          %v8826 = vpop.f32.mrf.mxu0
          %v8827 = vadd.f32 %v8788, %v8826
          %v8828 = vpop.f32.mrf.mxu0
          %v8829 = vadd.f32 %v8790, %v8828
          %8830 = vdwg.mxu0
          %s8831 = smul.u32 %s306, 300
          %s8832 = smul.addr %s8831, 8
          %s8833 = scalar_lea.vmem %s166, %s8832 [#allocation3]
          %8834 = vst [vmem:[%s8833] sm:$0xff] %v6930
          %8835 = vst [vmem:[%s8833 + $0x8] sm:$0xff] %v7008
          %8836 = vst [vmem:[%s8833 + $0x10] sm:$0xff] %v7086
          %8837 = vst [vmem:[%s8833 + $0x18] sm:$0xff] %v7164
          %8838 = vst [vmem:[%s8833 + $0x20] sm:$0xff] %v7242
          %8839 = vst [vmem:[%s8833 + $0x28] sm:$0xff] %v7320
          %8840 = vst [vmem:[%s8833 + $0x30] sm:$0xff] %v7398
          %8841 = vst [vmem:[%s8833 + $0x38] sm:$0xff] %v7476
          %8842 = vst [vmem:[%s8833 + $0x40] sm:$0xff] %v7554
          %8843 = vst [vmem:[%s8833 + $0x48] sm:$0xff] %v7632
          %8844 = vst [vmem:[%s8833 + $0x50] sm:$0xff] %v7710
          %8845 = vst [vmem:[%s8833 + $0x58] sm:$0xff] %v7788
          %8846 = vst [vmem:[%s8833 + $0x60] sm:$0xff] %v7866
          %8847 = vst [vmem:[%s8833 + $0x68] sm:$0xff] %v7944
          %8848 = vst [vmem:[%s8833 + $0x70] sm:$0xff] %v8022
          %8849 = vst [vmem:[%s8833 + $0x78] sm:$0xff] %v8100
          %8850 = vst [vmem:[%s8833 + $0x80] sm:$0xff] %v8178
          %8851 = vst [vmem:[%s8833 + $0x88] sm:$0xff] %v8256
          %8852 = vst [vmem:[%s8833 + $0x90] sm:$0xff] %v8334
          %8853 = vst [vmem:[%s8833 + $0x98] sm:$0xff] %v8412
          %8854 = vst [vmem:[%s8833 + $0xa0] sm:$0xff] %v8490
          %8855 = vst [vmem:[%s8833 + $0xa8] sm:$0xff] %v8568
          %8856 = vst [vmem:[%s8833 + $0xb0] sm:$0xff] %v8646
          %8857 = vst [vmem:[%s8833 + $0xb8] sm:$0xff] %v8724
          %vm8858 = vcmask 523264
          %8859 = vst.msk [vmem:[%s8833 + $0xc0] sm:$0xff] %vm8858, %v8802
          %8860 = vst [vmem:[%s8833 + $0xc8] sm:$0xff] %v6932
          %8861 = vst [vmem:[%s8833 + $0xd0] sm:$0xff] %v7010
          %8862 = vst [vmem:[%s8833 + $0xd8] sm:$0xff] %v7088
          %8863 = vst [vmem:[%s8833 + $0xe0] sm:$0xff] %v7166
          %8864 = vst [vmem:[%s8833 + $0xe8] sm:$0xff] %v7244
          %8865 = vst [vmem:[%s8833 + $0xf0] sm:$0xff] %v7322
          %8866 = vst [vmem:[%s8833 + $0xf8] sm:$0xff] %v7400
          %8867 = vst [vmem:[%s8833 + $0x100] sm:$0xff] %v7478
          %8868 = vst [vmem:[%s8833 + $0x108] sm:$0xff] %v7556
          %8869 = vst [vmem:[%s8833 + $0x110] sm:$0xff] %v7634
          %8870 = vst [vmem:[%s8833 + $0x118] sm:$0xff] %v7712
          %8871 = vst [vmem:[%s8833 + $0x120] sm:$0xff] %v7790
          %8872 = vst [vmem:[%s8833 + $0x128] sm:$0xff] %v7868
          %8873 = vst [vmem:[%s8833 + $0x130] sm:$0xff] %v7946
          %8874 = vst [vmem:[%s8833 + $0x138] sm:$0xff] %v8024
          %8875 = vst [vmem:[%s8833 + $0x140] sm:$0xff] %v8102
          %8876 = vst [vmem:[%s8833 + $0x148] sm:$0xff] %v8180
          %8877 = vst [vmem:[%s8833 + $0x150] sm:$0xff] %v8258
          %8878 = vst [vmem:[%s8833 + $0x158] sm:$0xff] %v8336
          %8879 = vst [vmem:[%s8833 + $0x160] sm:$0xff] %v8414
          %8880 = vst [vmem:[%s8833 + $0x168] sm:$0xff] %v8492
          %8881 = vst [vmem:[%s8833 + $0x170] sm:$0xff] %v8570
          %8882 = vst [vmem:[%s8833 + $0x178] sm:$0xff] %v8648
          %8883 = vst [vmem:[%s8833 + $0x180] sm:$0xff] %v8726
          %8884 = vst.msk [vmem:[%s8833 + $0x188] sm:$0xff] %vm8858, %v8804
          %8885 = vst [vmem:[%s8833 + $0x190] sm:$0xff] %v6935
          %8886 = vst [vmem:[%s8833 + $0x198] sm:$0xff] %v7013
          %8887 = vst [vmem:[%s8833 + $0x1a0] sm:$0xff] %v7091
          %8888 = vst [vmem:[%s8833 + $0x1a8] sm:$0xff] %v7169
          %8889 = vst [vmem:[%s8833 + $0x1b0] sm:$0xff] %v7247
          %8890 = vst [vmem:[%s8833 + $0x1b8] sm:$0xff] %v7325
          %8891 = vst [vmem:[%s8833 + $0x1c0] sm:$0xff] %v7403
          %8892 = vst [vmem:[%s8833 + $0x1c8] sm:$0xff] %v7481
          %8893 = vst [vmem:[%s8833 + $0x1d0] sm:$0xff] %v7559
          %8894 = vst [vmem:[%s8833 + $0x1d8] sm:$0xff] %v7637
          %8895 = vst [vmem:[%s8833 + $0x1e0] sm:$0xff] %v7715
          %8896 = vst [vmem:[%s8833 + $0x1e8] sm:$0xff] %v7793
          %8897 = vst [vmem:[%s8833 + $0x1f0] sm:$0xff] %v7871
          %8898 = vst [vmem:[%s8833 + $0x1f8] sm:$0xff] %v7949
          %8899 = vst [vmem:[%s8833 + $0x200] sm:$0xff] %v8027
          %8900 = vst [vmem:[%s8833 + $0x208] sm:$0xff] %v8105
          %8901 = vst [vmem:[%s8833 + $0x210] sm:$0xff] %v8183
          %8902 = vst [vmem:[%s8833 + $0x218] sm:$0xff] %v8261
          %8903 = vst [vmem:[%s8833 + $0x220] sm:$0xff] %v8339
          %8904 = vst [vmem:[%s8833 + $0x228] sm:$0xff] %v8417
          %8905 = vst [vmem:[%s8833 + $0x230] sm:$0xff] %v8495
          %8906 = vst [vmem:[%s8833 + $0x238] sm:$0xff] %v8573
          %8907 = vst [vmem:[%s8833 + $0x240] sm:$0xff] %v8651
          %8908 = vst [vmem:[%s8833 + $0x248] sm:$0xff] %v8729
          %8909 = vst.msk [vmem:[%s8833 + $0x250] sm:$0xff] %vm8858, %v8807
          %8910 = vst [vmem:[%s8833 + $0x258] sm:$0xff] %v6937
          %8911 = vst [vmem:[%s8833 + $0x260] sm:$0xff] %v7015
          %8912 = vst [vmem:[%s8833 + $0x268] sm:$0xff] %v7093
          %8913 = vst [vmem:[%s8833 + $0x270] sm:$0xff] %v7171
          %8914 = vst [vmem:[%s8833 + $0x278] sm:$0xff] %v7249
          %8915 = vst [vmem:[%s8833 + $0x280] sm:$0xff] %v7327
          %8916 = vst [vmem:[%s8833 + $0x288] sm:$0xff] %v7405
          %8917 = vst [vmem:[%s8833 + $0x290] sm:$0xff] %v7483
          %8918 = vst [vmem:[%s8833 + $0x298] sm:$0xff] %v7561
          %8919 = vst [vmem:[%s8833 + $0x2a0] sm:$0xff] %v7639
          %8920 = vst [vmem:[%s8833 + $0x2a8] sm:$0xff] %v7717
          %8921 = vst [vmem:[%s8833 + $0x2b0] sm:$0xff] %v7795
          %8922 = vst [vmem:[%s8833 + $0x2b8] sm:$0xff] %v7873
          %8923 = vst [vmem:[%s8833 + $0x2c0] sm:$0xff] %v7951
          %8924 = vst [vmem:[%s8833 + $0x2c8] sm:$0xff] %v8029
          %8925 = vst [vmem:[%s8833 + $0x2d0] sm:$0xff] %v8107
          %8926 = vst [vmem:[%s8833 + $0x2d8] sm:$0xff] %v8185
          %8927 = vst [vmem:[%s8833 + $0x2e0] sm:$0xff] %v8263
          %8928 = vst [vmem:[%s8833 + $0x2e8] sm:$0xff] %v8341
          %8929 = vst [vmem:[%s8833 + $0x2f0] sm:$0xff] %v8419
          %8930 = vst [vmem:[%s8833 + $0x2f8] sm:$0xff] %v8497
          %8931 = vst [vmem:[%s8833 + $0x300] sm:$0xff] %v8575
          %8932 = vst [vmem:[%s8833 + $0x308] sm:$0xff] %v8653
          %8933 = vst [vmem:[%s8833 + $0x310] sm:$0xff] %v8731
          %8934 = vst.msk [vmem:[%s8833 + $0x318] sm:$0xff] %vm8858, %v8809
          %8935 = vst [vmem:[%s8833 + $0x320] sm:$0xff] %v6940
          %8936 = vst [vmem:[%s8833 + $0x328] sm:$0xff] %v7018
          %8937 = vst [vmem:[%s8833 + $0x330] sm:$0xff] %v7096
          %8938 = vst [vmem:[%s8833 + $0x338] sm:$0xff] %v7174
          %8939 = vst [vmem:[%s8833 + $0x340] sm:$0xff] %v7252
          %8940 = vst [vmem:[%s8833 + $0x348] sm:$0xff] %v7330
          %8941 = vst [vmem:[%s8833 + $0x350] sm:$0xff] %v7408
          %8942 = vst [vmem:[%s8833 + $0x358] sm:$0xff] %v7486
          %8943 = vst [vmem:[%s8833 + $0x360] sm:$0xff] %v7564
          %8944 = vst [vmem:[%s8833 + $0x368] sm:$0xff] %v7642
          %8945 = vst [vmem:[%s8833 + $0x370] sm:$0xff] %v7720
          %8946 = vst [vmem:[%s8833 + $0x378] sm:$0xff] %v7798
          %8947 = vst [vmem:[%s8833 + $0x380] sm:$0xff] %v7876
          %8948 = vst [vmem:[%s8833 + $0x388] sm:$0xff] %v7954
          %8949 = vst [vmem:[%s8833 + $0x390] sm:$0xff] %v8032
          %8950 = vst [vmem:[%s8833 + $0x398] sm:$0xff] %v8110
          %8951 = vst [vmem:[%s8833 + $0x3a0] sm:$0xff] %v8188
          %8952 = vst [vmem:[%s8833 + $0x3a8] sm:$0xff] %v8266
          %8953 = vst [vmem:[%s8833 + $0x3b0] sm:$0xff] %v8344
          %8954 = vst [vmem:[%s8833 + $0x3b8] sm:$0xff] %v8422
          %8955 = vst [vmem:[%s8833 + $0x3c0] sm:$0xff] %v8500
          %8956 = vst [vmem:[%s8833 + $0x3c8] sm:$0xff] %v8578
          %8957 = vst [vmem:[%s8833 + $0x3d0] sm:$0xff] %v8656
          %8958 = vst [vmem:[%s8833 + $0x3d8] sm:$0xff] %v8734
          %8959 = vst.msk [vmem:[%s8833 + $0x3e0] sm:$0xff] %vm8858, %v8812
          %8960 = vst [vmem:[%s8833 + $0x3e8] sm:$0xff] %v6942
          %8961 = vst [vmem:[%s8833 + $0x3f0] sm:$0xff] %v7020
          %8962 = vst [vmem:[%s8833 + $0x3f8] sm:$0xff] %v7098
          %8963 = vst [vmem:[%s8833 + $0x400] sm:$0xff] %v7176
          %8964 = vst [vmem:[%s8833 + $0x408] sm:$0xff] %v7254
          %8965 = vst [vmem:[%s8833 + $0x410] sm:$0xff] %v7332
          %8966 = vst [vmem:[%s8833 + $0x418] sm:$0xff] %v7410
          %8967 = vst [vmem:[%s8833 + $0x420] sm:$0xff] %v7488
          %8968 = vst [vmem:[%s8833 + $0x428] sm:$0xff] %v7566
          %8969 = vst [vmem:[%s8833 + $0x430] sm:$0xff] %v7644
          %8970 = vst [vmem:[%s8833 + $0x438] sm:$0xff] %v7722
          %8971 = vst [vmem:[%s8833 + $0x440] sm:$0xff] %v7800
          %8972 = vst [vmem:[%s8833 + $0x448] sm:$0xff] %v7878
          %8973 = vst [vmem:[%s8833 + $0x450] sm:$0xff] %v7956
          %8974 = vst [vmem:[%s8833 + $0x458] sm:$0xff] %v8034
          %8975 = vst [vmem:[%s8833 + $0x460] sm:$0xff] %v8112
          %8976 = vst [vmem:[%s8833 + $0x468] sm:$0xff] %v8190
          %8977 = vst [vmem:[%s8833 + $0x470] sm:$0xff] %v8268
          %8978 = vst [vmem:[%s8833 + $0x478] sm:$0xff] %v8346
          %8979 = vst [vmem:[%s8833 + $0x480] sm:$0xff] %v8424
          %8980 = vst [vmem:[%s8833 + $0x488] sm:$0xff] %v8502
          %8981 = vst [vmem:[%s8833 + $0x490] sm:$0xff] %v8580
          %8982 = vst [vmem:[%s8833 + $0x498] sm:$0xff] %v8658
          %8983 = vst [vmem:[%s8833 + $0x4a0] sm:$0xff] %v8736
          %8984 = vst.msk [vmem:[%s8833 + $0x4a8] sm:$0xff] %vm8858, %v8814
          %8985 = vst [vmem:[%s8833 + $0x4b0] sm:$0xff] %v6945
          %8986 = vst [vmem:[%s8833 + $0x4b8] sm:$0xff] %v7023
          %8987 = vst [vmem:[%s8833 + $0x4c0] sm:$0xff] %v7101
          %8988 = vst [vmem:[%s8833 + $0x4c8] sm:$0xff] %v7179
          %8989 = vst [vmem:[%s8833 + $0x4d0] sm:$0xff] %v7257
          %8990 = vst [vmem:[%s8833 + $0x4d8] sm:$0xff] %v7335
          %8991 = vst [vmem:[%s8833 + $0x4e0] sm:$0xff] %v7413
          %8992 = vst [vmem:[%s8833 + $0x4e8] sm:$0xff] %v7491
          %8993 = vst [vmem:[%s8833 + $0x4f0] sm:$0xff] %v7569
          %8994 = vst [vmem:[%s8833 + $0x4f8] sm:$0xff] %v7647
          %8995 = vst [vmem:[%s8833 + $0x500] sm:$0xff] %v7725
          %8996 = vst [vmem:[%s8833 + $0x508] sm:$0xff] %v7803
          %8997 = vst [vmem:[%s8833 + $0x510] sm:$0xff] %v7881
          %8998 = vst [vmem:[%s8833 + $0x518] sm:$0xff] %v7959
          %8999 = vst [vmem:[%s8833 + $0x520] sm:$0xff] %v8037
          %9000 = vst [vmem:[%s8833 + $0x528] sm:$0xff] %v8115
          %9001 = vst [vmem:[%s8833 + $0x530] sm:$0xff] %v8193
          %9002 = vst [vmem:[%s8833 + $0x538] sm:$0xff] %v8271
          %9003 = vst [vmem:[%s8833 + $0x540] sm:$0xff] %v8349
          %9004 = vst [vmem:[%s8833 + $0x548] sm:$0xff] %v8427
          %9005 = vst [vmem:[%s8833 + $0x550] sm:$0xff] %v8505
          %9006 = vst [vmem:[%s8833 + $0x558] sm:$0xff] %v8583
          %9007 = vst [vmem:[%s8833 + $0x560] sm:$0xff] %v8661
          %9008 = vst [vmem:[%s8833 + $0x568] sm:$0xff] %v8739
          %9009 = vst.msk [vmem:[%s8833 + $0x570] sm:$0xff] %vm8858, %v8817
          %9010 = vst [vmem:[%s8833 + $0x578] sm:$0xff] %v6947
          %9011 = vst [vmem:[%s8833 + $0x580] sm:$0xff] %v7025
          %9012 = vst [vmem:[%s8833 + $0x588] sm:$0xff] %v7103
          %9013 = vst [vmem:[%s8833 + $0x590] sm:$0xff] %v7181
          %9014 = vst [vmem:[%s8833 + $0x598] sm:$0xff] %v7259
          %9015 = vst [vmem:[%s8833 + $0x5a0] sm:$0xff] %v7337
          %9016 = vst [vmem:[%s8833 + $0x5a8] sm:$0xff] %v7415
          %9017 = vst [vmem:[%s8833 + $0x5b0] sm:$0xff] %v7493
          %9018 = vst [vmem:[%s8833 + $0x5b8] sm:$0xff] %v7571
          %9019 = vst [vmem:[%s8833 + $0x5c0] sm:$0xff] %v7649
          %9020 = vst [vmem:[%s8833 + $0x5c8] sm:$0xff] %v7727
          %9021 = vst [vmem:[%s8833 + $0x5d0] sm:$0xff] %v7805
          %9022 = vst [vmem:[%s8833 + $0x5d8] sm:$0xff] %v7883
          %9023 = vst [vmem:[%s8833 + $0x5e0] sm:$0xff] %v7961
          %9024 = vst [vmem:[%s8833 + $0x5e8] sm:$0xff] %v8039
          %9025 = vst [vmem:[%s8833 + $0x5f0] sm:$0xff] %v8117
          %9026 = vst [vmem:[%s8833 + $0x5f8] sm:$0xff] %v8195
          %9027 = vst [vmem:[%s8833 + $0x600] sm:$0xff] %v8273
          %9028 = vst [vmem:[%s8833 + $0x608] sm:$0xff] %v8351
          %9029 = vst [vmem:[%s8833 + $0x610] sm:$0xff] %v8429
          %9030 = vst [vmem:[%s8833 + $0x618] sm:$0xff] %v8507
          %9031 = vst [vmem:[%s8833 + $0x620] sm:$0xff] %v8585
          %9032 = vst [vmem:[%s8833 + $0x628] sm:$0xff] %v8663
          %9033 = vst [vmem:[%s8833 + $0x630] sm:$0xff] %v8741
          %9034 = vst.msk [vmem:[%s8833 + $0x638] sm:$0xff] %vm8858, %v8819
          %9035 = vst [vmem:[%s8833 + $0x640] sm:$0xff] %v6950
          %9036 = vst [vmem:[%s8833 + $0x648] sm:$0xff] %v7028
          %9037 = vst [vmem:[%s8833 + $0x650] sm:$0xff] %v7106
          %9038 = vst [vmem:[%s8833 + $0x658] sm:$0xff] %v7184
          %9039 = vst [vmem:[%s8833 + $0x660] sm:$0xff] %v7262
          %9040 = vst [vmem:[%s8833 + $0x668] sm:$0xff] %v7340
          %9041 = vst [vmem:[%s8833 + $0x670] sm:$0xff] %v7418
          %9042 = vst [vmem:[%s8833 + $0x678] sm:$0xff] %v7496
          %9043 = vst [vmem:[%s8833 + $0x680] sm:$0xff] %v7574
          %9044 = vst [vmem:[%s8833 + $0x688] sm:$0xff] %v7652
          %9045 = vst [vmem:[%s8833 + $0x690] sm:$0xff] %v7730
          %9046 = vst [vmem:[%s8833 + $0x698] sm:$0xff] %v7808
          %9047 = vst [vmem:[%s8833 + $0x6a0] sm:$0xff] %v7886
          %9048 = vst [vmem:[%s8833 + $0x6a8] sm:$0xff] %v7964
          %9049 = vst [vmem:[%s8833 + $0x6b0] sm:$0xff] %v8042
          %9050 = vst [vmem:[%s8833 + $0x6b8] sm:$0xff] %v8120
          %9051 = vst [vmem:[%s8833 + $0x6c0] sm:$0xff] %v8198
          %9052 = vst [vmem:[%s8833 + $0x6c8] sm:$0xff] %v8276
          %9053 = vst [vmem:[%s8833 + $0x6d0] sm:$0xff] %v8354
          %9054 = vst [vmem:[%s8833 + $0x6d8] sm:$0xff] %v8432
          %9055 = vst [vmem:[%s8833 + $0x6e0] sm:$0xff] %v8510
          %9056 = vst [vmem:[%s8833 + $0x6e8] sm:$0xff] %v8588
          %9057 = vst [vmem:[%s8833 + $0x6f0] sm:$0xff] %v8666
          %9058 = vst [vmem:[%s8833 + $0x6f8] sm:$0xff] %v8744
          %9059 = vst.msk [vmem:[%s8833 + $0x700] sm:$0xff] %vm8858, %v8822
          %9060 = vst [vmem:[%s8833 + $0x708] sm:$0xff] %v6952
          %9061 = vst [vmem:[%s8833 + $0x710] sm:$0xff] %v7030
          %9062 = vst [vmem:[%s8833 + $0x718] sm:$0xff] %v7108
          %9063 = vst [vmem:[%s8833 + $0x720] sm:$0xff] %v7186
          %9064 = vst [vmem:[%s8833 + $0x728] sm:$0xff] %v7264
          %9065 = vst [vmem:[%s8833 + $0x730] sm:$0xff] %v7342
          %9066 = vst [vmem:[%s8833 + $0x738] sm:$0xff] %v7420
          %9067 = vst [vmem:[%s8833 + $0x740] sm:$0xff] %v7498
          %9068 = vst [vmem:[%s8833 + $0x748] sm:$0xff] %v7576
          %9069 = vst [vmem:[%s8833 + $0x750] sm:$0xff] %v7654
          %9070 = vst [vmem:[%s8833 + $0x758] sm:$0xff] %v7732
          %9071 = vst [vmem:[%s8833 + $0x760] sm:$0xff] %v7810
          %9072 = vst [vmem:[%s8833 + $0x768] sm:$0xff] %v7888
          %9073 = vst [vmem:[%s8833 + $0x770] sm:$0xff] %v7966
          %9074 = vst [vmem:[%s8833 + $0x778] sm:$0xff] %v8044
          %9075 = vst [vmem:[%s8833 + $0x780] sm:$0xff] %v8122
          %9076 = vst [vmem:[%s8833 + $0x788] sm:$0xff] %v8200
          %9077 = vst [vmem:[%s8833 + $0x790] sm:$0xff] %v8278
          %9078 = vst [vmem:[%s8833 + $0x798] sm:$0xff] %v8356
          %9079 = vst [vmem:[%s8833 + $0x7a0] sm:$0xff] %v8434
          %9080 = vst [vmem:[%s8833 + $0x7a8] sm:$0xff] %v8512
          %9081 = vst [vmem:[%s8833 + $0x7b0] sm:$0xff] %v8590
          %9082 = vst [vmem:[%s8833 + $0x7b8] sm:$0xff] %v8668
          %9083 = vst [vmem:[%s8833 + $0x7c0] sm:$0xff] %v8746
          %9084 = vst.msk [vmem:[%s8833 + $0x7c8] sm:$0xff] %vm8858, %v8824
          %9085 = vst [vmem:[%s8833 + $0x7d0] sm:$0xff] %v6955
          %9086 = vst [vmem:[%s8833 + $0x7d8] sm:$0xff] %v7033
          %9087 = vst [vmem:[%s8833 + $0x7e0] sm:$0xff] %v7111
          %9088 = vst [vmem:[%s8833 + $0x7e8] sm:$0xff] %v7189
          %9089 = vst [vmem:[%s8833 + $0x7f0] sm:$0xff] %v7267
          %9090 = vst [vmem:[%s8833 + $0x7f8] sm:$0xff] %v7345
          %9091 = vst [vmem:[%s8833 + $0x800] sm:$0xff] %v7423
          %9092 = vst [vmem:[%s8833 + $0x808] sm:$0xff] %v7501
          %9093 = vst [vmem:[%s8833 + $0x810] sm:$0xff] %v7579
          %9094 = vst [vmem:[%s8833 + $0x818] sm:$0xff] %v7657
          %9095 = vst [vmem:[%s8833 + $0x820] sm:$0xff] %v7735
          %9096 = vst [vmem:[%s8833 + $0x828] sm:$0xff] %v7813
          %9097 = vst [vmem:[%s8833 + $0x830] sm:$0xff] %v7891
          %9098 = vst [vmem:[%s8833 + $0x838] sm:$0xff] %v7969
          %9099 = vst [vmem:[%s8833 + $0x840] sm:$0xff] %v8047
          %9100 = vst [vmem:[%s8833 + $0x848] sm:$0xff] %v8125
          %9101 = vst [vmem:[%s8833 + $0x850] sm:$0xff] %v8203
          %9102 = vst [vmem:[%s8833 + $0x858] sm:$0xff] %v8281
          %9103 = vst [vmem:[%s8833 + $0x860] sm:$0xff] %v8359
          %9104 = vst [vmem:[%s8833 + $0x868] sm:$0xff] %v8437
          %9105 = vst [vmem:[%s8833 + $0x870] sm:$0xff] %v8515
          %9106 = vst [vmem:[%s8833 + $0x878] sm:$0xff] %v8593
          %9107 = vst [vmem:[%s8833 + $0x880] sm:$0xff] %v8671
          %9108 = vst [vmem:[%s8833 + $0x888] sm:$0xff] %v8749
          %9109 = vst.msk [vmem:[%s8833 + $0x890] sm:$0xff] %vm8858, %v8827
          %9110 = vst [vmem:[%s8833 + $0x898] sm:$0xff] %v6957
          %9111 = vst [vmem:[%s8833 + $0x8a0] sm:$0xff] %v7035
          %9112 = vst [vmem:[%s8833 + $0x8a8] sm:$0xff] %v7113
          %9113 = vst [vmem:[%s8833 + $0x8b0] sm:$0xff] %v7191
          %9114 = vst [vmem:[%s8833 + $0x8b8] sm:$0xff] %v7269
          %9115 = vst [vmem:[%s8833 + $0x8c0] sm:$0xff] %v7347
          %9116 = vst [vmem:[%s8833 + $0x8c8] sm:$0xff] %v7425
          %9117 = vst [vmem:[%s8833 + $0x8d0] sm:$0xff] %v7503
          %9118 = vst [vmem:[%s8833 + $0x8d8] sm:$0xff] %v7581
          %9119 = vst [vmem:[%s8833 + $0x8e0] sm:$0xff] %v7659
          %9120 = vst [vmem:[%s8833 + $0x8e8] sm:$0xff] %v7737
          %9121 = vst [vmem:[%s8833 + $0x8f0] sm:$0xff] %v7815
          %9122 = vst [vmem:[%s8833 + $0x8f8] sm:$0xff] %v7893
          %9123 = vst [vmem:[%s8833 + $0x900] sm:$0xff] %v7971
          %9124 = vst [vmem:[%s8833 + $0x908] sm:$0xff] %v8049
          %9125 = vst [vmem:[%s8833 + $0x910] sm:$0xff] %v8127
          %9126 = vst [vmem:[%s8833 + $0x918] sm:$0xff] %v8205
          %9127 = vst [vmem:[%s8833 + $0x920] sm:$0xff] %v8283
          %9128 = vst [vmem:[%s8833 + $0x928] sm:$0xff] %v8361
          %9129 = vst [vmem:[%s8833 + $0x930] sm:$0xff] %v8439
          %9130 = vst [vmem:[%s8833 + $0x938] sm:$0xff] %v8517
          %9131 = vst [vmem:[%s8833 + $0x940] sm:$0xff] %v8595
          %9132 = vst [vmem:[%s8833 + $0x948] sm:$0xff] %v8673
          %9133 = vst [vmem:[%s8833 + $0x950] sm:$0xff] %v8751
          %9134 = vst.msk [vmem:[%s8833 + $0x958] sm:$0xff] %vm8858, %v8829
        $region37: #{kernel_generated_1_forward.1} parent=31 // loop_footer
          %s310 = sadd.s32 1, %s306
        $region38: #{kernel_generated_1_forward.1} parent=31 // loop_footer_branch
          %305 = sbr.rel target = $region34
        $region39: #{kernel_generated_1_forward.1} parent=31 // loop_exit
          _
        %s9135 = sand.u32 %s93, 1
        %s9136 = scalar_lea.sflag [#allocation4], %s9135
        %s9137 = sand.u32 %s93, 1
        %s9138 = smul.addr %s9137, 19200
        %s9139 = scalar_lea.vmem [#allocation3], %s9138
        // Predicated region
        $region40: #{kernel_generated_1_forward.1} parent=31 // pred_check
          %p9140 = pneg %p103
        $region41: #{kernel_generated_1_forward.1} parent=31 // pred_check_branch
          %9142 = sbr.rel (%p9140) target = $region43
        $region42: #{kernel_generated_1_forward.1} parent=31 // pred_region
          %s9143 = smul.u32 8, %s17
          %9145 = vsyncadd %s9136, 0
          %s9146 = smul.addr %s9143, 300
          %s9147 = smul.addr %s9146, 8
          %s9148 = scalar_lea.hbm %s3, %s9147
          %s9149 = sshll.u32 %s9139, 4
          %s9150 = int_to_ptr.vmem [resolvable:$true] %s9149
          %s9151 = sshll.u32 %s9148, 4
          %s9152 = int_to_ptr.hbm [resolvable:$true] %s9151
          %9157 = dma.vmem_to_hbm [thread:$0]  %s9150, 307200, %s9152, %s9136, 3200, 3200, 200
        $region43: #{kernel_generated_1_forward.1} parent=31 // pred_fallthru
          _
      $region32: #{kernel_generated_1_forward.1} parent=5 // pred_fallthru
        _
      %p9158 = scmp.le.s32.totalorder 2, %s12
      // Predicated region
      $region44: #{kernel_generated_1_forward.1} parent=5 // pred_check
        %p9159 = pneg %p9158
      $region45: #{kernel_generated_1_forward.1} parent=5 // pred_check_branch
        %9161 = sbr.rel (%p9159) target = $region47
      $region46: #{kernel_generated_1_forward.1} parent=5 // pred_region
        %s9162 = ssub.s32 %s12, 2
        // Predicated region
        $region48: #{kernel_generated_1_forward.1} parent=46 // pred_check
          %p9163 = pneg %p109
        $region49: #{kernel_generated_1_forward.1} parent=46 // pred_check_branch
          %9165 = sbr.rel (%p9163) target = $region51
        $region50: #{kernel_generated_1_forward.1} parent=46 // pred_region
          %s9166 = sand.u32 %s94, 1
          %s9167 = scalar_lea.sflag [#allocation4], %s9166
          %s9168 = sand.u32 %s94, 1
          %s9169 = smul.addr %s9168, 19200
          %s9170 = scalar_lea.vmem [#allocation3], %s9169
          %9172 = dma.done %s9167, 307200
        $region51: #{kernel_generated_1_forward.1} parent=46 // pred_fallthru
          _
      $region47: #{kernel_generated_1_forward.1} parent=5 // pred_fallthru
        _
    $region6: #{kernel_generated_1_forward.1} parent=1 // loop_footer
      %s16 = sadd.s32 1, %s12
    $region7: #{kernel_generated_1_forward.1} parent=1 // loop_footer_branch
      %11 = sbr.rel target = $region3
    $region8: #{kernel_generated_1_forward.1} parent=1 // loop_exit
      _
    %9173 = vsyncpa [#allocation4], 1
    %s9174 = scalar_lea.sflag [#allocation4], 1
    %9175 = vsyncpa %s9174, 1

</llo_original>
